<compile_context>
chip_gen: v6e
topology: v6e:2x2x1
jax: 0.10.0
libtpu: 0.0.40
codegen_flags: <defaults>
</compile_context>

<pallas_src>
import functools

import jax
import jax.numpy as jnp
from jax.experimental import pallas as pl
from jax.experimental.pallas import tpu as pltpu


def gat_fused_kernel(x_ref, wqkv_ref, bqkv_ref, wout_ref, bout_ref,
                     g1_ref, be1_ref, w1_ref, b1_ref, w2_ref, b2_ref,
                     g2_ref, be2_ref, o_ref, h_ref, *, num_heads):
    """One grid step == one MultiHeadAttentionLayer; h_ref carries activations."""
    B, N, D = x_ref.shape
    H = num_heads
    hd = D // H
    eps = 1e-5
    layer = pl.program_id(0)
    bf16 = jnp.bfloat16

    # Seed the resident activation carry with the input embeddings at layer 0.
    @pl.when(layer == 0)
    def _():
        h_ref[...] = x_ref[...].reshape(B * N, D).astype(jnp.float32)

    x2 = h_ref[...]                                   # [B*N, D] float32 carry
    wdt = wqkv_ref.dtype                              # bfloat16 matmul weights

    # ---------------- Multi-head self-attention ----------------
    # 1/sqrt(hd) is already folded into the Q slice of wqkv / bqkv.
    qkv = jnp.dot(x2.astype(wdt), wqkv_ref[...],
                  preferred_element_type=jnp.float32) + bqkv_ref[...]   # [B*N, 3D]

    def split_heads(t):                               # [B*N, H*hd] -> [H*B, N, hd]
        t = t.reshape(B * N, H, hd)                   # head block off the lane axis
        t = pltpu.einshape("mhd->hmd", t)             # head -> leading (batch) axis
        return t.reshape(H, B, N, hd).reshape(H * B, N, hd)

    def merge_heads(t):                               # [H*B, N, hd] -> [B*N, H*hd]
        t = t.reshape(H, B, N, hd).reshape(H, B * N, hd)
        t = pltpu.einshape("hmd->mhd", t)             # head back onto the lane axis
        return t.reshape(B * N, D)

    # bf16 MXU operands; accumulation stays f32 via preferred_element_type.
    q = split_heads(qkv[:, 0 * D:1 * D]).astype(bf16)
    k = split_heads(qkv[:, 1 * D:2 * D]).astype(bf16)
    v = split_heads(qkv[:, 2 * D:3 * D]).astype(bf16)

    s = jnp.einsum('bqd,bkd->bqk', q, k,
                   preferred_element_type=jnp.float32)                  # [H*B, N, N]
    s = s - jnp.max(s, axis=-1, keepdims=True)
    p = jnp.exp(s)
    p = p * pl.reciprocal(jnp.sum(p, axis=-1, keepdims=True), approx=True)
    ctx = jnp.einsum('bqk,bkd->bqd', p.astype(bf16), v,
                     preferred_element_type=jnp.float32)                # [H*B, N, hd]

    attn = merge_heads(ctx)                                             # [B*N, D]
    mha = jnp.dot(attn.astype(wdt), wout_ref[...],
                  preferred_element_type=jnp.float32) + bout_ref[...]

    # -------- Skip connection + BatchNorm1d (train-mode stats over all B*N rows) --------
    inv_rows = jnp.float32(1.0 / (B * N))
    h = x2 + mha
    mean1 = jnp.sum(h, axis=0, keepdims=True) * inv_rows
    hc = h - mean1
    var1 = jnp.sum(hc * hc, axis=0, keepdims=True) * inv_rows           # two-pass, biased
    h = hc * jax.lax.rsqrt(var1 + eps) * g1_ref[...] + be1_ref[...]

    # ---------------- Skip connection + feed-forward ----------------
    f = jnp.dot(h.astype(wdt), w1_ref[...],
                preferred_element_type=jnp.float32) + b1_ref[...]
    f = jnp.maximum(f, 0.0)
    f = jnp.dot(f.astype(wdt), w2_ref[...],
                preferred_element_type=jnp.float32) + b2_ref[...]
    h2 = h + f

    # ---------------- BatchNorm1d ----------------
    mean2 = jnp.sum(h2, axis=0, keepdims=True) * inv_rows
    h2c = h2 - mean2
    var2 = jnp.sum(h2c * h2c, axis=0, keepdims=True) * inv_rows
    out = h2c * jax.lax.rsqrt(var2 + eps) * g2_ref[...] + be2_ref[...]

    # Carry for the next layer; output store only on the final layer (dead work otherwise).
    h_ref[...] = out

    @pl.when(layer == pl.num_programs(0) - 1)
    def _():
        o_ref[...] = out.reshape(B, N, D).astype(o_ref.dtype)


def graph_attention_network(x, stacked_params, num_heads):
    """Full GraphAttentionNetwork forward: ONE pallas_call, grid over layers."""
    B, N, D = x.shape
    L = stacked_params[0].shape[0]

    in_specs = [pl.BlockSpec((B, N, D), lambda l: (0, 0, 0))]           # x (resident)
    for p in stacked_params:
        # Leading layer axis squeezed out; Pallas double-buffers layer l+1's weights.
        in_specs.append(pl.BlockSpec((None,) + tuple(p.shape[1:]),
                                     lambda l: (l, 0, 0)))
    out_spec = pl.BlockSpec((B, N, D), lambda l: (0, 0, 0))

    return pl.pallas_call(
        functools.partial(gat_fused_kernel, num_heads=num_heads),
        out_shape=jax.ShapeDtypeStruct(x.shape, x.dtype),
        grid_spec=pltpu.PrefetchScalarGridSpec(
            num_scalar_prefetch=0,
            grid=(L,),
            in_specs=in_specs,
            out_specs=out_spec,
            scratch_shapes=[pltpu.VMEM((B * N, D), jnp.float32)]),
        compiler_params=pltpu.CompilerParams(
            dimension_semantics=("arbitrary",),      # sequential carry across layers
            vmem_limit_bytes=32 * 1024 * 1024),      # explicit budget; fits v7x's 64 MiB
    )(x, *stacked_params)


def init_layer_params(key, embed_dim, ff_hidden):
    """Deterministic parameters matching the PyTorch module's shapes/init style."""
    ks = jax.random.split(key, 4)

    def linear(k, fan_in, fan_out):
        kw, kb = jax.random.split(k)
        bound = 1.0 / (fan_in ** 0.5)
        w = jax.random.uniform(kw, (fan_in, fan_out), jnp.float32, -bound, bound)
        b = jax.random.uniform(kb, (1, fan_out), jnp.float32, -bound, bound)
        return w, b

    wqkv, bqkv = linear(ks[0], embed_dim, 3 * embed_dim)   # MHA Wqkv
    wout, bout = linear(ks[1], embed_dim, embed_dim)       # MHA out_proj
    w1, b1 = linear(ks[2], embed_dim, ff_hidden)           # FFN layer 1
    w2, b2 = linear(ks[3], ff_hidden, embed_dim)           # FFN layer 2
    g1 = jnp.ones((1, embed_dim), jnp.float32)             # BatchNorm1 affine
    be1 = jnp.zeros((1, embed_dim), jnp.float32)
    g2 = jnp.ones((1, embed_dim), jnp.float32)             # BatchNorm2 affine
    be2 = jnp.zeros((1, embed_dim), jnp.float32)
    return (wqkv, bqkv, wout, bout, g1, be1, w1, b1, w2, b2, g2, be2)


def pack_params(per_layer, embed_dim, num_heads, weight_dtype=jnp.bfloat16):
    """Stack per-layer params along a leading layer axis, fold the attention scale
    into the Q projection, and store the big matmul weights in bf16."""
    D = embed_dim
    hd = D // num_heads
    scale = jnp.float32(1.0 / (hd ** 0.5))
    stacked = [jnp.stack(ps, axis=0) for ps in zip(*per_layer)]
    wqkv, bqkv, wout, bout, g1, be1, w1, b1, w2, b2, g2, be2 = stacked
    # Fold 1/sqrt(hd) into Q weights AND Q bias so scores need no extra multiply.
    wqkv = wqkv.at[:, :, :D].multiply(scale)
    bqkv = bqkv.at[:, :, :D].multiply(scale)
    # bf16 only for MXU weight operands; biases / BN params stay float32.
    wqkv = wqkv.astype(weight_dtype)
    wout = wout.astype(weight_dtype)
    w1 = w1.astype(weight_dtype)
    w2 = w2.astype(weight_dtype)
    return (wqkv, bqkv, wout, bout, g1, be1, w1, b1, w2, b2, g2, be2)


if __name__ == "__main__":
    # Small, module-consistent shapes.
    batch, graph_size, embed_dim = 2, 16, 128
    num_heads, num_layers, feed_forward_hidden = 8, 2, 256

    key = jax.random.PRNGKey(0)
    kx, kp = jax.random.split(key)
    x = jax.random.normal(kx, (batch, graph_size, embed_dim), jnp.float32)

    layer_keys = jax.random.split(kp, num_layers)
    per_layer = [init_layer_params(k, embed_dim, feed_forward_hidden)
                 for k in layer_keys]
    params = pack_params(per_layer, embed_dim, num_heads)

    fwd = jax.jit(functools.partial(graph_attention_network, num_heads=num_heads))
    out = fwd(x, params)
    jax.block_until_ready(out)

    assert out.shape == (batch, graph_size, embed_dim)
    assert jnp.all(jnp.isfinite(out))
    print("KERNEL_OK")
</pallas_src>

<mosaic_0001>
module attributes {stable_mosaic.version = 11 : i64} {
  func.func @gat_fused_kernel(%arg0: i32, %arg1: memref<2x16x128xf32, #tpu.memory_space<vmem>>, %arg2: memref<1x128x384xbf16, #tpu.memory_space<vmem>>, %arg3: memref<1x1x384xf32, #tpu.memory_space<vmem>>, %arg4: memref<1x128x128xbf16, #tpu.memory_space<vmem>>, %arg5: memref<1x1x128xf32, #tpu.memory_space<vmem>>, %arg6: memref<1x1x128xf32, #tpu.memory_space<vmem>>, %arg7: memref<1x1x128xf32, #tpu.memory_space<vmem>>, %arg8: memref<1x128x256xbf16, #tpu.memory_space<vmem>>, %arg9: memref<1x1x256xf32, #tpu.memory_space<vmem>>, %arg10: memref<1x256x128xbf16, #tpu.memory_space<vmem>>, %arg11: memref<1x1x128xf32, #tpu.memory_space<vmem>>, %arg12: memref<1x1x128xf32, #tpu.memory_space<vmem>>, %arg13: memref<1x1x128xf32, #tpu.memory_space<vmem>>, %arg14: memref<2x16x128xf32, #tpu.memory_space<vmem>>, %arg15: memref<32x128xf32, #tpu.memory_space<vmem>>) attributes {dimension_semantics = [#tpu.dimension_semantics<arbitrary>], iteration_bounds = array<i64: 2>, scalar_prefetch = 0 : i64, scratch_operands = 1 : i64, tpu.core_type = #tpu.core_type<tc>, window_params = [{pipeline_mode = #tpu.pipeline_mode<synchronous>, transform_indices = @transform_0, window_bounds = array<i64: 2, 16, 128>}, {transform_indices = @transform_1, window_bounds = array<i64: 1, 128, 384>}, {transform_indices = @transform_2, window_bounds = array<i64: 1, 1, 384>}, {transform_indices = @transform_3, window_bounds = array<i64: 1, 128, 128>}, {transform_indices = @transform_4, window_bounds = array<i64: 1, 1, 128>}, {transform_indices = @transform_5, window_bounds = array<i64: 1, 1, 128>}, {transform_indices = @transform_6, window_bounds = array<i64: 1, 1, 128>}, {transform_indices = @transform_7, window_bounds = array<i64: 1, 128, 256>}, {transform_indices = @transform_8, window_bounds = array<i64: 1, 1, 256>}, {transform_indices = @transform_9, window_bounds = array<i64: 1, 256, 128>}, {transform_indices = @transform_10, window_bounds = array<i64: 1, 1, 128>}, {transform_indices = @transform_11, window_bounds = array<i64: 1, 1, 128>}, {transform_indices = @transform_12, window_bounds = array<i64: 1, 1, 128>}, {pipeline_mode = #tpu.pipeline_mode<synchronous>, transform_indices = @transform_13, window_bounds = array<i64: 2, 16, 128>}]} {
    %c0_i32 = arith.constant 0 : i32
    %0 = arith.cmpi eq, %arg0, %c0_i32 : i32
    %1 = arith.extui %0 : i1 to i32
    %c0_i32_0 = arith.constant 0 : i32
    %2 = arith.cmpi ne, %1, %c0_i32_0 : i32
    scf.if %2 {
      %c0_59 = arith.constant 0 : index
      %c0_60 = arith.constant 0 : index
      %c0_61 = arith.constant 0 : index
      %127 = vector.load %arg1[%c0_59, %c0_60, %c0_61] : memref<2x16x128xf32, #tpu.memory_space<vmem>>, vector<2x16x128xf32>
      %128 = vector.shape_cast %127 : vector<2x16x128xf32> to vector<32x128xf32>
      %c0_62 = arith.constant 0 : index
      %c0_63 = arith.constant 0 : index
      %129 = vector.load %arg15[%c0_62, %c0_63] : memref<32x128xf32, #tpu.memory_space<vmem>>, vector<32x128xf32>
      tpu.vector_store %arg15[%c0_62, %c0_63], %128 {strides = array<i32>} : memref<32x128xf32, #tpu.memory_space<vmem>>, vector<32x128xf32>,
    } else {
    }
    %c0 = arith.constant 0 : index
    %c0_1 = arith.constant 0 : index
    %3 = vector.load %arg15[%c0, %c0_1] : memref<32x128xf32, #tpu.memory_space<vmem>>, vector<32x128xf32>
    %4 = arith.truncf %3 : vector<32x128xf32> to vector<32x128xbf16>
    %c0_2 = arith.constant 0 : index
    %c0_3 = arith.constant 0 : index
    %c0_4 = arith.constant 0 : index
    %5 = vector.load %arg2[%c0_2, %c0_3, %c0_4] : memref<1x128x384xbf16, #tpu.memory_space<vmem>>, vector<1x128x384xbf16>
    %6 = vector.shape_cast %5 : vector<1x128x384xbf16> to vector<128x384xbf16>
    %cst = arith.constant dense<0.000000e+00> : vector<32x384xf32>
    %7 = tpu.matmul %4, %6, %cst {dimension_numbers = #tpu.dot_dimension_numbers<[1], [0], [0], [1], [0, 0, 1, 1], [], []>} : vector<32x128xbf16>, vector<128x384xbf16>, vector<32x384xf32> -> vector<32x384xf32>
    %c0_5 = arith.constant 0 : index
    %c0_6 = arith.constant 0 : index
    %c0_7 = arith.constant 0 : index
    %8 = vector.load %arg3[%c0_5, %c0_6, %c0_7] : memref<1x1x384xf32, #tpu.memory_space<vmem>>, vector<1x1x384xf32>
    %9 = vector.shape_cast %8 : vector<1x1x384xf32> to vector<1x384xf32>
    %10 = vector.broadcast %9 : vector<1x384xf32> to vector<32x384xf32>
    %11 = arith.addf %7, %10 : vector<32x384xf32>
    %12 = vector.extract_strided_slice %11 {offsets = [0, 0], sizes = [32, 128], strides = [1, 1]} : vector<32x384xf32> to vector<32x128xf32>
    %13 = vector.shape_cast %12 : vector<32x128xf32> to vector<32x8x16xf32>
    %14 = tpu.transpose %13, [1, 0, 2] : vector<32x8x16xf32> -> vector<8x32x16xf32>
    %15 = vector.shape_cast %14 : vector<8x32x16xf32> to vector<8x2x16x16xf32>
    %16 = vector.shape_cast %15 : vector<8x2x16x16xf32> to vector<16x16x16xf32>
    %17 = arith.truncf %16 : vector<16x16x16xf32> to vector<16x16x16xbf16>
    %18 = vector.extract_strided_slice %11 {offsets = [0, 128], sizes = [32, 128], strides = [1, 1]} : vector<32x384xf32> to vector<32x128xf32>
    %19 = vector.shape_cast %18 : vector<32x128xf32> to vector<32x8x16xf32>
    %20 = tpu.transpose %19, [1, 0, 2] : vector<32x8x16xf32> -> vector<8x32x16xf32>
    %21 = vector.shape_cast %20 : vector<8x32x16xf32> to vector<8x2x16x16xf32>
    %22 = vector.shape_cast %21 : vector<8x2x16x16xf32> to vector<16x16x16xf32>
    %23 = arith.truncf %22 : vector<16x16x16xf32> to vector<16x16x16xbf16>
    %24 = vector.extract_strided_slice %11 {offsets = [0, 256], sizes = [32, 128], strides = [1, 1]} : vector<32x384xf32> to vector<32x128xf32>
    %25 = vector.shape_cast %24 : vector<32x128xf32> to vector<32x8x16xf32>
    %26 = tpu.transpose %25, [1, 0, 2] : vector<32x8x16xf32> -> vector<8x32x16xf32>
    %27 = vector.shape_cast %26 : vector<8x32x16xf32> to vector<8x2x16x16xf32>
    %28 = vector.shape_cast %27 : vector<8x2x16x16xf32> to vector<16x16x16xf32>
    %29 = arith.truncf %28 : vector<16x16x16xf32> to vector<16x16x16xbf16>
    "tpu.trace_start"() <{level = 10 : i32, message = "bqd,bkd->bqk"}> : () -> ()
    %cst_8 = arith.constant dense<0.000000e+00> : vector<16x16x16xf32>
    %30 = tpu.matmul %17, %23, %cst_8 {dimension_numbers = #tpu.dot_dimension_numbers<[2], [2], [1], [1], [0, 0, 0, 1, 1, 1], [0], [0]>} : vector<16x16x16xbf16>, vector<16x16x16xbf16>, vector<16x16x16xf32> -> vector<16x16x16xf32>
    "tpu.trace_stop"() : () -> ()
    %cst_9 = arith.constant dense<0xFF800000> : vector<16x16xf32>
    %31 = vector.multi_reduction <maximumf>, %30, %cst_9 [2] : vector<16x16x16xf32> to vector<16x16xf32>
    %32 = vector.shape_cast %31 : vector<16x16xf32> to vector<16x16x1xf32>
    %33 = vector.broadcast %32 : vector<16x16x1xf32> to vector<16x16x16xf32>
    %34 = arith.subf %30, %33 : vector<16x16x16xf32>
    %35 = math.exp %34 : vector<16x16x16xf32>
    %cst_10 = arith.constant dense<0.000000e+00> : vector<16x16xf32>
    %36 = vector.multi_reduction <add>, %35, %cst_10 [2] : vector<16x16x16xf32> to vector<16x16xf32>
    %37 = vector.shape_cast %36 : vector<16x16xf32> to vector<16x16x1xf32>
    %38 = tpu.reciprocal %37 {approx = true} : vector<16x16x1xf32> -> vector<16x16x1xf32>
    %39 = vector.broadcast %38 : vector<16x16x1xf32> to vector<16x16x16xf32>
    %40 = arith.mulf %35, %39 : vector<16x16x16xf32>
    %41 = arith.truncf %40 : vector<16x16x16xf32> to vector<16x16x16xbf16>
    "tpu.trace_start"() <{level = 10 : i32, message = "bqk,bkd->bqd"}> : () -> ()
    %cst_11 = arith.constant dense<0.000000e+00> : vector<16x16x16xf32>
    %42 = tpu.matmul %41, %29, %cst_11 {dimension_numbers = #tpu.dot_dimension_numbers<[2], [1], [1], [2], [0, 0, 0, 1, 1, 2], [0], [0]>} : vector<16x16x16xbf16>, vector<16x16x16xbf16>, vector<16x16x16xf32> -> vector<16x16x16xf32>
    "tpu.trace_stop"() : () -> ()
    %43 = vector.shape_cast %42 : vector<16x16x16xf32> to vector<8x2x16x16xf32>
    %44 = vector.shape_cast %43 : vector<8x2x16x16xf32> to vector<8x32x16xf32>
    %45 = tpu.transpose %44, [1, 0, 2] : vector<8x32x16xf32> -> vector<32x8x16xf32>
    %46 = vector.shape_cast %45 : vector<32x8x16xf32> to vector<32x128xf32>
    %47 = arith.truncf %46 : vector<32x128xf32> to vector<32x128xbf16>
    %c0_12 = arith.constant 0 : index
    %c0_13 = arith.constant 0 : index
    %c0_14 = arith.constant 0 : index
    %48 = vector.load %arg4[%c0_12, %c0_13, %c0_14] : memref<1x128x128xbf16, #tpu.memory_space<vmem>>, vector<1x128x128xbf16>
    %49 = vector.shape_cast %48 : vector<1x128x128xbf16> to vector<128x128xbf16>
    %cst_15 = arith.constant dense<0.000000e+00> : vector<32x128xf32>
    %50 = tpu.matmul %47, %49, %cst_15 {dimension_numbers = #tpu.dot_dimension_numbers<[1], [0], [0], [1], [0, 0, 1, 1], [], []>} : vector<32x128xbf16>, vector<128x128xbf16>, vector<32x128xf32> -> vector<32x128xf32>
    %c0_16 = arith.constant 0 : index
    %c0_17 = arith.constant 0 : index
    %c0_18 = arith.constant 0 : index
    %51 = vector.load %arg5[%c0_16, %c0_17, %c0_18] : memref<1x1x128xf32, #tpu.memory_space<vmem>>, vector<1x1x128xf32>
    %52 = vector.shape_cast %51 : vector<1x1x128xf32> to vector<1x128xf32>
    %53 = vector.broadcast %52 : vector<1x128xf32> to vector<32x128xf32>
    %54 = arith.addf %50, %53 : vector<32x128xf32>
    %55 = arith.addf %3, %54 : vector<32x128xf32>
    %cst_19 = arith.constant dense<0.000000e+00> : vector<128xf32>
    %56 = vector.multi_reduction <add>, %55, %cst_19 [0] : vector<32x128xf32> to vector<128xf32>
    %57 = vector.shape_cast %56 : vector<128xf32> to vector<1x128xf32>
    %cst_20 = arith.constant 3.125000e-02 : f32
    %58 = vector.broadcast %cst_20 : f32 to vector<1x128xf32>
    %59 = arith.mulf %57, %58 : vector<1x128xf32>
    %60 = vector.broadcast %59 : vector<1x128xf32> to vector<32x128xf32>
    %61 = arith.subf %55, %60 : vector<32x128xf32>
    %62 = arith.mulf %61, %61 : vector<32x128xf32>
    %cst_21 = arith.constant dense<0.000000e+00> : vector<128xf32>
    %63 = vector.multi_reduction <add>, %62, %cst_21 [0] : vector<32x128xf32> to vector<128xf32>
    %64 = vector.shape_cast %63 : vector<128xf32> to vector<1x128xf32>
    %cst_22 = arith.constant 3.125000e-02 : f32
    %65 = vector.broadcast %cst_22 : f32 to vector<1x128xf32>
    %66 = arith.mulf %64, %65 : vector<1x128xf32>
    %cst_23 = arith.constant 9.99999974E-6 : f32
    %67 = vector.broadcast %cst_23 : f32 to vector<1x128xf32>
    %68 = arith.addf %66, %67 : vector<1x128xf32>
    %69 = math.rsqrt %68 : vector<1x128xf32>
    %70 = vector.broadcast %69 : vector<1x128xf32> to vector<32x128xf32>
    %71 = arith.mulf %61, %70 : vector<32x128xf32>
    %c0_24 = arith.constant 0 : index
    %c0_25 = arith.constant 0 : index
    %c0_26 = arith.constant 0 : index
    %72 = vector.load %arg6[%c0_24, %c0_25, %c0_26] : memref<1x1x128xf32, #tpu.memory_space<vmem>>, vector<1x1x128xf32>
    %73 = vector.shape_cast %72 : vector<1x1x128xf32> to vector<1x128xf32>
    %74 = vector.broadcast %73 : vector<1x128xf32> to vector<32x128xf32>
    %75 = arith.mulf %71, %74 : vector<32x128xf32>
    %c0_27 = arith.constant 0 : index
    %c0_28 = arith.constant 0 : index
    %c0_29 = arith.constant 0 : index
    %76 = vector.load %arg7[%c0_27, %c0_28, %c0_29] : memref<1x1x128xf32, #tpu.memory_space<vmem>>, vector<1x1x128xf32>
    %77 = vector.shape_cast %76 : vector<1x1x128xf32> to vector<1x128xf32>
    %78 = vector.broadcast %77 : vector<1x128xf32> to vector<32x128xf32>
    %79 = arith.addf %75, %78 : vector<32x128xf32>
    %80 = arith.truncf %79 : vector<32x128xf32> to vector<32x128xbf16>
    %c0_30 = arith.constant 0 : index
    %c0_31 = arith.constant 0 : index
    %c0_32 = arith.constant 0 : index
    %81 = vector.load %arg8[%c0_30, %c0_31, %c0_32] : memref<1x128x256xbf16, #tpu.memory_space<vmem>>, vector<1x128x256xbf16>
    %82 = vector.shape_cast %81 : vector<1x128x256xbf16> to vector<128x256xbf16>
    %cst_33 = arith.constant dense<0.000000e+00> : vector<32x256xf32>
    %83 = tpu.matmul %80, %82, %cst_33 {dimension_numbers = #tpu.dot_dimension_numbers<[1], [0], [0], [1], [0, 0, 1, 1], [], []>} : vector<32x128xbf16>, vector<128x256xbf16>, vector<32x256xf32> -> vector<32x256xf32>
    %c0_34 = arith.constant 0 : index
    %c0_35 = arith.constant 0 : index
    %c0_36 = arith.constant 0 : index
    %84 = vector.load %arg9[%c0_34, %c0_35, %c0_36] : memref<1x1x256xf32, #tpu.memory_space<vmem>>, vector<1x1x256xf32>
    %85 = vector.shape_cast %84 : vector<1x1x256xf32> to vector<1x256xf32>
    %86 = vector.broadcast %85 : vector<1x256xf32> to vector<32x256xf32>
    %87 = arith.addf %83, %86 : vector<32x256xf32>
    %cst_37 = arith.constant 0.000000e+00 : f32
    %88 = vector.broadcast %cst_37 : f32 to vector<32x256xf32>
    %89 = arith.maximumf %87, %88 : vector<32x256xf32>
    %90 = arith.truncf %89 : vector<32x256xf32> to vector<32x256xbf16>
    %c0_38 = arith.constant 0 : index
    %c0_39 = arith.constant 0 : index
    %c0_40 = arith.constant 0 : index
    %91 = vector.load %arg10[%c0_38, %c0_39, %c0_40] : memref<1x256x128xbf16, #tpu.memory_space<vmem>>, vector<1x256x128xbf16>
    %92 = vector.shape_cast %91 : vector<1x256x128xbf16> to vector<256x128xbf16>
    %cst_41 = arith.constant dense<0.000000e+00> : vector<32x128xf32>
    %93 = tpu.matmul %90, %92, %cst_41 {dimension_numbers = #tpu.dot_dimension_numbers<[1], [0], [0], [1], [0, 0, 1, 1], [], []>} : vector<32x256xbf16>, vector<256x128xbf16>, vector<32x128xf32> -> vector<32x128xf32>
    %c0_42 = arith.constant 0 : index
    %c0_43 = arith.constant 0 : index
    %c0_44 = arith.constant 0 : index
    %94 = vector.load %arg11[%c0_42, %c0_43, %c0_44] : memref<1x1x128xf32, #tpu.memory_space<vmem>>, vector<1x1x128xf32>
    %95 = vector.shape_cast %94 : vector<1x1x128xf32> to vector<1x128xf32>
    %96 = vector.broadcast %95 : vector<1x128xf32> to vector<32x128xf32>
    %97 = arith.addf %93, %96 : vector<32x128xf32>
    %98 = arith.addf %79, %97 : vector<32x128xf32>
    %cst_45 = arith.constant dense<0.000000e+00> : vector<128xf32>
    %99 = vector.multi_reduction <add>, %98, %cst_45 [0] : vector<32x128xf32> to vector<128xf32>
    %100 = vector.shape_cast %99 : vector<128xf32> to vector<1x128xf32>
    %cst_46 = arith.constant 3.125000e-02 : f32
    %101 = vector.broadcast %cst_46 : f32 to vector<1x128xf32>
    %102 = arith.mulf %100, %101 : vector<1x128xf32>
    %103 = vector.broadcast %102 : vector<1x128xf32> to vector<32x128xf32>
    %104 = arith.subf %98, %103 : vector<32x128xf32>
    %105 = arith.mulf %104, %104 : vector<32x128xf32>
    %cst_47 = arith.constant dense<0.000000e+00> : vector<128xf32>
    %106 = vector.multi_reduction <add>, %105, %cst_47 [0] : vector<32x128xf32> to vector<128xf32>
    %107 = vector.shape_cast %106 : vector<128xf32> to vector<1x128xf32>
    %cst_48 = arith.constant 3.125000e-02 : f32
    %108 = vector.broadcast %cst_48 : f32 to vector<1x128xf32>
    %109 = arith.mulf %107, %108 : vector<1x128xf32>
    %cst_49 = arith.constant 9.99999974E-6 : f32
    %110 = vector.broadcast %cst_49 : f32 to vector<1x128xf32>
    %111 = arith.addf %109, %110 : vector<1x128xf32>
    %112 = math.rsqrt %111 : vector<1x128xf32>
    %113 = vector.broadcast %112 : vector<1x128xf32> to vector<32x128xf32>
    %114 = arith.mulf %104, %113 : vector<32x128xf32>
    %c0_50 = arith.constant 0 : index
    %c0_51 = arith.constant 0 : index
    %c0_52 = arith.constant 0 : index
    %115 = vector.load %arg12[%c0_50, %c0_51, %c0_52] : memref<1x1x128xf32, #tpu.memory_space<vmem>>, vector<1x1x128xf32>
    %116 = vector.shape_cast %115 : vector<1x1x128xf32> to vector<1x128xf32>
    %117 = vector.broadcast %116 : vector<1x128xf32> to vector<32x128xf32>
    %118 = arith.mulf %114, %117 : vector<32x128xf32>
    %c0_53 = arith.constant 0 : index
    %c0_54 = arith.constant 0 : index
    %c0_55 = arith.constant 0 : index
    %119 = vector.load %arg13[%c0_53, %c0_54, %c0_55] : memref<1x1x128xf32, #tpu.memory_space<vmem>>, vector<1x1x128xf32>
    %120 = vector.shape_cast %119 : vector<1x1x128xf32> to vector<1x128xf32>
    %121 = vector.broadcast %120 : vector<1x128xf32> to vector<32x128xf32>
    %122 = arith.addf %118, %121 : vector<32x128xf32>
    %c0_56 = arith.constant 0 : index
    %c0_57 = arith.constant 0 : index
    %123 = vector.load %arg15[%c0_56, %c0_57] : memref<32x128xf32, #tpu.memory_space<vmem>>, vector<32x128xf32>
    tpu.vector_store %arg15[%c0_56, %c0_57], %122 {strides = array<i32>} : memref<32x128xf32, #tpu.memory_space<vmem>>, vector<32x128xf32>,
    %c1_i32 = arith.constant 1 : i32
    %124 = arith.cmpi eq, %arg0, %c1_i32 : i32
    %125 = arith.extui %124 : i1 to i32
    %c0_i32_58 = arith.constant 0 : i32
    %126 = arith.cmpi ne, %125, %c0_i32_58 : i32
    scf.if %126 {
      %127 = vector.shape_cast %122 : vector<32x128xf32> to vector<2x16x128xf32>
      %c0_59 = arith.constant 0 : index
      %c0_60 = arith.constant 0 : index
      %c0_61 = arith.constant 0 : index
      %128 = vector.load %arg14[%c0_59, %c0_60, %c0_61] : memref<2x16x128xf32, #tpu.memory_space<vmem>>, vector<2x16x128xf32>
      tpu.vector_store %arg14[%c0_59, %c0_60, %c0_61], %127 {strides = array<i32>} : memref<2x16x128xf32, #tpu.memory_space<vmem>>, vector<2x16x128xf32>,
    } else {
    }
    return
  }
  func.func @transform_0(%arg0: i32) -> (i32, i32, i32) {
    %c0_i32 = arith.constant 0 : i32
    %c0_i32_0 = arith.constant 0 : i32
    %c0_i32_1 = arith.constant 0 : i32
    %c0_i32_2 = arith.constant 0 : i32
    return %c0_i32, %c0_i32_0, %c0_i32_1 : i32, i32, i32
  }
  func.func @transform_1(%arg0: i32) -> (i32, i32, i32) {
    %c0_i32 = arith.constant 0 : i32
    %c0_i32_0 = arith.constant 0 : i32
    %c0_i32_1 = arith.constant 0 : i32
    return %arg0, %c0_i32, %c0_i32_0 : i32, i32, i32
  }
  func.func @transform_2(%arg0: i32) -> (i32, i32, i32) {
    %c0_i32 = arith.constant 0 : i32
    %c0_i32_0 = arith.constant 0 : i32
    %c0_i32_1 = arith.constant 0 : i32
    return %arg0, %c0_i32, %c0_i32_0 : i32, i32, i32
  }
  func.func @transform_3(%arg0: i32) -> (i32, i32, i32) {
    %c0_i32 = arith.constant 0 : i32
    %c0_i32_0 = arith.constant 0 : i32
    %c0_i32_1 = arith.constant 0 : i32
    return %arg0, %c0_i32, %c0_i32_0 : i32, i32, i32
  }
  func.func @transform_4(%arg0: i32) -> (i32, i32, i32) {
    %c0_i32 = arith.constant 0 : i32
    %c0_i32_0 = arith.constant 0 : i32
    %c0_i32_1 = arith.constant 0 : i32
    return %arg0, %c0_i32, %c0_i32_0 : i32, i32, i32
  }
  func.func @transform_5(%arg0: i32) -> (i32, i32, i32) {
    %c0_i32 = arith.constant 0 : i32
    %c0_i32_0 = arith.constant 0 : i32
    %c0_i32_1 = arith.constant 0 : i32
    return %arg0, %c0_i32, %c0_i32_0 : i32, i32, i32
  }
  func.func @transform_6(%arg0: i32) -> (i32, i32, i32) {
    %c0_i32 = arith.constant 0 : i32
    %c0_i32_0 = arith.constant 0 : i32
    %c0_i32_1 = arith.constant 0 : i32
    return %arg0, %c0_i32, %c0_i32_0 : i32, i32, i32
  }
  func.func @transform_7(%arg0: i32) -> (i32, i32, i32) {
    %c0_i32 = arith.constant 0 : i32
    %c0_i32_0 = arith.constant 0 : i32
    %c0_i32_1 = arith.constant 0 : i32
    return %arg0, %c0_i32, %c0_i32_0 : i32, i32, i32
  }
  func.func @transform_8(%arg0: i32) -> (i32, i32, i32) {
    %c0_i32 = arith.constant 0 : i32
    %c0_i32_0 = arith.constant 0 : i32
    %c0_i32_1 = arith.constant 0 : i32
    return %arg0, %c0_i32, %c0_i32_0 : i32, i32, i32
  }
  func.func @transform_9(%arg0: i32) -> (i32, i32, i32) {
    %c0_i32 = arith.constant 0 : i32
    %c0_i32_0 = arith.constant 0 : i32
    %c0_i32_1 = arith.constant 0 : i32
    return %arg0, %c0_i32, %c0_i32_0 : i32, i32, i32
  }
  func.func @transform_10(%arg0: i32) -> (i32, i32, i32) {
    %c0_i32 = arith.constant 0 : i32
    %c0_i32_0 = arith.constant 0 : i32
    %c0_i32_1 = arith.constant 0 : i32
    return %arg0, %c0_i32, %c0_i32_0 : i32, i32, i32
  }
  func.func @transform_11(%arg0: i32) -> (i32, i32, i32) {
    %c0_i32 = arith.constant 0 : i32
    %c0_i32_0 = arith.constant 0 : i32
    %c0_i32_1 = arith.constant 0 : i32
    return %arg0, %c0_i32, %c0_i32_0 : i32, i32, i32
  }
  func.func @transform_12(%arg0: i32) -> (i32, i32, i32) {
    %c0_i32 = arith.constant 0 : i32
    %c0_i32_0 = arith.constant 0 : i32
    %c0_i32_1 = arith.constant 0 : i32
    return %arg0, %c0_i32, %c0_i32_0 : i32, i32, i32
  }
  func.func @transform_13(%arg0: i32) -> (i32, i32, i32) {
    %c0_i32 = arith.constant 0 : i32
    %c0_i32_0 = arith.constant 0 : i32
    %c0_i32_1 = arith.constant 0 : i32
    %c0_i32_2 = arith.constant 0 : i32
    return %c0_i32, %c0_i32_0, %c0_i32_1 : i32, i32, i32
  }
}

</mosaic_0001>

<llo_original>
// kernel: graph_attention_network.1
$region0: #{graph_attention_network.1}
  #allocation0 [shape = 'u32[]', space=smem, size = 0x4, offset = 0x4, fixed_abs, tag = 'smem constant byte address 0x4 - core index']
  #allocation1 [shape = 'u32[144,128]{1,0:T(1,128)}', space=vmem, size = 0x12000, scoped, tag = 'internal scratch']
  #allocation2 [shape = 'f32[32,128]{1,0:T(8,128)}', space=vmem, size = 0x4000, scoped, tag = 'scratch operand']
  %s0 = inlined_call_operand.hbm [shape: f32[2,16,128], index: 0, kind: input, shape index: {}]
  %s1 = inlined_call_operand.hbm [shape: bf16[2,128,384], index: 1, kind: input, shape index: {}]
  %s2 = inlined_call_operand.hbm [shape: f32[2,1,384], index: 2, kind: input, shape index: {}]
  %s3 = inlined_call_operand.hbm [shape: bf16[2,128,128], index: 3, kind: input, shape index: {}]
  %s4 = inlined_call_operand.vmem [shape: f32[2,1,128], index: 4, kind: input, shape index: {}]
  %s5 = inlined_call_operand.vmem [shape: f32[2,1,128], index: 5, kind: input, shape index: {}]
  %s6 = inlined_call_operand.vmem [shape: f32[2,1,128], index: 6, kind: input, shape index: {}]
  %s7 = inlined_call_operand.hbm [shape: bf16[2,128,256], index: 7, kind: input, shape index: {}]
  %s8 = inlined_call_operand.vmem [shape: f32[2,1,256], index: 8, kind: input, shape index: {}]
  %s9 = inlined_call_operand.hbm [shape: bf16[2,256,128], index: 9, kind: input, shape index: {}]
  %s10 = inlined_call_operand.vmem [shape: f32[2,1,128], index: 10, kind: input, shape index: {}]
  %s11 = inlined_call_operand.vmem [shape: f32[2,1,128], index: 11, kind: input, shape index: {}]
  %s12 = inlined_call_operand.vmem [shape: f32[2,1,128], index: 12, kind: input, shape index: {}]
  %s13 = inlined_call_operand.hbm [shape: f32[2,16,128], index: 13, kind: output, shape index: {}]
  %s14 = sld [smem:[#allocation0]]
  $region117: #{graph_attention_network.1} parent=0
    _
  %s16 = ssub.s32 1, %s14
  %s17 = scalar_select 0, %s16, %s14
  $region1: #{graph_attention_network.1} parent=0
    #allocation3 [shape = 'u8[16384]{0}', space=vmem, size = 0x4000, scoped, tag = 'input window, operand 0, single buffered']
    #allocation4 [shape = 's32[2]{0}', space=sflag, size = 0x8, scoped, tag = 'scoped memory for graph_attention_network.1']
    #allocation5 [shape = 's32[2]{0}', space=sflag, size = 0x8, scoped, tag = 'scoped memory for graph_attention_network.1']
    #allocation6 [shape = 'u8[196608]{0}', space=vmem, size = 0x30000, scoped, tag = 'input window, operand 1']
    #allocation7 [shape = 's32[2]{0}', space=sflag, size = 0x8, scoped, tag = 'scoped memory for graph_attention_network.1']
    #allocation8 [shape = 'u8[3072]{0}', space=vmem, size = 0xc00, scoped, tag = 'input window, operand 2']
    #allocation9 [shape = 'u8[65536]{0}', space=vmem, size = 0x10000, scoped, tag = 'input window, operand 3']
    #allocation10 [shape = 's32[2]{0}', space=sflag, size = 0x8, scoped, tag = 'scoped memory for graph_attention_network.1']
    #allocation11 [shape = 'u8[131072]{0}', space=vmem, size = 0x20000, scoped, tag = 'input window, operand 7']
    #allocation12 [shape = 'u8[131072]{0}', space=vmem, size = 0x20000, scoped, tag = 'input window, operand 9']
    #allocation13 [shape = 's32[2]{0}', space=sflag, size = 0x8, scoped, tag = 'scoped memory for graph_attention_network.1']
    #allocation14 [shape = 'u8[16384]{0}', space=vmem, size = 0x4000, scoped, tag = 'output window, operand 0, single buffered']
    %18 = vsyncpa [#allocation4], 0
    %19 = vsyncpa [#allocation7], 0
    %s20 = scalar_lea.sflag [#allocation7], 1
    %21 = vsyncpa %s20, 0
    %22 = vsyncpa [#allocation10], 0
    %s23 = scalar_lea.sflag [#allocation10], 1
    %24 = vsyncpa %s23, 0
    %25 = vsyncpa [#allocation13], 0
    %s26 = scalar_lea.sflag [#allocation13], 1
    %27 = vsyncpa %s26, 0
    %28 = vsyncpa [#allocation5], 0
    loop: start=0, step=1, limit=4
    $region2: #{graph_attention_network.1} parent=1 // loop_pre_header
      _
    $region3: #{graph_attention_network.1} parent=1 // loop_header
      %s30 = sphi 0, %s34
      %p31 = scmp.ge.s32.totalorder %s30, 4
      %s38 = sphi 0, %s38
      %s40 = sphi 0, %s38
      %s41 = sphi 0, %s40
      %s55 = sphi 0, %s41
      %s61 = sphi 0, %s63
      %s64 = sphi 0, %s61
      %s65 = sphi 0, %s64
      %s81 = sphi 0, %s65
      %s87 = sphi 0, %s89
      %s90 = sphi 0, %s87
      %s91 = sphi 0, %s90
      %s107 = sphi 0, %s91
      %s113 = sphi 0, %s115
      %s116 = sphi 0, %s113
      %s117 = sphi 0, %s116
      %s133 = sphi 0, %s117
      %s139 = sphi 0, %s141
      %s142 = sphi 0, %s139
      %s143 = sphi 0, %s142
      %s159 = sphi 0, %s143
      %s165 = sphi 0, %s167
      %s168 = sphi 0, %s165
      %s169 = sphi 0, %s168
      %s185 = sphi 0, %s169
      %s191 = sphi 0, %s193
      %s194 = sphi 0, %s191
      %s195 = sphi 0, %s194
      %s211 = sphi 0, %s195
      %s217 = sphi 0, %s219
      %s220 = sphi 0, %s217
      %s221 = sphi 0, %s220
      %s237 = sphi 0, %s221
      %s243 = sphi 0, %s245
      %s246 = sphi 0, %s243
      %s247 = sphi 0, %s246
      %s263 = sphi 0, %s247
      %s269 = sphi 0, %s271
      %s272 = sphi 0, %s269
      %s273 = sphi 0, %s272
      %s289 = sphi 0, %s273
      %s295 = sphi 0, %s297
      %s298 = sphi 0, %s295
      %s299 = sphi 0, %s298
      %s315 = sphi 0, %s299
      %s321 = sphi 0, %s323
      %s324 = sphi 0, %s321
      %s325 = sphi 0, %s324
      %s341 = sphi 0, %s325
      %s347 = sphi 0, %s349
      %s350 = sphi 0, %s347
      %s351 = sphi 0, %s350
      %s367 = sphi 0, %s351
      %s371 = sphi 0, %s371
      %s373 = sphi 0, %s371
      %s374 = sphi 0, %s373
      %s388 = sphi 0, %s374
    $region4: #{graph_attention_network.1} parent=1 // loop_header_branch
      %33 = sbr.rel (%p31) target = $region8
    $region5: #{graph_attention_network.1} parent=1 // loop_body
      %s35 = ssub.s32 %s30, 1
      %s36 = ssub.s32 %s30, 2
      %s37 = sadd.s32 %s30, 1
      %s39 = sadd.s32 %s38, 1
      %p42 = scmp.eq.s32.totalorder %s30, 1
      %p43 = scmp.ne.s32.totalorder %s38, %s40
      %p44 = scmp.eq.s32.totalorder %s30, 0
      %p45 = por %p43, %p44
      %p46 = scmp.ne.s32.totalorder %s38, %s40
      %p47 = scmp.eq.s32.totalorder %s35, 1
      %p48 = por %p46, %p47
      %p49 = scmp.ne.s32.totalorder %s40, %s41
      %p50 = scmp.eq.s32.totalorder %s35, 0
      %p51 = por %p49, %p50
      %p52 = scmp.ne.s32.totalorder %s40, %s41
      %p53 = scmp.eq.s32.totalorder %s36, 1
      %p54 = por %p52, %p53
      %p56 = scmp.ne.s32.totalorder %s41, %s55
      %p57 = scmp.eq.s32.totalorder %s36, 0
      %p58 = por %p56, %p57
      %s59 = ssub.s32 %s30, %s37
      %p60 = scmp.eq.s32.totalorder %s59, 0
      %s62 = sadd.s32 %s61, 1
      %s63 = scalar_select %p60, %s61, %s62
      %p66 = pneg %p60
      %p67 = scmp.eq.s32.totalorder %s30, 1
      %p68 = por %p66, %p67
      %p69 = scmp.ne.s32.totalorder %s61, %s64
      %p70 = scmp.eq.s32.totalorder %s30, 0
      %p71 = por %p69, %p70
      %p72 = scmp.ne.s32.totalorder %s61, %s64
      %p73 = scmp.eq.s32.totalorder %s35, 1
      %p74 = por %p72, %p73
      %p75 = scmp.ne.s32.totalorder %s64, %s65
      %p76 = scmp.eq.s32.totalorder %s35, 0
      %p77 = por %p75, %p76
      %p78 = scmp.ne.s32.totalorder %s64, %s65
      %p79 = scmp.eq.s32.totalorder %s36, 1
      %p80 = por %p78, %p79
      %p82 = scmp.ne.s32.totalorder %s65, %s81
      %p83 = scmp.eq.s32.totalorder %s36, 0
      %p84 = por %p82, %p83
      %s85 = ssub.s32 %s30, %s37
      %p86 = scmp.eq.s32.totalorder %s85, 0
      %s88 = sadd.s32 %s87, 1
      %s89 = scalar_select %p86, %s87, %s88
      %p92 = pneg %p86
      %p93 = scmp.eq.s32.totalorder %s30, 1
      %p94 = por %p92, %p93
      %p95 = scmp.ne.s32.totalorder %s87, %s90
      %p96 = scmp.eq.s32.totalorder %s30, 0
      %p97 = por %p95, %p96
      %p98 = scmp.ne.s32.totalorder %s87, %s90
      %p99 = scmp.eq.s32.totalorder %s35, 1
      %p100 = por %p98, %p99
      %p101 = scmp.ne.s32.totalorder %s90, %s91
      %p102 = scmp.eq.s32.totalorder %s35, 0
      %p103 = por %p101, %p102
      %p104 = scmp.ne.s32.totalorder %s90, %s91
      %p105 = scmp.eq.s32.totalorder %s36, 1
      %p106 = por %p104, %p105
      %p108 = scmp.ne.s32.totalorder %s91, %s107
      %p109 = scmp.eq.s32.totalorder %s36, 0
      %p110 = por %p108, %p109
      %s111 = ssub.s32 %s30, %s37
      %p112 = scmp.eq.s32.totalorder %s111, 0
      %s114 = sadd.s32 %s113, 1
      %s115 = scalar_select %p112, %s113, %s114
      %p118 = pneg %p112
      %p119 = scmp.eq.s32.totalorder %s30, 1
      %p120 = por %p118, %p119
      %p121 = scmp.ne.s32.totalorder %s113, %s116
      %p122 = scmp.eq.s32.totalorder %s30, 0
      %p123 = por %p121, %p122
      %p124 = scmp.ne.s32.totalorder %s113, %s116
      %p125 = scmp.eq.s32.totalorder %s35, 1
      %p126 = por %p124, %p125
      %p127 = scmp.ne.s32.totalorder %s116, %s117
      %p128 = scmp.eq.s32.totalorder %s35, 0
      %p129 = por %p127, %p128
      %p130 = scmp.ne.s32.totalorder %s116, %s117
      %p131 = scmp.eq.s32.totalorder %s36, 1
      %p132 = por %p130, %p131
      %p134 = scmp.ne.s32.totalorder %s117, %s133
      %p135 = scmp.eq.s32.totalorder %s36, 0
      %p136 = por %p134, %p135
      %s137 = ssub.s32 %s30, %s37
      %p138 = scmp.eq.s32.totalorder %s137, 0
      %s140 = sadd.s32 %s139, 1
      %s141 = scalar_select %p138, %s139, %s140
      %p144 = pneg %p138
      %p145 = scmp.eq.s32.totalorder %s30, 1
      %p146 = por %p144, %p145
      %p147 = scmp.ne.s32.totalorder %s139, %s142
      %p148 = scmp.eq.s32.totalorder %s30, 0
      %p149 = por %p147, %p148
      %p150 = scmp.ne.s32.totalorder %s139, %s142
      %p151 = scmp.eq.s32.totalorder %s35, 1
      %p152 = por %p150, %p151
      %p153 = scmp.ne.s32.totalorder %s142, %s143
      %p154 = scmp.eq.s32.totalorder %s35, 0
      %p155 = por %p153, %p154
      %p156 = scmp.ne.s32.totalorder %s142, %s143
      %p157 = scmp.eq.s32.totalorder %s36, 1
      %p158 = por %p156, %p157
      %p160 = scmp.ne.s32.totalorder %s143, %s159
      %p161 = scmp.eq.s32.totalorder %s36, 0
      %p162 = por %p160, %p161
      %s163 = ssub.s32 %s30, %s37
      %p164 = scmp.eq.s32.totalorder %s163, 0
      %s166 = sadd.s32 %s165, 1
      %s167 = scalar_select %p164, %s165, %s166
      %p170 = pneg %p164
      %p171 = scmp.eq.s32.totalorder %s30, 1
      %p172 = por %p170, %p171
      %p173 = scmp.ne.s32.totalorder %s165, %s168
      %p174 = scmp.eq.s32.totalorder %s30, 0
      %p175 = por %p173, %p174
      %p176 = scmp.ne.s32.totalorder %s165, %s168
      %p177 = scmp.eq.s32.totalorder %s35, 1
      %p178 = por %p176, %p177
      %p179 = scmp.ne.s32.totalorder %s168, %s169
      %p180 = scmp.eq.s32.totalorder %s35, 0
      %p181 = por %p179, %p180
      %p182 = scmp.ne.s32.totalorder %s168, %s169
      %p183 = scmp.eq.s32.totalorder %s36, 1
      %p184 = por %p182, %p183
      %p186 = scmp.ne.s32.totalorder %s169, %s185
      %p187 = scmp.eq.s32.totalorder %s36, 0
      %p188 = por %p186, %p187
      %s189 = ssub.s32 %s30, %s37
      %p190 = scmp.eq.s32.totalorder %s189, 0
      %s192 = sadd.s32 %s191, 1
      %s193 = scalar_select %p190, %s191, %s192
      %p196 = pneg %p190
      %p197 = scmp.eq.s32.totalorder %s30, 1
      %p198 = por %p196, %p197
      %p199 = scmp.ne.s32.totalorder %s191, %s194
      %p200 = scmp.eq.s32.totalorder %s30, 0
      %p201 = por %p199, %p200
      %p202 = scmp.ne.s32.totalorder %s191, %s194
      %p203 = scmp.eq.s32.totalorder %s35, 1
      %p204 = por %p202, %p203
      %p205 = scmp.ne.s32.totalorder %s194, %s195
      %p206 = scmp.eq.s32.totalorder %s35, 0
      %p207 = por %p205, %p206
      %p208 = scmp.ne.s32.totalorder %s194, %s195
      %p209 = scmp.eq.s32.totalorder %s36, 1
      %p210 = por %p208, %p209
      %p212 = scmp.ne.s32.totalorder %s195, %s211
      %p213 = scmp.eq.s32.totalorder %s36, 0
      %p214 = por %p212, %p213
      %s215 = ssub.s32 %s30, %s37
      %p216 = scmp.eq.s32.totalorder %s215, 0
      %s218 = sadd.s32 %s217, 1
      %s219 = scalar_select %p216, %s217, %s218
      %p222 = pneg %p216
      %p223 = scmp.eq.s32.totalorder %s30, 1
      %p224 = por %p222, %p223
      %p225 = scmp.ne.s32.totalorder %s217, %s220
      %p226 = scmp.eq.s32.totalorder %s30, 0
      %p227 = por %p225, %p226
      %p228 = scmp.ne.s32.totalorder %s217, %s220
      %p229 = scmp.eq.s32.totalorder %s35, 1
      %p230 = por %p228, %p229
      %p231 = scmp.ne.s32.totalorder %s220, %s221
      %p232 = scmp.eq.s32.totalorder %s35, 0
      %p233 = por %p231, %p232
      %p234 = scmp.ne.s32.totalorder %s220, %s221
      %p235 = scmp.eq.s32.totalorder %s36, 1
      %p236 = por %p234, %p235
      %p238 = scmp.ne.s32.totalorder %s221, %s237
      %p239 = scmp.eq.s32.totalorder %s36, 0
      %p240 = por %p238, %p239
      %s241 = ssub.s32 %s30, %s37
      %p242 = scmp.eq.s32.totalorder %s241, 0
      %s244 = sadd.s32 %s243, 1
      %s245 = scalar_select %p242, %s243, %s244
      %p248 = pneg %p242
      %p249 = scmp.eq.s32.totalorder %s30, 1
      %p250 = por %p248, %p249
      %p251 = scmp.ne.s32.totalorder %s243, %s246
      %p252 = scmp.eq.s32.totalorder %s30, 0
      %p253 = por %p251, %p252
      %p254 = scmp.ne.s32.totalorder %s243, %s246
      %p255 = scmp.eq.s32.totalorder %s35, 1
      %p256 = por %p254, %p255
      %p257 = scmp.ne.s32.totalorder %s246, %s247
      %p258 = scmp.eq.s32.totalorder %s35, 0
      %p259 = por %p257, %p258
      %p260 = scmp.ne.s32.totalorder %s246, %s247
      %p261 = scmp.eq.s32.totalorder %s36, 1
      %p262 = por %p260, %p261
      %p264 = scmp.ne.s32.totalorder %s247, %s263
      %p265 = scmp.eq.s32.totalorder %s36, 0
      %p266 = por %p264, %p265
      %s267 = ssub.s32 %s30, %s37
      %p268 = scmp.eq.s32.totalorder %s267, 0
      %s270 = sadd.s32 %s269, 1
      %s271 = scalar_select %p268, %s269, %s270
      %p274 = pneg %p268
      %p275 = scmp.eq.s32.totalorder %s30, 1
      %p276 = por %p274, %p275
      %p277 = scmp.ne.s32.totalorder %s269, %s272
      %p278 = scmp.eq.s32.totalorder %s30, 0
      %p279 = por %p277, %p278
      %p280 = scmp.ne.s32.totalorder %s269, %s272
      %p281 = scmp.eq.s32.totalorder %s35, 1
      %p282 = por %p280, %p281
      %p283 = scmp.ne.s32.totalorder %s272, %s273
      %p284 = scmp.eq.s32.totalorder %s35, 0
      %p285 = por %p283, %p284
      %p286 = scmp.ne.s32.totalorder %s272, %s273
      %p287 = scmp.eq.s32.totalorder %s36, 1
      %p288 = por %p286, %p287
      %p290 = scmp.ne.s32.totalorder %s273, %s289
      %p291 = scmp.eq.s32.totalorder %s36, 0
      %p292 = por %p290, %p291
      %s293 = ssub.s32 %s30, %s37
      %p294 = scmp.eq.s32.totalorder %s293, 0
      %s296 = sadd.s32 %s295, 1
      %s297 = scalar_select %p294, %s295, %s296
      %p300 = pneg %p294
      %p301 = scmp.eq.s32.totalorder %s30, 1
      %p302 = por %p300, %p301
      %p303 = scmp.ne.s32.totalorder %s295, %s298
      %p304 = scmp.eq.s32.totalorder %s30, 0
      %p305 = por %p303, %p304
      %p306 = scmp.ne.s32.totalorder %s295, %s298
      %p307 = scmp.eq.s32.totalorder %s35, 1
      %p308 = por %p306, %p307
      %p309 = scmp.ne.s32.totalorder %s298, %s299
      %p310 = scmp.eq.s32.totalorder %s35, 0
      %p311 = por %p309, %p310
      %p312 = scmp.ne.s32.totalorder %s298, %s299
      %p313 = scmp.eq.s32.totalorder %s36, 1
      %p314 = por %p312, %p313
      %p316 = scmp.ne.s32.totalorder %s299, %s315
      %p317 = scmp.eq.s32.totalorder %s36, 0
      %p318 = por %p316, %p317
      %s319 = ssub.s32 %s30, %s37
      %p320 = scmp.eq.s32.totalorder %s319, 0
      %s322 = sadd.s32 %s321, 1
      %s323 = scalar_select %p320, %s321, %s322
      %p326 = pneg %p320
      %p327 = scmp.eq.s32.totalorder %s30, 1
      %p328 = por %p326, %p327
      %p329 = scmp.ne.s32.totalorder %s321, %s324
      %p330 = scmp.eq.s32.totalorder %s30, 0
      %p331 = por %p329, %p330
      %p332 = scmp.ne.s32.totalorder %s321, %s324
      %p333 = scmp.eq.s32.totalorder %s35, 1
      %p334 = por %p332, %p333
      %p335 = scmp.ne.s32.totalorder %s324, %s325
      %p336 = scmp.eq.s32.totalorder %s35, 0
      %p337 = por %p335, %p336
      %p338 = scmp.ne.s32.totalorder %s324, %s325
      %p339 = scmp.eq.s32.totalorder %s36, 1
      %p340 = por %p338, %p339
      %p342 = scmp.ne.s32.totalorder %s325, %s341
      %p343 = scmp.eq.s32.totalorder %s36, 0
      %p344 = por %p342, %p343
      %s345 = ssub.s32 %s30, %s37
      %p346 = scmp.eq.s32.totalorder %s345, 0
      %s348 = sadd.s32 %s347, 1
      %s349 = scalar_select %p346, %s347, %s348
      %p352 = pneg %p346
      %p353 = scmp.eq.s32.totalorder %s30, 1
      %p354 = por %p352, %p353
      %p355 = scmp.ne.s32.totalorder %s347, %s350
      %p356 = scmp.eq.s32.totalorder %s30, 0
      %p357 = por %p355, %p356
      %p358 = scmp.ne.s32.totalorder %s347, %s350
      %p359 = scmp.eq.s32.totalorder %s35, 1
      %p360 = por %p358, %p359
      %p361 = scmp.ne.s32.totalorder %s350, %s351
      %p362 = scmp.eq.s32.totalorder %s35, 0
      %p363 = por %p361, %p362
      %p364 = scmp.ne.s32.totalorder %s350, %s351
      %p365 = scmp.eq.s32.totalorder %s36, 1
      %p366 = por %p364, %p365
      %p368 = scmp.ne.s32.totalorder %s351, %s367
      %p369 = scmp.eq.s32.totalorder %s36, 0
      %p370 = por %p368, %p369
      %s372 = sadd.s32 %s371, 1
      %p375 = scmp.eq.s32.totalorder %s30, 1
      %p376 = scmp.ne.s32.totalorder %s371, %s373
      %p377 = scmp.eq.s32.totalorder %s30, 0
      %p378 = por %p376, %p377
      %p379 = scmp.ne.s32.totalorder %s371, %s373
      %p380 = scmp.eq.s32.totalorder %s35, 1
      %p381 = por %p379, %p380
      %p382 = scmp.ne.s32.totalorder %s373, %s374
      %p383 = scmp.eq.s32.totalorder %s35, 0
      %p384 = por %p382, %p383
      %p385 = scmp.ne.s32.totalorder %s373, %s374
      %p386 = scmp.eq.s32.totalorder %s36, 1
      %p387 = por %p385, %p386
      %p389 = scmp.ne.s32.totalorder %s374, %s388
      %p390 = scmp.eq.s32.totalorder %s36, 0
      %p391 = por %p389, %p390
      %p392 = scmp.le.s32.totalorder 1, %s30
      %p393 = scmp.lt.s32.totalorder %s30, 3
      %p394 = pnand %p392, %p393
      %p395 = pneg %p394
      // Predicated region
      $region9: #{graph_attention_network.1} parent=5 // pred_check
        _
      $region10: #{graph_attention_network.1} parent=5 // pred_check_branch
        %397 = sbr.rel (%p394) target = $region12
      $region11: #{graph_attention_network.1} parent=5 // pred_region
        %s398 = ssub.s32 %s30, 1
        // Predicated region
        $region13: #{graph_attention_network.1} parent=11 // pred_check
          %p399 = pneg %p51
        $region14: #{graph_attention_network.1} parent=11 // pred_check_branch
          %401 = sbr.rel (%p399) target = $region16
        $region15: #{graph_attention_network.1} parent=11 // pred_region
          %s403 = ssub.s32 512, 512
          %404 = vsyncadd [#allocation4], %s403
          %s405 = sshll.u32 [#allocation3], 4
          %s406 = int_to_ptr.vmem [resolvable:$true] %s405
          %411 = dma.hbm_to_vmem [thread:$0]  %s0, 512, %s406, [#allocation4], 128, 128, 8
        $region16: #{graph_attention_network.1} parent=11 // pred_fallthru
          _
      $region12: #{graph_attention_network.1} parent=5 // pred_fallthru
        _
      %p412 = scmp.lt.s32.totalorder %s30, 2
      // Predicated region
      $region17: #{graph_attention_network.1} parent=5 // pred_check
        %p413 = pneg %p412
      $region18: #{graph_attention_network.1} parent=5 // pred_check_branch
        %415 = sbr.rel (%p413) target = $region20
      $region19: #{graph_attention_network.1} parent=5 // pred_region
        // Predicated region
        $region21: #{graph_attention_network.1} parent=19 // pred_check
          %p416 = pneg %p71
        $region22: #{graph_attention_network.1} parent=19 // pred_check_branch
          %418 = sbr.rel (%p416) target = $region24
        $region23: #{graph_attention_network.1} parent=19 // pred_region
          %s419 = sand.u32 %s30, 1
          %s420 = scalar_lea.sflag [#allocation7], %s419
          %s421 = sand.u32 %s61, 1
          %s422 = smul.addr %s421, 192
          %s423 = scalar_lea.vmem [#allocation6], %s422
          %s425 = ssub.s32 3072, 3072
          %426 = vsyncadd %s420, %s425
          %s427 = smul.addr %s30, 48
          %s428 = smul.addr %s427, 64
          %s429 = scalar_lea.hbm %s1, %s428
          %s430 = sshll.u32 %s423, 4
          %s431 = int_to_ptr.vmem [resolvable:$true] %s430
          %436 = dma.hbm_to_vmem [thread:$0]  %s429, 3072, %s431, %s420, 192, 192, 12
        $region24: #{graph_attention_network.1} parent=19 // pred_fallthru
          _
        // Predicated region
        $region25: #{graph_attention_network.1} parent=19 // pred_check
          %p437 = pneg %p97
        $region26: #{graph_attention_network.1} parent=19 // pred_check_branch
          %439 = sbr.rel (%p437) target = $region28
        $region27: #{graph_attention_network.1} parent=19 // pred_region
          %s440 = sand.u32 %s30, 1
          %s441 = scalar_lea.sflag [#allocation7], %s440
          %s442 = sand.u32 %s87, 1
          %s443 = smul.addr %s442, 3
          %s444 = scalar_lea.vmem [#allocation8], %s443
          %s446 = ssub.s32 48, 48
          %447 = vsyncadd %s441, %s446
          %s448 = smul.addr %s30, 3
          %s449 = smul.addr %s448, 16
          %s450 = scalar_lea.hbm %s2, %s449
          %s452 = sshll.u32 %s444, 4
          %s453 = int_to_ptr.vmem [resolvable:$true] %s452
          %455 = dma.hbm_to_vmem [thread:$0]  %s450, 48, %s453, %s441
        $region28: #{graph_attention_network.1} parent=19 // pred_fallthru
          _
        // Predicated region
        $region29: #{graph_attention_network.1} parent=19 // pred_check
          %p456 = pneg %p123
        $region30: #{graph_attention_network.1} parent=19 // pred_check_branch
          %458 = sbr.rel (%p456) target = $region32
        $region31: #{graph_attention_network.1} parent=19 // pred_region
          %s459 = sand.u32 %s30, 1
          %s460 = scalar_lea.sflag [#allocation10], %s459
          %s461 = sand.u32 %s113, 1
          %s462 = smul.addr %s461, 64
          %s463 = scalar_lea.vmem [#allocation9], %s462
          %s465 = ssub.s32 1024, 1024
          %466 = vsyncadd %s460, %s465
          %s467 = smul.addr %s30, 16
          %s468 = smul.addr %s467, 64
          %s469 = scalar_lea.hbm %s3, %s468
          %s470 = sshll.u32 %s463, 4
          %s471 = int_to_ptr.vmem [resolvable:$true] %s470
          %476 = dma.hbm_to_vmem [thread:$0]  %s469, 1024, %s471, %s460, 64, 64, 4
        $region32: #{graph_attention_network.1} parent=19 // pred_fallthru
          _
        // Predicated region
        $region33: #{graph_attention_network.1} parent=19 // pred_check
          %p477 = pneg %p149
        $region34: #{graph_attention_network.1} parent=19 // pred_check_branch
          %479 = sbr.rel (%p477) target = $region36
        $region35: #{graph_attention_network.1} parent=19 // pred_region
          %p480 = scmp.lt.s32.totalorder %s30, 1
          %s481 = scalar_select %p480, %s30, 1
          %s482 = scalar_lea.vmem %s4, %s481
        $region36: #{graph_attention_network.1} parent=19 // pred_fallthru
          _
        // Predicated region
        $region37: #{graph_attention_network.1} parent=19 // pred_check
          %p483 = pneg %p175
        $region38: #{graph_attention_network.1} parent=19 // pred_check_branch
          %485 = sbr.rel (%p483) target = $region40
        $region39: #{graph_attention_network.1} parent=19 // pred_region
          %p486 = scmp.lt.s32.totalorder %s30, 1
          %s487 = scalar_select %p486, %s30, 1
          %s488 = scalar_lea.vmem %s5, %s487
        $region40: #{graph_attention_network.1} parent=19 // pred_fallthru
          _
        // Predicated region
        $region41: #{graph_attention_network.1} parent=19 // pred_check
          %p489 = pneg %p201
        $region42: #{graph_attention_network.1} parent=19 // pred_check_branch
          %491 = sbr.rel (%p489) target = $region44
        $region43: #{graph_attention_network.1} parent=19 // pred_region
          %p492 = scmp.lt.s32.totalorder %s30, 1
          %s493 = scalar_select %p492, %s30, 1
          %s494 = scalar_lea.vmem %s6, %s493
        $region44: #{graph_attention_network.1} parent=19 // pred_fallthru
          _
        // Predicated region
        $region45: #{graph_attention_network.1} parent=19 // pred_check
          %p495 = pneg %p227
        $region46: #{graph_attention_network.1} parent=19 // pred_check_branch
          %497 = sbr.rel (%p495) target = $region48
        $region47: #{graph_attention_network.1} parent=19 // pred_region
          %s498 = sand.u32 %s30, 1
          %s499 = scalar_lea.sflag [#allocation10], %s498
          %s500 = sand.u32 %s217, 1
          %s501 = smul.addr %s500, 128
          %s502 = scalar_lea.vmem [#allocation11], %s501
          %s504 = ssub.s32 2048, 2048
          %505 = vsyncadd %s499, %s504
          %s506 = smul.addr %s30, 32
          %s507 = smul.addr %s506, 64
          %s508 = scalar_lea.hbm %s7, %s507
          %s509 = sshll.u32 %s502, 4
          %s510 = int_to_ptr.vmem [resolvable:$true] %s509
          %515 = dma.hbm_to_vmem [thread:$0]  %s508, 2048, %s510, %s499, 128, 128, 8
        $region48: #{graph_attention_network.1} parent=19 // pred_fallthru
          _
        // Predicated region
        $region49: #{graph_attention_network.1} parent=19 // pred_check
          %p516 = pneg %p253
        $region50: #{graph_attention_network.1} parent=19 // pred_check_branch
          %518 = sbr.rel (%p516) target = $region52
        $region51: #{graph_attention_network.1} parent=19 // pred_region
          %p519 = scmp.lt.s32.totalorder %s30, 1
          %s520 = scalar_select %p519, %s30, 1
          %s521 = smul.addr %s520, 2
          %s522 = scalar_lea.vmem %s8, %s521
        $region52: #{graph_attention_network.1} parent=19 // pred_fallthru
          _
        // Predicated region
        $region53: #{graph_attention_network.1} parent=19 // pred_check
          %p523 = pneg %p279
        $region54: #{graph_attention_network.1} parent=19 // pred_check_branch
          %525 = sbr.rel (%p523) target = $region56
        $region55: #{graph_attention_network.1} parent=19 // pred_region
          %s526 = sand.u32 %s269, 1
          %s527 = scalar_lea.sflag [#allocation13], %s526
          %s528 = sand.u32 %s269, 1
          %s529 = smul.addr %s528, 128
          %s530 = scalar_lea.vmem [#allocation12], %s529
          %s532 = ssub.s32 2048, 2048
          %533 = vsyncadd %s527, %s532
          %s534 = smul.addr %s30, 32
          %s535 = smul.addr %s534, 64
          %s536 = scalar_lea.hbm %s9, %s535
          %s537 = sshll.u32 %s530, 4
          %s538 = int_to_ptr.vmem [resolvable:$true] %s537
          %543 = dma.hbm_to_vmem [thread:$0]  %s536, 2048, %s538, %s527, 64, 64, 4
        $region56: #{graph_attention_network.1} parent=19 // pred_fallthru
          _
        // Predicated region
        $region57: #{graph_attention_network.1} parent=19 // pred_check
          %p544 = pneg %p305
        $region58: #{graph_attention_network.1} parent=19 // pred_check_branch
          %546 = sbr.rel (%p544) target = $region60
        $region59: #{graph_attention_network.1} parent=19 // pred_region
          %p547 = scmp.lt.s32.totalorder %s30, 1
          %s548 = scalar_select %p547, %s30, 1
          %s549 = scalar_lea.vmem %s10, %s548
        $region60: #{graph_attention_network.1} parent=19 // pred_fallthru
          _
        // Predicated region
        $region61: #{graph_attention_network.1} parent=19 // pred_check
          %p550 = pneg %p331
        $region62: #{graph_attention_network.1} parent=19 // pred_check_branch
          %552 = sbr.rel (%p550) target = $region64
        $region63: #{graph_attention_network.1} parent=19 // pred_region
          %p553 = scmp.lt.s32.totalorder %s30, 1
          %s554 = scalar_select %p553, %s30, 1
          %s555 = scalar_lea.vmem %s11, %s554
        $region64: #{graph_attention_network.1} parent=19 // pred_fallthru
          _
        // Predicated region
        $region65: #{graph_attention_network.1} parent=19 // pred_check
          %p556 = pneg %p357
        $region66: #{graph_attention_network.1} parent=19 // pred_check_branch
          %558 = sbr.rel (%p556) target = $region68
        $region67: #{graph_attention_network.1} parent=19 // pred_region
          %p559 = scmp.lt.s32.totalorder %s30, 1
          %s560 = scalar_select %p559, %s30, 1
          %s561 = scalar_lea.vmem %s12, %s560
        $region68: #{graph_attention_network.1} parent=19 // pred_fallthru
          _
      $region20: #{graph_attention_network.1} parent=5 // pred_fallthru
        _
      %p562 = scmp.le.s32.totalorder 1, %s30
      %p563 = scmp.lt.s32.totalorder %s30, 3
      %p564 = pnand %p562, %p563
      %p565 = pneg %p564
      // Predicated region
      $region69: #{graph_attention_network.1} parent=5 // pred_check
        _
      $region70: #{graph_attention_network.1} parent=5 // pred_check_branch
        %567 = sbr.rel (%p564) target = $region72
      $region71: #{graph_attention_network.1} parent=5 // pred_region
        %s568 = ssub.s32 %s30, 1
        // Predicated region
        $region73: #{graph_attention_network.1} parent=71 // pred_check
          %p569 = pneg %p51
        $region74: #{graph_attention_network.1} parent=71 // pred_check_branch
          %571 = sbr.rel (%p569) target = $region76
        $region75: #{graph_attention_network.1} parent=71 // pred_region
          %572 = dma.done [#allocation4], 512
        $region76: #{graph_attention_network.1} parent=71 // pred_fallthru
          _
        %s573 = sand.u32 %s35, 1
        %s574 = scalar_lea.sflag [#allocation7], %s573
        %s575 = sand.u32 %s64, 1
        %s576 = smul.addr %s575, 192
        %s577 = scalar_lea.vmem [#allocation6], %s576
        // Predicated region
        $region77: #{graph_attention_network.1} parent=71 // pred_check
          %p578 = pneg %p77
        $region78: #{graph_attention_network.1} parent=71 // pred_check_branch
          %580 = sbr.rel (%p578) target = $region80
        $region79: #{graph_attention_network.1} parent=71 // pred_region
          %581 = dma.done %s574, 3072
        $region80: #{graph_attention_network.1} parent=71 // pred_fallthru
          _
        %s582 = sand.u32 %s35, 1
        %s583 = scalar_lea.sflag [#allocation7], %s582
        %s584 = sand.u32 %s90, 1
        %s585 = smul.addr %s584, 3
        %s586 = scalar_lea.vmem [#allocation8], %s585
        // Predicated region
        $region81: #{graph_attention_network.1} parent=71 // pred_check
          %p587 = pneg %p103
        $region82: #{graph_attention_network.1} parent=71 // pred_check_branch
          %589 = sbr.rel (%p587) target = $region84
        $region83: #{graph_attention_network.1} parent=71 // pred_region
          %590 = dma.done %s583, 48
        $region84: #{graph_attention_network.1} parent=71 // pred_fallthru
          _
        %s591 = sand.u32 %s35, 1
        %s592 = scalar_lea.sflag [#allocation10], %s591
        %s593 = sand.u32 %s116, 1
        %s594 = smul.addr %s593, 64
        %s595 = scalar_lea.vmem [#allocation9], %s594
        // Predicated region
        $region85: #{graph_attention_network.1} parent=71 // pred_check
          %p596 = pneg %p129
        $region86: #{graph_attention_network.1} parent=71 // pred_check_branch
          %598 = sbr.rel (%p596) target = $region88
        $region87: #{graph_attention_network.1} parent=71 // pred_region
          %599 = dma.done %s592, 1024
        $region88: #{graph_attention_network.1} parent=71 // pred_fallthru
          _
        %s600 = sand.u32 %s35, 1
        %s601 = scalar_lea.sflag [#allocation10], %s600
        %s602 = sand.u32 %s220, 1
        %s603 = smul.addr %s602, 128
        %s604 = scalar_lea.vmem [#allocation11], %s603
        // Predicated region
        $region89: #{graph_attention_network.1} parent=71 // pred_check
          %p605 = pneg %p233
        $region90: #{graph_attention_network.1} parent=71 // pred_check_branch
          %607 = sbr.rel (%p605) target = $region92
        $region91: #{graph_attention_network.1} parent=71 // pred_region
          %608 = dma.done %s601, 2048
        $region92: #{graph_attention_network.1} parent=71 // pred_fallthru
          _
        %s609 = sand.u32 %s272, 1
        %s610 = scalar_lea.sflag [#allocation13], %s609
        %s611 = sand.u32 %s272, 1
        %s612 = smul.addr %s611, 128
        %s613 = scalar_lea.vmem [#allocation12], %s612
        // Predicated region
        $region93: #{graph_attention_network.1} parent=71 // pred_check
          %p614 = pneg %p285
        $region94: #{graph_attention_network.1} parent=71 // pred_check_branch
          %616 = sbr.rel (%p614) target = $region96
        $region95: #{graph_attention_network.1} parent=71 // pred_region
          %617 = dma.done %s610, 2048
        $region96: #{graph_attention_network.1} parent=71 // pred_fallthru
          _
        %p618 = pneg %p51
        %p619 = pneg %p48
        %s620 = sand.u32 %s35, 1
        %s621 = scalar_lea.sflag [#allocation7], %s620
        %s622 = sand.u32 %s64, 1
        %s623 = smul.addr %s622, 192
        %s624 = scalar_lea.vmem [#allocation6], %s623
        %p625 = pneg %p77
        %p626 = pneg %p74
        %s627 = sand.u32 %s35, 1
        %s628 = scalar_lea.sflag [#allocation7], %s627
        %s629 = sand.u32 %s90, 1
        %s630 = smul.addr %s629, 3
        %s631 = scalar_lea.vmem [#allocation8], %s630
        %p632 = pneg %p103
        %p633 = pneg %p100
        %s634 = sand.u32 %s35, 1
        %s635 = scalar_lea.sflag [#allocation10], %s634
        %s636 = sand.u32 %s116, 1
        %s637 = smul.addr %s636, 64
        %s638 = scalar_lea.vmem [#allocation9], %s637
        %p639 = pneg %p129
        %p640 = pneg %p126
        %p641 = scmp.lt.s32.totalorder %s35, 1
        %s642 = scalar_select %p641, %s35, 1
        %s643 = scalar_lea.vmem %s4, %s642
        %p644 = pneg %p155
        %p645 = pneg %p152
        %p646 = scmp.lt.s32.totalorder %s35, 1
        %s647 = scalar_select %p646, %s35, 1
        %s648 = scalar_lea.vmem %s5, %s647
        %p649 = pneg %p181
        %p650 = pneg %p178
        %p651 = scmp.lt.s32.totalorder %s35, 1
        %s652 = scalar_select %p651, %s35, 1
        %s653 = scalar_lea.vmem %s6, %s652
        %p654 = pneg %p207
        %p655 = pneg %p204
        %s656 = sand.u32 %s35, 1
        %s657 = scalar_lea.sflag [#allocation10], %s656
        %s658 = sand.u32 %s220, 1
        %s659 = smul.addr %s658, 128
        %s660 = scalar_lea.vmem [#allocation11], %s659
        %p661 = pneg %p233
        %p662 = pneg %p230
        %p663 = scmp.lt.s32.totalorder %s35, 1
        %s664 = scalar_select %p663, %s35, 1
        %s665 = smul.addr %s664, 2
        %s666 = scalar_lea.vmem %s8, %s665
        %p667 = pneg %p259
        %p668 = pneg %p256
        %s669 = sand.u32 %s272, 1
        %s670 = scalar_lea.sflag [#allocation13], %s669
        %s671 = sand.u32 %s272, 1
        %s672 = smul.addr %s671, 128
        %s673 = scalar_lea.vmem [#allocation12], %s672
        %p674 = pneg %p285
        %p675 = pneg %p282
        %p676 = scmp.lt.s32.totalorder %s35, 1
        %s677 = scalar_select %p676, %s35, 1
        %s678 = scalar_lea.vmem %s10, %s677
        %p679 = pneg %p311
        %p680 = pneg %p308
        %p681 = scmp.lt.s32.totalorder %s35, 1
        %s682 = scalar_select %p681, %s35, 1
        %s683 = scalar_lea.vmem %s11, %s682
        %p684 = pneg %p337
        %p685 = pneg %p334
        %p686 = scmp.lt.s32.totalorder %s35, 1
        %s687 = scalar_select %p686, %s35, 1
        %s688 = scalar_lea.vmem %s12, %s687
        %p689 = pneg %p363
        %p690 = pneg %p360
        %p691 = pneg %p384
        %p692 = pneg %p381
        %p693 = scmp.lt.s32.totalorder %s35, 1
        %s694 = scalar_select %p693, %s35, 1
        %s695 = scalar_lea.vmem %s4, %s694
        %p696 = scmp.lt.s32.totalorder %s35, 1
        %s697 = scalar_select %p696, %s35, 1
        %s698 = scalar_lea.vmem %s5, %s697
        %p699 = scmp.lt.s32.totalorder %s35, 1
        %s700 = scalar_select %p699, %s35, 1
        %s701 = scalar_lea.vmem %s6, %s700
        %p702 = scmp.lt.s32.totalorder %s35, 1
        %s703 = scalar_select %p702, %s35, 1
        %s704 = smul.addr %s703, 2
        %s705 = scalar_lea.vmem %s8, %s704
        %p706 = scmp.lt.s32.totalorder %s35, 1
        %s707 = scalar_select %p706, %s35, 1
        %s708 = scalar_lea.vmem %s10, %s707
        %p709 = scmp.lt.s32.totalorder %s35, 1
        %s710 = scalar_select %p709, %s35, 1
        %s711 = scalar_lea.vmem %s11, %s710
        %p712 = scmp.lt.s32.totalorder %s35, 1
        %s713 = scalar_select %p712, %s35, 1
        %s714 = scalar_lea.vmem %s12, %s713
        %p716 = scmp.eq.s32.totalorder %s35, 0
        // Predicated region
        $region97: #{graph_attention_network.1} parent=71 // pred_check
          %p717 = pneg %p716
        $region98: #{graph_attention_network.1} parent=71 // pred_check_branch
          %719 = sbr.rel (%p717) target = $region100
        $region99: #{graph_attention_network.1} parent=71 // pred_region
          %v720 = vld [vmem:[#allocation3] sm:$0xff]
          %v721 = vld [vmem:[#allocation3 + $0x8] sm:$0xff]
          %v722 = vld [vmem:[#allocation3 + $0x10] sm:$0xff]
          %v723 = vld [vmem:[#allocation3 + $0x18] sm:$0xff]
          %724 = vst [vmem:[#allocation2] sm:$0xff] %v720
          %725 = vst [vmem:[#allocation2 + $0x8] sm:$0xff] %v721
          %726 = vst [vmem:[#allocation2 + $0x10] sm:$0xff] %v722
          %727 = vst [vmem:[#allocation2 + $0x18] sm:$0xff] %v723
        $region100: #{graph_attention_network.1} parent=71 // pred_fallthru
          _
        %v728 = vld [vmem:[#allocation2] sm:$0xff]
        %v729 = vld [vmem:[#allocation2 + $0x8] sm:$0xff]
        %v730 = vld [vmem:[#allocation2 + $0x10] sm:$0xff]
        %v731 = vld [vmem:[#allocation2 + $0x18] sm:$0xff]
        %v732 = vpack.c.bf16 %v729, %v728
        %v733 = vpack.c.bf16 %v731, %v730
        %v734 = vld [vmem:[%s577] sm:$0xff]
        %v735 = vld [vmem:[%s577 + $0x8] sm:$0xf]
        %v736 = vld [vmem:[%s577 + $0xc] sm:$0xff]
        %v737 = vld [vmem:[%s577 + $0x14] sm:$0xf]
        %v738 = vld [vmem:[%s577 + $0x18] sm:$0xff]
        %v739 = vld [vmem:[%s577 + $0x20] sm:$0xf]
        %v740 = vld [vmem:[%s577 + $0x24] sm:$0xff]
        %v741 = vld [vmem:[%s577 + $0x2c] sm:$0xf]
        %v742 = vld [vmem:[%s577 + $0x30] sm:$0xff]
        %v743 = vld [vmem:[%s577 + $0x38] sm:$0xf]
        %v744 = vld [vmem:[%s577 + $0x3c] sm:$0xff]
        %v745 = vld [vmem:[%s577 + $0x44] sm:$0xf]
        %v746 = vld [vmem:[%s577 + $0x48] sm:$0xff]
        %v747 = vld [vmem:[%s577 + $0x50] sm:$0xf]
        %v748 = vld [vmem:[%s577 + $0x54] sm:$0xff]
        %v749 = vld [vmem:[%s577 + $0x5c] sm:$0xf]
        %v750 = vld [vmem:[%s577 + $0x60] sm:$0xff]
        %v751 = vld [vmem:[%s577 + $0x68] sm:$0xf]
        %v752 = vld [vmem:[%s577 + $0x6c] sm:$0xff]
        %v753 = vld [vmem:[%s577 + $0x74] sm:$0xf]
        %v754 = vld [vmem:[%s577 + $0x78] sm:$0xff]
        %v755 = vld [vmem:[%s577 + $0x80] sm:$0xf]
        %v756 = vld [vmem:[%s577 + $0x84] sm:$0xff]
        %v757 = vld [vmem:[%s577 + $0x8c] sm:$0xf]
        %v758 = vld [vmem:[%s577 + $0x90] sm:$0xff]
        %v759 = vld [vmem:[%s577 + $0x98] sm:$0xf]
        %v760 = vld [vmem:[%s577 + $0x9c] sm:$0xff]
        %v761 = vld [vmem:[%s577 + $0xa4] sm:$0xf]
        %v762 = vld [vmem:[%s577 + $0xa8] sm:$0xff]
        %v763 = vld [vmem:[%s577 + $0xb0] sm:$0xf]
        %v764 = vld [vmem:[%s577 + $0xb4] sm:$0xff]
        %v765 = vld [vmem:[%s577 + $0xbc] sm:$0xf]
        %v766 = vld [vmem:[%s586] sm:$0x7]
        %v768 = vlaneseq
        %v769 = vshrl.u32 %v768, 7
        %v770 = vsub.s32 0, %v769
        %v771 = vrot.slane %v766, %v770
        %v772 = vlaneseq
        %v773 = vshrl.u32 %v772, 7
        %v774 = vsub.s32 1, %v773
        %v775 = vrot.slane %v766, %v774
        %v776 = vlaneseq
        %v777 = vshrl.u32 %v776, 7
        %v778 = vsub.s32 2, %v777
        %v779 = vrot.slane %v766, %v778
        %v815 = vunpack.c.l.b16 %v734
        %v816 = vunpack.c.h.b16 %v734
        %v817 = vunpack.c.l.b16 %v735
        %v818 = vunpack.c.l.b16 %v736
        %v819 = vunpack.c.h.b16 %v736
        %v820 = vunpack.c.l.b16 %v737
        %v821 = vunpack.c.l.b16 %v738
        %v822 = vunpack.c.h.b16 %v738
        %v823 = vunpack.c.l.b16 %v739
        %v824 = vunpack.c.l.b16 %v740
        %v825 = vunpack.c.h.b16 %v740
        %v826 = vunpack.c.l.b16 %v741
        %v827 = vunpack.c.l.b16 %v742
        %v828 = vunpack.c.h.b16 %v742
        %v829 = vunpack.c.l.b16 %v743
        %v830 = vunpack.c.l.b16 %v744
        %v831 = vunpack.c.h.b16 %v744
        %v832 = vunpack.c.l.b16 %v745
        %v833 = vunpack.c.l.b16 %v746
        %v834 = vunpack.c.h.b16 %v746
        %v835 = vunpack.c.l.b16 %v747
        %v836 = vunpack.c.l.b16 %v748
        %v837 = vunpack.c.h.b16 %v748
        %v838 = vunpack.c.l.b16 %v749
        %v839 = vunpack.c.l.b16 %v750
        %v840 = vunpack.c.h.b16 %v750
        %v841 = vunpack.c.l.b16 %v751
        %v842 = vunpack.c.l.b16 %v752
        %v843 = vunpack.c.h.b16 %v752
        %v844 = vunpack.c.l.b16 %v753
        %v845 = vunpack.c.l.b16 %v754
        %v846 = vunpack.c.h.b16 %v754
        %v847 = vunpack.c.l.b16 %v755
        %v848 = vunpack.c.l.b16 %v756
        %v849 = vunpack.c.h.b16 %v756
        %v850 = vunpack.c.l.b16 %v757
        %v851 = vunpack.c.l.b16 %v758
        %v852 = vunpack.c.h.b16 %v758
        %v853 = vunpack.c.l.b16 %v759
        %v854 = vunpack.c.l.b16 %v760
        %v855 = vunpack.c.h.b16 %v760
        %v856 = vunpack.c.l.b16 %v761
        %v857 = vunpack.c.l.b16 %v762
        %v858 = vunpack.c.h.b16 %v762
        %v859 = vunpack.c.l.b16 %v763
        %v860 = vunpack.c.l.b16 %v764
        %v861 = vunpack.c.h.b16 %v764
        %v862 = vunpack.c.l.b16 %v765
        %v863 = vpack.c.b16 %v818, %v815
        %v864 = vpack.c.b16 %v819, %v816
        %v865 = vpack.c.b16 %v820, %v817
        %v866 = vpack.c.b16 %v824, %v821
        %v867 = vpack.c.b16 %v825, %v822
        %v868 = vpack.c.b16 %v826, %v823
        %v869 = vpack.c.b16 %v830, %v827
        %v870 = vpack.c.b16 %v831, %v828
        %v871 = vpack.c.b16 %v832, %v829
        %v872 = vpack.c.b16 %v836, %v833
        %v873 = vpack.c.b16 %v837, %v834
        %v874 = vpack.c.b16 %v838, %v835
        %v875 = vpack.c.b16 %v842, %v839
        %v876 = vpack.c.b16 %v843, %v840
        %v877 = vpack.c.b16 %v844, %v841
        %v878 = vpack.c.b16 %v848, %v845
        %v879 = vpack.c.b16 %v849, %v846
        %v880 = vpack.c.b16 %v850, %v847
        %v881 = vpack.c.b16 %v854, %v851
        %v882 = vpack.c.b16 %v855, %v852
        %v883 = vpack.c.b16 %v856, %v853
        %v884 = vpack.c.b16 %v860, %v857
        %v885 = vpack.c.b16 %v861, %v858
        %v886 = vpack.c.b16 %v862, %v859
        %911 = vmatprep.subr.bf16.mxu0 %v885
        %912 = vmatpush1.bf16.msra.mxu0 %v884
        %913 = vmatprep.subr.bf16.mxu0 %v882
        %914 = vmatpush1.bf16.msra.mxu0 %v881
        %915 = vmatprep.subr.bf16.mxu0 %v879
        %916 = vmatpush1.bf16.msra.mxu0 %v878
        %917 = vmatprep.subr.bf16.mxu0 %v876
        %918 = vmatpush1.bf16.msra.mxu0 %v875
        %919 = vmatprep.subr.bf16.mxu0 %v873
        %920 = vmatpush1.bf16.msra.mxu0 %v872
        %921 = vmatprep.subr.bf16.mxu0 %v870
        %922 = vmatpush1.bf16.msra.mxu0 %v869
        %923 = vmatprep.subr.bf16.mxu0 %v867
        %924 = vmatpush1.bf16.msra.mxu0 %v866
        %925 = vmatprep.subr.bf16.mxu0 %v864
        %926 = vmatpush1.bf16.msra.mxu0 %v863
        %927 = vmatprep.subr.bf16.mxu0 0
        %928 = vmatpush2.bf16.msra.mxu0 0
        %929 = vmatprep.subr.bf16.mxu0 0
        %930 = vmatpush2.bf16.msra.mxu0 0
        %931 = vmatprep.subr.bf16.mxu0 0
        %932 = vmatpush2.bf16.msra.mxu0 0
        %933 = vmatprep.subr.bf16.mxu0 0
        %934 = vmatpush2.bf16.msra.mxu0 0
        %935 = vmatprep.subr.bf16.mxu0 0
        %936 = vmatpush2.bf16.msra.mxu0 0
        %937 = vmatprep.subr.bf16.mxu0 0
        %938 = vmatpush2.bf16.msra.mxu0 0
        %939 = vmatprep.subr.bf16.mxu0 0
        %940 = vmatpush2.bf16.msra.mxu0 0
        %941 = vmatprep.subr.bf16.mxu0 0
        %942 = vmatpush2.bf16.msra.mxu0 0
        %943 = vmatprep.mubr.bf16.mxu0 0
        %944 = vmatmul.mubr.bf16.gmra.mxu0 %v732
        %v945 = vpop.f32.mrf.mxu0
        %v946 = vadd.f32 %v771, %v945
        %v947 = vpop.f32.mrf.mxu0
        %v948 = vadd.f32 %v775, %v947
        %v949 = vpop.f32.mrf.mxu0
        %v950 = vadd.f32 %v771, %v949
        %v951 = vpop.f32.mrf.mxu0
        %v952 = vadd.f32 %v775, %v951
        %953 = vmatprep.mubr.bf16.mxu0 0
        %954 = vmatmul.mubr.bf16.gmra.mxu0 %v733
        %v955 = vpop.f32.mrf.mxu0
        %v956 = vadd.f32 %v771, %v955
        %v957 = vpop.f32.mrf.mxu0
        %v958 = vadd.f32 %v775, %v957
        %v959 = vpop.f32.mrf.mxu0
        %v960 = vadd.f32 %v771, %v959
        %v961 = vpop.f32.mrf.mxu0
        %v962 = vadd.f32 %v775, %v961
        %963 = vdwg.mxu0
        %964 = vmatprep.subr.bf16.mxu0 0
        %965 = vmatpush1.bf16.msra.mxu0 %v886
        %966 = vmatprep.subr.bf16.mxu0 0
        %967 = vmatpush1.bf16.msra.mxu0 %v883
        %968 = vmatprep.subr.bf16.mxu0 0
        %969 = vmatpush1.bf16.msra.mxu0 %v880
        %970 = vmatprep.subr.bf16.mxu0 0
        %971 = vmatpush1.bf16.msra.mxu0 %v877
        %972 = vmatprep.subr.bf16.mxu0 0
        %973 = vmatpush1.bf16.msra.mxu0 %v874
        %974 = vmatprep.subr.bf16.mxu0 0
        %975 = vmatpush1.bf16.msra.mxu0 %v871
        %976 = vmatprep.subr.bf16.mxu0 0
        %977 = vmatpush1.bf16.msra.mxu0 %v868
        %978 = vmatprep.subr.bf16.mxu0 0
        %979 = vmatpush1.bf16.msra.mxu0 %v865
        %980 = vmatprep.subr.bf16.mxu0 0
        %981 = vmatpush2.bf16.msra.mxu0 0
        %982 = vmatprep.subr.bf16.mxu0 0
        %983 = vmatpush2.bf16.msra.mxu0 0
        %984 = vmatprep.subr.bf16.mxu0 0
        %985 = vmatpush2.bf16.msra.mxu0 0
        %986 = vmatprep.subr.bf16.mxu0 0
        %987 = vmatpush2.bf16.msra.mxu0 0
        %988 = vmatprep.subr.bf16.mxu0 0
        %989 = vmatpush2.bf16.msra.mxu0 0
        %990 = vmatprep.subr.bf16.mxu0 0
        %991 = vmatpush2.bf16.msra.mxu0 0
        %992 = vmatprep.subr.bf16.mxu0 0
        %993 = vmatpush2.bf16.msra.mxu0 0
        %994 = vmatprep.subr.bf16.mxu0 0
        %995 = vmatpush2.bf16.msra.mxu0 0
        %996 = vmatprep.mubr.bf16.mxu0 0
        %997 = vmatmul.mubr.bf16.gmra.mxu0 %v732
        %v998 = vpop.f32.mrf.mxu0
        %v999 = vadd.f32 %v779, %v998
        %v1000 = vpop.f32.mrf.mxu0
        %v1001 = vpop.f32.mrf.mxu0
        %v1002 = vadd.f32 %v779, %v1001
        %v1003 = vpop.f32.mrf.mxu0
        %1004 = vmatprep.mubr.bf16.mxu0 0
        %1005 = vmatmul.mubr.bf16.gmra.mxu0 %v733
        %v1006 = vpop.f32.mrf.mxu0
        %v1007 = vadd.f32 %v779, %v1006
        %v1008 = vpop.f32.mrf.mxu0
        %v1009 = vpop.f32.mrf.mxu0
        %v1010 = vadd.f32 %v779, %v1009
        %v1011 = vpop.f32.mrf.mxu0
        %1012 = vdwg.mxu0
        %1017 = vrot.lane.b32.xlu0 %v946, 112
        %v1018 = vpop.permute.xlu0 %1017
        %1019 = vrot.lane.b32.xlu0 %v950, 112
        %v1020 = vpop.permute.xlu0 %1019
        %1021 = vrot.lane.b32.xlu0 %v956, 112
        %v1022 = vpop.permute.xlu0 %1021
        %1023 = vrot.lane.b32.xlu0 %v960, 112
        %v1024 = vpop.permute.xlu0 %1023
        %1029 = vrot.lane.b32.xlu0 %v946, 96
        %v1030 = vpop.permute.xlu0 %1029
        %1031 = vrot.lane.b32.xlu0 %v950, 96
        %v1032 = vpop.permute.xlu0 %1031
        %1033 = vrot.lane.b32.xlu0 %v956, 96
        %v1034 = vpop.permute.xlu0 %1033
        %1035 = vrot.lane.b32.xlu0 %v960, 96
        %v1036 = vpop.permute.xlu0 %1035
        %1041 = vrot.lane.b32.xlu0 %v946, 80
        %v1042 = vpop.permute.xlu0 %1041
        %1043 = vrot.lane.b32.xlu0 %v950, 80
        %v1044 = vpop.permute.xlu0 %1043
        %1045 = vrot.lane.b32.xlu0 %v956, 80
        %v1046 = vpop.permute.xlu0 %1045
        %1047 = vrot.lane.b32.xlu0 %v960, 80
        %v1048 = vpop.permute.xlu0 %1047
        %1053 = vrot.lane.b32.xlu0 %v946, 64
        %v1054 = vpop.permute.xlu0 %1053
        %1055 = vrot.lane.b32.xlu0 %v950, 64
        %v1056 = vpop.permute.xlu0 %1055
        %1057 = vrot.lane.b32.xlu0 %v956, 64
        %v1058 = vpop.permute.xlu0 %1057
        %1059 = vrot.lane.b32.xlu0 %v960, 64
        %v1060 = vpop.permute.xlu0 %1059
        %1065 = vrot.lane.b32.xlu0 %v946, 48
        %v1066 = vpop.permute.xlu0 %1065
        %1067 = vrot.lane.b32.xlu0 %v950, 48
        %v1068 = vpop.permute.xlu0 %1067
        %1069 = vrot.lane.b32.xlu0 %v956, 48
        %v1070 = vpop.permute.xlu0 %1069
        %1071 = vrot.lane.b32.xlu0 %v960, 48
        %v1072 = vpop.permute.xlu0 %1071
        %1077 = vrot.lane.b32.xlu0 %v946, 32
        %v1078 = vpop.permute.xlu0 %1077
        %1079 = vrot.lane.b32.xlu0 %v950, 32
        %v1080 = vpop.permute.xlu0 %1079
        %1081 = vrot.lane.b32.xlu0 %v956, 32
        %v1082 = vpop.permute.xlu0 %1081
        %1083 = vrot.lane.b32.xlu0 %v960, 32
        %v1084 = vpop.permute.xlu0 %1083
        %1089 = vrot.lane.b32.xlu0 %v946, 16
        %v1090 = vpop.permute.xlu0 %1089
        %1091 = vrot.lane.b32.xlu0 %v950, 16
        %v1092 = vpop.permute.xlu0 %1091
        %1093 = vrot.lane.b32.xlu0 %v956, 16
        %v1094 = vpop.permute.xlu0 %1093
        %1095 = vrot.lane.b32.xlu0 %v960, 16
        %v1096 = vpop.permute.xlu0 %1095
        %v1101 = vcombine.low %v946, %v1030
        %v1102 = vcombine.high %v946, %v1030
        %v1104 = vunpack.c.l.s4 1983009808
        %v1105 = vunpack.c.0.s8 %v1104
        %v1106 = vlaneseq
        %v1107 = vshrl.u32 %v1106, 7
        %v1108 = vsub.s32 %v1105, %v1107
        %v1109 = vrot.slane %v1101, %v1108
        %v1111 = vunpack.c.l.s4 1983009808
        %v1112 = vunpack.c.0.s8 %v1111
        %v1113 = vlaneseq
        %v1114 = vshrl.u32 %v1113, 7
        %v1115 = vsub.s32 %v1112, %v1114
        %v1116 = vrot.slane %v1102, %v1115
        %v1117 = vcombine.low %v1018, %v1042
        %v1118 = vcombine.high %v1018, %v1042
        %v1120 = vunpack.c.l.s4 1983009808
        %v1121 = vunpack.c.0.s8 %v1120
        %v1122 = vlaneseq
        %v1123 = vshrl.u32 %v1122, 7
        %v1124 = vsub.s32 %v1121, %v1123
        %v1125 = vrot.slane %v1117, %v1124
        %v1127 = vunpack.c.l.s4 1983009808
        %v1128 = vunpack.c.0.s8 %v1127
        %v1129 = vlaneseq
        %v1130 = vshrl.u32 %v1129, 7
        %v1131 = vsub.s32 %v1128, %v1130
        %v1132 = vrot.slane %v1118, %v1131
        %v1133 = vcombine.low %v1054, %v1078
        %v1134 = vcombine.high %v1054, %v1078
        %v1136 = vunpack.c.l.s4 1983009808
        %v1137 = vunpack.c.0.s8 %v1136
        %v1138 = vlaneseq
        %v1139 = vshrl.u32 %v1138, 7
        %v1140 = vsub.s32 %v1137, %v1139
        %v1141 = vrot.slane %v1133, %v1140
        %v1143 = vunpack.c.l.s4 1983009808
        %v1144 = vunpack.c.0.s8 %v1143
        %v1145 = vlaneseq
        %v1146 = vshrl.u32 %v1145, 7
        %v1147 = vsub.s32 %v1144, %v1146
        %v1148 = vrot.slane %v1134, %v1147
        %v1149 = vcombine.low %v1066, %v1090
        %v1150 = vcombine.high %v1066, %v1090
        %v1152 = vunpack.c.l.s4 1983009808
        %v1153 = vunpack.c.0.s8 %v1152
        %v1154 = vlaneseq
        %v1155 = vshrl.u32 %v1154, 7
        %v1156 = vsub.s32 %v1153, %v1155
        %v1157 = vrot.slane %v1149, %v1156
        %v1159 = vunpack.c.l.s4 1983009808
        %v1160 = vunpack.c.0.s8 %v1159
        %v1161 = vlaneseq
        %v1162 = vshrl.u32 %v1161, 7
        %v1163 = vsub.s32 %v1160, %v1162
        %v1164 = vrot.slane %v1150, %v1163
        %v1165 = vcombine.low %v1109, %v1125
        %v1166 = vcombine.high %v1109, %v1125
        %v1168 = vunpack.c.l.s4 1934713408
        %v1169 = vunpack.c.0.s8 %v1168
        %v1170 = vlaneseq
        %v1171 = vshrl.u32 %v1170, 7
        %v1172 = vsub.s32 %v1169, %v1171
        %v1173 = vrot.slane %v1165, %v1172
        %v1175 = vunpack.c.l.s4 1934713408
        %v1176 = vunpack.c.0.s8 %v1175
        %v1177 = vlaneseq
        %v1178 = vshrl.u32 %v1177, 7
        %v1179 = vsub.s32 %v1176, %v1178
        %v1180 = vrot.slane %v1166, %v1179
        %v1181 = vcombine.low %v1116, %v1132
        %v1182 = vcombine.high %v1116, %v1132
        %v1184 = vunpack.c.l.s4 1934713408
        %v1185 = vunpack.c.0.s8 %v1184
        %v1186 = vlaneseq
        %v1187 = vshrl.u32 %v1186, 7
        %v1188 = vsub.s32 %v1185, %v1187
        %v1189 = vrot.slane %v1181, %v1188
        %v1191 = vunpack.c.l.s4 1934713408
        %v1192 = vunpack.c.0.s8 %v1191
        %v1193 = vlaneseq
        %v1194 = vshrl.u32 %v1193, 7
        %v1195 = vsub.s32 %v1192, %v1194
        %v1196 = vrot.slane %v1182, %v1195
        %v1197 = vcombine.low %v1141, %v1157
        %v1198 = vcombine.high %v1141, %v1157
        %v1200 = vunpack.c.l.s4 1934713408
        %v1201 = vunpack.c.0.s8 %v1200
        %v1202 = vlaneseq
        %v1203 = vshrl.u32 %v1202, 7
        %v1204 = vsub.s32 %v1201, %v1203
        %v1205 = vrot.slane %v1197, %v1204
        %v1207 = vunpack.c.l.s4 1934713408
        %v1208 = vunpack.c.0.s8 %v1207
        %v1209 = vlaneseq
        %v1210 = vshrl.u32 %v1209, 7
        %v1211 = vsub.s32 %v1208, %v1210
        %v1212 = vrot.slane %v1198, %v1211
        %v1213 = vcombine.low %v1148, %v1164
        %v1214 = vcombine.high %v1148, %v1164
        %v1216 = vunpack.c.l.s4 1934713408
        %v1217 = vunpack.c.0.s8 %v1216
        %v1218 = vlaneseq
        %v1219 = vshrl.u32 %v1218, 7
        %v1220 = vsub.s32 %v1217, %v1219
        %v1221 = vrot.slane %v1213, %v1220
        %v1223 = vunpack.c.l.s4 1934713408
        %v1224 = vunpack.c.0.s8 %v1223
        %v1225 = vlaneseq
        %v1226 = vshrl.u32 %v1225, 7
        %v1227 = vsub.s32 %v1224, %v1226
        %v1228 = vrot.slane %v1214, %v1227
        %v1229 = vcombine.low %v1173, %v1205
        %v1230 = vcombine.high %v1173, %v1205
        %v1231 = vcombine.low %v1180, %v1212
        %v1232 = vcombine.high %v1180, %v1212
        %v1233 = vcombine.low %v1189, %v1221
        %v1234 = vcombine.high %v1189, %v1221
        %v1235 = vcombine.low %v1196, %v1228
        %v1236 = vcombine.high %v1196, %v1228
        %v1237 = vcombine.low %v950, %v1032
        %v1238 = vcombine.high %v950, %v1032
        %v1240 = vunpack.c.l.s4 1983009808
        %v1241 = vunpack.c.0.s8 %v1240
        %v1242 = vlaneseq
        %v1243 = vshrl.u32 %v1242, 7
        %v1244 = vsub.s32 %v1241, %v1243
        %v1245 = vrot.slane %v1237, %v1244
        %v1247 = vunpack.c.l.s4 1983009808
        %v1248 = vunpack.c.0.s8 %v1247
        %v1249 = vlaneseq
        %v1250 = vshrl.u32 %v1249, 7
        %v1251 = vsub.s32 %v1248, %v1250
        %v1252 = vrot.slane %v1238, %v1251
        %v1253 = vcombine.low %v1020, %v1044
        %v1254 = vcombine.high %v1020, %v1044
        %v1256 = vunpack.c.l.s4 1983009808
        %v1257 = vunpack.c.0.s8 %v1256
        %v1258 = vlaneseq
        %v1259 = vshrl.u32 %v1258, 7
        %v1260 = vsub.s32 %v1257, %v1259
        %v1261 = vrot.slane %v1253, %v1260
        %v1263 = vunpack.c.l.s4 1983009808
        %v1264 = vunpack.c.0.s8 %v1263
        %v1265 = vlaneseq
        %v1266 = vshrl.u32 %v1265, 7
        %v1267 = vsub.s32 %v1264, %v1266
        %v1268 = vrot.slane %v1254, %v1267
        %v1269 = vcombine.low %v1056, %v1080
        %v1270 = vcombine.high %v1056, %v1080
        %v1272 = vunpack.c.l.s4 1983009808
        %v1273 = vunpack.c.0.s8 %v1272
        %v1274 = vlaneseq
        %v1275 = vshrl.u32 %v1274, 7
        %v1276 = vsub.s32 %v1273, %v1275
        %v1277 = vrot.slane %v1269, %v1276
        %v1279 = vunpack.c.l.s4 1983009808
        %v1280 = vunpack.c.0.s8 %v1279
        %v1281 = vlaneseq
        %v1282 = vshrl.u32 %v1281, 7
        %v1283 = vsub.s32 %v1280, %v1282
        %v1284 = vrot.slane %v1270, %v1283
        %v1285 = vcombine.low %v1068, %v1092
        %v1286 = vcombine.high %v1068, %v1092
        %v1288 = vunpack.c.l.s4 1983009808
        %v1289 = vunpack.c.0.s8 %v1288
        %v1290 = vlaneseq
        %v1291 = vshrl.u32 %v1290, 7
        %v1292 = vsub.s32 %v1289, %v1291
        %v1293 = vrot.slane %v1285, %v1292
        %v1295 = vunpack.c.l.s4 1983009808
        %v1296 = vunpack.c.0.s8 %v1295
        %v1297 = vlaneseq
        %v1298 = vshrl.u32 %v1297, 7
        %v1299 = vsub.s32 %v1296, %v1298
        %v1300 = vrot.slane %v1286, %v1299
        %v1301 = vcombine.low %v1245, %v1261
        %v1302 = vcombine.high %v1245, %v1261
        %v1304 = vunpack.c.l.s4 1934713408
        %v1305 = vunpack.c.0.s8 %v1304
        %v1306 = vlaneseq
        %v1307 = vshrl.u32 %v1306, 7
        %v1308 = vsub.s32 %v1305, %v1307
        %v1309 = vrot.slane %v1301, %v1308
        %v1311 = vunpack.c.l.s4 1934713408
        %v1312 = vunpack.c.0.s8 %v1311
        %v1313 = vlaneseq
        %v1314 = vshrl.u32 %v1313, 7
        %v1315 = vsub.s32 %v1312, %v1314
        %v1316 = vrot.slane %v1302, %v1315
        %v1317 = vcombine.low %v1252, %v1268
        %v1318 = vcombine.high %v1252, %v1268
        %v1320 = vunpack.c.l.s4 1934713408
        %v1321 = vunpack.c.0.s8 %v1320
        %v1322 = vlaneseq
        %v1323 = vshrl.u32 %v1322, 7
        %v1324 = vsub.s32 %v1321, %v1323
        %v1325 = vrot.slane %v1317, %v1324
        %v1327 = vunpack.c.l.s4 1934713408
        %v1328 = vunpack.c.0.s8 %v1327
        %v1329 = vlaneseq
        %v1330 = vshrl.u32 %v1329, 7
        %v1331 = vsub.s32 %v1328, %v1330
        %v1332 = vrot.slane %v1318, %v1331
        %v1333 = vcombine.low %v1277, %v1293
        %v1334 = vcombine.high %v1277, %v1293
        %v1336 = vunpack.c.l.s4 1934713408
        %v1337 = vunpack.c.0.s8 %v1336
        %v1338 = vlaneseq
        %v1339 = vshrl.u32 %v1338, 7
        %v1340 = vsub.s32 %v1337, %v1339
        %v1341 = vrot.slane %v1333, %v1340
        %v1343 = vunpack.c.l.s4 1934713408
        %v1344 = vunpack.c.0.s8 %v1343
        %v1345 = vlaneseq
        %v1346 = vshrl.u32 %v1345, 7
        %v1347 = vsub.s32 %v1344, %v1346
        %v1348 = vrot.slane %v1334, %v1347
        %v1349 = vcombine.low %v1284, %v1300
        %v1350 = vcombine.high %v1284, %v1300
        %v1352 = vunpack.c.l.s4 1934713408
        %v1353 = vunpack.c.0.s8 %v1352
        %v1354 = vlaneseq
        %v1355 = vshrl.u32 %v1354, 7
        %v1356 = vsub.s32 %v1353, %v1355
        %v1357 = vrot.slane %v1349, %v1356
        %v1359 = vunpack.c.l.s4 1934713408
        %v1360 = vunpack.c.0.s8 %v1359
        %v1361 = vlaneseq
        %v1362 = vshrl.u32 %v1361, 7
        %v1363 = vsub.s32 %v1360, %v1362
        %v1364 = vrot.slane %v1350, %v1363
        %v1365 = vcombine.low %v1309, %v1341
        %v1366 = vcombine.high %v1309, %v1341
        %v1367 = vcombine.low %v1316, %v1348
        %v1368 = vcombine.high %v1316, %v1348
        %v1369 = vcombine.low %v1325, %v1357
        %v1370 = vcombine.high %v1325, %v1357
        %v1371 = vcombine.low %v1332, %v1364
        %v1372 = vcombine.high %v1332, %v1364
        %v1373 = vcombine.low %v956, %v1034
        %v1374 = vcombine.high %v956, %v1034
        %v1376 = vunpack.c.l.s4 1983009808
        %v1377 = vunpack.c.0.s8 %v1376
        %v1378 = vlaneseq
        %v1379 = vshrl.u32 %v1378, 7
        %v1380 = vsub.s32 %v1377, %v1379
        %v1381 = vrot.slane %v1373, %v1380
        %v1383 = vunpack.c.l.s4 1983009808
        %v1384 = vunpack.c.0.s8 %v1383
        %v1385 = vlaneseq
        %v1386 = vshrl.u32 %v1385, 7
        %v1387 = vsub.s32 %v1384, %v1386
        %v1388 = vrot.slane %v1374, %v1387
        %v1389 = vcombine.low %v1022, %v1046
        %v1390 = vcombine.high %v1022, %v1046
        %v1392 = vunpack.c.l.s4 1983009808
        %v1393 = vunpack.c.0.s8 %v1392
        %v1394 = vlaneseq
        %v1395 = vshrl.u32 %v1394, 7
        %v1396 = vsub.s32 %v1393, %v1395
        %v1397 = vrot.slane %v1389, %v1396
        %v1399 = vunpack.c.l.s4 1983009808
        %v1400 = vunpack.c.0.s8 %v1399
        %v1401 = vlaneseq
        %v1402 = vshrl.u32 %v1401, 7
        %v1403 = vsub.s32 %v1400, %v1402
        %v1404 = vrot.slane %v1390, %v1403
        %v1405 = vcombine.low %v1058, %v1082
        %v1406 = vcombine.high %v1058, %v1082
        %v1408 = vunpack.c.l.s4 1983009808
        %v1409 = vunpack.c.0.s8 %v1408
        %v1410 = vlaneseq
        %v1411 = vshrl.u32 %v1410, 7
        %v1412 = vsub.s32 %v1409, %v1411
        %v1413 = vrot.slane %v1405, %v1412
        %v1415 = vunpack.c.l.s4 1983009808
        %v1416 = vunpack.c.0.s8 %v1415
        %v1417 = vlaneseq
        %v1418 = vshrl.u32 %v1417, 7
        %v1419 = vsub.s32 %v1416, %v1418
        %v1420 = vrot.slane %v1406, %v1419
        %v1421 = vcombine.low %v1070, %v1094
        %v1422 = vcombine.high %v1070, %v1094
        %v1424 = vunpack.c.l.s4 1983009808
        %v1425 = vunpack.c.0.s8 %v1424
        %v1426 = vlaneseq
        %v1427 = vshrl.u32 %v1426, 7
        %v1428 = vsub.s32 %v1425, %v1427
        %v1429 = vrot.slane %v1421, %v1428
        %v1431 = vunpack.c.l.s4 1983009808
        %v1432 = vunpack.c.0.s8 %v1431
        %v1433 = vlaneseq
        %v1434 = vshrl.u32 %v1433, 7
        %v1435 = vsub.s32 %v1432, %v1434
        %v1436 = vrot.slane %v1422, %v1435
        %v1437 = vcombine.low %v1381, %v1397
        %v1438 = vcombine.high %v1381, %v1397
        %v1440 = vunpack.c.l.s4 1934713408
        %v1441 = vunpack.c.0.s8 %v1440
        %v1442 = vlaneseq
        %v1443 = vshrl.u32 %v1442, 7
        %v1444 = vsub.s32 %v1441, %v1443
        %v1445 = vrot.slane %v1437, %v1444
        %v1447 = vunpack.c.l.s4 1934713408
        %v1448 = vunpack.c.0.s8 %v1447
        %v1449 = vlaneseq
        %v1450 = vshrl.u32 %v1449, 7
        %v1451 = vsub.s32 %v1448, %v1450
        %v1452 = vrot.slane %v1438, %v1451
        %v1453 = vcombine.low %v1388, %v1404
        %v1454 = vcombine.high %v1388, %v1404
        %v1456 = vunpack.c.l.s4 1934713408
        %v1457 = vunpack.c.0.s8 %v1456
        %v1458 = vlaneseq
        %v1459 = vshrl.u32 %v1458, 7
        %v1460 = vsub.s32 %v1457, %v1459
        %v1461 = vrot.slane %v1453, %v1460
        %v1463 = vunpack.c.l.s4 1934713408
        %v1464 = vunpack.c.0.s8 %v1463
        %v1465 = vlaneseq
        %v1466 = vshrl.u32 %v1465, 7
        %v1467 = vsub.s32 %v1464, %v1466
        %v1468 = vrot.slane %v1454, %v1467
        %v1469 = vcombine.low %v1413, %v1429
        %v1470 = vcombine.high %v1413, %v1429
        %v1472 = vunpack.c.l.s4 1934713408
        %v1473 = vunpack.c.0.s8 %v1472
        %v1474 = vlaneseq
        %v1475 = vshrl.u32 %v1474, 7
        %v1476 = vsub.s32 %v1473, %v1475
        %v1477 = vrot.slane %v1469, %v1476
        %v1479 = vunpack.c.l.s4 1934713408
        %v1480 = vunpack.c.0.s8 %v1479
        %v1481 = vlaneseq
        %v1482 = vshrl.u32 %v1481, 7
        %v1483 = vsub.s32 %v1480, %v1482
        %v1484 = vrot.slane %v1470, %v1483
        %v1485 = vcombine.low %v1420, %v1436
        %v1486 = vcombine.high %v1420, %v1436
        %v1488 = vunpack.c.l.s4 1934713408
        %v1489 = vunpack.c.0.s8 %v1488
        %v1490 = vlaneseq
        %v1491 = vshrl.u32 %v1490, 7
        %v1492 = vsub.s32 %v1489, %v1491
        %v1493 = vrot.slane %v1485, %v1492
        %v1495 = vunpack.c.l.s4 1934713408
        %v1496 = vunpack.c.0.s8 %v1495
        %v1497 = vlaneseq
        %v1498 = vshrl.u32 %v1497, 7
        %v1499 = vsub.s32 %v1496, %v1498
        %v1500 = vrot.slane %v1486, %v1499
        %v1501 = vcombine.low %v1445, %v1477
        %v1502 = vcombine.high %v1445, %v1477
        %v1503 = vcombine.low %v1452, %v1484
        %v1504 = vcombine.high %v1452, %v1484
        %v1505 = vcombine.low %v1461, %v1493
        %v1506 = vcombine.high %v1461, %v1493
        %v1507 = vcombine.low %v1468, %v1500
        %v1508 = vcombine.high %v1468, %v1500
        %v1509 = vcombine.low %v960, %v1036
        %v1510 = vcombine.high %v960, %v1036
        %v1512 = vunpack.c.l.s4 1983009808
        %v1513 = vunpack.c.0.s8 %v1512
        %v1514 = vlaneseq
        %v1515 = vshrl.u32 %v1514, 7
        %v1516 = vsub.s32 %v1513, %v1515
        %v1517 = vrot.slane %v1509, %v1516
        %v1519 = vunpack.c.l.s4 1983009808
        %v1520 = vunpack.c.0.s8 %v1519
        %v1521 = vlaneseq
        %v1522 = vshrl.u32 %v1521, 7
        %v1523 = vsub.s32 %v1520, %v1522
        %v1524 = vrot.slane %v1510, %v1523
        %v1525 = vcombine.low %v1024, %v1048
        %v1526 = vcombine.high %v1024, %v1048
        %v1528 = vunpack.c.l.s4 1983009808
        %v1529 = vunpack.c.0.s8 %v1528
        %v1530 = vlaneseq
        %v1531 = vshrl.u32 %v1530, 7
        %v1532 = vsub.s32 %v1529, %v1531
        %v1533 = vrot.slane %v1525, %v1532
        %v1535 = vunpack.c.l.s4 1983009808
        %v1536 = vunpack.c.0.s8 %v1535
        %v1537 = vlaneseq
        %v1538 = vshrl.u32 %v1537, 7
        %v1539 = vsub.s32 %v1536, %v1538
        %v1540 = vrot.slane %v1526, %v1539
        %v1541 = vcombine.low %v1060, %v1084
        %v1542 = vcombine.high %v1060, %v1084
        %v1544 = vunpack.c.l.s4 1983009808
        %v1545 = vunpack.c.0.s8 %v1544
        %v1546 = vlaneseq
        %v1547 = vshrl.u32 %v1546, 7
        %v1548 = vsub.s32 %v1545, %v1547
        %v1549 = vrot.slane %v1541, %v1548
        %v1551 = vunpack.c.l.s4 1983009808
        %v1552 = vunpack.c.0.s8 %v1551
        %v1553 = vlaneseq
        %v1554 = vshrl.u32 %v1553, 7
        %v1555 = vsub.s32 %v1552, %v1554
        %v1556 = vrot.slane %v1542, %v1555
        %v1557 = vcombine.low %v1072, %v1096
        %v1558 = vcombine.high %v1072, %v1096
        %v1560 = vunpack.c.l.s4 1983009808
        %v1561 = vunpack.c.0.s8 %v1560
        %v1562 = vlaneseq
        %v1563 = vshrl.u32 %v1562, 7
        %v1564 = vsub.s32 %v1561, %v1563
        %v1565 = vrot.slane %v1557, %v1564
        %v1567 = vunpack.c.l.s4 1983009808
        %v1568 = vunpack.c.0.s8 %v1567
        %v1569 = vlaneseq
        %v1570 = vshrl.u32 %v1569, 7
        %v1571 = vsub.s32 %v1568, %v1570
        %v1572 = vrot.slane %v1558, %v1571
        %v1573 = vcombine.low %v1517, %v1533
        %v1574 = vcombine.high %v1517, %v1533
        %v1576 = vunpack.c.l.s4 1934713408
        %v1577 = vunpack.c.0.s8 %v1576
        %v1578 = vlaneseq
        %v1579 = vshrl.u32 %v1578, 7
        %v1580 = vsub.s32 %v1577, %v1579
        %v1581 = vrot.slane %v1573, %v1580
        %v1583 = vunpack.c.l.s4 1934713408
        %v1584 = vunpack.c.0.s8 %v1583
        %v1585 = vlaneseq
        %v1586 = vshrl.u32 %v1585, 7
        %v1587 = vsub.s32 %v1584, %v1586
        %v1588 = vrot.slane %v1574, %v1587
        %v1589 = vcombine.low %v1524, %v1540
        %v1590 = vcombine.high %v1524, %v1540
        %v1592 = vunpack.c.l.s4 1934713408
        %v1593 = vunpack.c.0.s8 %v1592
        %v1594 = vlaneseq
        %v1595 = vshrl.u32 %v1594, 7
        %v1596 = vsub.s32 %v1593, %v1595
        %v1597 = vrot.slane %v1589, %v1596
        %v1599 = vunpack.c.l.s4 1934713408
        %v1600 = vunpack.c.0.s8 %v1599
        %v1601 = vlaneseq
        %v1602 = vshrl.u32 %v1601, 7
        %v1603 = vsub.s32 %v1600, %v1602
        %v1604 = vrot.slane %v1590, %v1603
        %v1605 = vcombine.low %v1549, %v1565
        %v1606 = vcombine.high %v1549, %v1565
        %v1608 = vunpack.c.l.s4 1934713408
        %v1609 = vunpack.c.0.s8 %v1608
        %v1610 = vlaneseq
        %v1611 = vshrl.u32 %v1610, 7
        %v1612 = vsub.s32 %v1609, %v1611
        %v1613 = vrot.slane %v1605, %v1612
        %v1615 = vunpack.c.l.s4 1934713408
        %v1616 = vunpack.c.0.s8 %v1615
        %v1617 = vlaneseq
        %v1618 = vshrl.u32 %v1617, 7
        %v1619 = vsub.s32 %v1616, %v1618
        %v1620 = vrot.slane %v1606, %v1619
        %v1621 = vcombine.low %v1556, %v1572
        %v1622 = vcombine.high %v1556, %v1572
        %v1624 = vunpack.c.l.s4 1934713408
        %v1625 = vunpack.c.0.s8 %v1624
        %v1626 = vlaneseq
        %v1627 = vshrl.u32 %v1626, 7
        %v1628 = vsub.s32 %v1625, %v1627
        %v1629 = vrot.slane %v1621, %v1628
        %v1631 = vunpack.c.l.s4 1934713408
        %v1632 = vunpack.c.0.s8 %v1631
        %v1633 = vlaneseq
        %v1634 = vshrl.u32 %v1633, 7
        %v1635 = vsub.s32 %v1632, %v1634
        %v1636 = vrot.slane %v1622, %v1635
        %v1637 = vcombine.low %v1581, %v1613
        %v1638 = vcombine.high %v1581, %v1613
        %v1639 = vcombine.low %v1588, %v1620
        %v1640 = vcombine.high %v1588, %v1620
        %v1641 = vcombine.low %v1597, %v1629
        %v1642 = vcombine.high %v1597, %v1629
        %v1643 = vcombine.low %v1604, %v1636
        %v1644 = vcombine.high %v1604, %v1636
        %v1645 = vcombine.low %v1229, %v1231
        %v1646 = vcombine.high %v1229, %v1231
        %v1648 = vunpack.c.l.s4 1983009808
        %v1649 = vunpack.c.0.s8 %v1648
        %v1650 = vlaneseq
        %v1651 = vshrl.u32 %v1650, 7
        %v1652 = vsub.s32 %v1649, %v1651
        %v1653 = vrot.slane %v1645, %v1652
        %v1655 = vunpack.c.l.s4 1983009808
        %v1656 = vunpack.c.0.s8 %v1655
        %v1657 = vlaneseq
        %v1658 = vshrl.u32 %v1657, 7
        %v1659 = vsub.s32 %v1656, %v1658
        %v1660 = vrot.slane %v1646, %v1659
        %v1661 = vcombine.low %v1230, %v1232
        %v1662 = vcombine.high %v1230, %v1232
        %v1664 = vunpack.c.l.s4 1983009808
        %v1665 = vunpack.c.0.s8 %v1664
        %v1666 = vlaneseq
        %v1667 = vshrl.u32 %v1666, 7
        %v1668 = vsub.s32 %v1665, %v1667
        %v1669 = vrot.slane %v1661, %v1668
        %v1671 = vunpack.c.l.s4 1983009808
        %v1672 = vunpack.c.0.s8 %v1671
        %v1673 = vlaneseq
        %v1674 = vshrl.u32 %v1673, 7
        %v1675 = vsub.s32 %v1672, %v1674
        %v1676 = vrot.slane %v1662, %v1675
        %v1677 = vcombine.low %v1233, %v1235
        %v1678 = vcombine.high %v1233, %v1235
        %v1680 = vunpack.c.l.s4 1983009808
        %v1681 = vunpack.c.0.s8 %v1680
        %v1682 = vlaneseq
        %v1683 = vshrl.u32 %v1682, 7
        %v1684 = vsub.s32 %v1681, %v1683
        %v1685 = vrot.slane %v1677, %v1684
        %v1687 = vunpack.c.l.s4 1983009808
        %v1688 = vunpack.c.0.s8 %v1687
        %v1689 = vlaneseq
        %v1690 = vshrl.u32 %v1689, 7
        %v1691 = vsub.s32 %v1688, %v1690
        %v1692 = vrot.slane %v1678, %v1691
        %v1693 = vcombine.low %v1234, %v1236
        %v1694 = vcombine.high %v1234, %v1236
        %v1696 = vunpack.c.l.s4 1983009808
        %v1697 = vunpack.c.0.s8 %v1696
        %v1698 = vlaneseq
        %v1699 = vshrl.u32 %v1698, 7
        %v1700 = vsub.s32 %v1697, %v1699
        %v1701 = vrot.slane %v1693, %v1700
        %v1703 = vunpack.c.l.s4 1983009808
        %v1704 = vunpack.c.0.s8 %v1703
        %v1705 = vlaneseq
        %v1706 = vshrl.u32 %v1705, 7
        %v1707 = vsub.s32 %v1704, %v1706
        %v1708 = vrot.slane %v1694, %v1707
        %v1709 = vcombine.low %v1653, %v1669
        %v1710 = vcombine.high %v1653, %v1669
        %v1712 = vunpack.c.l.s4 1934713408
        %v1713 = vunpack.c.0.s8 %v1712
        %v1714 = vlaneseq
        %v1715 = vshrl.u32 %v1714, 7
        %v1716 = vsub.s32 %v1713, %v1715
        %v1717 = vrot.slane %v1709, %v1716
        %v1719 = vunpack.c.l.s4 1934713408
        %v1720 = vunpack.c.0.s8 %v1719
        %v1721 = vlaneseq
        %v1722 = vshrl.u32 %v1721, 7
        %v1723 = vsub.s32 %v1720, %v1722
        %v1724 = vrot.slane %v1710, %v1723
        %v1725 = vcombine.low %v1660, %v1676
        %v1726 = vcombine.high %v1660, %v1676
        %v1728 = vunpack.c.l.s4 1934713408
        %v1729 = vunpack.c.0.s8 %v1728
        %v1730 = vlaneseq
        %v1731 = vshrl.u32 %v1730, 7
        %v1732 = vsub.s32 %v1729, %v1731
        %v1733 = vrot.slane %v1725, %v1732
        %v1735 = vunpack.c.l.s4 1934713408
        %v1736 = vunpack.c.0.s8 %v1735
        %v1737 = vlaneseq
        %v1738 = vshrl.u32 %v1737, 7
        %v1739 = vsub.s32 %v1736, %v1738
        %v1740 = vrot.slane %v1726, %v1739
        %v1741 = vcombine.low %v1685, %v1701
        %v1742 = vcombine.high %v1685, %v1701
        %v1744 = vunpack.c.l.s4 1934713408
        %v1745 = vunpack.c.0.s8 %v1744
        %v1746 = vlaneseq
        %v1747 = vshrl.u32 %v1746, 7
        %v1748 = vsub.s32 %v1745, %v1747
        %v1749 = vrot.slane %v1741, %v1748
        %v1751 = vunpack.c.l.s4 1934713408
        %v1752 = vunpack.c.0.s8 %v1751
        %v1753 = vlaneseq
        %v1754 = vshrl.u32 %v1753, 7
        %v1755 = vsub.s32 %v1752, %v1754
        %v1756 = vrot.slane %v1742, %v1755
        %v1757 = vcombine.low %v1692, %v1708
        %v1758 = vcombine.high %v1692, %v1708
        %v1760 = vunpack.c.l.s4 1934713408
        %v1761 = vunpack.c.0.s8 %v1760
        %v1762 = vlaneseq
        %v1763 = vshrl.u32 %v1762, 7
        %v1764 = vsub.s32 %v1761, %v1763
        %v1765 = vrot.slane %v1757, %v1764
        %v1767 = vunpack.c.l.s4 1934713408
        %v1768 = vunpack.c.0.s8 %v1767
        %v1769 = vlaneseq
        %v1770 = vshrl.u32 %v1769, 7
        %v1771 = vsub.s32 %v1768, %v1770
        %v1772 = vrot.slane %v1758, %v1771
        %v1773 = vcombine.low %v1717, %v1749
        %v1774 = vcombine.high %v1717, %v1749
        %v1775 = vcombine.low %v1724, %v1756
        %v1776 = vcombine.high %v1724, %v1756
        %v1777 = vcombine.low %v1733, %v1765
        %v1778 = vcombine.high %v1733, %v1765
        %v1779 = vcombine.low %v1740, %v1772
        %v1780 = vcombine.high %v1740, %v1772
        %v1781 = vcombine.low %v1365, %v1367
        %v1782 = vcombine.high %v1365, %v1367
        %v1784 = vunpack.c.l.s4 1983009808
        %v1785 = vunpack.c.0.s8 %v1784
        %v1786 = vlaneseq
        %v1787 = vshrl.u32 %v1786, 7
        %v1788 = vsub.s32 %v1785, %v1787
        %v1789 = vrot.slane %v1781, %v1788
        %v1791 = vunpack.c.l.s4 1983009808
        %v1792 = vunpack.c.0.s8 %v1791
        %v1793 = vlaneseq
        %v1794 = vshrl.u32 %v1793, 7
        %v1795 = vsub.s32 %v1792, %v1794
        %v1796 = vrot.slane %v1782, %v1795
        %v1797 = vcombine.low %v1366, %v1368
        %v1798 = vcombine.high %v1366, %v1368
        %v1800 = vunpack.c.l.s4 1983009808
        %v1801 = vunpack.c.0.s8 %v1800
        %v1802 = vlaneseq
        %v1803 = vshrl.u32 %v1802, 7
        %v1804 = vsub.s32 %v1801, %v1803
        %v1805 = vrot.slane %v1797, %v1804
        %v1807 = vunpack.c.l.s4 1983009808
        %v1808 = vunpack.c.0.s8 %v1807
        %v1809 = vlaneseq
        %v1810 = vshrl.u32 %v1809, 7
        %v1811 = vsub.s32 %v1808, %v1810
        %v1812 = vrot.slane %v1798, %v1811
        %v1813 = vcombine.low %v1369, %v1371
        %v1814 = vcombine.high %v1369, %v1371
        %v1816 = vunpack.c.l.s4 1983009808
        %v1817 = vunpack.c.0.s8 %v1816
        %v1818 = vlaneseq
        %v1819 = vshrl.u32 %v1818, 7
        %v1820 = vsub.s32 %v1817, %v1819
        %v1821 = vrot.slane %v1813, %v1820
        %v1823 = vunpack.c.l.s4 1983009808
        %v1824 = vunpack.c.0.s8 %v1823
        %v1825 = vlaneseq
        %v1826 = vshrl.u32 %v1825, 7
        %v1827 = vsub.s32 %v1824, %v1826
        %v1828 = vrot.slane %v1814, %v1827
        %v1829 = vcombine.low %v1370, %v1372
        %v1830 = vcombine.high %v1370, %v1372
        %v1832 = vunpack.c.l.s4 1983009808
        %v1833 = vunpack.c.0.s8 %v1832
        %v1834 = vlaneseq
        %v1835 = vshrl.u32 %v1834, 7
        %v1836 = vsub.s32 %v1833, %v1835
        %v1837 = vrot.slane %v1829, %v1836
        %v1839 = vunpack.c.l.s4 1983009808
        %v1840 = vunpack.c.0.s8 %v1839
        %v1841 = vlaneseq
        %v1842 = vshrl.u32 %v1841, 7
        %v1843 = vsub.s32 %v1840, %v1842
        %v1844 = vrot.slane %v1830, %v1843
        %v1845 = vcombine.low %v1789, %v1805
        %v1846 = vcombine.high %v1789, %v1805
        %v1848 = vunpack.c.l.s4 1934713408
        %v1849 = vunpack.c.0.s8 %v1848
        %v1850 = vlaneseq
        %v1851 = vshrl.u32 %v1850, 7
        %v1852 = vsub.s32 %v1849, %v1851
        %v1853 = vrot.slane %v1845, %v1852
        %v1855 = vunpack.c.l.s4 1934713408
        %v1856 = vunpack.c.0.s8 %v1855
        %v1857 = vlaneseq
        %v1858 = vshrl.u32 %v1857, 7
        %v1859 = vsub.s32 %v1856, %v1858
        %v1860 = vrot.slane %v1846, %v1859
        %v1861 = vcombine.low %v1796, %v1812
        %v1862 = vcombine.high %v1796, %v1812
        %v1864 = vunpack.c.l.s4 1934713408
        %v1865 = vunpack.c.0.s8 %v1864
        %v1866 = vlaneseq
        %v1867 = vshrl.u32 %v1866, 7
        %v1868 = vsub.s32 %v1865, %v1867
        %v1869 = vrot.slane %v1861, %v1868
        %v1871 = vunpack.c.l.s4 1934713408
        %v1872 = vunpack.c.0.s8 %v1871
        %v1873 = vlaneseq
        %v1874 = vshrl.u32 %v1873, 7
        %v1875 = vsub.s32 %v1872, %v1874
        %v1876 = vrot.slane %v1862, %v1875
        %v1877 = vcombine.low %v1821, %v1837
        %v1878 = vcombine.high %v1821, %v1837
        %v1880 = vunpack.c.l.s4 1934713408
        %v1881 = vunpack.c.0.s8 %v1880
        %v1882 = vlaneseq
        %v1883 = vshrl.u32 %v1882, 7
        %v1884 = vsub.s32 %v1881, %v1883
        %v1885 = vrot.slane %v1877, %v1884
        %v1887 = vunpack.c.l.s4 1934713408
        %v1888 = vunpack.c.0.s8 %v1887
        %v1889 = vlaneseq
        %v1890 = vshrl.u32 %v1889, 7
        %v1891 = vsub.s32 %v1888, %v1890
        %v1892 = vrot.slane %v1878, %v1891
        %v1893 = vcombine.low %v1828, %v1844
        %v1894 = vcombine.high %v1828, %v1844
        %v1896 = vunpack.c.l.s4 1934713408
        %v1897 = vunpack.c.0.s8 %v1896
        %v1898 = vlaneseq
        %v1899 = vshrl.u32 %v1898, 7
        %v1900 = vsub.s32 %v1897, %v1899
        %v1901 = vrot.slane %v1893, %v1900
        %v1903 = vunpack.c.l.s4 1934713408
        %v1904 = vunpack.c.0.s8 %v1903
        %v1905 = vlaneseq
        %v1906 = vshrl.u32 %v1905, 7
        %v1907 = vsub.s32 %v1904, %v1906
        %v1908 = vrot.slane %v1894, %v1907
        %v1909 = vcombine.low %v1853, %v1885
        %v1910 = vcombine.high %v1853, %v1885
        %v1911 = vcombine.low %v1860, %v1892
        %v1912 = vcombine.high %v1860, %v1892
        %v1913 = vcombine.low %v1869, %v1901
        %v1914 = vcombine.high %v1869, %v1901
        %v1915 = vcombine.low %v1876, %v1908
        %v1916 = vcombine.high %v1876, %v1908
        %v1917 = vcombine.low %v1501, %v1503
        %v1918 = vcombine.high %v1501, %v1503
        %v1920 = vunpack.c.l.s4 1983009808
        %v1921 = vunpack.c.0.s8 %v1920
        %v1922 = vlaneseq
        %v1923 = vshrl.u32 %v1922, 7
        %v1924 = vsub.s32 %v1921, %v1923
        %v1925 = vrot.slane %v1917, %v1924
        %v1927 = vunpack.c.l.s4 1983009808
        %v1928 = vunpack.c.0.s8 %v1927
        %v1929 = vlaneseq
        %v1930 = vshrl.u32 %v1929, 7
        %v1931 = vsub.s32 %v1928, %v1930
        %v1932 = vrot.slane %v1918, %v1931
        %v1933 = vcombine.low %v1502, %v1504
        %v1934 = vcombine.high %v1502, %v1504
        %v1936 = vunpack.c.l.s4 1983009808
        %v1937 = vunpack.c.0.s8 %v1936
        %v1938 = vlaneseq
        %v1939 = vshrl.u32 %v1938, 7
        %v1940 = vsub.s32 %v1937, %v1939
        %v1941 = vrot.slane %v1933, %v1940
        %v1943 = vunpack.c.l.s4 1983009808
        %v1944 = vunpack.c.0.s8 %v1943
        %v1945 = vlaneseq
        %v1946 = vshrl.u32 %v1945, 7
        %v1947 = vsub.s32 %v1944, %v1946
        %v1948 = vrot.slane %v1934, %v1947
        %v1949 = vcombine.low %v1505, %v1507
        %v1950 = vcombine.high %v1505, %v1507
        %v1952 = vunpack.c.l.s4 1983009808
        %v1953 = vunpack.c.0.s8 %v1952
        %v1954 = vlaneseq
        %v1955 = vshrl.u32 %v1954, 7
        %v1956 = vsub.s32 %v1953, %v1955
        %v1957 = vrot.slane %v1949, %v1956
        %v1959 = vunpack.c.l.s4 1983009808
        %v1960 = vunpack.c.0.s8 %v1959
        %v1961 = vlaneseq
        %v1962 = vshrl.u32 %v1961, 7
        %v1963 = vsub.s32 %v1960, %v1962
        %v1964 = vrot.slane %v1950, %v1963
        %v1965 = vcombine.low %v1506, %v1508
        %v1966 = vcombine.high %v1506, %v1508
        %v1968 = vunpack.c.l.s4 1983009808
        %v1969 = vunpack.c.0.s8 %v1968
        %v1970 = vlaneseq
        %v1971 = vshrl.u32 %v1970, 7
        %v1972 = vsub.s32 %v1969, %v1971
        %v1973 = vrot.slane %v1965, %v1972
        %v1975 = vunpack.c.l.s4 1983009808
        %v1976 = vunpack.c.0.s8 %v1975
        %v1977 = vlaneseq
        %v1978 = vshrl.u32 %v1977, 7
        %v1979 = vsub.s32 %v1976, %v1978
        %v1980 = vrot.slane %v1966, %v1979
        %v1981 = vcombine.low %v1925, %v1941
        %v1982 = vcombine.high %v1925, %v1941
        %v1984 = vunpack.c.l.s4 1934713408
        %v1985 = vunpack.c.0.s8 %v1984
        %v1986 = vlaneseq
        %v1987 = vshrl.u32 %v1986, 7
        %v1988 = vsub.s32 %v1985, %v1987
        %v1989 = vrot.slane %v1981, %v1988
        %v1991 = vunpack.c.l.s4 1934713408
        %v1992 = vunpack.c.0.s8 %v1991
        %v1993 = vlaneseq
        %v1994 = vshrl.u32 %v1993, 7
        %v1995 = vsub.s32 %v1992, %v1994
        %v1996 = vrot.slane %v1982, %v1995
        %v1997 = vcombine.low %v1932, %v1948
        %v1998 = vcombine.high %v1932, %v1948
        %v2000 = vunpack.c.l.s4 1934713408
        %v2001 = vunpack.c.0.s8 %v2000
        %v2002 = vlaneseq
        %v2003 = vshrl.u32 %v2002, 7
        %v2004 = vsub.s32 %v2001, %v2003
        %v2005 = vrot.slane %v1997, %v2004
        %v2007 = vunpack.c.l.s4 1934713408
        %v2008 = vunpack.c.0.s8 %v2007
        %v2009 = vlaneseq
        %v2010 = vshrl.u32 %v2009, 7
        %v2011 = vsub.s32 %v2008, %v2010
        %v2012 = vrot.slane %v1998, %v2011
        %v2013 = vcombine.low %v1957, %v1973
        %v2014 = vcombine.high %v1957, %v1973
        %v2016 = vunpack.c.l.s4 1934713408
        %v2017 = vunpack.c.0.s8 %v2016
        %v2018 = vlaneseq
        %v2019 = vshrl.u32 %v2018, 7
        %v2020 = vsub.s32 %v2017, %v2019
        %v2021 = vrot.slane %v2013, %v2020
        %v2023 = vunpack.c.l.s4 1934713408
        %v2024 = vunpack.c.0.s8 %v2023
        %v2025 = vlaneseq
        %v2026 = vshrl.u32 %v2025, 7
        %v2027 = vsub.s32 %v2024, %v2026
        %v2028 = vrot.slane %v2014, %v2027
        %v2029 = vcombine.low %v1964, %v1980
        %v2030 = vcombine.high %v1964, %v1980
        %v2032 = vunpack.c.l.s4 1934713408
        %v2033 = vunpack.c.0.s8 %v2032
        %v2034 = vlaneseq
        %v2035 = vshrl.u32 %v2034, 7
        %v2036 = vsub.s32 %v2033, %v2035
        %v2037 = vrot.slane %v2029, %v2036
        %v2039 = vunpack.c.l.s4 1934713408
        %v2040 = vunpack.c.0.s8 %v2039
        %v2041 = vlaneseq
        %v2042 = vshrl.u32 %v2041, 7
        %v2043 = vsub.s32 %v2040, %v2042
        %v2044 = vrot.slane %v2030, %v2043
        %v2045 = vcombine.low %v1989, %v2021
        %v2046 = vcombine.high %v1989, %v2021
        %v2047 = vcombine.low %v1996, %v2028
        %v2048 = vcombine.high %v1996, %v2028
        %v2049 = vcombine.low %v2005, %v2037
        %v2050 = vcombine.high %v2005, %v2037
        %v2051 = vcombine.low %v2012, %v2044
        %v2052 = vcombine.high %v2012, %v2044
        %v2053 = vcombine.low %v1637, %v1639
        %v2054 = vcombine.high %v1637, %v1639
        %v2056 = vunpack.c.l.s4 1983009808
        %v2057 = vunpack.c.0.s8 %v2056
        %v2058 = vlaneseq
        %v2059 = vshrl.u32 %v2058, 7
        %v2060 = vsub.s32 %v2057, %v2059
        %v2061 = vrot.slane %v2053, %v2060
        %v2063 = vunpack.c.l.s4 1983009808
        %v2064 = vunpack.c.0.s8 %v2063
        %v2065 = vlaneseq
        %v2066 = vshrl.u32 %v2065, 7
        %v2067 = vsub.s32 %v2064, %v2066
        %v2068 = vrot.slane %v2054, %v2067
        %v2069 = vcombine.low %v1638, %v1640
        %v2070 = vcombine.high %v1638, %v1640
        %v2072 = vunpack.c.l.s4 1983009808
        %v2073 = vunpack.c.0.s8 %v2072
        %v2074 = vlaneseq
        %v2075 = vshrl.u32 %v2074, 7
        %v2076 = vsub.s32 %v2073, %v2075
        %v2077 = vrot.slane %v2069, %v2076
        %v2079 = vunpack.c.l.s4 1983009808
        %v2080 = vunpack.c.0.s8 %v2079
        %v2081 = vlaneseq
        %v2082 = vshrl.u32 %v2081, 7
        %v2083 = vsub.s32 %v2080, %v2082
        %v2084 = vrot.slane %v2070, %v2083
        %v2085 = vcombine.low %v1641, %v1643
        %v2086 = vcombine.high %v1641, %v1643
        %v2088 = vunpack.c.l.s4 1983009808
        %v2089 = vunpack.c.0.s8 %v2088
        %v2090 = vlaneseq
        %v2091 = vshrl.u32 %v2090, 7
        %v2092 = vsub.s32 %v2089, %v2091
        %v2093 = vrot.slane %v2085, %v2092
        %v2095 = vunpack.c.l.s4 1983009808
        %v2096 = vunpack.c.0.s8 %v2095
        %v2097 = vlaneseq
        %v2098 = vshrl.u32 %v2097, 7
        %v2099 = vsub.s32 %v2096, %v2098
        %v2100 = vrot.slane %v2086, %v2099
        %v2101 = vcombine.low %v1642, %v1644
        %v2102 = vcombine.high %v1642, %v1644
        %v2104 = vunpack.c.l.s4 1983009808
        %v2105 = vunpack.c.0.s8 %v2104
        %v2106 = vlaneseq
        %v2107 = vshrl.u32 %v2106, 7
        %v2108 = vsub.s32 %v2105, %v2107
        %v2109 = vrot.slane %v2101, %v2108
        %v2111 = vunpack.c.l.s4 1983009808
        %v2112 = vunpack.c.0.s8 %v2111
        %v2113 = vlaneseq
        %v2114 = vshrl.u32 %v2113, 7
        %v2115 = vsub.s32 %v2112, %v2114
        %v2116 = vrot.slane %v2102, %v2115
        %v2117 = vcombine.low %v2061, %v2077
        %v2118 = vcombine.high %v2061, %v2077
        %v2120 = vunpack.c.l.s4 1934713408
        %v2121 = vunpack.c.0.s8 %v2120
        %v2122 = vlaneseq
        %v2123 = vshrl.u32 %v2122, 7
        %v2124 = vsub.s32 %v2121, %v2123
        %v2125 = vrot.slane %v2117, %v2124
        %v2127 = vunpack.c.l.s4 1934713408
        %v2128 = vunpack.c.0.s8 %v2127
        %v2129 = vlaneseq
        %v2130 = vshrl.u32 %v2129, 7
        %v2131 = vsub.s32 %v2128, %v2130
        %v2132 = vrot.slane %v2118, %v2131
        %v2133 = vcombine.low %v2068, %v2084
        %v2134 = vcombine.high %v2068, %v2084
        %v2136 = vunpack.c.l.s4 1934713408
        %v2137 = vunpack.c.0.s8 %v2136
        %v2138 = vlaneseq
        %v2139 = vshrl.u32 %v2138, 7
        %v2140 = vsub.s32 %v2137, %v2139
        %v2141 = vrot.slane %v2133, %v2140
        %v2143 = vunpack.c.l.s4 1934713408
        %v2144 = vunpack.c.0.s8 %v2143
        %v2145 = vlaneseq
        %v2146 = vshrl.u32 %v2145, 7
        %v2147 = vsub.s32 %v2144, %v2146
        %v2148 = vrot.slane %v2134, %v2147
        %v2149 = vcombine.low %v2093, %v2109
        %v2150 = vcombine.high %v2093, %v2109
        %v2152 = vunpack.c.l.s4 1934713408
        %v2153 = vunpack.c.0.s8 %v2152
        %v2154 = vlaneseq
        %v2155 = vshrl.u32 %v2154, 7
        %v2156 = vsub.s32 %v2153, %v2155
        %v2157 = vrot.slane %v2149, %v2156
        %v2159 = vunpack.c.l.s4 1934713408
        %v2160 = vunpack.c.0.s8 %v2159
        %v2161 = vlaneseq
        %v2162 = vshrl.u32 %v2161, 7
        %v2163 = vsub.s32 %v2160, %v2162
        %v2164 = vrot.slane %v2150, %v2163
        %v2165 = vcombine.low %v2100, %v2116
        %v2166 = vcombine.high %v2100, %v2116
        %v2168 = vunpack.c.l.s4 1934713408
        %v2169 = vunpack.c.0.s8 %v2168
        %v2170 = vlaneseq
        %v2171 = vshrl.u32 %v2170, 7
        %v2172 = vsub.s32 %v2169, %v2171
        %v2173 = vrot.slane %v2165, %v2172
        %v2175 = vunpack.c.l.s4 1934713408
        %v2176 = vunpack.c.0.s8 %v2175
        %v2177 = vlaneseq
        %v2178 = vshrl.u32 %v2177, 7
        %v2179 = vsub.s32 %v2176, %v2178
        %v2180 = vrot.slane %v2166, %v2179
        %v2181 = vcombine.low %v2125, %v2157
        %v2182 = vcombine.high %v2125, %v2157
        %v2183 = vcombine.low %v2132, %v2164
        %v2184 = vcombine.high %v2132, %v2164
        %v2185 = vcombine.low %v2141, %v2173
        %v2186 = vcombine.high %v2141, %v2173
        %v2187 = vcombine.low %v2148, %v2180
        %v2188 = vcombine.high %v2148, %v2180
        %v2189 = vpack.c.bf16 %v1909, %v1773
        %v2190 = vpack.c.bf16 %v2181, %v2045
        %v2191 = vpack.c.bf16 %v1910, %v1774
        %v2192 = vpack.c.bf16 %v2182, %v2046
        %v2193 = vpack.c.bf16 %v1911, %v1775
        %v2194 = vpack.c.bf16 %v2183, %v2047
        %v2195 = vpack.c.bf16 %v1912, %v1776
        %v2196 = vpack.c.bf16 %v2184, %v2048
        %v2197 = vpack.c.bf16 %v1913, %v1777
        %v2198 = vpack.c.bf16 %v2185, %v2049
        %v2199 = vpack.c.bf16 %v1914, %v1778
        %v2200 = vpack.c.bf16 %v2186, %v2050
        %v2201 = vpack.c.bf16 %v1915, %v1779
        %v2202 = vpack.c.bf16 %v2187, %v2051
        %v2203 = vpack.c.bf16 %v1916, %v1780
        %v2204 = vpack.c.bf16 %v2188, %v2052
        %2209 = vrot.lane.b32.xlu0 %v948, 112
        %v2210 = vpop.permute.xlu0 %2209
        %2211 = vrot.lane.b32.xlu0 %v952, 112
        %v2212 = vpop.permute.xlu0 %2211
        %2213 = vrot.lane.b32.xlu0 %v958, 112
        %v2214 = vpop.permute.xlu0 %2213
        %2215 = vrot.lane.b32.xlu0 %v962, 112
        %v2216 = vpop.permute.xlu0 %2215
        %2221 = vrot.lane.b32.xlu0 %v948, 96
        %v2222 = vpop.permute.xlu0 %2221
        %2223 = vrot.lane.b32.xlu0 %v952, 96
        %v2224 = vpop.permute.xlu0 %2223
        %2225 = vrot.lane.b32.xlu0 %v958, 96
        %v2226 = vpop.permute.xlu0 %2225
        %2227 = vrot.lane.b32.xlu0 %v962, 96
        %v2228 = vpop.permute.xlu0 %2227
        %2233 = vrot.lane.b32.xlu0 %v948, 80
        %v2234 = vpop.permute.xlu0 %2233
        %2235 = vrot.lane.b32.xlu0 %v952, 80
        %v2236 = vpop.permute.xlu0 %2235
        %2237 = vrot.lane.b32.xlu0 %v958, 80
        %v2238 = vpop.permute.xlu0 %2237
        %2239 = vrot.lane.b32.xlu0 %v962, 80
        %v2240 = vpop.permute.xlu0 %2239
        %2245 = vrot.lane.b32.xlu0 %v948, 64
        %v2246 = vpop.permute.xlu0 %2245
        %2247 = vrot.lane.b32.xlu0 %v952, 64
        %v2248 = vpop.permute.xlu0 %2247
        %2249 = vrot.lane.b32.xlu0 %v958, 64
        %v2250 = vpop.permute.xlu0 %2249
        %2251 = vrot.lane.b32.xlu0 %v962, 64
        %v2252 = vpop.permute.xlu0 %2251
        %2257 = vrot.lane.b32.xlu0 %v948, 48
        %v2258 = vpop.permute.xlu0 %2257
        %2259 = vrot.lane.b32.xlu0 %v952, 48
        %v2260 = vpop.permute.xlu0 %2259
        %2261 = vrot.lane.b32.xlu0 %v958, 48
        %v2262 = vpop.permute.xlu0 %2261
        %2263 = vrot.lane.b32.xlu0 %v962, 48
        %v2264 = vpop.permute.xlu0 %2263
        %2269 = vrot.lane.b32.xlu0 %v948, 32
        %v2270 = vpop.permute.xlu0 %2269
        %2271 = vrot.lane.b32.xlu0 %v952, 32
        %v2272 = vpop.permute.xlu0 %2271
        %2273 = vrot.lane.b32.xlu0 %v958, 32
        %v2274 = vpop.permute.xlu0 %2273
        %2275 = vrot.lane.b32.xlu0 %v962, 32
        %v2276 = vpop.permute.xlu0 %2275
        %2281 = vrot.lane.b32.xlu0 %v948, 16
        %v2282 = vpop.permute.xlu0 %2281
        %2283 = vrot.lane.b32.xlu0 %v952, 16
        %v2284 = vpop.permute.xlu0 %2283
        %2285 = vrot.lane.b32.xlu0 %v958, 16
        %v2286 = vpop.permute.xlu0 %2285
        %2287 = vrot.lane.b32.xlu0 %v962, 16
        %v2288 = vpop.permute.xlu0 %2287
        %v2293 = vcombine.low %v948, %v2222
        %v2294 = vcombine.high %v948, %v2222
        %v2296 = vunpack.c.l.s4 1983009808
        %v2297 = vunpack.c.0.s8 %v2296
        %v2298 = vlaneseq
        %v2299 = vshrl.u32 %v2298, 7
        %v2300 = vsub.s32 %v2297, %v2299
        %v2301 = vrot.slane %v2293, %v2300
        %v2303 = vunpack.c.l.s4 1983009808
        %v2304 = vunpack.c.0.s8 %v2303
        %v2305 = vlaneseq
        %v2306 = vshrl.u32 %v2305, 7
        %v2307 = vsub.s32 %v2304, %v2306
        %v2308 = vrot.slane %v2294, %v2307
        %v2309 = vcombine.low %v2210, %v2234
        %v2310 = vcombine.high %v2210, %v2234
        %v2312 = vunpack.c.l.s4 1983009808
        %v2313 = vunpack.c.0.s8 %v2312
        %v2314 = vlaneseq
        %v2315 = vshrl.u32 %v2314, 7
        %v2316 = vsub.s32 %v2313, %v2315
        %v2317 = vrot.slane %v2309, %v2316
        %v2319 = vunpack.c.l.s4 1983009808
        %v2320 = vunpack.c.0.s8 %v2319
        %v2321 = vlaneseq
        %v2322 = vshrl.u32 %v2321, 7
        %v2323 = vsub.s32 %v2320, %v2322
        %v2324 = vrot.slane %v2310, %v2323
        %v2325 = vcombine.low %v2246, %v2270
        %v2326 = vcombine.high %v2246, %v2270
        %v2328 = vunpack.c.l.s4 1983009808
        %v2329 = vunpack.c.0.s8 %v2328
        %v2330 = vlaneseq
        %v2331 = vshrl.u32 %v2330, 7
        %v2332 = vsub.s32 %v2329, %v2331
        %v2333 = vrot.slane %v2325, %v2332
        %v2335 = vunpack.c.l.s4 1983009808
        %v2336 = vunpack.c.0.s8 %v2335
        %v2337 = vlaneseq
        %v2338 = vshrl.u32 %v2337, 7
        %v2339 = vsub.s32 %v2336, %v2338
        %v2340 = vrot.slane %v2326, %v2339
        %v2341 = vcombine.low %v2258, %v2282
        %v2342 = vcombine.high %v2258, %v2282
        %v2344 = vunpack.c.l.s4 1983009808
        %v2345 = vunpack.c.0.s8 %v2344
        %v2346 = vlaneseq
        %v2347 = vshrl.u32 %v2346, 7
        %v2348 = vsub.s32 %v2345, %v2347
        %v2349 = vrot.slane %v2341, %v2348
        %v2351 = vunpack.c.l.s4 1983009808
        %v2352 = vunpack.c.0.s8 %v2351
        %v2353 = vlaneseq
        %v2354 = vshrl.u32 %v2353, 7
        %v2355 = vsub.s32 %v2352, %v2354
        %v2356 = vrot.slane %v2342, %v2355
        %v2357 = vcombine.low %v2301, %v2317
        %v2358 = vcombine.high %v2301, %v2317
        %v2360 = vunpack.c.l.s4 1934713408
        %v2361 = vunpack.c.0.s8 %v2360
        %v2362 = vlaneseq
        %v2363 = vshrl.u32 %v2362, 7
        %v2364 = vsub.s32 %v2361, %v2363
        %v2365 = vrot.slane %v2357, %v2364
        %v2367 = vunpack.c.l.s4 1934713408
        %v2368 = vunpack.c.0.s8 %v2367
        %v2369 = vlaneseq
        %v2370 = vshrl.u32 %v2369, 7
        %v2371 = vsub.s32 %v2368, %v2370
        %v2372 = vrot.slane %v2358, %v2371
        %v2373 = vcombine.low %v2308, %v2324
        %v2374 = vcombine.high %v2308, %v2324
        %v2376 = vunpack.c.l.s4 1934713408
        %v2377 = vunpack.c.0.s8 %v2376
        %v2378 = vlaneseq
        %v2379 = vshrl.u32 %v2378, 7
        %v2380 = vsub.s32 %v2377, %v2379
        %v2381 = vrot.slane %v2373, %v2380
        %v2383 = vunpack.c.l.s4 1934713408
        %v2384 = vunpack.c.0.s8 %v2383
        %v2385 = vlaneseq
        %v2386 = vshrl.u32 %v2385, 7
        %v2387 = vsub.s32 %v2384, %v2386
        %v2388 = vrot.slane %v2374, %v2387
        %v2389 = vcombine.low %v2333, %v2349
        %v2390 = vcombine.high %v2333, %v2349
        %v2392 = vunpack.c.l.s4 1934713408
        %v2393 = vunpack.c.0.s8 %v2392
        %v2394 = vlaneseq
        %v2395 = vshrl.u32 %v2394, 7
        %v2396 = vsub.s32 %v2393, %v2395
        %v2397 = vrot.slane %v2389, %v2396
        %v2399 = vunpack.c.l.s4 1934713408
        %v2400 = vunpack.c.0.s8 %v2399
        %v2401 = vlaneseq
        %v2402 = vshrl.u32 %v2401, 7
        %v2403 = vsub.s32 %v2400, %v2402
        %v2404 = vrot.slane %v2390, %v2403
        %v2405 = vcombine.low %v2340, %v2356
        %v2406 = vcombine.high %v2340, %v2356
        %v2408 = vunpack.c.l.s4 1934713408
        %v2409 = vunpack.c.0.s8 %v2408
        %v2410 = vlaneseq
        %v2411 = vshrl.u32 %v2410, 7
        %v2412 = vsub.s32 %v2409, %v2411
        %v2413 = vrot.slane %v2405, %v2412
        %v2415 = vunpack.c.l.s4 1934713408
        %v2416 = vunpack.c.0.s8 %v2415
        %v2417 = vlaneseq
        %v2418 = vshrl.u32 %v2417, 7
        %v2419 = vsub.s32 %v2416, %v2418
        %v2420 = vrot.slane %v2406, %v2419
        %v2421 = vcombine.low %v2365, %v2397
        %v2422 = vcombine.high %v2365, %v2397
        %v2423 = vcombine.low %v2372, %v2404
        %v2424 = vcombine.high %v2372, %v2404
        %v2425 = vcombine.low %v2381, %v2413
        %v2426 = vcombine.high %v2381, %v2413
        %v2427 = vcombine.low %v2388, %v2420
        %v2428 = vcombine.high %v2388, %v2420
        %v2429 = vcombine.low %v952, %v2224
        %v2430 = vcombine.high %v952, %v2224
        %v2432 = vunpack.c.l.s4 1983009808
        %v2433 = vunpack.c.0.s8 %v2432
        %v2434 = vlaneseq
        %v2435 = vshrl.u32 %v2434, 7
        %v2436 = vsub.s32 %v2433, %v2435
        %v2437 = vrot.slane %v2429, %v2436
        %v2439 = vunpack.c.l.s4 1983009808
        %v2440 = vunpack.c.0.s8 %v2439
        %v2441 = vlaneseq
        %v2442 = vshrl.u32 %v2441, 7
        %v2443 = vsub.s32 %v2440, %v2442
        %v2444 = vrot.slane %v2430, %v2443
        %v2445 = vcombine.low %v2212, %v2236
        %v2446 = vcombine.high %v2212, %v2236
        %v2448 = vunpack.c.l.s4 1983009808
        %v2449 = vunpack.c.0.s8 %v2448
        %v2450 = vlaneseq
        %v2451 = vshrl.u32 %v2450, 7
        %v2452 = vsub.s32 %v2449, %v2451
        %v2453 = vrot.slane %v2445, %v2452
        %v2455 = vunpack.c.l.s4 1983009808
        %v2456 = vunpack.c.0.s8 %v2455
        %v2457 = vlaneseq
        %v2458 = vshrl.u32 %v2457, 7
        %v2459 = vsub.s32 %v2456, %v2458
        %v2460 = vrot.slane %v2446, %v2459
        %v2461 = vcombine.low %v2248, %v2272
        %v2462 = vcombine.high %v2248, %v2272
        %v2464 = vunpack.c.l.s4 1983009808
        %v2465 = vunpack.c.0.s8 %v2464
        %v2466 = vlaneseq
        %v2467 = vshrl.u32 %v2466, 7
        %v2468 = vsub.s32 %v2465, %v2467
        %v2469 = vrot.slane %v2461, %v2468
        %v2471 = vunpack.c.l.s4 1983009808
        %v2472 = vunpack.c.0.s8 %v2471
        %v2473 = vlaneseq
        %v2474 = vshrl.u32 %v2473, 7
        %v2475 = vsub.s32 %v2472, %v2474
        %v2476 = vrot.slane %v2462, %v2475
        %v2477 = vcombine.low %v2260, %v2284
        %v2478 = vcombine.high %v2260, %v2284
        %v2480 = vunpack.c.l.s4 1983009808
        %v2481 = vunpack.c.0.s8 %v2480
        %v2482 = vlaneseq
        %v2483 = vshrl.u32 %v2482, 7
        %v2484 = vsub.s32 %v2481, %v2483
        %v2485 = vrot.slane %v2477, %v2484
        %v2487 = vunpack.c.l.s4 1983009808
        %v2488 = vunpack.c.0.s8 %v2487
        %v2489 = vlaneseq
        %v2490 = vshrl.u32 %v2489, 7
        %v2491 = vsub.s32 %v2488, %v2490
        %v2492 = vrot.slane %v2478, %v2491
        %v2493 = vcombine.low %v2437, %v2453
        %v2494 = vcombine.high %v2437, %v2453
        %v2496 = vunpack.c.l.s4 1934713408
        %v2497 = vunpack.c.0.s8 %v2496
        %v2498 = vlaneseq
        %v2499 = vshrl.u32 %v2498, 7
        %v2500 = vsub.s32 %v2497, %v2499
        %v2501 = vrot.slane %v2493, %v2500
        %v2503 = vunpack.c.l.s4 1934713408
        %v2504 = vunpack.c.0.s8 %v2503
        %v2505 = vlaneseq
        %v2506 = vshrl.u32 %v2505, 7
        %v2507 = vsub.s32 %v2504, %v2506
        %v2508 = vrot.slane %v2494, %v2507
        %v2509 = vcombine.low %v2444, %v2460
        %v2510 = vcombine.high %v2444, %v2460
        %v2512 = vunpack.c.l.s4 1934713408
        %v2513 = vunpack.c.0.s8 %v2512
        %v2514 = vlaneseq
        %v2515 = vshrl.u32 %v2514, 7
        %v2516 = vsub.s32 %v2513, %v2515
        %v2517 = vrot.slane %v2509, %v2516
        %v2519 = vunpack.c.l.s4 1934713408
        %v2520 = vunpack.c.0.s8 %v2519
        %v2521 = vlaneseq
        %v2522 = vshrl.u32 %v2521, 7
        %v2523 = vsub.s32 %v2520, %v2522
        %v2524 = vrot.slane %v2510, %v2523
        %v2525 = vcombine.low %v2469, %v2485
        %v2526 = vcombine.high %v2469, %v2485
        %v2528 = vunpack.c.l.s4 1934713408
        %v2529 = vunpack.c.0.s8 %v2528
        %v2530 = vlaneseq
        %v2531 = vshrl.u32 %v2530, 7
        %v2532 = vsub.s32 %v2529, %v2531
        %v2533 = vrot.slane %v2525, %v2532
        %v2535 = vunpack.c.l.s4 1934713408
        %v2536 = vunpack.c.0.s8 %v2535
        %v2537 = vlaneseq
        %v2538 = vshrl.u32 %v2537, 7
        %v2539 = vsub.s32 %v2536, %v2538
        %v2540 = vrot.slane %v2526, %v2539
        %v2541 = vcombine.low %v2476, %v2492
        %v2542 = vcombine.high %v2476, %v2492
        %v2544 = vunpack.c.l.s4 1934713408
        %v2545 = vunpack.c.0.s8 %v2544
        %v2546 = vlaneseq
        %v2547 = vshrl.u32 %v2546, 7
        %v2548 = vsub.s32 %v2545, %v2547
        %v2549 = vrot.slane %v2541, %v2548
        %v2551 = vunpack.c.l.s4 1934713408
        %v2552 = vunpack.c.0.s8 %v2551
        %v2553 = vlaneseq
        %v2554 = vshrl.u32 %v2553, 7
        %v2555 = vsub.s32 %v2552, %v2554
        %v2556 = vrot.slane %v2542, %v2555
        %v2557 = vcombine.low %v2501, %v2533
        %v2558 = vcombine.high %v2501, %v2533
        %v2559 = vcombine.low %v2508, %v2540
        %v2560 = vcombine.high %v2508, %v2540
        %v2561 = vcombine.low %v2517, %v2549
        %v2562 = vcombine.high %v2517, %v2549
        %v2563 = vcombine.low %v2524, %v2556
        %v2564 = vcombine.high %v2524, %v2556
        %v2565 = vcombine.low %v958, %v2226
        %v2566 = vcombine.high %v958, %v2226
        %v2568 = vunpack.c.l.s4 1983009808
        %v2569 = vunpack.c.0.s8 %v2568
        %v2570 = vlaneseq
        %v2571 = vshrl.u32 %v2570, 7
        %v2572 = vsub.s32 %v2569, %v2571
        %v2573 = vrot.slane %v2565, %v2572
        %v2575 = vunpack.c.l.s4 1983009808
        %v2576 = vunpack.c.0.s8 %v2575
        %v2577 = vlaneseq
        %v2578 = vshrl.u32 %v2577, 7
        %v2579 = vsub.s32 %v2576, %v2578
        %v2580 = vrot.slane %v2566, %v2579
        %v2581 = vcombine.low %v2214, %v2238
        %v2582 = vcombine.high %v2214, %v2238
        %v2584 = vunpack.c.l.s4 1983009808
        %v2585 = vunpack.c.0.s8 %v2584
        %v2586 = vlaneseq
        %v2587 = vshrl.u32 %v2586, 7
        %v2588 = vsub.s32 %v2585, %v2587
        %v2589 = vrot.slane %v2581, %v2588
        %v2591 = vunpack.c.l.s4 1983009808
        %v2592 = vunpack.c.0.s8 %v2591
        %v2593 = vlaneseq
        %v2594 = vshrl.u32 %v2593, 7
        %v2595 = vsub.s32 %v2592, %v2594
        %v2596 = vrot.slane %v2582, %v2595
        %v2597 = vcombine.low %v2250, %v2274
        %v2598 = vcombine.high %v2250, %v2274
        %v2600 = vunpack.c.l.s4 1983009808
        %v2601 = vunpack.c.0.s8 %v2600
        %v2602 = vlaneseq
        %v2603 = vshrl.u32 %v2602, 7
        %v2604 = vsub.s32 %v2601, %v2603
        %v2605 = vrot.slane %v2597, %v2604
        %v2607 = vunpack.c.l.s4 1983009808
        %v2608 = vunpack.c.0.s8 %v2607
        %v2609 = vlaneseq
        %v2610 = vshrl.u32 %v2609, 7
        %v2611 = vsub.s32 %v2608, %v2610
        %v2612 = vrot.slane %v2598, %v2611
        %v2613 = vcombine.low %v2262, %v2286
        %v2614 = vcombine.high %v2262, %v2286
        %v2616 = vunpack.c.l.s4 1983009808
        %v2617 = vunpack.c.0.s8 %v2616
        %v2618 = vlaneseq
        %v2619 = vshrl.u32 %v2618, 7
        %v2620 = vsub.s32 %v2617, %v2619
        %v2621 = vrot.slane %v2613, %v2620
        %v2623 = vunpack.c.l.s4 1983009808
        %v2624 = vunpack.c.0.s8 %v2623
        %v2625 = vlaneseq
        %v2626 = vshrl.u32 %v2625, 7
        %v2627 = vsub.s32 %v2624, %v2626
        %v2628 = vrot.slane %v2614, %v2627
        %v2629 = vcombine.low %v2573, %v2589
        %v2630 = vcombine.high %v2573, %v2589
        %v2632 = vunpack.c.l.s4 1934713408
        %v2633 = vunpack.c.0.s8 %v2632
        %v2634 = vlaneseq
        %v2635 = vshrl.u32 %v2634, 7
        %v2636 = vsub.s32 %v2633, %v2635
        %v2637 = vrot.slane %v2629, %v2636
        %v2639 = vunpack.c.l.s4 1934713408
        %v2640 = vunpack.c.0.s8 %v2639
        %v2641 = vlaneseq
        %v2642 = vshrl.u32 %v2641, 7
        %v2643 = vsub.s32 %v2640, %v2642
        %v2644 = vrot.slane %v2630, %v2643
        %v2645 = vcombine.low %v2580, %v2596
        %v2646 = vcombine.high %v2580, %v2596
        %v2648 = vunpack.c.l.s4 1934713408
        %v2649 = vunpack.c.0.s8 %v2648
        %v2650 = vlaneseq
        %v2651 = vshrl.u32 %v2650, 7
        %v2652 = vsub.s32 %v2649, %v2651
        %v2653 = vrot.slane %v2645, %v2652
        %v2655 = vunpack.c.l.s4 1934713408
        %v2656 = vunpack.c.0.s8 %v2655
        %v2657 = vlaneseq
        %v2658 = vshrl.u32 %v2657, 7
        %v2659 = vsub.s32 %v2656, %v2658
        %v2660 = vrot.slane %v2646, %v2659
        %v2661 = vcombine.low %v2605, %v2621
        %v2662 = vcombine.high %v2605, %v2621
        %v2664 = vunpack.c.l.s4 1934713408
        %v2665 = vunpack.c.0.s8 %v2664
        %v2666 = vlaneseq
        %v2667 = vshrl.u32 %v2666, 7
        %v2668 = vsub.s32 %v2665, %v2667
        %v2669 = vrot.slane %v2661, %v2668
        %v2671 = vunpack.c.l.s4 1934713408
        %v2672 = vunpack.c.0.s8 %v2671
        %v2673 = vlaneseq
        %v2674 = vshrl.u32 %v2673, 7
        %v2675 = vsub.s32 %v2672, %v2674
        %v2676 = vrot.slane %v2662, %v2675
        %v2677 = vcombine.low %v2612, %v2628
        %v2678 = vcombine.high %v2612, %v2628
        %v2680 = vunpack.c.l.s4 1934713408
        %v2681 = vunpack.c.0.s8 %v2680
        %v2682 = vlaneseq
        %v2683 = vshrl.u32 %v2682, 7
        %v2684 = vsub.s32 %v2681, %v2683
        %v2685 = vrot.slane %v2677, %v2684
        %v2687 = vunpack.c.l.s4 1934713408
        %v2688 = vunpack.c.0.s8 %v2687
        %v2689 = vlaneseq
        %v2690 = vshrl.u32 %v2689, 7
        %v2691 = vsub.s32 %v2688, %v2690
        %v2692 = vrot.slane %v2678, %v2691
        %v2693 = vcombine.low %v2637, %v2669
        %v2694 = vcombine.high %v2637, %v2669
        %v2695 = vcombine.low %v2644, %v2676
        %v2696 = vcombine.high %v2644, %v2676
        %v2697 = vcombine.low %v2653, %v2685
        %v2698 = vcombine.high %v2653, %v2685
        %v2699 = vcombine.low %v2660, %v2692
        %v2700 = vcombine.high %v2660, %v2692
        %v2701 = vcombine.low %v962, %v2228
        %v2702 = vcombine.high %v962, %v2228
        %v2704 = vunpack.c.l.s4 1983009808
        %v2705 = vunpack.c.0.s8 %v2704
        %v2706 = vlaneseq
        %v2707 = vshrl.u32 %v2706, 7
        %v2708 = vsub.s32 %v2705, %v2707
        %v2709 = vrot.slane %v2701, %v2708
        %v2711 = vunpack.c.l.s4 1983009808
        %v2712 = vunpack.c.0.s8 %v2711
        %v2713 = vlaneseq
        %v2714 = vshrl.u32 %v2713, 7
        %v2715 = vsub.s32 %v2712, %v2714
        %v2716 = vrot.slane %v2702, %v2715
        %v2717 = vcombine.low %v2216, %v2240
        %v2718 = vcombine.high %v2216, %v2240
        %v2720 = vunpack.c.l.s4 1983009808
        %v2721 = vunpack.c.0.s8 %v2720
        %v2722 = vlaneseq
        %v2723 = vshrl.u32 %v2722, 7
        %v2724 = vsub.s32 %v2721, %v2723
        %v2725 = vrot.slane %v2717, %v2724
        %v2727 = vunpack.c.l.s4 1983009808
        %v2728 = vunpack.c.0.s8 %v2727
        %v2729 = vlaneseq
        %v2730 = vshrl.u32 %v2729, 7
        %v2731 = vsub.s32 %v2728, %v2730
        %v2732 = vrot.slane %v2718, %v2731
        %v2733 = vcombine.low %v2252, %v2276
        %v2734 = vcombine.high %v2252, %v2276
        %v2736 = vunpack.c.l.s4 1983009808
        %v2737 = vunpack.c.0.s8 %v2736
        %v2738 = vlaneseq
        %v2739 = vshrl.u32 %v2738, 7
        %v2740 = vsub.s32 %v2737, %v2739
        %v2741 = vrot.slane %v2733, %v2740
        %v2743 = vunpack.c.l.s4 1983009808
        %v2744 = vunpack.c.0.s8 %v2743
        %v2745 = vlaneseq
        %v2746 = vshrl.u32 %v2745, 7
        %v2747 = vsub.s32 %v2744, %v2746
        %v2748 = vrot.slane %v2734, %v2747
        %v2749 = vcombine.low %v2264, %v2288
        %v2750 = vcombine.high %v2264, %v2288
        %v2752 = vunpack.c.l.s4 1983009808
        %v2753 = vunpack.c.0.s8 %v2752
        %v2754 = vlaneseq
        %v2755 = vshrl.u32 %v2754, 7
        %v2756 = vsub.s32 %v2753, %v2755
        %v2757 = vrot.slane %v2749, %v2756
        %v2759 = vunpack.c.l.s4 1983009808
        %v2760 = vunpack.c.0.s8 %v2759
        %v2761 = vlaneseq
        %v2762 = vshrl.u32 %v2761, 7
        %v2763 = vsub.s32 %v2760, %v2762
        %v2764 = vrot.slane %v2750, %v2763
        %v2765 = vcombine.low %v2709, %v2725
        %v2766 = vcombine.high %v2709, %v2725
        %v2768 = vunpack.c.l.s4 1934713408
        %v2769 = vunpack.c.0.s8 %v2768
        %v2770 = vlaneseq
        %v2771 = vshrl.u32 %v2770, 7
        %v2772 = vsub.s32 %v2769, %v2771
        %v2773 = vrot.slane %v2765, %v2772
        %v2775 = vunpack.c.l.s4 1934713408
        %v2776 = vunpack.c.0.s8 %v2775
        %v2777 = vlaneseq
        %v2778 = vshrl.u32 %v2777, 7
        %v2779 = vsub.s32 %v2776, %v2778
        %v2780 = vrot.slane %v2766, %v2779
        %v2781 = vcombine.low %v2716, %v2732
        %v2782 = vcombine.high %v2716, %v2732
        %v2784 = vunpack.c.l.s4 1934713408
        %v2785 = vunpack.c.0.s8 %v2784
        %v2786 = vlaneseq
        %v2787 = vshrl.u32 %v2786, 7
        %v2788 = vsub.s32 %v2785, %v2787
        %v2789 = vrot.slane %v2781, %v2788
        %v2791 = vunpack.c.l.s4 1934713408
        %v2792 = vunpack.c.0.s8 %v2791
        %v2793 = vlaneseq
        %v2794 = vshrl.u32 %v2793, 7
        %v2795 = vsub.s32 %v2792, %v2794
        %v2796 = vrot.slane %v2782, %v2795
        %v2797 = vcombine.low %v2741, %v2757
        %v2798 = vcombine.high %v2741, %v2757
        %v2800 = vunpack.c.l.s4 1934713408
        %v2801 = vunpack.c.0.s8 %v2800
        %v2802 = vlaneseq
        %v2803 = vshrl.u32 %v2802, 7
        %v2804 = vsub.s32 %v2801, %v2803
        %v2805 = vrot.slane %v2797, %v2804
        %v2807 = vunpack.c.l.s4 1934713408
        %v2808 = vunpack.c.0.s8 %v2807
        %v2809 = vlaneseq
        %v2810 = vshrl.u32 %v2809, 7
        %v2811 = vsub.s32 %v2808, %v2810
        %v2812 = vrot.slane %v2798, %v2811
        %v2813 = vcombine.low %v2748, %v2764
        %v2814 = vcombine.high %v2748, %v2764
        %v2816 = vunpack.c.l.s4 1934713408
        %v2817 = vunpack.c.0.s8 %v2816
        %v2818 = vlaneseq
        %v2819 = vshrl.u32 %v2818, 7
        %v2820 = vsub.s32 %v2817, %v2819
        %v2821 = vrot.slane %v2813, %v2820
        %v2823 = vunpack.c.l.s4 1934713408
        %v2824 = vunpack.c.0.s8 %v2823
        %v2825 = vlaneseq
        %v2826 = vshrl.u32 %v2825, 7
        %v2827 = vsub.s32 %v2824, %v2826
        %v2828 = vrot.slane %v2814, %v2827
        %v2829 = vcombine.low %v2773, %v2805
        %v2830 = vcombine.high %v2773, %v2805
        %v2831 = vcombine.low %v2780, %v2812
        %v2832 = vcombine.high %v2780, %v2812
        %v2833 = vcombine.low %v2789, %v2821
        %v2834 = vcombine.high %v2789, %v2821
        %v2835 = vcombine.low %v2796, %v2828
        %v2836 = vcombine.high %v2796, %v2828
        %v2837 = vcombine.low %v2421, %v2423
        %v2838 = vcombine.high %v2421, %v2423
        %v2840 = vunpack.c.l.s4 1983009808
        %v2841 = vunpack.c.0.s8 %v2840
        %v2842 = vlaneseq
        %v2843 = vshrl.u32 %v2842, 7
        %v2844 = vsub.s32 %v2841, %v2843
        %v2845 = vrot.slane %v2837, %v2844
        %v2847 = vunpack.c.l.s4 1983009808
        %v2848 = vunpack.c.0.s8 %v2847
        %v2849 = vlaneseq
        %v2850 = vshrl.u32 %v2849, 7
        %v2851 = vsub.s32 %v2848, %v2850
        %v2852 = vrot.slane %v2838, %v2851
        %v2853 = vcombine.low %v2422, %v2424
        %v2854 = vcombine.high %v2422, %v2424
        %v2856 = vunpack.c.l.s4 1983009808
        %v2857 = vunpack.c.0.s8 %v2856
        %v2858 = vlaneseq
        %v2859 = vshrl.u32 %v2858, 7
        %v2860 = vsub.s32 %v2857, %v2859
        %v2861 = vrot.slane %v2853, %v2860
        %v2863 = vunpack.c.l.s4 1983009808
        %v2864 = vunpack.c.0.s8 %v2863
        %v2865 = vlaneseq
        %v2866 = vshrl.u32 %v2865, 7
        %v2867 = vsub.s32 %v2864, %v2866
        %v2868 = vrot.slane %v2854, %v2867
        %v2869 = vcombine.low %v2425, %v2427
        %v2870 = vcombine.high %v2425, %v2427
        %v2872 = vunpack.c.l.s4 1983009808
        %v2873 = vunpack.c.0.s8 %v2872
        %v2874 = vlaneseq
        %v2875 = vshrl.u32 %v2874, 7
        %v2876 = vsub.s32 %v2873, %v2875
        %v2877 = vrot.slane %v2869, %v2876
        %v2879 = vunpack.c.l.s4 1983009808
        %v2880 = vunpack.c.0.s8 %v2879
        %v2881 = vlaneseq
        %v2882 = vshrl.u32 %v2881, 7
        %v2883 = vsub.s32 %v2880, %v2882
        %v2884 = vrot.slane %v2870, %v2883
        %v2885 = vcombine.low %v2426, %v2428
        %v2886 = vcombine.high %v2426, %v2428
        %v2888 = vunpack.c.l.s4 1983009808
        %v2889 = vunpack.c.0.s8 %v2888
        %v2890 = vlaneseq
        %v2891 = vshrl.u32 %v2890, 7
        %v2892 = vsub.s32 %v2889, %v2891
        %v2893 = vrot.slane %v2885, %v2892
        %v2895 = vunpack.c.l.s4 1983009808
        %v2896 = vunpack.c.0.s8 %v2895
        %v2897 = vlaneseq
        %v2898 = vshrl.u32 %v2897, 7
        %v2899 = vsub.s32 %v2896, %v2898
        %v2900 = vrot.slane %v2886, %v2899
        %v2901 = vcombine.low %v2845, %v2861
        %v2902 = vcombine.high %v2845, %v2861
        %v2904 = vunpack.c.l.s4 1934713408
        %v2905 = vunpack.c.0.s8 %v2904
        %v2906 = vlaneseq
        %v2907 = vshrl.u32 %v2906, 7
        %v2908 = vsub.s32 %v2905, %v2907
        %v2909 = vrot.slane %v2901, %v2908
        %v2911 = vunpack.c.l.s4 1934713408
        %v2912 = vunpack.c.0.s8 %v2911
        %v2913 = vlaneseq
        %v2914 = vshrl.u32 %v2913, 7
        %v2915 = vsub.s32 %v2912, %v2914
        %v2916 = vrot.slane %v2902, %v2915
        %v2917 = vcombine.low %v2852, %v2868
        %v2918 = vcombine.high %v2852, %v2868
        %v2920 = vunpack.c.l.s4 1934713408
        %v2921 = vunpack.c.0.s8 %v2920
        %v2922 = vlaneseq
        %v2923 = vshrl.u32 %v2922, 7
        %v2924 = vsub.s32 %v2921, %v2923
        %v2925 = vrot.slane %v2917, %v2924
        %v2927 = vunpack.c.l.s4 1934713408
        %v2928 = vunpack.c.0.s8 %v2927
        %v2929 = vlaneseq
        %v2930 = vshrl.u32 %v2929, 7
        %v2931 = vsub.s32 %v2928, %v2930
        %v2932 = vrot.slane %v2918, %v2931
        %v2933 = vcombine.low %v2877, %v2893
        %v2934 = vcombine.high %v2877, %v2893
        %v2936 = vunpack.c.l.s4 1934713408
        %v2937 = vunpack.c.0.s8 %v2936
        %v2938 = vlaneseq
        %v2939 = vshrl.u32 %v2938, 7
        %v2940 = vsub.s32 %v2937, %v2939
        %v2941 = vrot.slane %v2933, %v2940
        %v2943 = vunpack.c.l.s4 1934713408
        %v2944 = vunpack.c.0.s8 %v2943
        %v2945 = vlaneseq
        %v2946 = vshrl.u32 %v2945, 7
        %v2947 = vsub.s32 %v2944, %v2946
        %v2948 = vrot.slane %v2934, %v2947
        %v2949 = vcombine.low %v2884, %v2900
        %v2950 = vcombine.high %v2884, %v2900
        %v2952 = vunpack.c.l.s4 1934713408
        %v2953 = vunpack.c.0.s8 %v2952
        %v2954 = vlaneseq
        %v2955 = vshrl.u32 %v2954, 7
        %v2956 = vsub.s32 %v2953, %v2955
        %v2957 = vrot.slane %v2949, %v2956
        %v2959 = vunpack.c.l.s4 1934713408
        %v2960 = vunpack.c.0.s8 %v2959
        %v2961 = vlaneseq
        %v2962 = vshrl.u32 %v2961, 7
        %v2963 = vsub.s32 %v2960, %v2962
        %v2964 = vrot.slane %v2950, %v2963
        %v2965 = vcombine.low %v2909, %v2941
        %v2966 = vcombine.high %v2909, %v2941
        %v2967 = vcombine.low %v2916, %v2948
        %v2968 = vcombine.high %v2916, %v2948
        %v2969 = vcombine.low %v2925, %v2957
        %v2970 = vcombine.high %v2925, %v2957
        %v2971 = vcombine.low %v2932, %v2964
        %v2972 = vcombine.high %v2932, %v2964
        %v2973 = vcombine.low %v2557, %v2559
        %v2974 = vcombine.high %v2557, %v2559
        %v2976 = vunpack.c.l.s4 1983009808
        %v2977 = vunpack.c.0.s8 %v2976
        %v2978 = vlaneseq
        %v2979 = vshrl.u32 %v2978, 7
        %v2980 = vsub.s32 %v2977, %v2979
        %v2981 = vrot.slane %v2973, %v2980
        %v2983 = vunpack.c.l.s4 1983009808
        %v2984 = vunpack.c.0.s8 %v2983
        %v2985 = vlaneseq
        %v2986 = vshrl.u32 %v2985, 7
        %v2987 = vsub.s32 %v2984, %v2986
        %v2988 = vrot.slane %v2974, %v2987
        %v2989 = vcombine.low %v2558, %v2560
        %v2990 = vcombine.high %v2558, %v2560
        %v2992 = vunpack.c.l.s4 1983009808
        %v2993 = vunpack.c.0.s8 %v2992
        %v2994 = vlaneseq
        %v2995 = vshrl.u32 %v2994, 7
        %v2996 = vsub.s32 %v2993, %v2995
        %v2997 = vrot.slane %v2989, %v2996
        %v2999 = vunpack.c.l.s4 1983009808
        %v3000 = vunpack.c.0.s8 %v2999
        %v3001 = vlaneseq
        %v3002 = vshrl.u32 %v3001, 7
        %v3003 = vsub.s32 %v3000, %v3002
        %v3004 = vrot.slane %v2990, %v3003
        %v3005 = vcombine.low %v2561, %v2563
        %v3006 = vcombine.high %v2561, %v2563
        %v3008 = vunpack.c.l.s4 1983009808
        %v3009 = vunpack.c.0.s8 %v3008
        %v3010 = vlaneseq
        %v3011 = vshrl.u32 %v3010, 7
        %v3012 = vsub.s32 %v3009, %v3011
        %v3013 = vrot.slane %v3005, %v3012
        %v3015 = vunpack.c.l.s4 1983009808
        %v3016 = vunpack.c.0.s8 %v3015
        %v3017 = vlaneseq
        %v3018 = vshrl.u32 %v3017, 7
        %v3019 = vsub.s32 %v3016, %v3018
        %v3020 = vrot.slane %v3006, %v3019
        %v3021 = vcombine.low %v2562, %v2564
        %v3022 = vcombine.high %v2562, %v2564
        %v3024 = vunpack.c.l.s4 1983009808
        %v3025 = vunpack.c.0.s8 %v3024
        %v3026 = vlaneseq
        %v3027 = vshrl.u32 %v3026, 7
        %v3028 = vsub.s32 %v3025, %v3027
        %v3029 = vrot.slane %v3021, %v3028
        %v3031 = vunpack.c.l.s4 1983009808
        %v3032 = vunpack.c.0.s8 %v3031
        %v3033 = vlaneseq
        %v3034 = vshrl.u32 %v3033, 7
        %v3035 = vsub.s32 %v3032, %v3034
        %v3036 = vrot.slane %v3022, %v3035
        %v3037 = vcombine.low %v2981, %v2997
        %v3038 = vcombine.high %v2981, %v2997
        %v3040 = vunpack.c.l.s4 1934713408
        %v3041 = vunpack.c.0.s8 %v3040
        %v3042 = vlaneseq
        %v3043 = vshrl.u32 %v3042, 7
        %v3044 = vsub.s32 %v3041, %v3043
        %v3045 = vrot.slane %v3037, %v3044
        %v3047 = vunpack.c.l.s4 1934713408
        %v3048 = vunpack.c.0.s8 %v3047
        %v3049 = vlaneseq
        %v3050 = vshrl.u32 %v3049, 7
        %v3051 = vsub.s32 %v3048, %v3050
        %v3052 = vrot.slane %v3038, %v3051
        %v3053 = vcombine.low %v2988, %v3004
        %v3054 = vcombine.high %v2988, %v3004
        %v3056 = vunpack.c.l.s4 1934713408
        %v3057 = vunpack.c.0.s8 %v3056
        %v3058 = vlaneseq
        %v3059 = vshrl.u32 %v3058, 7
        %v3060 = vsub.s32 %v3057, %v3059
        %v3061 = vrot.slane %v3053, %v3060
        %v3063 = vunpack.c.l.s4 1934713408
        %v3064 = vunpack.c.0.s8 %v3063
        %v3065 = vlaneseq
        %v3066 = vshrl.u32 %v3065, 7
        %v3067 = vsub.s32 %v3064, %v3066
        %v3068 = vrot.slane %v3054, %v3067
        %v3069 = vcombine.low %v3013, %v3029
        %v3070 = vcombine.high %v3013, %v3029
        %v3072 = vunpack.c.l.s4 1934713408
        %v3073 = vunpack.c.0.s8 %v3072
        %v3074 = vlaneseq
        %v3075 = vshrl.u32 %v3074, 7
        %v3076 = vsub.s32 %v3073, %v3075
        %v3077 = vrot.slane %v3069, %v3076
        %v3079 = vunpack.c.l.s4 1934713408
        %v3080 = vunpack.c.0.s8 %v3079
        %v3081 = vlaneseq
        %v3082 = vshrl.u32 %v3081, 7
        %v3083 = vsub.s32 %v3080, %v3082
        %v3084 = vrot.slane %v3070, %v3083
        %v3085 = vcombine.low %v3020, %v3036
        %v3086 = vcombine.high %v3020, %v3036
        %v3088 = vunpack.c.l.s4 1934713408
        %v3089 = vunpack.c.0.s8 %v3088
        %v3090 = vlaneseq
        %v3091 = vshrl.u32 %v3090, 7
        %v3092 = vsub.s32 %v3089, %v3091
        %v3093 = vrot.slane %v3085, %v3092
        %v3095 = vunpack.c.l.s4 1934713408
        %v3096 = vunpack.c.0.s8 %v3095
        %v3097 = vlaneseq
        %v3098 = vshrl.u32 %v3097, 7
        %v3099 = vsub.s32 %v3096, %v3098
        %v3100 = vrot.slane %v3086, %v3099
        %v3101 = vcombine.low %v3045, %v3077
        %v3102 = vcombine.high %v3045, %v3077
        %v3103 = vcombine.low %v3052, %v3084
        %v3104 = vcombine.high %v3052, %v3084
        %v3105 = vcombine.low %v3061, %v3093
        %v3106 = vcombine.high %v3061, %v3093
        %v3107 = vcombine.low %v3068, %v3100
        %v3108 = vcombine.high %v3068, %v3100
        %v3109 = vcombine.low %v2693, %v2695
        %v3110 = vcombine.high %v2693, %v2695
        %v3112 = vunpack.c.l.s4 1983009808
        %v3113 = vunpack.c.0.s8 %v3112
        %v3114 = vlaneseq
        %v3115 = vshrl.u32 %v3114, 7
        %v3116 = vsub.s32 %v3113, %v3115
        %v3117 = vrot.slane %v3109, %v3116
        %v3119 = vunpack.c.l.s4 1983009808
        %v3120 = vunpack.c.0.s8 %v3119
        %v3121 = vlaneseq
        %v3122 = vshrl.u32 %v3121, 7
        %v3123 = vsub.s32 %v3120, %v3122
        %v3124 = vrot.slane %v3110, %v3123
        %v3125 = vcombine.low %v2694, %v2696
        %v3126 = vcombine.high %v2694, %v2696
        %v3128 = vunpack.c.l.s4 1983009808
        %v3129 = vunpack.c.0.s8 %v3128
        %v3130 = vlaneseq
        %v3131 = vshrl.u32 %v3130, 7
        %v3132 = vsub.s32 %v3129, %v3131
        %v3133 = vrot.slane %v3125, %v3132
        %v3135 = vunpack.c.l.s4 1983009808
        %v3136 = vunpack.c.0.s8 %v3135
        %v3137 = vlaneseq
        %v3138 = vshrl.u32 %v3137, 7
        %v3139 = vsub.s32 %v3136, %v3138
        %v3140 = vrot.slane %v3126, %v3139
        %v3141 = vcombine.low %v2697, %v2699
        %v3142 = vcombine.high %v2697, %v2699
        %v3144 = vunpack.c.l.s4 1983009808
        %v3145 = vunpack.c.0.s8 %v3144
        %v3146 = vlaneseq
        %v3147 = vshrl.u32 %v3146, 7
        %v3148 = vsub.s32 %v3145, %v3147
        %v3149 = vrot.slane %v3141, %v3148
        %v3151 = vunpack.c.l.s4 1983009808
        %v3152 = vunpack.c.0.s8 %v3151
        %v3153 = vlaneseq
        %v3154 = vshrl.u32 %v3153, 7
        %v3155 = vsub.s32 %v3152, %v3154
        %v3156 = vrot.slane %v3142, %v3155
        %v3157 = vcombine.low %v2698, %v2700
        %v3158 = vcombine.high %v2698, %v2700
        %v3160 = vunpack.c.l.s4 1983009808
        %v3161 = vunpack.c.0.s8 %v3160
        %v3162 = vlaneseq
        %v3163 = vshrl.u32 %v3162, 7
        %v3164 = vsub.s32 %v3161, %v3163
        %v3165 = vrot.slane %v3157, %v3164
        %v3167 = vunpack.c.l.s4 1983009808
        %v3168 = vunpack.c.0.s8 %v3167
        %v3169 = vlaneseq
        %v3170 = vshrl.u32 %v3169, 7
        %v3171 = vsub.s32 %v3168, %v3170
        %v3172 = vrot.slane %v3158, %v3171
        %v3173 = vcombine.low %v3117, %v3133
        %v3174 = vcombine.high %v3117, %v3133
        %v3176 = vunpack.c.l.s4 1934713408
        %v3177 = vunpack.c.0.s8 %v3176
        %v3178 = vlaneseq
        %v3179 = vshrl.u32 %v3178, 7
        %v3180 = vsub.s32 %v3177, %v3179
        %v3181 = vrot.slane %v3173, %v3180
        %v3183 = vunpack.c.l.s4 1934713408
        %v3184 = vunpack.c.0.s8 %v3183
        %v3185 = vlaneseq
        %v3186 = vshrl.u32 %v3185, 7
        %v3187 = vsub.s32 %v3184, %v3186
        %v3188 = vrot.slane %v3174, %v3187
        %v3189 = vcombine.low %v3124, %v3140
        %v3190 = vcombine.high %v3124, %v3140
        %v3192 = vunpack.c.l.s4 1934713408
        %v3193 = vunpack.c.0.s8 %v3192
        %v3194 = vlaneseq
        %v3195 = vshrl.u32 %v3194, 7
        %v3196 = vsub.s32 %v3193, %v3195
        %v3197 = vrot.slane %v3189, %v3196
        %v3199 = vunpack.c.l.s4 1934713408
        %v3200 = vunpack.c.0.s8 %v3199
        %v3201 = vlaneseq
        %v3202 = vshrl.u32 %v3201, 7
        %v3203 = vsub.s32 %v3200, %v3202
        %v3204 = vrot.slane %v3190, %v3203
        %v3205 = vcombine.low %v3149, %v3165
        %v3206 = vcombine.high %v3149, %v3165
        %v3208 = vunpack.c.l.s4 1934713408
        %v3209 = vunpack.c.0.s8 %v3208
        %v3210 = vlaneseq
        %v3211 = vshrl.u32 %v3210, 7
        %v3212 = vsub.s32 %v3209, %v3211
        %v3213 = vrot.slane %v3205, %v3212
        %v3215 = vunpack.c.l.s4 1934713408
        %v3216 = vunpack.c.0.s8 %v3215
        %v3217 = vlaneseq
        %v3218 = vshrl.u32 %v3217, 7
        %v3219 = vsub.s32 %v3216, %v3218
        %v3220 = vrot.slane %v3206, %v3219
        %v3221 = vcombine.low %v3156, %v3172
        %v3222 = vcombine.high %v3156, %v3172
        %v3224 = vunpack.c.l.s4 1934713408
        %v3225 = vunpack.c.0.s8 %v3224
        %v3226 = vlaneseq
        %v3227 = vshrl.u32 %v3226, 7
        %v3228 = vsub.s32 %v3225, %v3227
        %v3229 = vrot.slane %v3221, %v3228
        %v3231 = vunpack.c.l.s4 1934713408
        %v3232 = vunpack.c.0.s8 %v3231
        %v3233 = vlaneseq
        %v3234 = vshrl.u32 %v3233, 7
        %v3235 = vsub.s32 %v3232, %v3234
        %v3236 = vrot.slane %v3222, %v3235
        %v3237 = vcombine.low %v3181, %v3213
        %v3238 = vcombine.high %v3181, %v3213
        %v3239 = vcombine.low %v3188, %v3220
        %v3240 = vcombine.high %v3188, %v3220
        %v3241 = vcombine.low %v3197, %v3229
        %v3242 = vcombine.high %v3197, %v3229
        %v3243 = vcombine.low %v3204, %v3236
        %v3244 = vcombine.high %v3204, %v3236
        %v3245 = vcombine.low %v2829, %v2831
        %v3246 = vcombine.high %v2829, %v2831
        %v3248 = vunpack.c.l.s4 1983009808
        %v3249 = vunpack.c.0.s8 %v3248
        %v3250 = vlaneseq
        %v3251 = vshrl.u32 %v3250, 7
        %v3252 = vsub.s32 %v3249, %v3251
        %v3253 = vrot.slane %v3245, %v3252
        %v3255 = vunpack.c.l.s4 1983009808
        %v3256 = vunpack.c.0.s8 %v3255
        %v3257 = vlaneseq
        %v3258 = vshrl.u32 %v3257, 7
        %v3259 = vsub.s32 %v3256, %v3258
        %v3260 = vrot.slane %v3246, %v3259
        %v3261 = vcombine.low %v2830, %v2832
        %v3262 = vcombine.high %v2830, %v2832
        %v3264 = vunpack.c.l.s4 1983009808
        %v3265 = vunpack.c.0.s8 %v3264
        %v3266 = vlaneseq
        %v3267 = vshrl.u32 %v3266, 7
        %v3268 = vsub.s32 %v3265, %v3267
        %v3269 = vrot.slane %v3261, %v3268
        %v3271 = vunpack.c.l.s4 1983009808
        %v3272 = vunpack.c.0.s8 %v3271
        %v3273 = vlaneseq
        %v3274 = vshrl.u32 %v3273, 7
        %v3275 = vsub.s32 %v3272, %v3274
        %v3276 = vrot.slane %v3262, %v3275
        %v3277 = vcombine.low %v2833, %v2835
        %v3278 = vcombine.high %v2833, %v2835
        %v3280 = vunpack.c.l.s4 1983009808
        %v3281 = vunpack.c.0.s8 %v3280
        %v3282 = vlaneseq
        %v3283 = vshrl.u32 %v3282, 7
        %v3284 = vsub.s32 %v3281, %v3283
        %v3285 = vrot.slane %v3277, %v3284
        %v3287 = vunpack.c.l.s4 1983009808
        %v3288 = vunpack.c.0.s8 %v3287
        %v3289 = vlaneseq
        %v3290 = vshrl.u32 %v3289, 7
        %v3291 = vsub.s32 %v3288, %v3290
        %v3292 = vrot.slane %v3278, %v3291
        %v3293 = vcombine.low %v2834, %v2836
        %v3294 = vcombine.high %v2834, %v2836
        %v3296 = vunpack.c.l.s4 1983009808
        %v3297 = vunpack.c.0.s8 %v3296
        %v3298 = vlaneseq
        %v3299 = vshrl.u32 %v3298, 7
        %v3300 = vsub.s32 %v3297, %v3299
        %v3301 = vrot.slane %v3293, %v3300
        %v3303 = vunpack.c.l.s4 1983009808
        %v3304 = vunpack.c.0.s8 %v3303
        %v3305 = vlaneseq
        %v3306 = vshrl.u32 %v3305, 7
        %v3307 = vsub.s32 %v3304, %v3306
        %v3308 = vrot.slane %v3294, %v3307
        %v3309 = vcombine.low %v3253, %v3269
        %v3310 = vcombine.high %v3253, %v3269
        %v3312 = vunpack.c.l.s4 1934713408
        %v3313 = vunpack.c.0.s8 %v3312
        %v3314 = vlaneseq
        %v3315 = vshrl.u32 %v3314, 7
        %v3316 = vsub.s32 %v3313, %v3315
        %v3317 = vrot.slane %v3309, %v3316
        %v3319 = vunpack.c.l.s4 1934713408
        %v3320 = vunpack.c.0.s8 %v3319
        %v3321 = vlaneseq
        %v3322 = vshrl.u32 %v3321, 7
        %v3323 = vsub.s32 %v3320, %v3322
        %v3324 = vrot.slane %v3310, %v3323
        %v3325 = vcombine.low %v3260, %v3276
        %v3326 = vcombine.high %v3260, %v3276
        %v3328 = vunpack.c.l.s4 1934713408
        %v3329 = vunpack.c.0.s8 %v3328
        %v3330 = vlaneseq
        %v3331 = vshrl.u32 %v3330, 7
        %v3332 = vsub.s32 %v3329, %v3331
        %v3333 = vrot.slane %v3325, %v3332
        %v3335 = vunpack.c.l.s4 1934713408
        %v3336 = vunpack.c.0.s8 %v3335
        %v3337 = vlaneseq
        %v3338 = vshrl.u32 %v3337, 7
        %v3339 = vsub.s32 %v3336, %v3338
        %v3340 = vrot.slane %v3326, %v3339
        %v3341 = vcombine.low %v3285, %v3301
        %v3342 = vcombine.high %v3285, %v3301
        %v3344 = vunpack.c.l.s4 1934713408
        %v3345 = vunpack.c.0.s8 %v3344
        %v3346 = vlaneseq
        %v3347 = vshrl.u32 %v3346, 7
        %v3348 = vsub.s32 %v3345, %v3347
        %v3349 = vrot.slane %v3341, %v3348
        %v3351 = vunpack.c.l.s4 1934713408
        %v3352 = vunpack.c.0.s8 %v3351
        %v3353 = vlaneseq
        %v3354 = vshrl.u32 %v3353, 7
        %v3355 = vsub.s32 %v3352, %v3354
        %v3356 = vrot.slane %v3342, %v3355
        %v3357 = vcombine.low %v3292, %v3308
        %v3358 = vcombine.high %v3292, %v3308
        %v3360 = vunpack.c.l.s4 1934713408
        %v3361 = vunpack.c.0.s8 %v3360
        %v3362 = vlaneseq
        %v3363 = vshrl.u32 %v3362, 7
        %v3364 = vsub.s32 %v3361, %v3363
        %v3365 = vrot.slane %v3357, %v3364
        %v3367 = vunpack.c.l.s4 1934713408
        %v3368 = vunpack.c.0.s8 %v3367
        %v3369 = vlaneseq
        %v3370 = vshrl.u32 %v3369, 7
        %v3371 = vsub.s32 %v3368, %v3370
        %v3372 = vrot.slane %v3358, %v3371
        %v3373 = vcombine.low %v3317, %v3349
        %v3374 = vcombine.high %v3317, %v3349
        %v3375 = vcombine.low %v3324, %v3356
        %v3376 = vcombine.high %v3324, %v3356
        %v3377 = vcombine.low %v3333, %v3365
        %v3378 = vcombine.high %v3333, %v3365
        %v3379 = vcombine.low %v3340, %v3372
        %v3380 = vcombine.high %v3340, %v3372
        %v3381 = vpack.c.bf16 %v3101, %v2965
        %v3382 = vpack.c.bf16 %v3373, %v3237
        %v3383 = vpack.c.bf16 %v3102, %v2966
        %v3384 = vpack.c.bf16 %v3374, %v3238
        %v3385 = vpack.c.bf16 %v3103, %v2967
        %v3386 = vpack.c.bf16 %v3375, %v3239
        %v3387 = vpack.c.bf16 %v3104, %v2968
        %v3388 = vpack.c.bf16 %v3376, %v3240
        %v3389 = vpack.c.bf16 %v3105, %v2969
        %v3390 = vpack.c.bf16 %v3377, %v3241
        %v3391 = vpack.c.bf16 %v3106, %v2970
        %v3392 = vpack.c.bf16 %v3378, %v3242
        %v3393 = vpack.c.bf16 %v3107, %v2971
        %v3394 = vpack.c.bf16 %v3379, %v3243
        %v3395 = vpack.c.bf16 %v3108, %v2972
        %v3396 = vpack.c.bf16 %v3380, %v3244
        %3401 = vrot.lane.b32.xlu0 %v999, 112
        %v3402 = vpop.permute.xlu0 %3401
        %3403 = vrot.lane.b32.xlu0 %v1002, 112
        %v3404 = vpop.permute.xlu0 %3403
        %3405 = vrot.lane.b32.xlu0 %v1007, 112
        %v3406 = vpop.permute.xlu0 %3405
        %3407 = vrot.lane.b32.xlu0 %v1010, 112
        %v3408 = vpop.permute.xlu0 %3407
        %3413 = vrot.lane.b32.xlu0 %v999, 96
        %v3414 = vpop.permute.xlu0 %3413
        %3415 = vrot.lane.b32.xlu0 %v1002, 96
        %v3416 = vpop.permute.xlu0 %3415
        %3417 = vrot.lane.b32.xlu0 %v1007, 96
        %v3418 = vpop.permute.xlu0 %3417
        %3419 = vrot.lane.b32.xlu0 %v1010, 96
        %v3420 = vpop.permute.xlu0 %3419
        %3425 = vrot.lane.b32.xlu0 %v999, 80
        %v3426 = vpop.permute.xlu0 %3425
        %3427 = vrot.lane.b32.xlu0 %v1002, 80
        %v3428 = vpop.permute.xlu0 %3427
        %3429 = vrot.lane.b32.xlu0 %v1007, 80
        %v3430 = vpop.permute.xlu0 %3429
        %3431 = vrot.lane.b32.xlu0 %v1010, 80
        %v3432 = vpop.permute.xlu0 %3431
        %3437 = vrot.lane.b32.xlu0 %v999, 64
        %v3438 = vpop.permute.xlu0 %3437
        %3439 = vrot.lane.b32.xlu0 %v1002, 64
        %v3440 = vpop.permute.xlu0 %3439
        %3441 = vrot.lane.b32.xlu0 %v1007, 64
        %v3442 = vpop.permute.xlu0 %3441
        %3443 = vrot.lane.b32.xlu0 %v1010, 64
        %v3444 = vpop.permute.xlu0 %3443
        %3449 = vrot.lane.b32.xlu0 %v999, 48
        %v3450 = vpop.permute.xlu0 %3449
        %3451 = vrot.lane.b32.xlu0 %v1002, 48
        %v3452 = vpop.permute.xlu0 %3451
        %3453 = vrot.lane.b32.xlu0 %v1007, 48
        %v3454 = vpop.permute.xlu0 %3453
        %3455 = vrot.lane.b32.xlu0 %v1010, 48
        %v3456 = vpop.permute.xlu0 %3455
        %3461 = vrot.lane.b32.xlu0 %v999, 32
        %v3462 = vpop.permute.xlu0 %3461
        %3463 = vrot.lane.b32.xlu0 %v1002, 32
        %v3464 = vpop.permute.xlu0 %3463
        %3465 = vrot.lane.b32.xlu0 %v1007, 32
        %v3466 = vpop.permute.xlu0 %3465
        %3467 = vrot.lane.b32.xlu0 %v1010, 32
        %v3468 = vpop.permute.xlu0 %3467
        %3473 = vrot.lane.b32.xlu0 %v999, 16
        %v3474 = vpop.permute.xlu0 %3473
        %3475 = vrot.lane.b32.xlu0 %v1002, 16
        %v3476 = vpop.permute.xlu0 %3475
        %3477 = vrot.lane.b32.xlu0 %v1007, 16
        %v3478 = vpop.permute.xlu0 %3477
        %3479 = vrot.lane.b32.xlu0 %v1010, 16
        %v3480 = vpop.permute.xlu0 %3479
        %v3485 = vcombine.low %v999, %v3414
        %v3486 = vcombine.high %v999, %v3414
        %v3488 = vunpack.c.l.s4 1983009808
        %v3489 = vunpack.c.0.s8 %v3488
        %v3490 = vlaneseq
        %v3491 = vshrl.u32 %v3490, 7
        %v3492 = vsub.s32 %v3489, %v3491
        %v3493 = vrot.slane %v3485, %v3492
        %v3495 = vunpack.c.l.s4 1983009808
        %v3496 = vunpack.c.0.s8 %v3495
        %v3497 = vlaneseq
        %v3498 = vshrl.u32 %v3497, 7
        %v3499 = vsub.s32 %v3496, %v3498
        %v3500 = vrot.slane %v3486, %v3499
        %v3501 = vcombine.low %v3402, %v3426
        %v3502 = vcombine.high %v3402, %v3426
        %v3504 = vunpack.c.l.s4 1983009808
        %v3505 = vunpack.c.0.s8 %v3504
        %v3506 = vlaneseq
        %v3507 = vshrl.u32 %v3506, 7
        %v3508 = vsub.s32 %v3505, %v3507
        %v3509 = vrot.slane %v3501, %v3508
        %v3511 = vunpack.c.l.s4 1983009808
        %v3512 = vunpack.c.0.s8 %v3511
        %v3513 = vlaneseq
        %v3514 = vshrl.u32 %v3513, 7
        %v3515 = vsub.s32 %v3512, %v3514
        %v3516 = vrot.slane %v3502, %v3515
        %v3517 = vcombine.low %v3438, %v3462
        %v3518 = vcombine.high %v3438, %v3462
        %v3520 = vunpack.c.l.s4 1983009808
        %v3521 = vunpack.c.0.s8 %v3520
        %v3522 = vlaneseq
        %v3523 = vshrl.u32 %v3522, 7
        %v3524 = vsub.s32 %v3521, %v3523
        %v3525 = vrot.slane %v3517, %v3524
        %v3527 = vunpack.c.l.s4 1983009808
        %v3528 = vunpack.c.0.s8 %v3527
        %v3529 = vlaneseq
        %v3530 = vshrl.u32 %v3529, 7
        %v3531 = vsub.s32 %v3528, %v3530
        %v3532 = vrot.slane %v3518, %v3531
        %v3533 = vcombine.low %v3450, %v3474
        %v3534 = vcombine.high %v3450, %v3474
        %v3536 = vunpack.c.l.s4 1983009808
        %v3537 = vunpack.c.0.s8 %v3536
        %v3538 = vlaneseq
        %v3539 = vshrl.u32 %v3538, 7
        %v3540 = vsub.s32 %v3537, %v3539
        %v3541 = vrot.slane %v3533, %v3540
        %v3543 = vunpack.c.l.s4 1983009808
        %v3544 = vunpack.c.0.s8 %v3543
        %v3545 = vlaneseq
        %v3546 = vshrl.u32 %v3545, 7
        %v3547 = vsub.s32 %v3544, %v3546
        %v3548 = vrot.slane %v3534, %v3547
        %v3549 = vcombine.low %v3493, %v3509
        %v3550 = vcombine.high %v3493, %v3509
        %v3552 = vunpack.c.l.s4 1934713408
        %v3553 = vunpack.c.0.s8 %v3552
        %v3554 = vlaneseq
        %v3555 = vshrl.u32 %v3554, 7
        %v3556 = vsub.s32 %v3553, %v3555
        %v3557 = vrot.slane %v3549, %v3556
        %v3559 = vunpack.c.l.s4 1934713408
        %v3560 = vunpack.c.0.s8 %v3559
        %v3561 = vlaneseq
        %v3562 = vshrl.u32 %v3561, 7
        %v3563 = vsub.s32 %v3560, %v3562
        %v3564 = vrot.slane %v3550, %v3563
        %v3565 = vcombine.low %v3500, %v3516
        %v3566 = vcombine.high %v3500, %v3516
        %v3568 = vunpack.c.l.s4 1934713408
        %v3569 = vunpack.c.0.s8 %v3568
        %v3570 = vlaneseq
        %v3571 = vshrl.u32 %v3570, 7
        %v3572 = vsub.s32 %v3569, %v3571
        %v3573 = vrot.slane %v3565, %v3572
        %v3575 = vunpack.c.l.s4 1934713408
        %v3576 = vunpack.c.0.s8 %v3575
        %v3577 = vlaneseq
        %v3578 = vshrl.u32 %v3577, 7
        %v3579 = vsub.s32 %v3576, %v3578
        %v3580 = vrot.slane %v3566, %v3579
        %v3581 = vcombine.low %v3525, %v3541
        %v3582 = vcombine.high %v3525, %v3541
        %v3584 = vunpack.c.l.s4 1934713408
        %v3585 = vunpack.c.0.s8 %v3584
        %v3586 = vlaneseq
        %v3587 = vshrl.u32 %v3586, 7
        %v3588 = vsub.s32 %v3585, %v3587
        %v3589 = vrot.slane %v3581, %v3588
        %v3591 = vunpack.c.l.s4 1934713408
        %v3592 = vunpack.c.0.s8 %v3591
        %v3593 = vlaneseq
        %v3594 = vshrl.u32 %v3593, 7
        %v3595 = vsub.s32 %v3592, %v3594
        %v3596 = vrot.slane %v3582, %v3595
        %v3597 = vcombine.low %v3532, %v3548
        %v3598 = vcombine.high %v3532, %v3548
        %v3600 = vunpack.c.l.s4 1934713408
        %v3601 = vunpack.c.0.s8 %v3600
        %v3602 = vlaneseq
        %v3603 = vshrl.u32 %v3602, 7
        %v3604 = vsub.s32 %v3601, %v3603
        %v3605 = vrot.slane %v3597, %v3604
        %v3607 = vunpack.c.l.s4 1934713408
        %v3608 = vunpack.c.0.s8 %v3607
        %v3609 = vlaneseq
        %v3610 = vshrl.u32 %v3609, 7
        %v3611 = vsub.s32 %v3608, %v3610
        %v3612 = vrot.slane %v3598, %v3611
        %v3613 = vcombine.low %v3557, %v3589
        %v3614 = vcombine.high %v3557, %v3589
        %v3615 = vcombine.low %v3564, %v3596
        %v3616 = vcombine.high %v3564, %v3596
        %v3617 = vcombine.low %v3573, %v3605
        %v3618 = vcombine.high %v3573, %v3605
        %v3619 = vcombine.low %v3580, %v3612
        %v3620 = vcombine.high %v3580, %v3612
        %v3621 = vcombine.low %v1002, %v3416
        %v3622 = vcombine.high %v1002, %v3416
        %v3624 = vunpack.c.l.s4 1983009808
        %v3625 = vunpack.c.0.s8 %v3624
        %v3626 = vlaneseq
        %v3627 = vshrl.u32 %v3626, 7
        %v3628 = vsub.s32 %v3625, %v3627
        %v3629 = vrot.slane %v3621, %v3628
        %v3631 = vunpack.c.l.s4 1983009808
        %v3632 = vunpack.c.0.s8 %v3631
        %v3633 = vlaneseq
        %v3634 = vshrl.u32 %v3633, 7
        %v3635 = vsub.s32 %v3632, %v3634
        %v3636 = vrot.slane %v3622, %v3635
        %v3637 = vcombine.low %v3404, %v3428
        %v3638 = vcombine.high %v3404, %v3428
        %v3640 = vunpack.c.l.s4 1983009808
        %v3641 = vunpack.c.0.s8 %v3640
        %v3642 = vlaneseq
        %v3643 = vshrl.u32 %v3642, 7
        %v3644 = vsub.s32 %v3641, %v3643
        %v3645 = vrot.slane %v3637, %v3644
        %v3647 = vunpack.c.l.s4 1983009808
        %v3648 = vunpack.c.0.s8 %v3647
        %v3649 = vlaneseq
        %v3650 = vshrl.u32 %v3649, 7
        %v3651 = vsub.s32 %v3648, %v3650
        %v3652 = vrot.slane %v3638, %v3651
        %v3653 = vcombine.low %v3440, %v3464
        %v3654 = vcombine.high %v3440, %v3464
        %v3656 = vunpack.c.l.s4 1983009808
        %v3657 = vunpack.c.0.s8 %v3656
        %v3658 = vlaneseq
        %v3659 = vshrl.u32 %v3658, 7
        %v3660 = vsub.s32 %v3657, %v3659
        %v3661 = vrot.slane %v3653, %v3660
        %v3663 = vunpack.c.l.s4 1983009808
        %v3664 = vunpack.c.0.s8 %v3663
        %v3665 = vlaneseq
        %v3666 = vshrl.u32 %v3665, 7
        %v3667 = vsub.s32 %v3664, %v3666
        %v3668 = vrot.slane %v3654, %v3667
        %v3669 = vcombine.low %v3452, %v3476
        %v3670 = vcombine.high %v3452, %v3476
        %v3672 = vunpack.c.l.s4 1983009808
        %v3673 = vunpack.c.0.s8 %v3672
        %v3674 = vlaneseq
        %v3675 = vshrl.u32 %v3674, 7
        %v3676 = vsub.s32 %v3673, %v3675
        %v3677 = vrot.slane %v3669, %v3676
        %v3679 = vunpack.c.l.s4 1983009808
        %v3680 = vunpack.c.0.s8 %v3679
        %v3681 = vlaneseq
        %v3682 = vshrl.u32 %v3681, 7
        %v3683 = vsub.s32 %v3680, %v3682
        %v3684 = vrot.slane %v3670, %v3683
        %v3685 = vcombine.low %v3629, %v3645
        %v3686 = vcombine.high %v3629, %v3645
        %v3688 = vunpack.c.l.s4 1934713408
        %v3689 = vunpack.c.0.s8 %v3688
        %v3690 = vlaneseq
        %v3691 = vshrl.u32 %v3690, 7
        %v3692 = vsub.s32 %v3689, %v3691
        %v3693 = vrot.slane %v3685, %v3692
        %v3695 = vunpack.c.l.s4 1934713408
        %v3696 = vunpack.c.0.s8 %v3695
        %v3697 = vlaneseq
        %v3698 = vshrl.u32 %v3697, 7
        %v3699 = vsub.s32 %v3696, %v3698
        %v3700 = vrot.slane %v3686, %v3699
        %v3701 = vcombine.low %v3636, %v3652
        %v3702 = vcombine.high %v3636, %v3652
        %v3704 = vunpack.c.l.s4 1934713408
        %v3705 = vunpack.c.0.s8 %v3704
        %v3706 = vlaneseq
        %v3707 = vshrl.u32 %v3706, 7
        %v3708 = vsub.s32 %v3705, %v3707
        %v3709 = vrot.slane %v3701, %v3708
        %v3711 = vunpack.c.l.s4 1934713408
        %v3712 = vunpack.c.0.s8 %v3711
        %v3713 = vlaneseq
        %v3714 = vshrl.u32 %v3713, 7
        %v3715 = vsub.s32 %v3712, %v3714
        %v3716 = vrot.slane %v3702, %v3715
        %v3717 = vcombine.low %v3661, %v3677
        %v3718 = vcombine.high %v3661, %v3677
        %v3720 = vunpack.c.l.s4 1934713408
        %v3721 = vunpack.c.0.s8 %v3720
        %v3722 = vlaneseq
        %v3723 = vshrl.u32 %v3722, 7
        %v3724 = vsub.s32 %v3721, %v3723
        %v3725 = vrot.slane %v3717, %v3724
        %v3727 = vunpack.c.l.s4 1934713408
        %v3728 = vunpack.c.0.s8 %v3727
        %v3729 = vlaneseq
        %v3730 = vshrl.u32 %v3729, 7
        %v3731 = vsub.s32 %v3728, %v3730
        %v3732 = vrot.slane %v3718, %v3731
        %v3733 = vcombine.low %v3668, %v3684
        %v3734 = vcombine.high %v3668, %v3684
        %v3736 = vunpack.c.l.s4 1934713408
        %v3737 = vunpack.c.0.s8 %v3736
        %v3738 = vlaneseq
        %v3739 = vshrl.u32 %v3738, 7
        %v3740 = vsub.s32 %v3737, %v3739
        %v3741 = vrot.slane %v3733, %v3740
        %v3743 = vunpack.c.l.s4 1934713408
        %v3744 = vunpack.c.0.s8 %v3743
        %v3745 = vlaneseq
        %v3746 = vshrl.u32 %v3745, 7
        %v3747 = vsub.s32 %v3744, %v3746
        %v3748 = vrot.slane %v3734, %v3747
        %v3749 = vcombine.low %v3693, %v3725
        %v3750 = vcombine.high %v3693, %v3725
        %v3751 = vcombine.low %v3700, %v3732
        %v3752 = vcombine.high %v3700, %v3732
        %v3753 = vcombine.low %v3709, %v3741
        %v3754 = vcombine.high %v3709, %v3741
        %v3755 = vcombine.low %v3716, %v3748
        %v3756 = vcombine.high %v3716, %v3748
        %v3757 = vcombine.low %v1007, %v3418
        %v3758 = vcombine.high %v1007, %v3418
        %v3760 = vunpack.c.l.s4 1983009808
        %v3761 = vunpack.c.0.s8 %v3760
        %v3762 = vlaneseq
        %v3763 = vshrl.u32 %v3762, 7
        %v3764 = vsub.s32 %v3761, %v3763
        %v3765 = vrot.slane %v3757, %v3764
        %v3767 = vunpack.c.l.s4 1983009808
        %v3768 = vunpack.c.0.s8 %v3767
        %v3769 = vlaneseq
        %v3770 = vshrl.u32 %v3769, 7
        %v3771 = vsub.s32 %v3768, %v3770
        %v3772 = vrot.slane %v3758, %v3771
        %v3773 = vcombine.low %v3406, %v3430
        %v3774 = vcombine.high %v3406, %v3430
        %v3776 = vunpack.c.l.s4 1983009808
        %v3777 = vunpack.c.0.s8 %v3776
        %v3778 = vlaneseq
        %v3779 = vshrl.u32 %v3778, 7
        %v3780 = vsub.s32 %v3777, %v3779
        %v3781 = vrot.slane %v3773, %v3780
        %v3783 = vunpack.c.l.s4 1983009808
        %v3784 = vunpack.c.0.s8 %v3783
        %v3785 = vlaneseq
        %v3786 = vshrl.u32 %v3785, 7
        %v3787 = vsub.s32 %v3784, %v3786
        %v3788 = vrot.slane %v3774, %v3787
        %v3789 = vcombine.low %v3442, %v3466
        %v3790 = vcombine.high %v3442, %v3466
        %v3792 = vunpack.c.l.s4 1983009808
        %v3793 = vunpack.c.0.s8 %v3792
        %v3794 = vlaneseq
        %v3795 = vshrl.u32 %v3794, 7
        %v3796 = vsub.s32 %v3793, %v3795
        %v3797 = vrot.slane %v3789, %v3796
        %v3799 = vunpack.c.l.s4 1983009808
        %v3800 = vunpack.c.0.s8 %v3799
        %v3801 = vlaneseq
        %v3802 = vshrl.u32 %v3801, 7
        %v3803 = vsub.s32 %v3800, %v3802
        %v3804 = vrot.slane %v3790, %v3803
        %v3805 = vcombine.low %v3454, %v3478
        %v3806 = vcombine.high %v3454, %v3478
        %v3808 = vunpack.c.l.s4 1983009808
        %v3809 = vunpack.c.0.s8 %v3808
        %v3810 = vlaneseq
        %v3811 = vshrl.u32 %v3810, 7
        %v3812 = vsub.s32 %v3809, %v3811
        %v3813 = vrot.slane %v3805, %v3812
        %v3815 = vunpack.c.l.s4 1983009808
        %v3816 = vunpack.c.0.s8 %v3815
        %v3817 = vlaneseq
        %v3818 = vshrl.u32 %v3817, 7
        %v3819 = vsub.s32 %v3816, %v3818
        %v3820 = vrot.slane %v3806, %v3819
        %v3821 = vcombine.low %v3765, %v3781
        %v3822 = vcombine.high %v3765, %v3781
        %v3824 = vunpack.c.l.s4 1934713408
        %v3825 = vunpack.c.0.s8 %v3824
        %v3826 = vlaneseq
        %v3827 = vshrl.u32 %v3826, 7
        %v3828 = vsub.s32 %v3825, %v3827
        %v3829 = vrot.slane %v3821, %v3828
        %v3831 = vunpack.c.l.s4 1934713408
        %v3832 = vunpack.c.0.s8 %v3831
        %v3833 = vlaneseq
        %v3834 = vshrl.u32 %v3833, 7
        %v3835 = vsub.s32 %v3832, %v3834
        %v3836 = vrot.slane %v3822, %v3835
        %v3837 = vcombine.low %v3772, %v3788
        %v3838 = vcombine.high %v3772, %v3788
        %v3840 = vunpack.c.l.s4 1934713408
        %v3841 = vunpack.c.0.s8 %v3840
        %v3842 = vlaneseq
        %v3843 = vshrl.u32 %v3842, 7
        %v3844 = vsub.s32 %v3841, %v3843
        %v3845 = vrot.slane %v3837, %v3844
        %v3847 = vunpack.c.l.s4 1934713408
        %v3848 = vunpack.c.0.s8 %v3847
        %v3849 = vlaneseq
        %v3850 = vshrl.u32 %v3849, 7
        %v3851 = vsub.s32 %v3848, %v3850
        %v3852 = vrot.slane %v3838, %v3851
        %v3853 = vcombine.low %v3797, %v3813
        %v3854 = vcombine.high %v3797, %v3813
        %v3856 = vunpack.c.l.s4 1934713408
        %v3857 = vunpack.c.0.s8 %v3856
        %v3858 = vlaneseq
        %v3859 = vshrl.u32 %v3858, 7
        %v3860 = vsub.s32 %v3857, %v3859
        %v3861 = vrot.slane %v3853, %v3860
        %v3863 = vunpack.c.l.s4 1934713408
        %v3864 = vunpack.c.0.s8 %v3863
        %v3865 = vlaneseq
        %v3866 = vshrl.u32 %v3865, 7
        %v3867 = vsub.s32 %v3864, %v3866
        %v3868 = vrot.slane %v3854, %v3867
        %v3869 = vcombine.low %v3804, %v3820
        %v3870 = vcombine.high %v3804, %v3820
        %v3872 = vunpack.c.l.s4 1934713408
        %v3873 = vunpack.c.0.s8 %v3872
        %v3874 = vlaneseq
        %v3875 = vshrl.u32 %v3874, 7
        %v3876 = vsub.s32 %v3873, %v3875
        %v3877 = vrot.slane %v3869, %v3876
        %v3879 = vunpack.c.l.s4 1934713408
        %v3880 = vunpack.c.0.s8 %v3879
        %v3881 = vlaneseq
        %v3882 = vshrl.u32 %v3881, 7
        %v3883 = vsub.s32 %v3880, %v3882
        %v3884 = vrot.slane %v3870, %v3883
        %v3885 = vcombine.low %v3829, %v3861
        %v3886 = vcombine.high %v3829, %v3861
        %v3887 = vcombine.low %v3836, %v3868
        %v3888 = vcombine.high %v3836, %v3868
        %v3889 = vcombine.low %v3845, %v3877
        %v3890 = vcombine.high %v3845, %v3877
        %v3891 = vcombine.low %v3852, %v3884
        %v3892 = vcombine.high %v3852, %v3884
        %v3893 = vcombine.low %v1010, %v3420
        %v3894 = vcombine.high %v1010, %v3420
        %v3896 = vunpack.c.l.s4 1983009808
        %v3897 = vunpack.c.0.s8 %v3896
        %v3898 = vlaneseq
        %v3899 = vshrl.u32 %v3898, 7
        %v3900 = vsub.s32 %v3897, %v3899
        %v3901 = vrot.slane %v3893, %v3900
        %v3903 = vunpack.c.l.s4 1983009808
        %v3904 = vunpack.c.0.s8 %v3903
        %v3905 = vlaneseq
        %v3906 = vshrl.u32 %v3905, 7
        %v3907 = vsub.s32 %v3904, %v3906
        %v3908 = vrot.slane %v3894, %v3907
        %v3909 = vcombine.low %v3408, %v3432
        %v3910 = vcombine.high %v3408, %v3432
        %v3912 = vunpack.c.l.s4 1983009808
        %v3913 = vunpack.c.0.s8 %v3912
        %v3914 = vlaneseq
        %v3915 = vshrl.u32 %v3914, 7
        %v3916 = vsub.s32 %v3913, %v3915
        %v3917 = vrot.slane %v3909, %v3916
        %v3919 = vunpack.c.l.s4 1983009808
        %v3920 = vunpack.c.0.s8 %v3919
        %v3921 = vlaneseq
        %v3922 = vshrl.u32 %v3921, 7
        %v3923 = vsub.s32 %v3920, %v3922
        %v3924 = vrot.slane %v3910, %v3923
        %v3925 = vcombine.low %v3444, %v3468
        %v3926 = vcombine.high %v3444, %v3468
        %v3928 = vunpack.c.l.s4 1983009808
        %v3929 = vunpack.c.0.s8 %v3928
        %v3930 = vlaneseq
        %v3931 = vshrl.u32 %v3930, 7
        %v3932 = vsub.s32 %v3929, %v3931
        %v3933 = vrot.slane %v3925, %v3932
        %v3935 = vunpack.c.l.s4 1983009808
        %v3936 = vunpack.c.0.s8 %v3935
        %v3937 = vlaneseq
        %v3938 = vshrl.u32 %v3937, 7
        %v3939 = vsub.s32 %v3936, %v3938
        %v3940 = vrot.slane %v3926, %v3939
        %v3941 = vcombine.low %v3456, %v3480
        %v3942 = vcombine.high %v3456, %v3480
        %v3944 = vunpack.c.l.s4 1983009808
        %v3945 = vunpack.c.0.s8 %v3944
        %v3946 = vlaneseq
        %v3947 = vshrl.u32 %v3946, 7
        %v3948 = vsub.s32 %v3945, %v3947
        %v3949 = vrot.slane %v3941, %v3948
        %v3951 = vunpack.c.l.s4 1983009808
        %v3952 = vunpack.c.0.s8 %v3951
        %v3953 = vlaneseq
        %v3954 = vshrl.u32 %v3953, 7
        %v3955 = vsub.s32 %v3952, %v3954
        %v3956 = vrot.slane %v3942, %v3955
        %v3957 = vcombine.low %v3901, %v3917
        %v3958 = vcombine.high %v3901, %v3917
        %v3960 = vunpack.c.l.s4 1934713408
        %v3961 = vunpack.c.0.s8 %v3960
        %v3962 = vlaneseq
        %v3963 = vshrl.u32 %v3962, 7
        %v3964 = vsub.s32 %v3961, %v3963
        %v3965 = vrot.slane %v3957, %v3964
        %v3967 = vunpack.c.l.s4 1934713408
        %v3968 = vunpack.c.0.s8 %v3967
        %v3969 = vlaneseq
        %v3970 = vshrl.u32 %v3969, 7
        %v3971 = vsub.s32 %v3968, %v3970
        %v3972 = vrot.slane %v3958, %v3971
        %v3973 = vcombine.low %v3908, %v3924
        %v3974 = vcombine.high %v3908, %v3924
        %v3976 = vunpack.c.l.s4 1934713408
        %v3977 = vunpack.c.0.s8 %v3976
        %v3978 = vlaneseq
        %v3979 = vshrl.u32 %v3978, 7
        %v3980 = vsub.s32 %v3977, %v3979
        %v3981 = vrot.slane %v3973, %v3980
        %v3983 = vunpack.c.l.s4 1934713408
        %v3984 = vunpack.c.0.s8 %v3983
        %v3985 = vlaneseq
        %v3986 = vshrl.u32 %v3985, 7
        %v3987 = vsub.s32 %v3984, %v3986
        %v3988 = vrot.slane %v3974, %v3987
        %v3989 = vcombine.low %v3933, %v3949
        %v3990 = vcombine.high %v3933, %v3949
        %v3992 = vunpack.c.l.s4 1934713408
        %v3993 = vunpack.c.0.s8 %v3992
        %v3994 = vlaneseq
        %v3995 = vshrl.u32 %v3994, 7
        %v3996 = vsub.s32 %v3993, %v3995
        %v3997 = vrot.slane %v3989, %v3996
        %v3999 = vunpack.c.l.s4 1934713408
        %v4000 = vunpack.c.0.s8 %v3999
        %v4001 = vlaneseq
        %v4002 = vshrl.u32 %v4001, 7
        %v4003 = vsub.s32 %v4000, %v4002
        %v4004 = vrot.slane %v3990, %v4003
        %v4005 = vcombine.low %v3940, %v3956
        %v4006 = vcombine.high %v3940, %v3956
        %v4008 = vunpack.c.l.s4 1934713408
        %v4009 = vunpack.c.0.s8 %v4008
        %v4010 = vlaneseq
        %v4011 = vshrl.u32 %v4010, 7
        %v4012 = vsub.s32 %v4009, %v4011
        %v4013 = vrot.slane %v4005, %v4012
        %v4015 = vunpack.c.l.s4 1934713408
        %v4016 = vunpack.c.0.s8 %v4015
        %v4017 = vlaneseq
        %v4018 = vshrl.u32 %v4017, 7
        %v4019 = vsub.s32 %v4016, %v4018
        %v4020 = vrot.slane %v4006, %v4019
        %v4021 = vcombine.low %v3965, %v3997
        %v4022 = vcombine.high %v3965, %v3997
        %v4023 = vcombine.low %v3972, %v4004
        %v4024 = vcombine.high %v3972, %v4004
        %v4025 = vcombine.low %v3981, %v4013
        %v4026 = vcombine.high %v3981, %v4013
        %v4027 = vcombine.low %v3988, %v4020
        %v4028 = vcombine.high %v3988, %v4020
        %v4029 = vcombine.low %v3613, %v3615
        %v4030 = vcombine.high %v3613, %v3615
        %v4032 = vunpack.c.l.s4 1983009808
        %v4033 = vunpack.c.0.s8 %v4032
        %v4034 = vlaneseq
        %v4035 = vshrl.u32 %v4034, 7
        %v4036 = vsub.s32 %v4033, %v4035
        %v4037 = vrot.slane %v4029, %v4036
        %v4039 = vunpack.c.l.s4 1983009808
        %v4040 = vunpack.c.0.s8 %v4039
        %v4041 = vlaneseq
        %v4042 = vshrl.u32 %v4041, 7
        %v4043 = vsub.s32 %v4040, %v4042
        %v4044 = vrot.slane %v4030, %v4043
        %v4045 = vcombine.low %v3614, %v3616
        %v4046 = vcombine.high %v3614, %v3616
        %v4048 = vunpack.c.l.s4 1983009808
        %v4049 = vunpack.c.0.s8 %v4048
        %v4050 = vlaneseq
        %v4051 = vshrl.u32 %v4050, 7
        %v4052 = vsub.s32 %v4049, %v4051
        %v4053 = vrot.slane %v4045, %v4052
        %v4055 = vunpack.c.l.s4 1983009808
        %v4056 = vunpack.c.0.s8 %v4055
        %v4057 = vlaneseq
        %v4058 = vshrl.u32 %v4057, 7
        %v4059 = vsub.s32 %v4056, %v4058
        %v4060 = vrot.slane %v4046, %v4059
        %v4061 = vcombine.low %v3617, %v3619
        %v4062 = vcombine.high %v3617, %v3619
        %v4064 = vunpack.c.l.s4 1983009808
        %v4065 = vunpack.c.0.s8 %v4064
        %v4066 = vlaneseq
        %v4067 = vshrl.u32 %v4066, 7
        %v4068 = vsub.s32 %v4065, %v4067
        %v4069 = vrot.slane %v4061, %v4068
        %v4071 = vunpack.c.l.s4 1983009808
        %v4072 = vunpack.c.0.s8 %v4071
        %v4073 = vlaneseq
        %v4074 = vshrl.u32 %v4073, 7
        %v4075 = vsub.s32 %v4072, %v4074
        %v4076 = vrot.slane %v4062, %v4075
        %v4077 = vcombine.low %v3618, %v3620
        %v4078 = vcombine.high %v3618, %v3620
        %v4080 = vunpack.c.l.s4 1983009808
        %v4081 = vunpack.c.0.s8 %v4080
        %v4082 = vlaneseq
        %v4083 = vshrl.u32 %v4082, 7
        %v4084 = vsub.s32 %v4081, %v4083
        %v4085 = vrot.slane %v4077, %v4084
        %v4087 = vunpack.c.l.s4 1983009808
        %v4088 = vunpack.c.0.s8 %v4087
        %v4089 = vlaneseq
        %v4090 = vshrl.u32 %v4089, 7
        %v4091 = vsub.s32 %v4088, %v4090
        %v4092 = vrot.slane %v4078, %v4091
        %v4093 = vcombine.low %v4037, %v4053
        %v4094 = vcombine.high %v4037, %v4053
        %v4096 = vunpack.c.l.s4 1934713408
        %v4097 = vunpack.c.0.s8 %v4096
        %v4098 = vlaneseq
        %v4099 = vshrl.u32 %v4098, 7
        %v4100 = vsub.s32 %v4097, %v4099
        %v4101 = vrot.slane %v4093, %v4100
        %v4103 = vunpack.c.l.s4 1934713408
        %v4104 = vunpack.c.0.s8 %v4103
        %v4105 = vlaneseq
        %v4106 = vshrl.u32 %v4105, 7
        %v4107 = vsub.s32 %v4104, %v4106
        %v4108 = vrot.slane %v4094, %v4107
        %v4109 = vcombine.low %v4044, %v4060
        %v4110 = vcombine.high %v4044, %v4060
        %v4112 = vunpack.c.l.s4 1934713408
        %v4113 = vunpack.c.0.s8 %v4112
        %v4114 = vlaneseq
        %v4115 = vshrl.u32 %v4114, 7
        %v4116 = vsub.s32 %v4113, %v4115
        %v4117 = vrot.slane %v4109, %v4116
        %v4119 = vunpack.c.l.s4 1934713408
        %v4120 = vunpack.c.0.s8 %v4119
        %v4121 = vlaneseq
        %v4122 = vshrl.u32 %v4121, 7
        %v4123 = vsub.s32 %v4120, %v4122
        %v4124 = vrot.slane %v4110, %v4123
        %v4125 = vcombine.low %v4069, %v4085
        %v4126 = vcombine.high %v4069, %v4085
        %v4128 = vunpack.c.l.s4 1934713408
        %v4129 = vunpack.c.0.s8 %v4128
        %v4130 = vlaneseq
        %v4131 = vshrl.u32 %v4130, 7
        %v4132 = vsub.s32 %v4129, %v4131
        %v4133 = vrot.slane %v4125, %v4132
        %v4135 = vunpack.c.l.s4 1934713408
        %v4136 = vunpack.c.0.s8 %v4135
        %v4137 = vlaneseq
        %v4138 = vshrl.u32 %v4137, 7
        %v4139 = vsub.s32 %v4136, %v4138
        %v4140 = vrot.slane %v4126, %v4139
        %v4141 = vcombine.low %v4076, %v4092
        %v4142 = vcombine.high %v4076, %v4092
        %v4144 = vunpack.c.l.s4 1934713408
        %v4145 = vunpack.c.0.s8 %v4144
        %v4146 = vlaneseq
        %v4147 = vshrl.u32 %v4146, 7
        %v4148 = vsub.s32 %v4145, %v4147
        %v4149 = vrot.slane %v4141, %v4148
        %v4151 = vunpack.c.l.s4 1934713408
        %v4152 = vunpack.c.0.s8 %v4151
        %v4153 = vlaneseq
        %v4154 = vshrl.u32 %v4153, 7
        %v4155 = vsub.s32 %v4152, %v4154
        %v4156 = vrot.slane %v4142, %v4155
        %v4157 = vcombine.low %v4101, %v4133
        %v4158 = vcombine.high %v4101, %v4133
        %v4159 = vcombine.low %v4108, %v4140
        %v4160 = vcombine.high %v4108, %v4140
        %v4161 = vcombine.low %v4117, %v4149
        %v4162 = vcombine.high %v4117, %v4149
        %v4163 = vcombine.low %v4124, %v4156
        %v4164 = vcombine.high %v4124, %v4156
        %v4165 = vcombine.low %v3749, %v3751
        %v4166 = vcombine.high %v3749, %v3751
        %v4168 = vunpack.c.l.s4 1983009808
        %v4169 = vunpack.c.0.s8 %v4168
        %v4170 = vlaneseq
        %v4171 = vshrl.u32 %v4170, 7
        %v4172 = vsub.s32 %v4169, %v4171
        %v4173 = vrot.slane %v4165, %v4172
        %v4175 = vunpack.c.l.s4 1983009808
        %v4176 = vunpack.c.0.s8 %v4175
        %v4177 = vlaneseq
        %v4178 = vshrl.u32 %v4177, 7
        %v4179 = vsub.s32 %v4176, %v4178
        %v4180 = vrot.slane %v4166, %v4179
        %v4181 = vcombine.low %v3750, %v3752
        %v4182 = vcombine.high %v3750, %v3752
        %v4184 = vunpack.c.l.s4 1983009808
        %v4185 = vunpack.c.0.s8 %v4184
        %v4186 = vlaneseq
        %v4187 = vshrl.u32 %v4186, 7
        %v4188 = vsub.s32 %v4185, %v4187
        %v4189 = vrot.slane %v4181, %v4188
        %v4191 = vunpack.c.l.s4 1983009808
        %v4192 = vunpack.c.0.s8 %v4191
        %v4193 = vlaneseq
        %v4194 = vshrl.u32 %v4193, 7
        %v4195 = vsub.s32 %v4192, %v4194
        %v4196 = vrot.slane %v4182, %v4195
        %v4197 = vcombine.low %v3753, %v3755
        %v4198 = vcombine.high %v3753, %v3755
        %v4200 = vunpack.c.l.s4 1983009808
        %v4201 = vunpack.c.0.s8 %v4200
        %v4202 = vlaneseq
        %v4203 = vshrl.u32 %v4202, 7
        %v4204 = vsub.s32 %v4201, %v4203
        %v4205 = vrot.slane %v4197, %v4204
        %v4207 = vunpack.c.l.s4 1983009808
        %v4208 = vunpack.c.0.s8 %v4207
        %v4209 = vlaneseq
        %v4210 = vshrl.u32 %v4209, 7
        %v4211 = vsub.s32 %v4208, %v4210
        %v4212 = vrot.slane %v4198, %v4211
        %v4213 = vcombine.low %v3754, %v3756
        %v4214 = vcombine.high %v3754, %v3756
        %v4216 = vunpack.c.l.s4 1983009808
        %v4217 = vunpack.c.0.s8 %v4216
        %v4218 = vlaneseq
        %v4219 = vshrl.u32 %v4218, 7
        %v4220 = vsub.s32 %v4217, %v4219
        %v4221 = vrot.slane %v4213, %v4220
        %v4223 = vunpack.c.l.s4 1983009808
        %v4224 = vunpack.c.0.s8 %v4223
        %v4225 = vlaneseq
        %v4226 = vshrl.u32 %v4225, 7
        %v4227 = vsub.s32 %v4224, %v4226
        %v4228 = vrot.slane %v4214, %v4227
        %v4229 = vcombine.low %v4173, %v4189
        %v4230 = vcombine.high %v4173, %v4189
        %v4232 = vunpack.c.l.s4 1934713408
        %v4233 = vunpack.c.0.s8 %v4232
        %v4234 = vlaneseq
        %v4235 = vshrl.u32 %v4234, 7
        %v4236 = vsub.s32 %v4233, %v4235
        %v4237 = vrot.slane %v4229, %v4236
        %v4239 = vunpack.c.l.s4 1934713408
        %v4240 = vunpack.c.0.s8 %v4239
        %v4241 = vlaneseq
        %v4242 = vshrl.u32 %v4241, 7
        %v4243 = vsub.s32 %v4240, %v4242
        %v4244 = vrot.slane %v4230, %v4243
        %v4245 = vcombine.low %v4180, %v4196
        %v4246 = vcombine.high %v4180, %v4196
        %v4248 = vunpack.c.l.s4 1934713408
        %v4249 = vunpack.c.0.s8 %v4248
        %v4250 = vlaneseq
        %v4251 = vshrl.u32 %v4250, 7
        %v4252 = vsub.s32 %v4249, %v4251
        %v4253 = vrot.slane %v4245, %v4252
        %v4255 = vunpack.c.l.s4 1934713408
        %v4256 = vunpack.c.0.s8 %v4255
        %v4257 = vlaneseq
        %v4258 = vshrl.u32 %v4257, 7
        %v4259 = vsub.s32 %v4256, %v4258
        %v4260 = vrot.slane %v4246, %v4259
        %v4261 = vcombine.low %v4205, %v4221
        %v4262 = vcombine.high %v4205, %v4221
        %v4264 = vunpack.c.l.s4 1934713408
        %v4265 = vunpack.c.0.s8 %v4264
        %v4266 = vlaneseq
        %v4267 = vshrl.u32 %v4266, 7
        %v4268 = vsub.s32 %v4265, %v4267
        %v4269 = vrot.slane %v4261, %v4268
        %v4271 = vunpack.c.l.s4 1934713408
        %v4272 = vunpack.c.0.s8 %v4271
        %v4273 = vlaneseq
        %v4274 = vshrl.u32 %v4273, 7
        %v4275 = vsub.s32 %v4272, %v4274
        %v4276 = vrot.slane %v4262, %v4275
        %v4277 = vcombine.low %v4212, %v4228
        %v4278 = vcombine.high %v4212, %v4228
        %v4280 = vunpack.c.l.s4 1934713408
        %v4281 = vunpack.c.0.s8 %v4280
        %v4282 = vlaneseq
        %v4283 = vshrl.u32 %v4282, 7
        %v4284 = vsub.s32 %v4281, %v4283
        %v4285 = vrot.slane %v4277, %v4284
        %v4287 = vunpack.c.l.s4 1934713408
        %v4288 = vunpack.c.0.s8 %v4287
        %v4289 = vlaneseq
        %v4290 = vshrl.u32 %v4289, 7
        %v4291 = vsub.s32 %v4288, %v4290
        %v4292 = vrot.slane %v4278, %v4291
        %v4293 = vcombine.low %v4237, %v4269
        %v4294 = vcombine.high %v4237, %v4269
        %v4295 = vcombine.low %v4244, %v4276
        %v4296 = vcombine.high %v4244, %v4276
        %v4297 = vcombine.low %v4253, %v4285
        %v4298 = vcombine.high %v4253, %v4285
        %v4299 = vcombine.low %v4260, %v4292
        %v4300 = vcombine.high %v4260, %v4292
        %v4301 = vcombine.low %v3885, %v3887
        %v4302 = vcombine.high %v3885, %v3887
        %v4304 = vunpack.c.l.s4 1983009808
        %v4305 = vunpack.c.0.s8 %v4304
        %v4306 = vlaneseq
        %v4307 = vshrl.u32 %v4306, 7
        %v4308 = vsub.s32 %v4305, %v4307
        %v4309 = vrot.slane %v4301, %v4308
        %v4311 = vunpack.c.l.s4 1983009808
        %v4312 = vunpack.c.0.s8 %v4311
        %v4313 = vlaneseq
        %v4314 = vshrl.u32 %v4313, 7
        %v4315 = vsub.s32 %v4312, %v4314
        %v4316 = vrot.slane %v4302, %v4315
        %v4317 = vcombine.low %v3886, %v3888
        %v4318 = vcombine.high %v3886, %v3888
        %v4320 = vunpack.c.l.s4 1983009808
        %v4321 = vunpack.c.0.s8 %v4320
        %v4322 = vlaneseq
        %v4323 = vshrl.u32 %v4322, 7
        %v4324 = vsub.s32 %v4321, %v4323
        %v4325 = vrot.slane %v4317, %v4324
        %v4327 = vunpack.c.l.s4 1983009808
        %v4328 = vunpack.c.0.s8 %v4327
        %v4329 = vlaneseq
        %v4330 = vshrl.u32 %v4329, 7
        %v4331 = vsub.s32 %v4328, %v4330
        %v4332 = vrot.slane %v4318, %v4331
        %v4333 = vcombine.low %v3889, %v3891
        %v4334 = vcombine.high %v3889, %v3891
        %v4336 = vunpack.c.l.s4 1983009808
        %v4337 = vunpack.c.0.s8 %v4336
        %v4338 = vlaneseq
        %v4339 = vshrl.u32 %v4338, 7
        %v4340 = vsub.s32 %v4337, %v4339
        %v4341 = vrot.slane %v4333, %v4340
        %v4343 = vunpack.c.l.s4 1983009808
        %v4344 = vunpack.c.0.s8 %v4343
        %v4345 = vlaneseq
        %v4346 = vshrl.u32 %v4345, 7
        %v4347 = vsub.s32 %v4344, %v4346
        %v4348 = vrot.slane %v4334, %v4347
        %v4349 = vcombine.low %v3890, %v3892
        %v4350 = vcombine.high %v3890, %v3892
        %v4352 = vunpack.c.l.s4 1983009808
        %v4353 = vunpack.c.0.s8 %v4352
        %v4354 = vlaneseq
        %v4355 = vshrl.u32 %v4354, 7
        %v4356 = vsub.s32 %v4353, %v4355
        %v4357 = vrot.slane %v4349, %v4356
        %v4359 = vunpack.c.l.s4 1983009808
        %v4360 = vunpack.c.0.s8 %v4359
        %v4361 = vlaneseq
        %v4362 = vshrl.u32 %v4361, 7
        %v4363 = vsub.s32 %v4360, %v4362
        %v4364 = vrot.slane %v4350, %v4363
        %v4365 = vcombine.low %v4309, %v4325
        %v4366 = vcombine.high %v4309, %v4325
        %v4368 = vunpack.c.l.s4 1934713408
        %v4369 = vunpack.c.0.s8 %v4368
        %v4370 = vlaneseq
        %v4371 = vshrl.u32 %v4370, 7
        %v4372 = vsub.s32 %v4369, %v4371
        %v4373 = vrot.slane %v4365, %v4372
        %v4375 = vunpack.c.l.s4 1934713408
        %v4376 = vunpack.c.0.s8 %v4375
        %v4377 = vlaneseq
        %v4378 = vshrl.u32 %v4377, 7
        %v4379 = vsub.s32 %v4376, %v4378
        %v4380 = vrot.slane %v4366, %v4379
        %v4381 = vcombine.low %v4316, %v4332
        %v4382 = vcombine.high %v4316, %v4332
        %v4384 = vunpack.c.l.s4 1934713408
        %v4385 = vunpack.c.0.s8 %v4384
        %v4386 = vlaneseq
        %v4387 = vshrl.u32 %v4386, 7
        %v4388 = vsub.s32 %v4385, %v4387
        %v4389 = vrot.slane %v4381, %v4388
        %v4391 = vunpack.c.l.s4 1934713408
        %v4392 = vunpack.c.0.s8 %v4391
        %v4393 = vlaneseq
        %v4394 = vshrl.u32 %v4393, 7
        %v4395 = vsub.s32 %v4392, %v4394
        %v4396 = vrot.slane %v4382, %v4395
        %v4397 = vcombine.low %v4341, %v4357
        %v4398 = vcombine.high %v4341, %v4357
        %v4400 = vunpack.c.l.s4 1934713408
        %v4401 = vunpack.c.0.s8 %v4400
        %v4402 = vlaneseq
        %v4403 = vshrl.u32 %v4402, 7
        %v4404 = vsub.s32 %v4401, %v4403
        %v4405 = vrot.slane %v4397, %v4404
        %v4407 = vunpack.c.l.s4 1934713408
        %v4408 = vunpack.c.0.s8 %v4407
        %v4409 = vlaneseq
        %v4410 = vshrl.u32 %v4409, 7
        %v4411 = vsub.s32 %v4408, %v4410
        %v4412 = vrot.slane %v4398, %v4411
        %v4413 = vcombine.low %v4348, %v4364
        %v4414 = vcombine.high %v4348, %v4364
        %v4416 = vunpack.c.l.s4 1934713408
        %v4417 = vunpack.c.0.s8 %v4416
        %v4418 = vlaneseq
        %v4419 = vshrl.u32 %v4418, 7
        %v4420 = vsub.s32 %v4417, %v4419
        %v4421 = vrot.slane %v4413, %v4420
        %v4423 = vunpack.c.l.s4 1934713408
        %v4424 = vunpack.c.0.s8 %v4423
        %v4425 = vlaneseq
        %v4426 = vshrl.u32 %v4425, 7
        %v4427 = vsub.s32 %v4424, %v4426
        %v4428 = vrot.slane %v4414, %v4427
        %v4429 = vcombine.low %v4373, %v4405
        %v4430 = vcombine.high %v4373, %v4405
        %v4431 = vcombine.low %v4380, %v4412
        %v4432 = vcombine.high %v4380, %v4412
        %v4433 = vcombine.low %v4389, %v4421
        %v4434 = vcombine.high %v4389, %v4421
        %v4435 = vcombine.low %v4396, %v4428
        %v4436 = vcombine.high %v4396, %v4428
        %v4437 = vcombine.low %v4021, %v4023
        %v4438 = vcombine.high %v4021, %v4023
        %v4440 = vunpack.c.l.s4 1983009808
        %v4441 = vunpack.c.0.s8 %v4440
        %v4442 = vlaneseq
        %v4443 = vshrl.u32 %v4442, 7
        %v4444 = vsub.s32 %v4441, %v4443
        %v4445 = vrot.slane %v4437, %v4444
        %v4447 = vunpack.c.l.s4 1983009808
        %v4448 = vunpack.c.0.s8 %v4447
        %v4449 = vlaneseq
        %v4450 = vshrl.u32 %v4449, 7
        %v4451 = vsub.s32 %v4448, %v4450
        %v4452 = vrot.slane %v4438, %v4451
        %v4453 = vcombine.low %v4022, %v4024
        %v4454 = vcombine.high %v4022, %v4024
        %v4456 = vunpack.c.l.s4 1983009808
        %v4457 = vunpack.c.0.s8 %v4456
        %v4458 = vlaneseq
        %v4459 = vshrl.u32 %v4458, 7
        %v4460 = vsub.s32 %v4457, %v4459
        %v4461 = vrot.slane %v4453, %v4460
        %v4463 = vunpack.c.l.s4 1983009808
        %v4464 = vunpack.c.0.s8 %v4463
        %v4465 = vlaneseq
        %v4466 = vshrl.u32 %v4465, 7
        %v4467 = vsub.s32 %v4464, %v4466
        %v4468 = vrot.slane %v4454, %v4467
        %v4469 = vcombine.low %v4025, %v4027
        %v4470 = vcombine.high %v4025, %v4027
        %v4472 = vunpack.c.l.s4 1983009808
        %v4473 = vunpack.c.0.s8 %v4472
        %v4474 = vlaneseq
        %v4475 = vshrl.u32 %v4474, 7
        %v4476 = vsub.s32 %v4473, %v4475
        %v4477 = vrot.slane %v4469, %v4476
        %v4479 = vunpack.c.l.s4 1983009808
        %v4480 = vunpack.c.0.s8 %v4479
        %v4481 = vlaneseq
        %v4482 = vshrl.u32 %v4481, 7
        %v4483 = vsub.s32 %v4480, %v4482
        %v4484 = vrot.slane %v4470, %v4483
        %v4485 = vcombine.low %v4026, %v4028
        %v4486 = vcombine.high %v4026, %v4028
        %v4488 = vunpack.c.l.s4 1983009808
        %v4489 = vunpack.c.0.s8 %v4488
        %v4490 = vlaneseq
        %v4491 = vshrl.u32 %v4490, 7
        %v4492 = vsub.s32 %v4489, %v4491
        %v4493 = vrot.slane %v4485, %v4492
        %v4495 = vunpack.c.l.s4 1983009808
        %v4496 = vunpack.c.0.s8 %v4495
        %v4497 = vlaneseq
        %v4498 = vshrl.u32 %v4497, 7
        %v4499 = vsub.s32 %v4496, %v4498
        %v4500 = vrot.slane %v4486, %v4499
        %v4501 = vcombine.low %v4445, %v4461
        %v4502 = vcombine.high %v4445, %v4461
        %v4504 = vunpack.c.l.s4 1934713408
        %v4505 = vunpack.c.0.s8 %v4504
        %v4506 = vlaneseq
        %v4507 = vshrl.u32 %v4506, 7
        %v4508 = vsub.s32 %v4505, %v4507
        %v4509 = vrot.slane %v4501, %v4508
        %v4511 = vunpack.c.l.s4 1934713408
        %v4512 = vunpack.c.0.s8 %v4511
        %v4513 = vlaneseq
        %v4514 = vshrl.u32 %v4513, 7
        %v4515 = vsub.s32 %v4512, %v4514
        %v4516 = vrot.slane %v4502, %v4515
        %v4517 = vcombine.low %v4452, %v4468
        %v4518 = vcombine.high %v4452, %v4468
        %v4520 = vunpack.c.l.s4 1934713408
        %v4521 = vunpack.c.0.s8 %v4520
        %v4522 = vlaneseq
        %v4523 = vshrl.u32 %v4522, 7
        %v4524 = vsub.s32 %v4521, %v4523
        %v4525 = vrot.slane %v4517, %v4524
        %v4527 = vunpack.c.l.s4 1934713408
        %v4528 = vunpack.c.0.s8 %v4527
        %v4529 = vlaneseq
        %v4530 = vshrl.u32 %v4529, 7
        %v4531 = vsub.s32 %v4528, %v4530
        %v4532 = vrot.slane %v4518, %v4531
        %v4533 = vcombine.low %v4477, %v4493
        %v4534 = vcombine.high %v4477, %v4493
        %v4536 = vunpack.c.l.s4 1934713408
        %v4537 = vunpack.c.0.s8 %v4536
        %v4538 = vlaneseq
        %v4539 = vshrl.u32 %v4538, 7
        %v4540 = vsub.s32 %v4537, %v4539
        %v4541 = vrot.slane %v4533, %v4540
        %v4543 = vunpack.c.l.s4 1934713408
        %v4544 = vunpack.c.0.s8 %v4543
        %v4545 = vlaneseq
        %v4546 = vshrl.u32 %v4545, 7
        %v4547 = vsub.s32 %v4544, %v4546
        %v4548 = vrot.slane %v4534, %v4547
        %v4549 = vcombine.low %v4484, %v4500
        %v4550 = vcombine.high %v4484, %v4500
        %v4552 = vunpack.c.l.s4 1934713408
        %v4553 = vunpack.c.0.s8 %v4552
        %v4554 = vlaneseq
        %v4555 = vshrl.u32 %v4554, 7
        %v4556 = vsub.s32 %v4553, %v4555
        %v4557 = vrot.slane %v4549, %v4556
        %v4559 = vunpack.c.l.s4 1934713408
        %v4560 = vunpack.c.0.s8 %v4559
        %v4561 = vlaneseq
        %v4562 = vshrl.u32 %v4561, 7
        %v4563 = vsub.s32 %v4560, %v4562
        %v4564 = vrot.slane %v4550, %v4563
        %v4565 = vcombine.low %v4509, %v4541
        %v4566 = vcombine.high %v4509, %v4541
        %v4567 = vcombine.low %v4516, %v4548
        %v4568 = vcombine.high %v4516, %v4548
        %v4569 = vcombine.low %v4525, %v4557
        %v4570 = vcombine.high %v4525, %v4557
        %v4571 = vcombine.low %v4532, %v4564
        %v4572 = vcombine.high %v4532, %v4564
        %v4573 = vpack.c.bf16 %v4293, %v4157
        %v4574 = vpack.c.bf16 %v4565, %v4429
        %v4575 = vpack.c.bf16 %v4294, %v4158
        %v4576 = vpack.c.bf16 %v4566, %v4430
        %v4577 = vpack.c.bf16 %v4295, %v4159
        %v4578 = vpack.c.bf16 %v4567, %v4431
        %v4579 = vpack.c.bf16 %v4296, %v4160
        %v4580 = vpack.c.bf16 %v4568, %v4432
        %v4581 = vpack.c.bf16 %v4297, %v4161
        %v4582 = vpack.c.bf16 %v4569, %v4433
        %v4583 = vpack.c.bf16 %v4298, %v4162
        %v4584 = vpack.c.bf16 %v4570, %v4434
        %v4585 = vpack.c.bf16 %v4299, %v4163
        %v4586 = vpack.c.bf16 %v4571, %v4435
        %v4587 = vpack.c.bf16 %v4300, %v4164
        %v4588 = vpack.c.bf16 %v4572, %v4436
        %vm4589 = vcmask 130048
        %v4591 = vsel %vm4589, %v2189, 0
        %v4594 = vsel %vm4589, %v3381, 0
        %4596 = vmatprep.subr.bf16.mxu0 0
        %4597 = vmatpush1.bf16.xpose.msra.mxu0 0
        %4598 = vmatprep.subr.bf16.mxu0 0
        %4599 = vmatpush1.bf16.xpose.msra.mxu0 0
        %4600 = vmatprep.subr.bf16.mxu0 0
        %4601 = vmatpush1.bf16.xpose.msra.mxu0 0
        %4602 = vmatprep.subr.bf16.mxu0 0
        %4603 = vmatpush1.bf16.xpose.msra.mxu0 0
        %4604 = vmatprep.subr.bf16.mxu0 0
        %4605 = vmatpush1.bf16.xpose.msra.mxu0 0
        %4606 = vmatprep.subr.bf16.mxu0 0
        %4607 = vmatpush1.bf16.xpose.msra.mxu0 0
        %4608 = vmatprep.subr.bf16.mxu0 0
        %4609 = vmatpush1.bf16.xpose.msra.mxu0 0
        %4610 = vmatprep.subr.bf16.mxu0 0
        %4611 = vmatpush1.bf16.xpose.msra.mxu0 %v4594
        %4612 = vmatprep.subr.bf16.mxu0 0
        %4613 = vmatpush2.bf16.xpose.msra.mxu0 0
        %4614 = vmatprep.subr.bf16.mxu0 0
        %4615 = vmatpush2.bf16.xpose.msra.mxu0 0
        %4616 = vmatprep.subr.bf16.mxu0 0
        %4617 = vmatpush2.bf16.xpose.msra.mxu0 0
        %4618 = vmatprep.subr.bf16.mxu0 0
        %4619 = vmatpush2.bf16.xpose.msra.mxu0 0
        %4620 = vmatprep.subr.bf16.mxu0 0
        %4621 = vmatpush2.bf16.xpose.msra.mxu0 0
        %4622 = vmatprep.subr.bf16.mxu0 0
        %4623 = vmatpush2.bf16.xpose.msra.mxu0 0
        %4624 = vmatprep.subr.bf16.mxu0 0
        %4625 = vmatpush2.bf16.xpose.msra.mxu0 0
        %4626 = vmatprep.subr.bf16.mxu0 0
        %4627 = vmatpush2.bf16.xpose.msra.mxu0 0
        %4628 = vmatprep.mubr.bf16.mxu0 0
        %4629 = vmatmul.mubr.bf16.gmra.mxu0 %v4591
        %v4630 = vpop.f32.mrf.mxu0
        %v4631 = vadd.f32 0.0, %v4630
        %v4632 = vpop.f32.mrf.mxu0
        %v4633 = vpop.f32.mrf.mxu0
        %v4634 = vadd.f32 0.0, %v4633
        %v4635 = vpop.f32.mrf.mxu0
        %4636 = vdwg.mxu0
        %v4638 = vsel %vm4589, %v2190, 0
        %v4641 = vsel %vm4589, %v3382, 0
        %4643 = vmatprep.subr.bf16.mxu0 0
        %4644 = vmatpush1.bf16.xpose.msra.mxu0 0
        %4645 = vmatprep.subr.bf16.mxu0 0
        %4646 = vmatpush1.bf16.xpose.msra.mxu0 0
        %4647 = vmatprep.subr.bf16.mxu0 0
        %4648 = vmatpush1.bf16.xpose.msra.mxu0 0
        %4649 = vmatprep.subr.bf16.mxu0 0
        %4650 = vmatpush1.bf16.xpose.msra.mxu0 0
        %4651 = vmatprep.subr.bf16.mxu0 0
        %4652 = vmatpush1.bf16.xpose.msra.mxu0 0
        %4653 = vmatprep.subr.bf16.mxu0 0
        %4654 = vmatpush1.bf16.xpose.msra.mxu0 0
        %4655 = vmatprep.subr.bf16.mxu0 0
        %4656 = vmatpush1.bf16.xpose.msra.mxu0 0
        %4657 = vmatprep.subr.bf16.mxu0 0
        %4658 = vmatpush1.bf16.xpose.msra.mxu0 %v4641
        %4659 = vmatprep.subr.bf16.mxu0 0
        %4660 = vmatpush2.bf16.xpose.msra.mxu0 0
        %4661 = vmatprep.subr.bf16.mxu0 0
        %4662 = vmatpush2.bf16.xpose.msra.mxu0 0
        %4663 = vmatprep.subr.bf16.mxu0 0
        %4664 = vmatpush2.bf16.xpose.msra.mxu0 0
        %4665 = vmatprep.subr.bf16.mxu0 0
        %4666 = vmatpush2.bf16.xpose.msra.mxu0 0
        %4667 = vmatprep.subr.bf16.mxu0 0
        %4668 = vmatpush2.bf16.xpose.msra.mxu0 0
        %4669 = vmatprep.subr.bf16.mxu0 0
        %4670 = vmatpush2.bf16.xpose.msra.mxu0 0
        %4671 = vmatprep.subr.bf16.mxu0 0
        %4672 = vmatpush2.bf16.xpose.msra.mxu0 0
        %4673 = vmatprep.subr.bf16.mxu0 0
        %4674 = vmatpush2.bf16.xpose.msra.mxu0 0
        %4675 = vmatprep.mubr.bf16.mxu0 0
        %4676 = vmatmul.mubr.bf16.gmra.mxu0 %v4638
        %v4677 = vpop.f32.mrf.mxu0
        %v4678 = vadd.f32 0.0, %v4677
        %v4679 = vpop.f32.mrf.mxu0
        %v4680 = vpop.f32.mrf.mxu0
        %v4681 = vadd.f32 0.0, %v4680
        %v4682 = vpop.f32.mrf.mxu0
        %4683 = vdwg.mxu0
        %v4685 = vsel %vm4589, %v2191, 0
        %v4688 = vsel %vm4589, %v3383, 0
        %4690 = vmatprep.subr.bf16.mxu0 0
        %4691 = vmatpush1.bf16.xpose.msra.mxu0 0
        %4692 = vmatprep.subr.bf16.mxu0 0
        %4693 = vmatpush1.bf16.xpose.msra.mxu0 0
        %4694 = vmatprep.subr.bf16.mxu0 0
        %4695 = vmatpush1.bf16.xpose.msra.mxu0 0
        %4696 = vmatprep.subr.bf16.mxu0 0
        %4697 = vmatpush1.bf16.xpose.msra.mxu0 0
        %4698 = vmatprep.subr.bf16.mxu0 0
        %4699 = vmatpush1.bf16.xpose.msra.mxu0 0
        %4700 = vmatprep.subr.bf16.mxu0 0
        %4701 = vmatpush1.bf16.xpose.msra.mxu0 0
        %4702 = vmatprep.subr.bf16.mxu0 0
        %4703 = vmatpush1.bf16.xpose.msra.mxu0 0
        %4704 = vmatprep.subr.bf16.mxu0 0
        %4705 = vmatpush1.bf16.xpose.msra.mxu0 %v4688
        %4706 = vmatprep.subr.bf16.mxu0 0
        %4707 = vmatpush2.bf16.xpose.msra.mxu0 0
        %4708 = vmatprep.subr.bf16.mxu0 0
        %4709 = vmatpush2.bf16.xpose.msra.mxu0 0
        %4710 = vmatprep.subr.bf16.mxu0 0
        %4711 = vmatpush2.bf16.xpose.msra.mxu0 0
        %4712 = vmatprep.subr.bf16.mxu0 0
        %4713 = vmatpush2.bf16.xpose.msra.mxu0 0
        %4714 = vmatprep.subr.bf16.mxu0 0
        %4715 = vmatpush2.bf16.xpose.msra.mxu0 0
        %4716 = vmatprep.subr.bf16.mxu0 0
        %4717 = vmatpush2.bf16.xpose.msra.mxu0 0
        %4718 = vmatprep.subr.bf16.mxu0 0
        %4719 = vmatpush2.bf16.xpose.msra.mxu0 0
        %4720 = vmatprep.subr.bf16.mxu0 0
        %4721 = vmatpush2.bf16.xpose.msra.mxu0 0
        %4722 = vmatprep.mubr.bf16.mxu0 0
        %4723 = vmatmul.mubr.bf16.gmra.mxu0 %v4685
        %v4724 = vpop.f32.mrf.mxu0
        %v4725 = vadd.f32 0.0, %v4724
        %v4726 = vpop.f32.mrf.mxu0
        %v4727 = vpop.f32.mrf.mxu0
        %v4728 = vadd.f32 0.0, %v4727
        %v4729 = vpop.f32.mrf.mxu0
        %4730 = vdwg.mxu0
        %v4732 = vsel %vm4589, %v2192, 0
        %v4735 = vsel %vm4589, %v3384, 0
        %4737 = vmatprep.subr.bf16.mxu0 0
        %4738 = vmatpush1.bf16.xpose.msra.mxu0 0
        %4739 = vmatprep.subr.bf16.mxu0 0
        %4740 = vmatpush1.bf16.xpose.msra.mxu0 0
        %4741 = vmatprep.subr.bf16.mxu0 0
        %4742 = vmatpush1.bf16.xpose.msra.mxu0 0
        %4743 = vmatprep.subr.bf16.mxu0 0
        %4744 = vmatpush1.bf16.xpose.msra.mxu0 0
        %4745 = vmatprep.subr.bf16.mxu0 0
        %4746 = vmatpush1.bf16.xpose.msra.mxu0 0
        %4747 = vmatprep.subr.bf16.mxu0 0
        %4748 = vmatpush1.bf16.xpose.msra.mxu0 0
        %4749 = vmatprep.subr.bf16.mxu0 0
        %4750 = vmatpush1.bf16.xpose.msra.mxu0 0
        %4751 = vmatprep.subr.bf16.mxu0 0
        %4752 = vmatpush1.bf16.xpose.msra.mxu0 %v4735
        %4753 = vmatprep.subr.bf16.mxu0 0
        %4754 = vmatpush2.bf16.xpose.msra.mxu0 0
        %4755 = vmatprep.subr.bf16.mxu0 0
        %4756 = vmatpush2.bf16.xpose.msra.mxu0 0
        %4757 = vmatprep.subr.bf16.mxu0 0
        %4758 = vmatpush2.bf16.xpose.msra.mxu0 0
        %4759 = vmatprep.subr.bf16.mxu0 0
        %4760 = vmatpush2.bf16.xpose.msra.mxu0 0
        %4761 = vmatprep.subr.bf16.mxu0 0
        %4762 = vmatpush2.bf16.xpose.msra.mxu0 0
        %4763 = vmatprep.subr.bf16.mxu0 0
        %4764 = vmatpush2.bf16.xpose.msra.mxu0 0
        %4765 = vmatprep.subr.bf16.mxu0 0
        %4766 = vmatpush2.bf16.xpose.msra.mxu0 0
        %4767 = vmatprep.subr.bf16.mxu0 0
        %4768 = vmatpush2.bf16.xpose.msra.mxu0 0
        %4769 = vmatprep.mubr.bf16.mxu0 0
        %4770 = vmatmul.mubr.bf16.gmra.mxu0 %v4732
        %v4771 = vpop.f32.mrf.mxu0
        %v4772 = vadd.f32 0.0, %v4771
        %v4773 = vpop.f32.mrf.mxu0
        %v4774 = vpop.f32.mrf.mxu0
        %v4775 = vadd.f32 0.0, %v4774
        %v4776 = vpop.f32.mrf.mxu0
        %4777 = vdwg.mxu0
        %v4779 = vsel %vm4589, %v2193, 0
        %v4782 = vsel %vm4589, %v3385, 0
        %4784 = vmatprep.subr.bf16.mxu0 0
        %4785 = vmatpush1.bf16.xpose.msra.mxu0 0
        %4786 = vmatprep.subr.bf16.mxu0 0
        %4787 = vmatpush1.bf16.xpose.msra.mxu0 0
        %4788 = vmatprep.subr.bf16.mxu0 0
        %4789 = vmatpush1.bf16.xpose.msra.mxu0 0
        %4790 = vmatprep.subr.bf16.mxu0 0
        %4791 = vmatpush1.bf16.xpose.msra.mxu0 0
        %4792 = vmatprep.subr.bf16.mxu0 0
        %4793 = vmatpush1.bf16.xpose.msra.mxu0 0
        %4794 = vmatprep.subr.bf16.mxu0 0
        %4795 = vmatpush1.bf16.xpose.msra.mxu0 0
        %4796 = vmatprep.subr.bf16.mxu0 0
        %4797 = vmatpush1.bf16.xpose.msra.mxu0 0
        %4798 = vmatprep.subr.bf16.mxu0 0
        %4799 = vmatpush1.bf16.xpose.msra.mxu0 %v4782
        %4800 = vmatprep.subr.bf16.mxu0 0
        %4801 = vmatpush2.bf16.xpose.msra.mxu0 0
        %4802 = vmatprep.subr.bf16.mxu0 0
        %4803 = vmatpush2.bf16.xpose.msra.mxu0 0
        %4804 = vmatprep.subr.bf16.mxu0 0
        %4805 = vmatpush2.bf16.xpose.msra.mxu0 0
        %4806 = vmatprep.subr.bf16.mxu0 0
        %4807 = vmatpush2.bf16.xpose.msra.mxu0 0
        %4808 = vmatprep.subr.bf16.mxu0 0
        %4809 = vmatpush2.bf16.xpose.msra.mxu0 0
        %4810 = vmatprep.subr.bf16.mxu0 0
        %4811 = vmatpush2.bf16.xpose.msra.mxu0 0
        %4812 = vmatprep.subr.bf16.mxu0 0
        %4813 = vmatpush2.bf16.xpose.msra.mxu0 0
        %4814 = vmatprep.subr.bf16.mxu0 0
        %4815 = vmatpush2.bf16.xpose.msra.mxu0 0
        %4816 = vmatprep.mubr.bf16.mxu0 0
        %4817 = vmatmul.mubr.bf16.gmra.mxu0 %v4779
        %v4818 = vpop.f32.mrf.mxu0
        %v4819 = vadd.f32 0.0, %v4818
        %v4820 = vpop.f32.mrf.mxu0
        %v4821 = vpop.f32.mrf.mxu0
        %v4822 = vadd.f32 0.0, %v4821
        %v4823 = vpop.f32.mrf.mxu0
        %4824 = vdwg.mxu0
        %v4826 = vsel %vm4589, %v2194, 0
        %v4829 = vsel %vm4589, %v3386, 0
        %4831 = vmatprep.subr.bf16.mxu0 0
        %4832 = vmatpush1.bf16.xpose.msra.mxu0 0
        %4833 = vmatprep.subr.bf16.mxu0 0
        %4834 = vmatpush1.bf16.xpose.msra.mxu0 0
        %4835 = vmatprep.subr.bf16.mxu0 0
        %4836 = vmatpush1.bf16.xpose.msra.mxu0 0
        %4837 = vmatprep.subr.bf16.mxu0 0
        %4838 = vmatpush1.bf16.xpose.msra.mxu0 0
        %4839 = vmatprep.subr.bf16.mxu0 0
        %4840 = vmatpush1.bf16.xpose.msra.mxu0 0
        %4841 = vmatprep.subr.bf16.mxu0 0
        %4842 = vmatpush1.bf16.xpose.msra.mxu0 0
        %4843 = vmatprep.subr.bf16.mxu0 0
        %4844 = vmatpush1.bf16.xpose.msra.mxu0 0
        %4845 = vmatprep.subr.bf16.mxu0 0
        %4846 = vmatpush1.bf16.xpose.msra.mxu0 %v4829
        %4847 = vmatprep.subr.bf16.mxu0 0
        %4848 = vmatpush2.bf16.xpose.msra.mxu0 0
        %4849 = vmatprep.subr.bf16.mxu0 0
        %4850 = vmatpush2.bf16.xpose.msra.mxu0 0
        %4851 = vmatprep.subr.bf16.mxu0 0
        %4852 = vmatpush2.bf16.xpose.msra.mxu0 0
        %4853 = vmatprep.subr.bf16.mxu0 0
        %4854 = vmatpush2.bf16.xpose.msra.mxu0 0
        %4855 = vmatprep.subr.bf16.mxu0 0
        %4856 = vmatpush2.bf16.xpose.msra.mxu0 0
        %4857 = vmatprep.subr.bf16.mxu0 0
        %4858 = vmatpush2.bf16.xpose.msra.mxu0 0
        %4859 = vmatprep.subr.bf16.mxu0 0
        %4860 = vmatpush2.bf16.xpose.msra.mxu0 0
        %4861 = vmatprep.subr.bf16.mxu0 0
        %4862 = vmatpush2.bf16.xpose.msra.mxu0 0
        %4863 = vmatprep.mubr.bf16.mxu0 0
        %4864 = vmatmul.mubr.bf16.gmra.mxu0 %v4826
        %v4865 = vpop.f32.mrf.mxu0
        %v4866 = vadd.f32 0.0, %v4865
        %v4867 = vpop.f32.mrf.mxu0
        %v4868 = vpop.f32.mrf.mxu0
        %v4869 = vadd.f32 0.0, %v4868
        %v4870 = vpop.f32.mrf.mxu0
        %4871 = vdwg.mxu0
        %v4873 = vsel %vm4589, %v2195, 0
        %v4876 = vsel %vm4589, %v3387, 0
        %4878 = vmatprep.subr.bf16.mxu0 0
        %4879 = vmatpush1.bf16.xpose.msra.mxu0 0
        %4880 = vmatprep.subr.bf16.mxu0 0
        %4881 = vmatpush1.bf16.xpose.msra.mxu0 0
        %4882 = vmatprep.subr.bf16.mxu0 0
        %4883 = vmatpush1.bf16.xpose.msra.mxu0 0
        %4884 = vmatprep.subr.bf16.mxu0 0
        %4885 = vmatpush1.bf16.xpose.msra.mxu0 0
        %4886 = vmatprep.subr.bf16.mxu0 0
        %4887 = vmatpush1.bf16.xpose.msra.mxu0 0
        %4888 = vmatprep.subr.bf16.mxu0 0
        %4889 = vmatpush1.bf16.xpose.msra.mxu0 0
        %4890 = vmatprep.subr.bf16.mxu0 0
        %4891 = vmatpush1.bf16.xpose.msra.mxu0 0
        %4892 = vmatprep.subr.bf16.mxu0 0
        %4893 = vmatpush1.bf16.xpose.msra.mxu0 %v4876
        %4894 = vmatprep.subr.bf16.mxu0 0
        %4895 = vmatpush2.bf16.xpose.msra.mxu0 0
        %4896 = vmatprep.subr.bf16.mxu0 0
        %4897 = vmatpush2.bf16.xpose.msra.mxu0 0
        %4898 = vmatprep.subr.bf16.mxu0 0
        %4899 = vmatpush2.bf16.xpose.msra.mxu0 0
        %4900 = vmatprep.subr.bf16.mxu0 0
        %4901 = vmatpush2.bf16.xpose.msra.mxu0 0
        %4902 = vmatprep.subr.bf16.mxu0 0
        %4903 = vmatpush2.bf16.xpose.msra.mxu0 0
        %4904 = vmatprep.subr.bf16.mxu0 0
        %4905 = vmatpush2.bf16.xpose.msra.mxu0 0
        %4906 = vmatprep.subr.bf16.mxu0 0
        %4907 = vmatpush2.bf16.xpose.msra.mxu0 0
        %4908 = vmatprep.subr.bf16.mxu0 0
        %4909 = vmatpush2.bf16.xpose.msra.mxu0 0
        %4910 = vmatprep.mubr.bf16.mxu0 0
        %4911 = vmatmul.mubr.bf16.gmra.mxu0 %v4873
        %v4912 = vpop.f32.mrf.mxu0
        %v4913 = vadd.f32 0.0, %v4912
        %v4914 = vpop.f32.mrf.mxu0
        %v4915 = vpop.f32.mrf.mxu0
        %v4916 = vadd.f32 0.0, %v4915
        %v4917 = vpop.f32.mrf.mxu0
        %4918 = vdwg.mxu0
        %v4920 = vsel %vm4589, %v2196, 0
        %v4923 = vsel %vm4589, %v3388, 0
        %4925 = vmatprep.subr.bf16.mxu0 0
        %4926 = vmatpush1.bf16.xpose.msra.mxu0 0
        %4927 = vmatprep.subr.bf16.mxu0 0
        %4928 = vmatpush1.bf16.xpose.msra.mxu0 0
        %4929 = vmatprep.subr.bf16.mxu0 0
        %4930 = vmatpush1.bf16.xpose.msra.mxu0 0
        %4931 = vmatprep.subr.bf16.mxu0 0
        %4932 = vmatpush1.bf16.xpose.msra.mxu0 0
        %4933 = vmatprep.subr.bf16.mxu0 0
        %4934 = vmatpush1.bf16.xpose.msra.mxu0 0
        %4935 = vmatprep.subr.bf16.mxu0 0
        %4936 = vmatpush1.bf16.xpose.msra.mxu0 0
        %4937 = vmatprep.subr.bf16.mxu0 0
        %4938 = vmatpush1.bf16.xpose.msra.mxu0 0
        %4939 = vmatprep.subr.bf16.mxu0 0
        %4940 = vmatpush1.bf16.xpose.msra.mxu0 %v4923
        %4941 = vmatprep.subr.bf16.mxu0 0
        %4942 = vmatpush2.bf16.xpose.msra.mxu0 0
        %4943 = vmatprep.subr.bf16.mxu0 0
        %4944 = vmatpush2.bf16.xpose.msra.mxu0 0
        %4945 = vmatprep.subr.bf16.mxu0 0
        %4946 = vmatpush2.bf16.xpose.msra.mxu0 0
        %4947 = vmatprep.subr.bf16.mxu0 0
        %4948 = vmatpush2.bf16.xpose.msra.mxu0 0
        %4949 = vmatprep.subr.bf16.mxu0 0
        %4950 = vmatpush2.bf16.xpose.msra.mxu0 0
        %4951 = vmatprep.subr.bf16.mxu0 0
        %4952 = vmatpush2.bf16.xpose.msra.mxu0 0
        %4953 = vmatprep.subr.bf16.mxu0 0
        %4954 = vmatpush2.bf16.xpose.msra.mxu0 0
        %4955 = vmatprep.subr.bf16.mxu0 0
        %4956 = vmatpush2.bf16.xpose.msra.mxu0 0
        %4957 = vmatprep.mubr.bf16.mxu0 0
        %4958 = vmatmul.mubr.bf16.gmra.mxu0 %v4920
        %v4959 = vpop.f32.mrf.mxu0
        %v4960 = vadd.f32 0.0, %v4959
        %v4961 = vpop.f32.mrf.mxu0
        %v4962 = vpop.f32.mrf.mxu0
        %v4963 = vadd.f32 0.0, %v4962
        %v4964 = vpop.f32.mrf.mxu0
        %4965 = vdwg.mxu0
        %v4967 = vsel %vm4589, %v2197, 0
        %v4970 = vsel %vm4589, %v3389, 0
        %4972 = vmatprep.subr.bf16.mxu0 0
        %4973 = vmatpush1.bf16.xpose.msra.mxu0 0
        %4974 = vmatprep.subr.bf16.mxu0 0
        %4975 = vmatpush1.bf16.xpose.msra.mxu0 0
        %4976 = vmatprep.subr.bf16.mxu0 0
        %4977 = vmatpush1.bf16.xpose.msra.mxu0 0
        %4978 = vmatprep.subr.bf16.mxu0 0
        %4979 = vmatpush1.bf16.xpose.msra.mxu0 0
        %4980 = vmatprep.subr.bf16.mxu0 0
        %4981 = vmatpush1.bf16.xpose.msra.mxu0 0
        %4982 = vmatprep.subr.bf16.mxu0 0
        %4983 = vmatpush1.bf16.xpose.msra.mxu0 0
        %4984 = vmatprep.subr.bf16.mxu0 0
        %4985 = vmatpush1.bf16.xpose.msra.mxu0 0
        %4986 = vmatprep.subr.bf16.mxu0 0
        %4987 = vmatpush1.bf16.xpose.msra.mxu0 %v4970
        %4988 = vmatprep.subr.bf16.mxu0 0
        %4989 = vmatpush2.bf16.xpose.msra.mxu0 0
        %4990 = vmatprep.subr.bf16.mxu0 0
        %4991 = vmatpush2.bf16.xpose.msra.mxu0 0
        %4992 = vmatprep.subr.bf16.mxu0 0
        %4993 = vmatpush2.bf16.xpose.msra.mxu0 0
        %4994 = vmatprep.subr.bf16.mxu0 0
        %4995 = vmatpush2.bf16.xpose.msra.mxu0 0
        %4996 = vmatprep.subr.bf16.mxu0 0
        %4997 = vmatpush2.bf16.xpose.msra.mxu0 0
        %4998 = vmatprep.subr.bf16.mxu0 0
        %4999 = vmatpush2.bf16.xpose.msra.mxu0 0
        %5000 = vmatprep.subr.bf16.mxu0 0
        %5001 = vmatpush2.bf16.xpose.msra.mxu0 0
        %5002 = vmatprep.subr.bf16.mxu0 0
        %5003 = vmatpush2.bf16.xpose.msra.mxu0 0
        %5004 = vmatprep.mubr.bf16.mxu0 0
        %5005 = vmatmul.mubr.bf16.gmra.mxu0 %v4967
        %v5006 = vpop.f32.mrf.mxu0
        %v5007 = vadd.f32 0.0, %v5006
        %v5008 = vpop.f32.mrf.mxu0
        %v5009 = vpop.f32.mrf.mxu0
        %v5010 = vadd.f32 0.0, %v5009
        %v5011 = vpop.f32.mrf.mxu0
        %5012 = vdwg.mxu0
        %v5014 = vsel %vm4589, %v2198, 0
        %v5017 = vsel %vm4589, %v3390, 0
        %5019 = vmatprep.subr.bf16.mxu0 0
        %5020 = vmatpush1.bf16.xpose.msra.mxu0 0
        %5021 = vmatprep.subr.bf16.mxu0 0
        %5022 = vmatpush1.bf16.xpose.msra.mxu0 0
        %5023 = vmatprep.subr.bf16.mxu0 0
        %5024 = vmatpush1.bf16.xpose.msra.mxu0 0
        %5025 = vmatprep.subr.bf16.mxu0 0
        %5026 = vmatpush1.bf16.xpose.msra.mxu0 0
        %5027 = vmatprep.subr.bf16.mxu0 0
        %5028 = vmatpush1.bf16.xpose.msra.mxu0 0
        %5029 = vmatprep.subr.bf16.mxu0 0
        %5030 = vmatpush1.bf16.xpose.msra.mxu0 0
        %5031 = vmatprep.subr.bf16.mxu0 0
        %5032 = vmatpush1.bf16.xpose.msra.mxu0 0
        %5033 = vmatprep.subr.bf16.mxu0 0
        %5034 = vmatpush1.bf16.xpose.msra.mxu0 %v5017
        %5035 = vmatprep.subr.bf16.mxu0 0
        %5036 = vmatpush2.bf16.xpose.msra.mxu0 0
        %5037 = vmatprep.subr.bf16.mxu0 0
        %5038 = vmatpush2.bf16.xpose.msra.mxu0 0
        %5039 = vmatprep.subr.bf16.mxu0 0
        %5040 = vmatpush2.bf16.xpose.msra.mxu0 0
        %5041 = vmatprep.subr.bf16.mxu0 0
        %5042 = vmatpush2.bf16.xpose.msra.mxu0 0
        %5043 = vmatprep.subr.bf16.mxu0 0
        %5044 = vmatpush2.bf16.xpose.msra.mxu0 0
        %5045 = vmatprep.subr.bf16.mxu0 0
        %5046 = vmatpush2.bf16.xpose.msra.mxu0 0
        %5047 = vmatprep.subr.bf16.mxu0 0
        %5048 = vmatpush2.bf16.xpose.msra.mxu0 0
        %5049 = vmatprep.subr.bf16.mxu0 0
        %5050 = vmatpush2.bf16.xpose.msra.mxu0 0
        %5051 = vmatprep.mubr.bf16.mxu0 0
        %5052 = vmatmul.mubr.bf16.gmra.mxu0 %v5014
        %v5053 = vpop.f32.mrf.mxu0
        %v5054 = vadd.f32 0.0, %v5053
        %v5055 = vpop.f32.mrf.mxu0
        %v5056 = vpop.f32.mrf.mxu0
        %v5057 = vadd.f32 0.0, %v5056
        %v5058 = vpop.f32.mrf.mxu0
        %5059 = vdwg.mxu0
        %v5061 = vsel %vm4589, %v2199, 0
        %v5064 = vsel %vm4589, %v3391, 0
        %5066 = vmatprep.subr.bf16.mxu0 0
        %5067 = vmatpush1.bf16.xpose.msra.mxu0 0
        %5068 = vmatprep.subr.bf16.mxu0 0
        %5069 = vmatpush1.bf16.xpose.msra.mxu0 0
        %5070 = vmatprep.subr.bf16.mxu0 0
        %5071 = vmatpush1.bf16.xpose.msra.mxu0 0
        %5072 = vmatprep.subr.bf16.mxu0 0
        %5073 = vmatpush1.bf16.xpose.msra.mxu0 0
        %5074 = vmatprep.subr.bf16.mxu0 0
        %5075 = vmatpush1.bf16.xpose.msra.mxu0 0
        %5076 = vmatprep.subr.bf16.mxu0 0
        %5077 = vmatpush1.bf16.xpose.msra.mxu0 0
        %5078 = vmatprep.subr.bf16.mxu0 0
        %5079 = vmatpush1.bf16.xpose.msra.mxu0 0
        %5080 = vmatprep.subr.bf16.mxu0 0
        %5081 = vmatpush1.bf16.xpose.msra.mxu0 %v5064
        %5082 = vmatprep.subr.bf16.mxu0 0
        %5083 = vmatpush2.bf16.xpose.msra.mxu0 0
        %5084 = vmatprep.subr.bf16.mxu0 0
        %5085 = vmatpush2.bf16.xpose.msra.mxu0 0
        %5086 = vmatprep.subr.bf16.mxu0 0
        %5087 = vmatpush2.bf16.xpose.msra.mxu0 0
        %5088 = vmatprep.subr.bf16.mxu0 0
        %5089 = vmatpush2.bf16.xpose.msra.mxu0 0
        %5090 = vmatprep.subr.bf16.mxu0 0
        %5091 = vmatpush2.bf16.xpose.msra.mxu0 0
        %5092 = vmatprep.subr.bf16.mxu0 0
        %5093 = vmatpush2.bf16.xpose.msra.mxu0 0
        %5094 = vmatprep.subr.bf16.mxu0 0
        %5095 = vmatpush2.bf16.xpose.msra.mxu0 0
        %5096 = vmatprep.subr.bf16.mxu0 0
        %5097 = vmatpush2.bf16.xpose.msra.mxu0 0
        %5098 = vmatprep.mubr.bf16.mxu0 0
        %5099 = vmatmul.mubr.bf16.gmra.mxu0 %v5061
        %v5100 = vpop.f32.mrf.mxu0
        %v5101 = vadd.f32 0.0, %v5100
        %v5102 = vpop.f32.mrf.mxu0
        %v5103 = vpop.f32.mrf.mxu0
        %v5104 = vadd.f32 0.0, %v5103
        %v5105 = vpop.f32.mrf.mxu0
        %5106 = vdwg.mxu0
        %v5108 = vsel %vm4589, %v2200, 0
        %v5111 = vsel %vm4589, %v3392, 0
        %5113 = vmatprep.subr.bf16.mxu0 0
        %5114 = vmatpush1.bf16.xpose.msra.mxu0 0
        %5115 = vmatprep.subr.bf16.mxu0 0
        %5116 = vmatpush1.bf16.xpose.msra.mxu0 0
        %5117 = vmatprep.subr.bf16.mxu0 0
        %5118 = vmatpush1.bf16.xpose.msra.mxu0 0
        %5119 = vmatprep.subr.bf16.mxu0 0
        %5120 = vmatpush1.bf16.xpose.msra.mxu0 0
        %5121 = vmatprep.subr.bf16.mxu0 0
        %5122 = vmatpush1.bf16.xpose.msra.mxu0 0
        %5123 = vmatprep.subr.bf16.mxu0 0
        %5124 = vmatpush1.bf16.xpose.msra.mxu0 0
        %5125 = vmatprep.subr.bf16.mxu0 0
        %5126 = vmatpush1.bf16.xpose.msra.mxu0 0
        %5127 = vmatprep.subr.bf16.mxu0 0
        %5128 = vmatpush1.bf16.xpose.msra.mxu0 %v5111
        %5129 = vmatprep.subr.bf16.mxu0 0
        %5130 = vmatpush2.bf16.xpose.msra.mxu0 0
        %5131 = vmatprep.subr.bf16.mxu0 0
        %5132 = vmatpush2.bf16.xpose.msra.mxu0 0
        %5133 = vmatprep.subr.bf16.mxu0 0
        %5134 = vmatpush2.bf16.xpose.msra.mxu0 0
        %5135 = vmatprep.subr.bf16.mxu0 0
        %5136 = vmatpush2.bf16.xpose.msra.mxu0 0
        %5137 = vmatprep.subr.bf16.mxu0 0
        %5138 = vmatpush2.bf16.xpose.msra.mxu0 0
        %5139 = vmatprep.subr.bf16.mxu0 0
        %5140 = vmatpush2.bf16.xpose.msra.mxu0 0
        %5141 = vmatprep.subr.bf16.mxu0 0
        %5142 = vmatpush2.bf16.xpose.msra.mxu0 0
        %5143 = vmatprep.subr.bf16.mxu0 0
        %5144 = vmatpush2.bf16.xpose.msra.mxu0 0
        %5145 = vmatprep.mubr.bf16.mxu0 0
        %5146 = vmatmul.mubr.bf16.gmra.mxu0 %v5108
        %v5147 = vpop.f32.mrf.mxu0
        %v5148 = vadd.f32 0.0, %v5147
        %v5149 = vpop.f32.mrf.mxu0
        %v5150 = vpop.f32.mrf.mxu0
        %v5151 = vadd.f32 0.0, %v5150
        %v5152 = vpop.f32.mrf.mxu0
        %5153 = vdwg.mxu0
        %v5155 = vsel %vm4589, %v2201, 0
        %v5158 = vsel %vm4589, %v3393, 0
        %5160 = vmatprep.subr.bf16.mxu0 0
        %5161 = vmatpush1.bf16.xpose.msra.mxu0 0
        %5162 = vmatprep.subr.bf16.mxu0 0
        %5163 = vmatpush1.bf16.xpose.msra.mxu0 0
        %5164 = vmatprep.subr.bf16.mxu0 0
        %5165 = vmatpush1.bf16.xpose.msra.mxu0 0
        %5166 = vmatprep.subr.bf16.mxu0 0
        %5167 = vmatpush1.bf16.xpose.msra.mxu0 0
        %5168 = vmatprep.subr.bf16.mxu0 0
        %5169 = vmatpush1.bf16.xpose.msra.mxu0 0
        %5170 = vmatprep.subr.bf16.mxu0 0
        %5171 = vmatpush1.bf16.xpose.msra.mxu0 0
        %5172 = vmatprep.subr.bf16.mxu0 0
        %5173 = vmatpush1.bf16.xpose.msra.mxu0 0
        %5174 = vmatprep.subr.bf16.mxu0 0
        %5175 = vmatpush1.bf16.xpose.msra.mxu0 %v5158
        %5176 = vmatprep.subr.bf16.mxu0 0
        %5177 = vmatpush2.bf16.xpose.msra.mxu0 0
        %5178 = vmatprep.subr.bf16.mxu0 0
        %5179 = vmatpush2.bf16.xpose.msra.mxu0 0
        %5180 = vmatprep.subr.bf16.mxu0 0
        %5181 = vmatpush2.bf16.xpose.msra.mxu0 0
        %5182 = vmatprep.subr.bf16.mxu0 0
        %5183 = vmatpush2.bf16.xpose.msra.mxu0 0
        %5184 = vmatprep.subr.bf16.mxu0 0
        %5185 = vmatpush2.bf16.xpose.msra.mxu0 0
        %5186 = vmatprep.subr.bf16.mxu0 0
        %5187 = vmatpush2.bf16.xpose.msra.mxu0 0
        %5188 = vmatprep.subr.bf16.mxu0 0
        %5189 = vmatpush2.bf16.xpose.msra.mxu0 0
        %5190 = vmatprep.subr.bf16.mxu0 0
        %5191 = vmatpush2.bf16.xpose.msra.mxu0 0
        %5192 = vmatprep.mubr.bf16.mxu0 0
        %5193 = vmatmul.mubr.bf16.gmra.mxu0 %v5155
        %v5194 = vpop.f32.mrf.mxu0
        %v5195 = vadd.f32 0.0, %v5194
        %v5196 = vpop.f32.mrf.mxu0
        %v5197 = vpop.f32.mrf.mxu0
        %v5198 = vadd.f32 0.0, %v5197
        %v5199 = vpop.f32.mrf.mxu0
        %5200 = vdwg.mxu0
        %v5202 = vsel %vm4589, %v2202, 0
        %v5205 = vsel %vm4589, %v3394, 0
        %5207 = vmatprep.subr.bf16.mxu0 0
        %5208 = vmatpush1.bf16.xpose.msra.mxu0 0
        %5209 = vmatprep.subr.bf16.mxu0 0
        %5210 = vmatpush1.bf16.xpose.msra.mxu0 0
        %5211 = vmatprep.subr.bf16.mxu0 0
        %5212 = vmatpush1.bf16.xpose.msra.mxu0 0
        %5213 = vmatprep.subr.bf16.mxu0 0
        %5214 = vmatpush1.bf16.xpose.msra.mxu0 0
        %5215 = vmatprep.subr.bf16.mxu0 0
        %5216 = vmatpush1.bf16.xpose.msra.mxu0 0
        %5217 = vmatprep.subr.bf16.mxu0 0
        %5218 = vmatpush1.bf16.xpose.msra.mxu0 0
        %5219 = vmatprep.subr.bf16.mxu0 0
        %5220 = vmatpush1.bf16.xpose.msra.mxu0 0
        %5221 = vmatprep.subr.bf16.mxu0 0
        %5222 = vmatpush1.bf16.xpose.msra.mxu0 %v5205
        %5223 = vmatprep.subr.bf16.mxu0 0
        %5224 = vmatpush2.bf16.xpose.msra.mxu0 0
        %5225 = vmatprep.subr.bf16.mxu0 0
        %5226 = vmatpush2.bf16.xpose.msra.mxu0 0
        %5227 = vmatprep.subr.bf16.mxu0 0
        %5228 = vmatpush2.bf16.xpose.msra.mxu0 0
        %5229 = vmatprep.subr.bf16.mxu0 0
        %5230 = vmatpush2.bf16.xpose.msra.mxu0 0
        %5231 = vmatprep.subr.bf16.mxu0 0
        %5232 = vmatpush2.bf16.xpose.msra.mxu0 0
        %5233 = vmatprep.subr.bf16.mxu0 0
        %5234 = vmatpush2.bf16.xpose.msra.mxu0 0
        %5235 = vmatprep.subr.bf16.mxu0 0
        %5236 = vmatpush2.bf16.xpose.msra.mxu0 0
        %5237 = vmatprep.subr.bf16.mxu0 0
        %5238 = vmatpush2.bf16.xpose.msra.mxu0 0
        %5239 = vmatprep.mubr.bf16.mxu0 0
        %5240 = vmatmul.mubr.bf16.gmra.mxu0 %v5202
        %v5241 = vpop.f32.mrf.mxu0
        %v5242 = vadd.f32 0.0, %v5241
        %v5243 = vpop.f32.mrf.mxu0
        %v5244 = vpop.f32.mrf.mxu0
        %v5245 = vadd.f32 0.0, %v5244
        %v5246 = vpop.f32.mrf.mxu0
        %5247 = vdwg.mxu0
        %v5249 = vsel %vm4589, %v2203, 0
        %v5252 = vsel %vm4589, %v3395, 0
        %5254 = vmatprep.subr.bf16.mxu0 0
        %5255 = vmatpush1.bf16.xpose.msra.mxu0 0
        %5256 = vmatprep.subr.bf16.mxu0 0
        %5257 = vmatpush1.bf16.xpose.msra.mxu0 0
        %5258 = vmatprep.subr.bf16.mxu0 0
        %5259 = vmatpush1.bf16.xpose.msra.mxu0 0
        %5260 = vmatprep.subr.bf16.mxu0 0
        %5261 = vmatpush1.bf16.xpose.msra.mxu0 0
        %5262 = vmatprep.subr.bf16.mxu0 0
        %5263 = vmatpush1.bf16.xpose.msra.mxu0 0
        %5264 = vmatprep.subr.bf16.mxu0 0
        %5265 = vmatpush1.bf16.xpose.msra.mxu0 0
        %5266 = vmatprep.subr.bf16.mxu0 0
        %5267 = vmatpush1.bf16.xpose.msra.mxu0 0
        %5268 = vmatprep.subr.bf16.mxu0 0
        %5269 = vmatpush1.bf16.xpose.msra.mxu0 %v5252
        %5270 = vmatprep.subr.bf16.mxu0 0
        %5271 = vmatpush2.bf16.xpose.msra.mxu0 0
        %5272 = vmatprep.subr.bf16.mxu0 0
        %5273 = vmatpush2.bf16.xpose.msra.mxu0 0
        %5274 = vmatprep.subr.bf16.mxu0 0
        %5275 = vmatpush2.bf16.xpose.msra.mxu0 0
        %5276 = vmatprep.subr.bf16.mxu0 0
        %5277 = vmatpush2.bf16.xpose.msra.mxu0 0
        %5278 = vmatprep.subr.bf16.mxu0 0
        %5279 = vmatpush2.bf16.xpose.msra.mxu0 0
        %5280 = vmatprep.subr.bf16.mxu0 0
        %5281 = vmatpush2.bf16.xpose.msra.mxu0 0
        %5282 = vmatprep.subr.bf16.mxu0 0
        %5283 = vmatpush2.bf16.xpose.msra.mxu0 0
        %5284 = vmatprep.subr.bf16.mxu0 0
        %5285 = vmatpush2.bf16.xpose.msra.mxu0 0
        %5286 = vmatprep.mubr.bf16.mxu0 0
        %5287 = vmatmul.mubr.bf16.gmra.mxu0 %v5249
        %v5288 = vpop.f32.mrf.mxu0
        %v5289 = vadd.f32 0.0, %v5288
        %v5290 = vpop.f32.mrf.mxu0
        %v5291 = vpop.f32.mrf.mxu0
        %v5292 = vadd.f32 0.0, %v5291
        %v5293 = vpop.f32.mrf.mxu0
        %5294 = vdwg.mxu0
        %v5296 = vsel %vm4589, %v2204, 0
        %v5299 = vsel %vm4589, %v3396, 0
        %5301 = vmatprep.subr.bf16.mxu0 0
        %5302 = vmatpush1.bf16.xpose.msra.mxu0 0
        %5303 = vmatprep.subr.bf16.mxu0 0
        %5304 = vmatpush1.bf16.xpose.msra.mxu0 0
        %5305 = vmatprep.subr.bf16.mxu0 0
        %5306 = vmatpush1.bf16.xpose.msra.mxu0 0
        %5307 = vmatprep.subr.bf16.mxu0 0
        %5308 = vmatpush1.bf16.xpose.msra.mxu0 0
        %5309 = vmatprep.subr.bf16.mxu0 0
        %5310 = vmatpush1.bf16.xpose.msra.mxu0 0
        %5311 = vmatprep.subr.bf16.mxu0 0
        %5312 = vmatpush1.bf16.xpose.msra.mxu0 0
        %5313 = vmatprep.subr.bf16.mxu0 0
        %5314 = vmatpush1.bf16.xpose.msra.mxu0 0
        %5315 = vmatprep.subr.bf16.mxu0 0
        %5316 = vmatpush1.bf16.xpose.msra.mxu0 %v5299
        %5317 = vmatprep.subr.bf16.mxu0 0
        %5318 = vmatpush2.bf16.xpose.msra.mxu0 0
        %5319 = vmatprep.subr.bf16.mxu0 0
        %5320 = vmatpush2.bf16.xpose.msra.mxu0 0
        %5321 = vmatprep.subr.bf16.mxu0 0
        %5322 = vmatpush2.bf16.xpose.msra.mxu0 0
        %5323 = vmatprep.subr.bf16.mxu0 0
        %5324 = vmatpush2.bf16.xpose.msra.mxu0 0
        %5325 = vmatprep.subr.bf16.mxu0 0
        %5326 = vmatpush2.bf16.xpose.msra.mxu0 0
        %5327 = vmatprep.subr.bf16.mxu0 0
        %5328 = vmatpush2.bf16.xpose.msra.mxu0 0
        %5329 = vmatprep.subr.bf16.mxu0 0
        %5330 = vmatpush2.bf16.xpose.msra.mxu0 0
        %5331 = vmatprep.subr.bf16.mxu0 0
        %5332 = vmatpush2.bf16.xpose.msra.mxu0 0
        %5333 = vmatprep.mubr.bf16.mxu0 0
        %5334 = vmatmul.mubr.bf16.gmra.mxu0 %v5296
        %v5335 = vpop.f32.mrf.mxu0
        %v5336 = vadd.f32 0.0, %v5335
        %v5337 = vpop.f32.mrf.mxu0
        %v5338 = vpop.f32.mrf.mxu0
        %v5339 = vadd.f32 0.0, %v5338
        %v5340 = vpop.f32.mrf.mxu0
        %5341 = vdwg.mxu0
        %v5342 = vsel %vm4589, %v4631, -inf
        %5343 = vmax.xlane.f32.xlu0 %v5342
        %v5344 = vpop.xlane.xlu0 %5343
        %v5345 = vsel %vm4589, %v4634, -inf
        %5346 = vmax.xlane.f32.xlu0 %v5345
        %v5347 = vpop.xlane.xlu0 %5346
        %v5348 = vsel %vm4589, %v4678, -inf
        %5349 = vmax.xlane.f32.xlu0 %v5348
        %v5350 = vpop.xlane.xlu0 %5349
        %v5351 = vsel %vm4589, %v4681, -inf
        %5352 = vmax.xlane.f32.xlu0 %v5351
        %v5353 = vpop.xlane.xlu0 %5352
        %v5354 = vsel %vm4589, %v4725, -inf
        %5355 = vmax.xlane.f32.xlu0 %v5354
        %v5356 = vpop.xlane.xlu0 %5355
        %v5357 = vsel %vm4589, %v4728, -inf
        %5358 = vmax.xlane.f32.xlu0 %v5357
        %v5359 = vpop.xlane.xlu0 %5358
        %v5360 = vsel %vm4589, %v4772, -inf
        %5361 = vmax.xlane.f32.xlu0 %v5360
        %v5362 = vpop.xlane.xlu0 %5361
        %v5363 = vsel %vm4589, %v4775, -inf
        %5364 = vmax.xlane.f32.xlu0 %v5363
        %v5365 = vpop.xlane.xlu0 %5364
        %v5366 = vsel %vm4589, %v4819, -inf
        %5367 = vmax.xlane.f32.xlu0 %v5366
        %v5368 = vpop.xlane.xlu0 %5367
        %v5369 = vsel %vm4589, %v4822, -inf
        %5370 = vmax.xlane.f32.xlu0 %v5369
        %v5371 = vpop.xlane.xlu0 %5370
        %v5372 = vsel %vm4589, %v4866, -inf
        %5373 = vmax.xlane.f32.xlu0 %v5372
        %v5374 = vpop.xlane.xlu0 %5373
        %v5375 = vsel %vm4589, %v4869, -inf
        %5376 = vmax.xlane.f32.xlu0 %v5375
        %v5377 = vpop.xlane.xlu0 %5376
        %v5378 = vsel %vm4589, %v4913, -inf
        %5379 = vmax.xlane.f32.xlu0 %v5378
        %v5380 = vpop.xlane.xlu0 %5379
        %v5381 = vsel %vm4589, %v4916, -inf
        %5382 = vmax.xlane.f32.xlu0 %v5381
        %v5383 = vpop.xlane.xlu0 %5382
        %v5384 = vsel %vm4589, %v4960, -inf
        %5385 = vmax.xlane.f32.xlu0 %v5384
        %v5386 = vpop.xlane.xlu0 %5385
        %v5387 = vsel %vm4589, %v4963, -inf
        %5388 = vmax.xlane.f32.xlu0 %v5387
        %v5389 = vpop.xlane.xlu0 %5388
        %v5390 = vsel %vm4589, %v5007, -inf
        %5391 = vmax.xlane.f32.xlu0 %v5390
        %v5392 = vpop.xlane.xlu0 %5391
        %v5393 = vsel %vm4589, %v5010, -inf
        %5394 = vmax.xlane.f32.xlu0 %v5393
        %v5395 = vpop.xlane.xlu0 %5394
        %v5396 = vsel %vm4589, %v5054, -inf
        %5397 = vmax.xlane.f32.xlu0 %v5396
        %v5398 = vpop.xlane.xlu0 %5397
        %v5399 = vsel %vm4589, %v5057, -inf
        %5400 = vmax.xlane.f32.xlu0 %v5399
        %v5401 = vpop.xlane.xlu0 %5400
        %v5402 = vsel %vm4589, %v5101, -inf
        %5403 = vmax.xlane.f32.xlu0 %v5402
        %v5404 = vpop.xlane.xlu0 %5403
        %v5405 = vsel %vm4589, %v5104, -inf
        %5406 = vmax.xlane.f32.xlu0 %v5405
        %v5407 = vpop.xlane.xlu0 %5406
        %v5408 = vsel %vm4589, %v5148, -inf
        %5409 = vmax.xlane.f32.xlu0 %v5408
        %v5410 = vpop.xlane.xlu0 %5409
        %v5411 = vsel %vm4589, %v5151, -inf
        %5412 = vmax.xlane.f32.xlu0 %v5411
        %v5413 = vpop.xlane.xlu0 %5412
        %v5414 = vsel %vm4589, %v5195, -inf
        %5415 = vmax.xlane.f32.xlu0 %v5414
        %v5416 = vpop.xlane.xlu0 %5415
        %v5417 = vsel %vm4589, %v5198, -inf
        %5418 = vmax.xlane.f32.xlu0 %v5417
        %v5419 = vpop.xlane.xlu0 %5418
        %v5420 = vsel %vm4589, %v5242, -inf
        %5421 = vmax.xlane.f32.xlu0 %v5420
        %v5422 = vpop.xlane.xlu0 %5421
        %v5423 = vsel %vm4589, %v5245, -inf
        %5424 = vmax.xlane.f32.xlu0 %v5423
        %v5425 = vpop.xlane.xlu0 %5424
        %v5426 = vsel %vm4589, %v5289, -inf
        %5427 = vmax.xlane.f32.xlu0 %v5426
        %v5428 = vpop.xlane.xlu0 %5427
        %v5429 = vsel %vm4589, %v5292, -inf
        %5430 = vmax.xlane.f32.xlu0 %v5429
        %v5431 = vpop.xlane.xlu0 %5430
        %v5432 = vsel %vm4589, %v5336, -inf
        %5433 = vmax.xlane.f32.xlu0 %v5432
        %v5434 = vpop.xlane.xlu0 %5433
        %v5435 = vsel %vm4589, %v5339, -inf
        %5436 = vmax.xlane.f32.xlu0 %v5435
        %v5437 = vpop.xlane.xlu0 %5436
        %v5438 = vsub.f32 %v4631, %v5344
        %v5439 = vsub.f32 %v4634, %v5347
        %v5440 = vsub.f32 %v4678, %v5350
        %v5441 = vsub.f32 %v4681, %v5353
        %v5442 = vsub.f32 %v4725, %v5356
        %v5443 = vsub.f32 %v4728, %v5359
        %v5444 = vsub.f32 %v4772, %v5362
        %v5445 = vsub.f32 %v4775, %v5365
        %v5446 = vsub.f32 %v4819, %v5368
        %v5447 = vsub.f32 %v4822, %v5371
        %v5448 = vsub.f32 %v4866, %v5374
        %v5449 = vsub.f32 %v4869, %v5377
        %v5450 = vsub.f32 %v4913, %v5380
        %v5451 = vsub.f32 %v4916, %v5383
        %v5452 = vsub.f32 %v4960, %v5386
        %v5453 = vsub.f32 %v4963, %v5389
        %v5454 = vsub.f32 %v5007, %v5392
        %v5455 = vsub.f32 %v5010, %v5395
        %v5456 = vsub.f32 %v5054, %v5398
        %v5457 = vsub.f32 %v5057, %v5401
        %v5458 = vsub.f32 %v5101, %v5404
        %v5459 = vsub.f32 %v5104, %v5407
        %v5460 = vsub.f32 %v5148, %v5410
        %v5461 = vsub.f32 %v5151, %v5413
        %v5462 = vsub.f32 %v5195, %v5416
        %v5463 = vsub.f32 %v5198, %v5419
        %v5464 = vsub.f32 %v5242, %v5422
        %v5465 = vsub.f32 %v5245, %v5425
        %v5466 = vsub.f32 %v5289, %v5428
        %v5467 = vsub.f32 %v5292, %v5431
        %v5468 = vsub.f32 %v5336, %v5434
        %v5469 = vsub.f32 %v5339, %v5437
        %v5470 = vmul.f32 %v5438, 1.442695
        %v5471 = vpow.pop %v5470
        %v5472 = vmul.f32 %v5439, 1.442695
        %v5473 = vpow.pop %v5472
        %v5474 = vmul.f32 %v5440, 1.442695
        %v5475 = vpow.pop %v5474
        %v5476 = vmul.f32 %v5441, 1.442695
        %v5477 = vpow.pop %v5476
        %v5478 = vmul.f32 %v5442, 1.442695
        %v5479 = vpow.pop %v5478
        %v5480 = vmul.f32 %v5443, 1.442695
        %v5481 = vpow.pop %v5480
        %v5482 = vmul.f32 %v5444, 1.442695
        %v5483 = vpow.pop %v5482
        %v5484 = vmul.f32 %v5445, 1.442695
        %v5485 = vpow.pop %v5484
        %v5486 = vmul.f32 %v5446, 1.442695
        %v5487 = vpow.pop %v5486
        %v5488 = vmul.f32 %v5447, 1.442695
        %v5489 = vpow.pop %v5488
        %v5490 = vmul.f32 %v5448, 1.442695
        %v5491 = vpow.pop %v5490
        %v5492 = vmul.f32 %v5449, 1.442695
        %v5493 = vpow.pop %v5492
        %v5494 = vmul.f32 %v5450, 1.442695
        %v5495 = vpow.pop %v5494
        %v5496 = vmul.f32 %v5451, 1.442695
        %v5497 = vpow.pop %v5496
        %v5498 = vmul.f32 %v5452, 1.442695
        %v5499 = vpow.pop %v5498
        %v5500 = vmul.f32 %v5453, 1.442695
        %v5501 = vpow.pop %v5500
        %v5502 = vmul.f32 %v5454, 1.442695
        %v5503 = vpow.pop %v5502
        %v5504 = vmul.f32 %v5455, 1.442695
        %v5505 = vpow.pop %v5504
        %v5506 = vmul.f32 %v5456, 1.442695
        %v5507 = vpow.pop %v5506
        %v5508 = vmul.f32 %v5457, 1.442695
        %v5509 = vpow.pop %v5508
        %v5510 = vmul.f32 %v5458, 1.442695
        %v5511 = vpow.pop %v5510
        %v5512 = vmul.f32 %v5459, 1.442695
        %v5513 = vpow.pop %v5512
        %v5514 = vmul.f32 %v5460, 1.442695
        %v5515 = vpow.pop %v5514
        %v5516 = vmul.f32 %v5461, 1.442695
        %v5517 = vpow.pop %v5516
        %v5518 = vmul.f32 %v5462, 1.442695
        %v5519 = vpow.pop %v5518
        %v5520 = vmul.f32 %v5463, 1.442695
        %v5521 = vpow.pop %v5520
        %v5522 = vmul.f32 %v5464, 1.442695
        %v5523 = vpow.pop %v5522
        %v5524 = vmul.f32 %v5465, 1.442695
        %v5525 = vpow.pop %v5524
        %v5526 = vmul.f32 %v5466, 1.442695
        %v5527 = vpow.pop %v5526
        %v5528 = vmul.f32 %v5467, 1.442695
        %v5529 = vpow.pop %v5528
        %v5530 = vmul.f32 %v5468, 1.442695
        %v5531 = vpow.pop %v5530
        %v5532 = vmul.f32 %v5469, 1.442695
        %v5533 = vpow.pop %v5532
        %v5534 = vsel %vm4589, %v5471, 0.0
        %5535 = vadd.xlane.f32.xlu0 %v5534
        %v5536 = vpop.xlane.xlu0 %5535
        %v5537 = vsel %vm4589, %v5473, 0.0
        %5538 = vadd.xlane.f32.xlu0 %v5537
        %v5539 = vpop.xlane.xlu0 %5538
        %v5540 = vsel %vm4589, %v5475, 0.0
        %5541 = vadd.xlane.f32.xlu0 %v5540
        %v5542 = vpop.xlane.xlu0 %5541
        %v5543 = vsel %vm4589, %v5477, 0.0
        %5544 = vadd.xlane.f32.xlu0 %v5543
        %v5545 = vpop.xlane.xlu0 %5544
        %v5546 = vsel %vm4589, %v5479, 0.0
        %5547 = vadd.xlane.f32.xlu0 %v5546
        %v5548 = vpop.xlane.xlu0 %5547
        %v5549 = vsel %vm4589, %v5481, 0.0
        %5550 = vadd.xlane.f32.xlu0 %v5549
        %v5551 = vpop.xlane.xlu0 %5550
        %v5552 = vsel %vm4589, %v5483, 0.0
        %5553 = vadd.xlane.f32.xlu0 %v5552
        %v5554 = vpop.xlane.xlu0 %5553
        %v5555 = vsel %vm4589, %v5485, 0.0
        %5556 = vadd.xlane.f32.xlu0 %v5555
        %v5557 = vpop.xlane.xlu0 %5556
        %v5558 = vsel %vm4589, %v5487, 0.0
        %5559 = vadd.xlane.f32.xlu0 %v5558
        %v5560 = vpop.xlane.xlu0 %5559
        %v5561 = vsel %vm4589, %v5489, 0.0
        %5562 = vadd.xlane.f32.xlu0 %v5561
        %v5563 = vpop.xlane.xlu0 %5562
        %v5564 = vsel %vm4589, %v5491, 0.0
        %5565 = vadd.xlane.f32.xlu0 %v5564
        %v5566 = vpop.xlane.xlu0 %5565
        %v5567 = vsel %vm4589, %v5493, 0.0
        %5568 = vadd.xlane.f32.xlu0 %v5567
        %v5569 = vpop.xlane.xlu0 %5568
        %v5570 = vsel %vm4589, %v5495, 0.0
        %5571 = vadd.xlane.f32.xlu0 %v5570
        %v5572 = vpop.xlane.xlu0 %5571
        %v5573 = vsel %vm4589, %v5497, 0.0
        %5574 = vadd.xlane.f32.xlu0 %v5573
        %v5575 = vpop.xlane.xlu0 %5574
        %v5576 = vsel %vm4589, %v5499, 0.0
        %5577 = vadd.xlane.f32.xlu0 %v5576
        %v5578 = vpop.xlane.xlu0 %5577
        %v5579 = vsel %vm4589, %v5501, 0.0
        %5580 = vadd.xlane.f32.xlu0 %v5579
        %v5581 = vpop.xlane.xlu0 %5580
        %v5582 = vsel %vm4589, %v5503, 0.0
        %5583 = vadd.xlane.f32.xlu0 %v5582
        %v5584 = vpop.xlane.xlu0 %5583
        %v5585 = vsel %vm4589, %v5505, 0.0
        %5586 = vadd.xlane.f32.xlu0 %v5585
        %v5587 = vpop.xlane.xlu0 %5586
        %v5588 = vsel %vm4589, %v5507, 0.0
        %5589 = vadd.xlane.f32.xlu0 %v5588
        %v5590 = vpop.xlane.xlu0 %5589
        %v5591 = vsel %vm4589, %v5509, 0.0
        %5592 = vadd.xlane.f32.xlu0 %v5591
        %v5593 = vpop.xlane.xlu0 %5592
        %v5594 = vsel %vm4589, %v5511, 0.0
        %5595 = vadd.xlane.f32.xlu0 %v5594
        %v5596 = vpop.xlane.xlu0 %5595
        %v5597 = vsel %vm4589, %v5513, 0.0
        %5598 = vadd.xlane.f32.xlu0 %v5597
        %v5599 = vpop.xlane.xlu0 %5598
        %v5600 = vsel %vm4589, %v5515, 0.0
        %5601 = vadd.xlane.f32.xlu0 %v5600
        %v5602 = vpop.xlane.xlu0 %5601
        %v5603 = vsel %vm4589, %v5517, 0.0
        %5604 = vadd.xlane.f32.xlu0 %v5603
        %v5605 = vpop.xlane.xlu0 %5604
        %v5606 = vsel %vm4589, %v5519, 0.0
        %5607 = vadd.xlane.f32.xlu0 %v5606
        %v5608 = vpop.xlane.xlu0 %5607
        %v5609 = vsel %vm4589, %v5521, 0.0
        %5610 = vadd.xlane.f32.xlu0 %v5609
        %v5611 = vpop.xlane.xlu0 %5610
        %v5612 = vsel %vm4589, %v5523, 0.0
        %5613 = vadd.xlane.f32.xlu0 %v5612
        %v5614 = vpop.xlane.xlu0 %5613
        %v5615 = vsel %vm4589, %v5525, 0.0
        %5616 = vadd.xlane.f32.xlu0 %v5615
        %v5617 = vpop.xlane.xlu0 %5616
        %v5618 = vsel %vm4589, %v5527, 0.0
        %5619 = vadd.xlane.f32.xlu0 %v5618
        %v5620 = vpop.xlane.xlu0 %5619
        %v5621 = vsel %vm4589, %v5529, 0.0
        %5622 = vadd.xlane.f32.xlu0 %v5621
        %v5623 = vpop.xlane.xlu0 %5622
        %v5624 = vsel %vm4589, %v5531, 0.0
        %5625 = vadd.xlane.f32.xlu0 %v5624
        %v5626 = vpop.xlane.xlu0 %5625
        %v5627 = vsel %vm4589, %v5533, 0.0
        %5628 = vadd.xlane.f32.xlu0 %v5627
        %v5629 = vpop.xlane.xlu0 %5628
        %v5630 = vrcp.pop %v5536
        %v5631 = vrcp.pop %v5539
        %v5632 = vrcp.pop %v5542
        %v5633 = vrcp.pop %v5545
        %v5634 = vrcp.pop %v5548
        %v5635 = vrcp.pop %v5551
        %v5636 = vrcp.pop %v5554
        %v5637 = vrcp.pop %v5557
        %v5638 = vrcp.pop %v5560
        %v5639 = vrcp.pop %v5563
        %v5640 = vrcp.pop %v5566
        %v5641 = vrcp.pop %v5569
        %v5642 = vrcp.pop %v5572
        %v5643 = vrcp.pop %v5575
        %v5644 = vrcp.pop %v5578
        %v5645 = vrcp.pop %v5581
        %v5646 = vrcp.pop %v5584
        %v5647 = vrcp.pop %v5587
        %v5648 = vrcp.pop %v5590
        %v5649 = vrcp.pop %v5593
        %v5650 = vrcp.pop %v5596
        %v5651 = vrcp.pop %v5599
        %v5652 = vrcp.pop %v5602
        %v5653 = vrcp.pop %v5605
        %v5654 = vrcp.pop %v5608
        %v5655 = vrcp.pop %v5611
        %v5656 = vrcp.pop %v5614
        %v5657 = vrcp.pop %v5617
        %v5658 = vrcp.pop %v5620
        %v5659 = vrcp.pop %v5623
        %v5660 = vrcp.pop %v5626
        %v5661 = vrcp.pop %v5629
        %v5662 = vmul.f32 %v5471, %v5630
        %v5663 = vmul.f32 %v5473, %v5631
        %v5664 = vmul.f32 %v5475, %v5632
        %v5665 = vmul.f32 %v5477, %v5633
        %v5666 = vmul.f32 %v5479, %v5634
        %v5667 = vmul.f32 %v5481, %v5635
        %v5668 = vmul.f32 %v5483, %v5636
        %v5669 = vmul.f32 %v5485, %v5637
        %v5670 = vmul.f32 %v5487, %v5638
        %v5671 = vmul.f32 %v5489, %v5639
        %v5672 = vmul.f32 %v5491, %v5640
        %v5673 = vmul.f32 %v5493, %v5641
        %v5674 = vmul.f32 %v5495, %v5642
        %v5675 = vmul.f32 %v5497, %v5643
        %v5676 = vmul.f32 %v5499, %v5644
        %v5677 = vmul.f32 %v5501, %v5645
        %v5678 = vmul.f32 %v5503, %v5646
        %v5679 = vmul.f32 %v5505, %v5647
        %v5680 = vmul.f32 %v5507, %v5648
        %v5681 = vmul.f32 %v5509, %v5649
        %v5682 = vmul.f32 %v5511, %v5650
        %v5683 = vmul.f32 %v5513, %v5651
        %v5684 = vmul.f32 %v5515, %v5652
        %v5685 = vmul.f32 %v5517, %v5653
        %v5686 = vmul.f32 %v5519, %v5654
        %v5687 = vmul.f32 %v5521, %v5655
        %v5688 = vmul.f32 %v5523, %v5656
        %v5689 = vmul.f32 %v5525, %v5657
        %v5690 = vmul.f32 %v5527, %v5658
        %v5691 = vmul.f32 %v5529, %v5659
        %v5692 = vmul.f32 %v5531, %v5660
        %v5693 = vmul.f32 %v5533, %v5661
        %v5694 = vpack.c.bf16 %v5663, %v5662
        %v5695 = vpack.c.bf16 %v5665, %v5664
        %v5696 = vpack.c.bf16 %v5667, %v5666
        %v5697 = vpack.c.bf16 %v5669, %v5668
        %v5698 = vpack.c.bf16 %v5671, %v5670
        %v5699 = vpack.c.bf16 %v5673, %v5672
        %v5700 = vpack.c.bf16 %v5675, %v5674
        %v5701 = vpack.c.bf16 %v5677, %v5676
        %v5702 = vpack.c.bf16 %v5679, %v5678
        %v5703 = vpack.c.bf16 %v5681, %v5680
        %v5704 = vpack.c.bf16 %v5683, %v5682
        %v5705 = vpack.c.bf16 %v5685, %v5684
        %v5706 = vpack.c.bf16 %v5687, %v5686
        %v5707 = vpack.c.bf16 %v5689, %v5688
        %v5708 = vpack.c.bf16 %v5691, %v5690
        %v5709 = vpack.c.bf16 %v5693, %v5692
        %v5711 = vsel %vm4589, %v5694, 0
        %5713 = vmatprep.subr.bf16.mxu0 0
        %5714 = vmatpush1.bf16.msra.mxu0 0
        %5715 = vmatprep.subr.bf16.mxu0 0
        %5716 = vmatpush1.bf16.msra.mxu0 0
        %5717 = vmatprep.subr.bf16.mxu0 0
        %5718 = vmatpush1.bf16.msra.mxu0 0
        %5719 = vmatprep.subr.bf16.mxu0 0
        %5720 = vmatpush1.bf16.msra.mxu0 0
        %5721 = vmatprep.subr.bf16.mxu0 0
        %5722 = vmatpush1.bf16.msra.mxu0 0
        %5723 = vmatprep.subr.bf16.mxu0 0
        %5724 = vmatpush1.bf16.msra.mxu0 0
        %5725 = vmatprep.subr.bf16.mxu0 0
        %5726 = vmatpush1.bf16.msra.mxu0 0
        %5727 = vmatprep.subr.bf16.mxu0 0
        %5728 = vmatpush1.bf16.msra.mxu0 %v4573
        %5729 = vmatprep.subr.bf16.mxu0 0
        %5730 = vmatpush2.bf16.msra.mxu0 0
        %5731 = vmatprep.subr.bf16.mxu0 0
        %5732 = vmatpush2.bf16.msra.mxu0 0
        %5733 = vmatprep.subr.bf16.mxu0 0
        %5734 = vmatpush2.bf16.msra.mxu0 0
        %5735 = vmatprep.subr.bf16.mxu0 0
        %5736 = vmatpush2.bf16.msra.mxu0 0
        %5737 = vmatprep.subr.bf16.mxu0 0
        %5738 = vmatpush2.bf16.msra.mxu0 0
        %5739 = vmatprep.subr.bf16.mxu0 0
        %5740 = vmatpush2.bf16.msra.mxu0 0
        %5741 = vmatprep.subr.bf16.mxu0 0
        %5742 = vmatpush2.bf16.msra.mxu0 0
        %5743 = vmatprep.subr.bf16.mxu0 0
        %5744 = vmatpush2.bf16.msra.mxu0 0
        %5745 = vmatprep.mubr.bf16.mxu0 0
        %5746 = vmatmul.mubr.bf16.gmra.mxu0 %v5711
        %v5747 = vpop.f32.mrf.mxu0
        %v5748 = vadd.f32 0.0, %v5747
        %v5749 = vpop.f32.mrf.mxu0
        %v5750 = vpop.f32.mrf.mxu0
        %v5751 = vadd.f32 0.0, %v5750
        %v5752 = vpop.f32.mrf.mxu0
        %5753 = vdwg.mxu0
        %v5755 = vsel %vm4589, %v5695, 0
        %5757 = vmatprep.subr.bf16.mxu0 0
        %5758 = vmatpush1.bf16.msra.mxu0 0
        %5759 = vmatprep.subr.bf16.mxu0 0
        %5760 = vmatpush1.bf16.msra.mxu0 0
        %5761 = vmatprep.subr.bf16.mxu0 0
        %5762 = vmatpush1.bf16.msra.mxu0 0
        %5763 = vmatprep.subr.bf16.mxu0 0
        %5764 = vmatpush1.bf16.msra.mxu0 0
        %5765 = vmatprep.subr.bf16.mxu0 0
        %5766 = vmatpush1.bf16.msra.mxu0 0
        %5767 = vmatprep.subr.bf16.mxu0 0
        %5768 = vmatpush1.bf16.msra.mxu0 0
        %5769 = vmatprep.subr.bf16.mxu0 0
        %5770 = vmatpush1.bf16.msra.mxu0 0
        %5771 = vmatprep.subr.bf16.mxu0 0
        %5772 = vmatpush1.bf16.msra.mxu0 %v4574
        %5773 = vmatprep.subr.bf16.mxu0 0
        %5774 = vmatpush2.bf16.msra.mxu0 0
        %5775 = vmatprep.subr.bf16.mxu0 0
        %5776 = vmatpush2.bf16.msra.mxu0 0
        %5777 = vmatprep.subr.bf16.mxu0 0
        %5778 = vmatpush2.bf16.msra.mxu0 0
        %5779 = vmatprep.subr.bf16.mxu0 0
        %5780 = vmatpush2.bf16.msra.mxu0 0
        %5781 = vmatprep.subr.bf16.mxu0 0
        %5782 = vmatpush2.bf16.msra.mxu0 0
        %5783 = vmatprep.subr.bf16.mxu0 0
        %5784 = vmatpush2.bf16.msra.mxu0 0
        %5785 = vmatprep.subr.bf16.mxu0 0
        %5786 = vmatpush2.bf16.msra.mxu0 0
        %5787 = vmatprep.subr.bf16.mxu0 0
        %5788 = vmatpush2.bf16.msra.mxu0 0
        %5789 = vmatprep.mubr.bf16.mxu0 0
        %5790 = vmatmul.mubr.bf16.gmra.mxu0 %v5755
        %v5791 = vpop.f32.mrf.mxu0
        %v5792 = vadd.f32 0.0, %v5791
        %v5793 = vpop.f32.mrf.mxu0
        %v5794 = vpop.f32.mrf.mxu0
        %v5795 = vadd.f32 0.0, %v5794
        %v5796 = vpop.f32.mrf.mxu0
        %5797 = vdwg.mxu0
        %v5799 = vsel %vm4589, %v5696, 0
        %5801 = vmatprep.subr.bf16.mxu0 0
        %5802 = vmatpush1.bf16.msra.mxu0 0
        %5803 = vmatprep.subr.bf16.mxu0 0
        %5804 = vmatpush1.bf16.msra.mxu0 0
        %5805 = vmatprep.subr.bf16.mxu0 0
        %5806 = vmatpush1.bf16.msra.mxu0 0
        %5807 = vmatprep.subr.bf16.mxu0 0
        %5808 = vmatpush1.bf16.msra.mxu0 0
        %5809 = vmatprep.subr.bf16.mxu0 0
        %5810 = vmatpush1.bf16.msra.mxu0 0
        %5811 = vmatprep.subr.bf16.mxu0 0
        %5812 = vmatpush1.bf16.msra.mxu0 0
        %5813 = vmatprep.subr.bf16.mxu0 0
        %5814 = vmatpush1.bf16.msra.mxu0 0
        %5815 = vmatprep.subr.bf16.mxu0 0
        %5816 = vmatpush1.bf16.msra.mxu0 %v4575
        %5817 = vmatprep.subr.bf16.mxu0 0
        %5818 = vmatpush2.bf16.msra.mxu0 0
        %5819 = vmatprep.subr.bf16.mxu0 0
        %5820 = vmatpush2.bf16.msra.mxu0 0
        %5821 = vmatprep.subr.bf16.mxu0 0
        %5822 = vmatpush2.bf16.msra.mxu0 0
        %5823 = vmatprep.subr.bf16.mxu0 0
        %5824 = vmatpush2.bf16.msra.mxu0 0
        %5825 = vmatprep.subr.bf16.mxu0 0
        %5826 = vmatpush2.bf16.msra.mxu0 0
        %5827 = vmatprep.subr.bf16.mxu0 0
        %5828 = vmatpush2.bf16.msra.mxu0 0
        %5829 = vmatprep.subr.bf16.mxu0 0
        %5830 = vmatpush2.bf16.msra.mxu0 0
        %5831 = vmatprep.subr.bf16.mxu0 0
        %5832 = vmatpush2.bf16.msra.mxu0 0
        %5833 = vmatprep.mubr.bf16.mxu0 0
        %5834 = vmatmul.mubr.bf16.gmra.mxu0 %v5799
        %v5835 = vpop.f32.mrf.mxu0
        %v5836 = vadd.f32 0.0, %v5835
        %v5837 = vpop.f32.mrf.mxu0
        %v5838 = vpop.f32.mrf.mxu0
        %v5839 = vadd.f32 0.0, %v5838
        %v5840 = vpop.f32.mrf.mxu0
        %5841 = vdwg.mxu0
        %v5843 = vsel %vm4589, %v5697, 0
        %5845 = vmatprep.subr.bf16.mxu0 0
        %5846 = vmatpush1.bf16.msra.mxu0 0
        %5847 = vmatprep.subr.bf16.mxu0 0
        %5848 = vmatpush1.bf16.msra.mxu0 0
        %5849 = vmatprep.subr.bf16.mxu0 0
        %5850 = vmatpush1.bf16.msra.mxu0 0
        %5851 = vmatprep.subr.bf16.mxu0 0
        %5852 = vmatpush1.bf16.msra.mxu0 0
        %5853 = vmatprep.subr.bf16.mxu0 0
        %5854 = vmatpush1.bf16.msra.mxu0 0
        %5855 = vmatprep.subr.bf16.mxu0 0
        %5856 = vmatpush1.bf16.msra.mxu0 0
        %5857 = vmatprep.subr.bf16.mxu0 0
        %5858 = vmatpush1.bf16.msra.mxu0 0
        %5859 = vmatprep.subr.bf16.mxu0 0
        %5860 = vmatpush1.bf16.msra.mxu0 %v4576
        %5861 = vmatprep.subr.bf16.mxu0 0
        %5862 = vmatpush2.bf16.msra.mxu0 0
        %5863 = vmatprep.subr.bf16.mxu0 0
        %5864 = vmatpush2.bf16.msra.mxu0 0
        %5865 = vmatprep.subr.bf16.mxu0 0
        %5866 = vmatpush2.bf16.msra.mxu0 0
        %5867 = vmatprep.subr.bf16.mxu0 0
        %5868 = vmatpush2.bf16.msra.mxu0 0
        %5869 = vmatprep.subr.bf16.mxu0 0
        %5870 = vmatpush2.bf16.msra.mxu0 0
        %5871 = vmatprep.subr.bf16.mxu0 0
        %5872 = vmatpush2.bf16.msra.mxu0 0
        %5873 = vmatprep.subr.bf16.mxu0 0
        %5874 = vmatpush2.bf16.msra.mxu0 0
        %5875 = vmatprep.subr.bf16.mxu0 0
        %5876 = vmatpush2.bf16.msra.mxu0 0
        %5877 = vmatprep.mubr.bf16.mxu0 0
        %5878 = vmatmul.mubr.bf16.gmra.mxu0 %v5843
        %v5879 = vpop.f32.mrf.mxu0
        %v5880 = vadd.f32 0.0, %v5879
        %v5881 = vpop.f32.mrf.mxu0
        %v5882 = vpop.f32.mrf.mxu0
        %v5883 = vadd.f32 0.0, %v5882
        %v5884 = vpop.f32.mrf.mxu0
        %5885 = vdwg.mxu0
        %v5887 = vsel %vm4589, %v5698, 0
        %5889 = vmatprep.subr.bf16.mxu0 0
        %5890 = vmatpush1.bf16.msra.mxu0 0
        %5891 = vmatprep.subr.bf16.mxu0 0
        %5892 = vmatpush1.bf16.msra.mxu0 0
        %5893 = vmatprep.subr.bf16.mxu0 0
        %5894 = vmatpush1.bf16.msra.mxu0 0
        %5895 = vmatprep.subr.bf16.mxu0 0
        %5896 = vmatpush1.bf16.msra.mxu0 0
        %5897 = vmatprep.subr.bf16.mxu0 0
        %5898 = vmatpush1.bf16.msra.mxu0 0
        %5899 = vmatprep.subr.bf16.mxu0 0
        %5900 = vmatpush1.bf16.msra.mxu0 0
        %5901 = vmatprep.subr.bf16.mxu0 0
        %5902 = vmatpush1.bf16.msra.mxu0 0
        %5903 = vmatprep.subr.bf16.mxu0 0
        %5904 = vmatpush1.bf16.msra.mxu0 %v4577
        %5905 = vmatprep.subr.bf16.mxu0 0
        %5906 = vmatpush2.bf16.msra.mxu0 0
        %5907 = vmatprep.subr.bf16.mxu0 0
        %5908 = vmatpush2.bf16.msra.mxu0 0
        %5909 = vmatprep.subr.bf16.mxu0 0
        %5910 = vmatpush2.bf16.msra.mxu0 0
        %5911 = vmatprep.subr.bf16.mxu0 0
        %5912 = vmatpush2.bf16.msra.mxu0 0
        %5913 = vmatprep.subr.bf16.mxu0 0
        %5914 = vmatpush2.bf16.msra.mxu0 0
        %5915 = vmatprep.subr.bf16.mxu0 0
        %5916 = vmatpush2.bf16.msra.mxu0 0
        %5917 = vmatprep.subr.bf16.mxu0 0
        %5918 = vmatpush2.bf16.msra.mxu0 0
        %5919 = vmatprep.subr.bf16.mxu0 0
        %5920 = vmatpush2.bf16.msra.mxu0 0
        %5921 = vmatprep.mubr.bf16.mxu0 0
        %5922 = vmatmul.mubr.bf16.gmra.mxu0 %v5887
        %v5923 = vpop.f32.mrf.mxu0
        %v5924 = vadd.f32 0.0, %v5923
        %v5925 = vpop.f32.mrf.mxu0
        %v5926 = vpop.f32.mrf.mxu0
        %v5927 = vadd.f32 0.0, %v5926
        %v5928 = vpop.f32.mrf.mxu0
        %5929 = vdwg.mxu0
        %v5931 = vsel %vm4589, %v5699, 0
        %5933 = vmatprep.subr.bf16.mxu0 0
        %5934 = vmatpush1.bf16.msra.mxu0 0
        %5935 = vmatprep.subr.bf16.mxu0 0
        %5936 = vmatpush1.bf16.msra.mxu0 0
        %5937 = vmatprep.subr.bf16.mxu0 0
        %5938 = vmatpush1.bf16.msra.mxu0 0
        %5939 = vmatprep.subr.bf16.mxu0 0
        %5940 = vmatpush1.bf16.msra.mxu0 0
        %5941 = vmatprep.subr.bf16.mxu0 0
        %5942 = vmatpush1.bf16.msra.mxu0 0
        %5943 = vmatprep.subr.bf16.mxu0 0
        %5944 = vmatpush1.bf16.msra.mxu0 0
        %5945 = vmatprep.subr.bf16.mxu0 0
        %5946 = vmatpush1.bf16.msra.mxu0 0
        %5947 = vmatprep.subr.bf16.mxu0 0
        %5948 = vmatpush1.bf16.msra.mxu0 %v4578
        %5949 = vmatprep.subr.bf16.mxu0 0
        %5950 = vmatpush2.bf16.msra.mxu0 0
        %5951 = vmatprep.subr.bf16.mxu0 0
        %5952 = vmatpush2.bf16.msra.mxu0 0
        %5953 = vmatprep.subr.bf16.mxu0 0
        %5954 = vmatpush2.bf16.msra.mxu0 0
        %5955 = vmatprep.subr.bf16.mxu0 0
        %5956 = vmatpush2.bf16.msra.mxu0 0
        %5957 = vmatprep.subr.bf16.mxu0 0
        %5958 = vmatpush2.bf16.msra.mxu0 0
        %5959 = vmatprep.subr.bf16.mxu0 0
        %5960 = vmatpush2.bf16.msra.mxu0 0
        %5961 = vmatprep.subr.bf16.mxu0 0
        %5962 = vmatpush2.bf16.msra.mxu0 0
        %5963 = vmatprep.subr.bf16.mxu0 0
        %5964 = vmatpush2.bf16.msra.mxu0 0
        %5965 = vmatprep.mubr.bf16.mxu0 0
        %5966 = vmatmul.mubr.bf16.gmra.mxu0 %v5931
        %v5967 = vpop.f32.mrf.mxu0
        %v5968 = vadd.f32 0.0, %v5967
        %v5969 = vpop.f32.mrf.mxu0
        %v5970 = vpop.f32.mrf.mxu0
        %v5971 = vadd.f32 0.0, %v5970
        %v5972 = vpop.f32.mrf.mxu0
        %5973 = vdwg.mxu0
        %v5975 = vsel %vm4589, %v5700, 0
        %5977 = vmatprep.subr.bf16.mxu0 0
        %5978 = vmatpush1.bf16.msra.mxu0 0
        %5979 = vmatprep.subr.bf16.mxu0 0
        %5980 = vmatpush1.bf16.msra.mxu0 0
        %5981 = vmatprep.subr.bf16.mxu0 0
        %5982 = vmatpush1.bf16.msra.mxu0 0
        %5983 = vmatprep.subr.bf16.mxu0 0
        %5984 = vmatpush1.bf16.msra.mxu0 0
        %5985 = vmatprep.subr.bf16.mxu0 0
        %5986 = vmatpush1.bf16.msra.mxu0 0
        %5987 = vmatprep.subr.bf16.mxu0 0
        %5988 = vmatpush1.bf16.msra.mxu0 0
        %5989 = vmatprep.subr.bf16.mxu0 0
        %5990 = vmatpush1.bf16.msra.mxu0 0
        %5991 = vmatprep.subr.bf16.mxu0 0
        %5992 = vmatpush1.bf16.msra.mxu0 %v4579
        %5993 = vmatprep.subr.bf16.mxu0 0
        %5994 = vmatpush2.bf16.msra.mxu0 0
        %5995 = vmatprep.subr.bf16.mxu0 0
        %5996 = vmatpush2.bf16.msra.mxu0 0
        %5997 = vmatprep.subr.bf16.mxu0 0
        %5998 = vmatpush2.bf16.msra.mxu0 0
        %5999 = vmatprep.subr.bf16.mxu0 0
        %6000 = vmatpush2.bf16.msra.mxu0 0
        %6001 = vmatprep.subr.bf16.mxu0 0
        %6002 = vmatpush2.bf16.msra.mxu0 0
        %6003 = vmatprep.subr.bf16.mxu0 0
        %6004 = vmatpush2.bf16.msra.mxu0 0
        %6005 = vmatprep.subr.bf16.mxu0 0
        %6006 = vmatpush2.bf16.msra.mxu0 0
        %6007 = vmatprep.subr.bf16.mxu0 0
        %6008 = vmatpush2.bf16.msra.mxu0 0
        %6009 = vmatprep.mubr.bf16.mxu0 0
        %6010 = vmatmul.mubr.bf16.gmra.mxu0 %v5975
        %v6011 = vpop.f32.mrf.mxu0
        %v6012 = vadd.f32 0.0, %v6011
        %v6013 = vpop.f32.mrf.mxu0
        %v6014 = vpop.f32.mrf.mxu0
        %v6015 = vadd.f32 0.0, %v6014
        %v6016 = vpop.f32.mrf.mxu0
        %6017 = vdwg.mxu0
        %v6019 = vsel %vm4589, %v5701, 0
        %6021 = vmatprep.subr.bf16.mxu0 0
        %6022 = vmatpush1.bf16.msra.mxu0 0
        %6023 = vmatprep.subr.bf16.mxu0 0
        %6024 = vmatpush1.bf16.msra.mxu0 0
        %6025 = vmatprep.subr.bf16.mxu0 0
        %6026 = vmatpush1.bf16.msra.mxu0 0
        %6027 = vmatprep.subr.bf16.mxu0 0
        %6028 = vmatpush1.bf16.msra.mxu0 0
        %6029 = vmatprep.subr.bf16.mxu0 0
        %6030 = vmatpush1.bf16.msra.mxu0 0
        %6031 = vmatprep.subr.bf16.mxu0 0
        %6032 = vmatpush1.bf16.msra.mxu0 0
        %6033 = vmatprep.subr.bf16.mxu0 0
        %6034 = vmatpush1.bf16.msra.mxu0 0
        %6035 = vmatprep.subr.bf16.mxu0 0
        %6036 = vmatpush1.bf16.msra.mxu0 %v4580
        %6037 = vmatprep.subr.bf16.mxu0 0
        %6038 = vmatpush2.bf16.msra.mxu0 0
        %6039 = vmatprep.subr.bf16.mxu0 0
        %6040 = vmatpush2.bf16.msra.mxu0 0
        %6041 = vmatprep.subr.bf16.mxu0 0
        %6042 = vmatpush2.bf16.msra.mxu0 0
        %6043 = vmatprep.subr.bf16.mxu0 0
        %6044 = vmatpush2.bf16.msra.mxu0 0
        %6045 = vmatprep.subr.bf16.mxu0 0
        %6046 = vmatpush2.bf16.msra.mxu0 0
        %6047 = vmatprep.subr.bf16.mxu0 0
        %6048 = vmatpush2.bf16.msra.mxu0 0
        %6049 = vmatprep.subr.bf16.mxu0 0
        %6050 = vmatpush2.bf16.msra.mxu0 0
        %6051 = vmatprep.subr.bf16.mxu0 0
        %6052 = vmatpush2.bf16.msra.mxu0 0
        %6053 = vmatprep.mubr.bf16.mxu0 0
        %6054 = vmatmul.mubr.bf16.gmra.mxu0 %v6019
        %v6055 = vpop.f32.mrf.mxu0
        %v6056 = vadd.f32 0.0, %v6055
        %v6057 = vpop.f32.mrf.mxu0
        %v6058 = vpop.f32.mrf.mxu0
        %v6059 = vadd.f32 0.0, %v6058
        %v6060 = vpop.f32.mrf.mxu0
        %6061 = vdwg.mxu0
        %v6063 = vsel %vm4589, %v5702, 0
        %6065 = vmatprep.subr.bf16.mxu0 0
        %6066 = vmatpush1.bf16.msra.mxu0 0
        %6067 = vmatprep.subr.bf16.mxu0 0
        %6068 = vmatpush1.bf16.msra.mxu0 0
        %6069 = vmatprep.subr.bf16.mxu0 0
        %6070 = vmatpush1.bf16.msra.mxu0 0
        %6071 = vmatprep.subr.bf16.mxu0 0
        %6072 = vmatpush1.bf16.msra.mxu0 0
        %6073 = vmatprep.subr.bf16.mxu0 0
        %6074 = vmatpush1.bf16.msra.mxu0 0
        %6075 = vmatprep.subr.bf16.mxu0 0
        %6076 = vmatpush1.bf16.msra.mxu0 0
        %6077 = vmatprep.subr.bf16.mxu0 0
        %6078 = vmatpush1.bf16.msra.mxu0 0
        %6079 = vmatprep.subr.bf16.mxu0 0
        %6080 = vmatpush1.bf16.msra.mxu0 %v4581
        %6081 = vmatprep.subr.bf16.mxu0 0
        %6082 = vmatpush2.bf16.msra.mxu0 0
        %6083 = vmatprep.subr.bf16.mxu0 0
        %6084 = vmatpush2.bf16.msra.mxu0 0
        %6085 = vmatprep.subr.bf16.mxu0 0
        %6086 = vmatpush2.bf16.msra.mxu0 0
        %6087 = vmatprep.subr.bf16.mxu0 0
        %6088 = vmatpush2.bf16.msra.mxu0 0
        %6089 = vmatprep.subr.bf16.mxu0 0
        %6090 = vmatpush2.bf16.msra.mxu0 0
        %6091 = vmatprep.subr.bf16.mxu0 0
        %6092 = vmatpush2.bf16.msra.mxu0 0
        %6093 = vmatprep.subr.bf16.mxu0 0
        %6094 = vmatpush2.bf16.msra.mxu0 0
        %6095 = vmatprep.subr.bf16.mxu0 0
        %6096 = vmatpush2.bf16.msra.mxu0 0
        %6097 = vmatprep.mubr.bf16.mxu0 0
        %6098 = vmatmul.mubr.bf16.gmra.mxu0 %v6063
        %v6099 = vpop.f32.mrf.mxu0
        %v6100 = vadd.f32 0.0, %v6099
        %v6101 = vpop.f32.mrf.mxu0
        %v6102 = vpop.f32.mrf.mxu0
        %v6103 = vadd.f32 0.0, %v6102
        %v6104 = vpop.f32.mrf.mxu0
        %6105 = vdwg.mxu0
        %v6107 = vsel %vm4589, %v5703, 0
        %6109 = vmatprep.subr.bf16.mxu0 0
        %6110 = vmatpush1.bf16.msra.mxu0 0
        %6111 = vmatprep.subr.bf16.mxu0 0
        %6112 = vmatpush1.bf16.msra.mxu0 0
        %6113 = vmatprep.subr.bf16.mxu0 0
        %6114 = vmatpush1.bf16.msra.mxu0 0
        %6115 = vmatprep.subr.bf16.mxu0 0
        %6116 = vmatpush1.bf16.msra.mxu0 0
        %6117 = vmatprep.subr.bf16.mxu0 0
        %6118 = vmatpush1.bf16.msra.mxu0 0
        %6119 = vmatprep.subr.bf16.mxu0 0
        %6120 = vmatpush1.bf16.msra.mxu0 0
        %6121 = vmatprep.subr.bf16.mxu0 0
        %6122 = vmatpush1.bf16.msra.mxu0 0
        %6123 = vmatprep.subr.bf16.mxu0 0
        %6124 = vmatpush1.bf16.msra.mxu0 %v4582
        %6125 = vmatprep.subr.bf16.mxu0 0
        %6126 = vmatpush2.bf16.msra.mxu0 0
        %6127 = vmatprep.subr.bf16.mxu0 0
        %6128 = vmatpush2.bf16.msra.mxu0 0
        %6129 = vmatprep.subr.bf16.mxu0 0
        %6130 = vmatpush2.bf16.msra.mxu0 0
        %6131 = vmatprep.subr.bf16.mxu0 0
        %6132 = vmatpush2.bf16.msra.mxu0 0
        %6133 = vmatprep.subr.bf16.mxu0 0
        %6134 = vmatpush2.bf16.msra.mxu0 0
        %6135 = vmatprep.subr.bf16.mxu0 0
        %6136 = vmatpush2.bf16.msra.mxu0 0
        %6137 = vmatprep.subr.bf16.mxu0 0
        %6138 = vmatpush2.bf16.msra.mxu0 0
        %6139 = vmatprep.subr.bf16.mxu0 0
        %6140 = vmatpush2.bf16.msra.mxu0 0
        %6141 = vmatprep.mubr.bf16.mxu0 0
        %6142 = vmatmul.mubr.bf16.gmra.mxu0 %v6107
        %v6143 = vpop.f32.mrf.mxu0
        %v6144 = vadd.f32 0.0, %v6143
        %v6145 = vpop.f32.mrf.mxu0
        %v6146 = vpop.f32.mrf.mxu0
        %v6147 = vadd.f32 0.0, %v6146
        %v6148 = vpop.f32.mrf.mxu0
        %6149 = vdwg.mxu0
        %v6151 = vsel %vm4589, %v5704, 0
        %6153 = vmatprep.subr.bf16.mxu0 0
        %6154 = vmatpush1.bf16.msra.mxu0 0
        %6155 = vmatprep.subr.bf16.mxu0 0
        %6156 = vmatpush1.bf16.msra.mxu0 0
        %6157 = vmatprep.subr.bf16.mxu0 0
        %6158 = vmatpush1.bf16.msra.mxu0 0
        %6159 = vmatprep.subr.bf16.mxu0 0
        %6160 = vmatpush1.bf16.msra.mxu0 0
        %6161 = vmatprep.subr.bf16.mxu0 0
        %6162 = vmatpush1.bf16.msra.mxu0 0
        %6163 = vmatprep.subr.bf16.mxu0 0
        %6164 = vmatpush1.bf16.msra.mxu0 0
        %6165 = vmatprep.subr.bf16.mxu0 0
        %6166 = vmatpush1.bf16.msra.mxu0 0
        %6167 = vmatprep.subr.bf16.mxu0 0
        %6168 = vmatpush1.bf16.msra.mxu0 %v4583
        %6169 = vmatprep.subr.bf16.mxu0 0
        %6170 = vmatpush2.bf16.msra.mxu0 0
        %6171 = vmatprep.subr.bf16.mxu0 0
        %6172 = vmatpush2.bf16.msra.mxu0 0
        %6173 = vmatprep.subr.bf16.mxu0 0
        %6174 = vmatpush2.bf16.msra.mxu0 0
        %6175 = vmatprep.subr.bf16.mxu0 0
        %6176 = vmatpush2.bf16.msra.mxu0 0
        %6177 = vmatprep.subr.bf16.mxu0 0
        %6178 = vmatpush2.bf16.msra.mxu0 0
        %6179 = vmatprep.subr.bf16.mxu0 0
        %6180 = vmatpush2.bf16.msra.mxu0 0
        %6181 = vmatprep.subr.bf16.mxu0 0
        %6182 = vmatpush2.bf16.msra.mxu0 0
        %6183 = vmatprep.subr.bf16.mxu0 0
        %6184 = vmatpush2.bf16.msra.mxu0 0
        %6185 = vmatprep.mubr.bf16.mxu0 0
        %6186 = vmatmul.mubr.bf16.gmra.mxu0 %v6151
        %v6187 = vpop.f32.mrf.mxu0
        %v6188 = vadd.f32 0.0, %v6187
        %v6189 = vpop.f32.mrf.mxu0
        %v6190 = vpop.f32.mrf.mxu0
        %v6191 = vadd.f32 0.0, %v6190
        %v6192 = vpop.f32.mrf.mxu0
        %6193 = vdwg.mxu0
        %v6195 = vsel %vm4589, %v5705, 0
        %6197 = vmatprep.subr.bf16.mxu0 0
        %6198 = vmatpush1.bf16.msra.mxu0 0
        %6199 = vmatprep.subr.bf16.mxu0 0
        %6200 = vmatpush1.bf16.msra.mxu0 0
        %6201 = vmatprep.subr.bf16.mxu0 0
        %6202 = vmatpush1.bf16.msra.mxu0 0
        %6203 = vmatprep.subr.bf16.mxu0 0
        %6204 = vmatpush1.bf16.msra.mxu0 0
        %6205 = vmatprep.subr.bf16.mxu0 0
        %6206 = vmatpush1.bf16.msra.mxu0 0
        %6207 = vmatprep.subr.bf16.mxu0 0
        %6208 = vmatpush1.bf16.msra.mxu0 0
        %6209 = vmatprep.subr.bf16.mxu0 0
        %6210 = vmatpush1.bf16.msra.mxu0 0
        %6211 = vmatprep.subr.bf16.mxu0 0
        %6212 = vmatpush1.bf16.msra.mxu0 %v4584
        %6213 = vmatprep.subr.bf16.mxu0 0
        %6214 = vmatpush2.bf16.msra.mxu0 0
        %6215 = vmatprep.subr.bf16.mxu0 0
        %6216 = vmatpush2.bf16.msra.mxu0 0
        %6217 = vmatprep.subr.bf16.mxu0 0
        %6218 = vmatpush2.bf16.msra.mxu0 0
        %6219 = vmatprep.subr.bf16.mxu0 0
        %6220 = vmatpush2.bf16.msra.mxu0 0
        %6221 = vmatprep.subr.bf16.mxu0 0
        %6222 = vmatpush2.bf16.msra.mxu0 0
        %6223 = vmatprep.subr.bf16.mxu0 0
        %6224 = vmatpush2.bf16.msra.mxu0 0
        %6225 = vmatprep.subr.bf16.mxu0 0
        %6226 = vmatpush2.bf16.msra.mxu0 0
        %6227 = vmatprep.subr.bf16.mxu0 0
        %6228 = vmatpush2.bf16.msra.mxu0 0
        %6229 = vmatprep.mubr.bf16.mxu0 0
        %6230 = vmatmul.mubr.bf16.gmra.mxu0 %v6195
        %v6231 = vpop.f32.mrf.mxu0
        %v6232 = vadd.f32 0.0, %v6231
        %v6233 = vpop.f32.mrf.mxu0
        %v6234 = vpop.f32.mrf.mxu0
        %v6235 = vadd.f32 0.0, %v6234
        %v6236 = vpop.f32.mrf.mxu0
        %6237 = vdwg.mxu0
        %v6239 = vsel %vm4589, %v5706, 0
        %6241 = vmatprep.subr.bf16.mxu0 0
        %6242 = vmatpush1.bf16.msra.mxu0 0
        %6243 = vmatprep.subr.bf16.mxu0 0
        %6244 = vmatpush1.bf16.msra.mxu0 0
        %6245 = vmatprep.subr.bf16.mxu0 0
        %6246 = vmatpush1.bf16.msra.mxu0 0
        %6247 = vmatprep.subr.bf16.mxu0 0
        %6248 = vmatpush1.bf16.msra.mxu0 0
        %6249 = vmatprep.subr.bf16.mxu0 0
        %6250 = vmatpush1.bf16.msra.mxu0 0
        %6251 = vmatprep.subr.bf16.mxu0 0
        %6252 = vmatpush1.bf16.msra.mxu0 0
        %6253 = vmatprep.subr.bf16.mxu0 0
        %6254 = vmatpush1.bf16.msra.mxu0 0
        %6255 = vmatprep.subr.bf16.mxu0 0
        %6256 = vmatpush1.bf16.msra.mxu0 %v4585
        %6257 = vmatprep.subr.bf16.mxu0 0
        %6258 = vmatpush2.bf16.msra.mxu0 0
        %6259 = vmatprep.subr.bf16.mxu0 0
        %6260 = vmatpush2.bf16.msra.mxu0 0
        %6261 = vmatprep.subr.bf16.mxu0 0
        %6262 = vmatpush2.bf16.msra.mxu0 0
        %6263 = vmatprep.subr.bf16.mxu0 0
        %6264 = vmatpush2.bf16.msra.mxu0 0
        %6265 = vmatprep.subr.bf16.mxu0 0
        %6266 = vmatpush2.bf16.msra.mxu0 0
        %6267 = vmatprep.subr.bf16.mxu0 0
        %6268 = vmatpush2.bf16.msra.mxu0 0
        %6269 = vmatprep.subr.bf16.mxu0 0
        %6270 = vmatpush2.bf16.msra.mxu0 0
        %6271 = vmatprep.subr.bf16.mxu0 0
        %6272 = vmatpush2.bf16.msra.mxu0 0
        %6273 = vmatprep.mubr.bf16.mxu0 0
        %6274 = vmatmul.mubr.bf16.gmra.mxu0 %v6239
        %v6275 = vpop.f32.mrf.mxu0
        %v6276 = vadd.f32 0.0, %v6275
        %v6277 = vpop.f32.mrf.mxu0
        %v6278 = vpop.f32.mrf.mxu0
        %v6279 = vadd.f32 0.0, %v6278
        %v6280 = vpop.f32.mrf.mxu0
        %6281 = vdwg.mxu0
        %v6283 = vsel %vm4589, %v5707, 0
        %6285 = vmatprep.subr.bf16.mxu0 0
        %6286 = vmatpush1.bf16.msra.mxu0 0
        %6287 = vmatprep.subr.bf16.mxu0 0
        %6288 = vmatpush1.bf16.msra.mxu0 0
        %6289 = vmatprep.subr.bf16.mxu0 0
        %6290 = vmatpush1.bf16.msra.mxu0 0
        %6291 = vmatprep.subr.bf16.mxu0 0
        %6292 = vmatpush1.bf16.msra.mxu0 0
        %6293 = vmatprep.subr.bf16.mxu0 0
        %6294 = vmatpush1.bf16.msra.mxu0 0
        %6295 = vmatprep.subr.bf16.mxu0 0
        %6296 = vmatpush1.bf16.msra.mxu0 0
        %6297 = vmatprep.subr.bf16.mxu0 0
        %6298 = vmatpush1.bf16.msra.mxu0 0
        %6299 = vmatprep.subr.bf16.mxu0 0
        %6300 = vmatpush1.bf16.msra.mxu0 %v4586
        %6301 = vmatprep.subr.bf16.mxu0 0
        %6302 = vmatpush2.bf16.msra.mxu0 0
        %6303 = vmatprep.subr.bf16.mxu0 0
        %6304 = vmatpush2.bf16.msra.mxu0 0
        %6305 = vmatprep.subr.bf16.mxu0 0
        %6306 = vmatpush2.bf16.msra.mxu0 0
        %6307 = vmatprep.subr.bf16.mxu0 0
        %6308 = vmatpush2.bf16.msra.mxu0 0
        %6309 = vmatprep.subr.bf16.mxu0 0
        %6310 = vmatpush2.bf16.msra.mxu0 0
        %6311 = vmatprep.subr.bf16.mxu0 0
        %6312 = vmatpush2.bf16.msra.mxu0 0
        %6313 = vmatprep.subr.bf16.mxu0 0
        %6314 = vmatpush2.bf16.msra.mxu0 0
        %6315 = vmatprep.subr.bf16.mxu0 0
        %6316 = vmatpush2.bf16.msra.mxu0 0
        %6317 = vmatprep.mubr.bf16.mxu0 0
        %6318 = vmatmul.mubr.bf16.gmra.mxu0 %v6283
        %v6319 = vpop.f32.mrf.mxu0
        %v6320 = vadd.f32 0.0, %v6319
        %v6321 = vpop.f32.mrf.mxu0
        %v6322 = vpop.f32.mrf.mxu0
        %v6323 = vadd.f32 0.0, %v6322
        %v6324 = vpop.f32.mrf.mxu0
        %6325 = vdwg.mxu0
        %v6327 = vsel %vm4589, %v5708, 0
        %6329 = vmatprep.subr.bf16.mxu0 0
        %6330 = vmatpush1.bf16.msra.mxu0 0
        %6331 = vmatprep.subr.bf16.mxu0 0
        %6332 = vmatpush1.bf16.msra.mxu0 0
        %6333 = vmatprep.subr.bf16.mxu0 0
        %6334 = vmatpush1.bf16.msra.mxu0 0
        %6335 = vmatprep.subr.bf16.mxu0 0
        %6336 = vmatpush1.bf16.msra.mxu0 0
        %6337 = vmatprep.subr.bf16.mxu0 0
        %6338 = vmatpush1.bf16.msra.mxu0 0
        %6339 = vmatprep.subr.bf16.mxu0 0
        %6340 = vmatpush1.bf16.msra.mxu0 0
        %6341 = vmatprep.subr.bf16.mxu0 0
        %6342 = vmatpush1.bf16.msra.mxu0 0
        %6343 = vmatprep.subr.bf16.mxu0 0
        %6344 = vmatpush1.bf16.msra.mxu0 %v4587
        %6345 = vmatprep.subr.bf16.mxu0 0
        %6346 = vmatpush2.bf16.msra.mxu0 0
        %6347 = vmatprep.subr.bf16.mxu0 0
        %6348 = vmatpush2.bf16.msra.mxu0 0
        %6349 = vmatprep.subr.bf16.mxu0 0
        %6350 = vmatpush2.bf16.msra.mxu0 0
        %6351 = vmatprep.subr.bf16.mxu0 0
        %6352 = vmatpush2.bf16.msra.mxu0 0
        %6353 = vmatprep.subr.bf16.mxu0 0
        %6354 = vmatpush2.bf16.msra.mxu0 0
        %6355 = vmatprep.subr.bf16.mxu0 0
        %6356 = vmatpush2.bf16.msra.mxu0 0
        %6357 = vmatprep.subr.bf16.mxu0 0
        %6358 = vmatpush2.bf16.msra.mxu0 0
        %6359 = vmatprep.subr.bf16.mxu0 0
        %6360 = vmatpush2.bf16.msra.mxu0 0
        %6361 = vmatprep.mubr.bf16.mxu0 0
        %6362 = vmatmul.mubr.bf16.gmra.mxu0 %v6327
        %v6363 = vpop.f32.mrf.mxu0
        %v6364 = vadd.f32 0.0, %v6363
        %v6365 = vpop.f32.mrf.mxu0
        %v6366 = vpop.f32.mrf.mxu0
        %v6367 = vadd.f32 0.0, %v6366
        %v6368 = vpop.f32.mrf.mxu0
        %6369 = vdwg.mxu0
        %v6371 = vsel %vm4589, %v5709, 0
        %6373 = vmatprep.subr.bf16.mxu0 0
        %6374 = vmatpush1.bf16.msra.mxu0 0
        %6375 = vmatprep.subr.bf16.mxu0 0
        %6376 = vmatpush1.bf16.msra.mxu0 0
        %6377 = vmatprep.subr.bf16.mxu0 0
        %6378 = vmatpush1.bf16.msra.mxu0 0
        %6379 = vmatprep.subr.bf16.mxu0 0
        %6380 = vmatpush1.bf16.msra.mxu0 0
        %6381 = vmatprep.subr.bf16.mxu0 0
        %6382 = vmatpush1.bf16.msra.mxu0 0
        %6383 = vmatprep.subr.bf16.mxu0 0
        %6384 = vmatpush1.bf16.msra.mxu0 0
        %6385 = vmatprep.subr.bf16.mxu0 0
        %6386 = vmatpush1.bf16.msra.mxu0 0
        %6387 = vmatprep.subr.bf16.mxu0 0
        %6388 = vmatpush1.bf16.msra.mxu0 %v4588
        %6389 = vmatprep.subr.bf16.mxu0 0
        %6390 = vmatpush2.bf16.msra.mxu0 0
        %6391 = vmatprep.subr.bf16.mxu0 0
        %6392 = vmatpush2.bf16.msra.mxu0 0
        %6393 = vmatprep.subr.bf16.mxu0 0
        %6394 = vmatpush2.bf16.msra.mxu0 0
        %6395 = vmatprep.subr.bf16.mxu0 0
        %6396 = vmatpush2.bf16.msra.mxu0 0
        %6397 = vmatprep.subr.bf16.mxu0 0
        %6398 = vmatpush2.bf16.msra.mxu0 0
        %6399 = vmatprep.subr.bf16.mxu0 0
        %6400 = vmatpush2.bf16.msra.mxu0 0
        %6401 = vmatprep.subr.bf16.mxu0 0
        %6402 = vmatpush2.bf16.msra.mxu0 0
        %6403 = vmatprep.subr.bf16.mxu0 0
        %6404 = vmatpush2.bf16.msra.mxu0 0
        %6405 = vmatprep.mubr.bf16.mxu0 0
        %6406 = vmatmul.mubr.bf16.gmra.mxu0 %v6371
        %v6407 = vpop.f32.mrf.mxu0
        %v6408 = vadd.f32 0.0, %v6407
        %v6409 = vpop.f32.mrf.mxu0
        %v6410 = vpop.f32.mrf.mxu0
        %v6411 = vadd.f32 0.0, %v6410
        %v6412 = vpop.f32.mrf.mxu0
        %6413 = vdwg.mxu0
        %v6414 = vcombine.low %v5748, %v5924
        %v6415 = vcombine.high %v5748, %v5924
        %v6417 = vunpack.c.l.s4 1983009808
        %v6418 = vunpack.c.0.s8 %v6417
        %v6419 = vlaneseq
        %v6420 = vshrl.u32 %v6419, 7
        %v6421 = vsub.s32 %v6418, %v6420
        %v6422 = vrot.slane %v6414, %v6421
        %v6424 = vunpack.c.l.s4 1983009808
        %v6425 = vunpack.c.0.s8 %v6424
        %v6426 = vlaneseq
        %v6427 = vshrl.u32 %v6426, 7
        %v6428 = vsub.s32 %v6425, %v6427
        %v6429 = vrot.slane %v6415, %v6428
        %v6430 = vcombine.low %v5836, %v6012
        %v6431 = vcombine.high %v5836, %v6012
        %v6433 = vunpack.c.l.s4 1983009808
        %v6434 = vunpack.c.0.s8 %v6433
        %v6435 = vlaneseq
        %v6436 = vshrl.u32 %v6435, 7
        %v6437 = vsub.s32 %v6434, %v6436
        %v6438 = vrot.slane %v6430, %v6437
        %v6440 = vunpack.c.l.s4 1983009808
        %v6441 = vunpack.c.0.s8 %v6440
        %v6442 = vlaneseq
        %v6443 = vshrl.u32 %v6442, 7
        %v6444 = vsub.s32 %v6441, %v6443
        %v6445 = vrot.slane %v6431, %v6444
        %v6446 = vcombine.low %v6100, %v6276
        %v6447 = vcombine.high %v6100, %v6276
        %v6449 = vunpack.c.l.s4 1983009808
        %v6450 = vunpack.c.0.s8 %v6449
        %v6451 = vlaneseq
        %v6452 = vshrl.u32 %v6451, 7
        %v6453 = vsub.s32 %v6450, %v6452
        %v6454 = vrot.slane %v6446, %v6453
        %v6456 = vunpack.c.l.s4 1983009808
        %v6457 = vunpack.c.0.s8 %v6456
        %v6458 = vlaneseq
        %v6459 = vshrl.u32 %v6458, 7
        %v6460 = vsub.s32 %v6457, %v6459
        %v6461 = vrot.slane %v6447, %v6460
        %v6462 = vcombine.low %v6188, %v6364
        %v6463 = vcombine.high %v6188, %v6364
        %v6465 = vunpack.c.l.s4 1983009808
        %v6466 = vunpack.c.0.s8 %v6465
        %v6467 = vlaneseq
        %v6468 = vshrl.u32 %v6467, 7
        %v6469 = vsub.s32 %v6466, %v6468
        %v6470 = vrot.slane %v6462, %v6469
        %v6472 = vunpack.c.l.s4 1983009808
        %v6473 = vunpack.c.0.s8 %v6472
        %v6474 = vlaneseq
        %v6475 = vshrl.u32 %v6474, 7
        %v6476 = vsub.s32 %v6473, %v6475
        %v6477 = vrot.slane %v6463, %v6476
        %v6478 = vcombine.low %v6422, %v6438
        %v6479 = vcombine.high %v6422, %v6438
        %v6481 = vunpack.c.l.s4 1934713408
        %v6482 = vunpack.c.0.s8 %v6481
        %v6483 = vlaneseq
        %v6484 = vshrl.u32 %v6483, 7
        %v6485 = vsub.s32 %v6482, %v6484
        %v6486 = vrot.slane %v6478, %v6485
        %v6488 = vunpack.c.l.s4 1934713408
        %v6489 = vunpack.c.0.s8 %v6488
        %v6490 = vlaneseq
        %v6491 = vshrl.u32 %v6490, 7
        %v6492 = vsub.s32 %v6489, %v6491
        %v6493 = vrot.slane %v6479, %v6492
        %v6494 = vcombine.low %v6429, %v6445
        %v6495 = vcombine.high %v6429, %v6445
        %v6497 = vunpack.c.l.s4 1934713408
        %v6498 = vunpack.c.0.s8 %v6497
        %v6499 = vlaneseq
        %v6500 = vshrl.u32 %v6499, 7
        %v6501 = vsub.s32 %v6498, %v6500
        %v6502 = vrot.slane %v6494, %v6501
        %v6504 = vunpack.c.l.s4 1934713408
        %v6505 = vunpack.c.0.s8 %v6504
        %v6506 = vlaneseq
        %v6507 = vshrl.u32 %v6506, 7
        %v6508 = vsub.s32 %v6505, %v6507
        %v6509 = vrot.slane %v6495, %v6508
        %v6510 = vcombine.low %v6454, %v6470
        %v6511 = vcombine.high %v6454, %v6470
        %v6513 = vunpack.c.l.s4 1934713408
        %v6514 = vunpack.c.0.s8 %v6513
        %v6515 = vlaneseq
        %v6516 = vshrl.u32 %v6515, 7
        %v6517 = vsub.s32 %v6514, %v6516
        %v6518 = vrot.slane %v6510, %v6517
        %v6520 = vunpack.c.l.s4 1934713408
        %v6521 = vunpack.c.0.s8 %v6520
        %v6522 = vlaneseq
        %v6523 = vshrl.u32 %v6522, 7
        %v6524 = vsub.s32 %v6521, %v6523
        %v6525 = vrot.slane %v6511, %v6524
        %v6526 = vcombine.low %v6461, %v6477
        %v6527 = vcombine.high %v6461, %v6477
        %v6529 = vunpack.c.l.s4 1934713408
        %v6530 = vunpack.c.0.s8 %v6529
        %v6531 = vlaneseq
        %v6532 = vshrl.u32 %v6531, 7
        %v6533 = vsub.s32 %v6530, %v6532
        %v6534 = vrot.slane %v6526, %v6533
        %v6536 = vunpack.c.l.s4 1934713408
        %v6537 = vunpack.c.0.s8 %v6536
        %v6538 = vlaneseq
        %v6539 = vshrl.u32 %v6538, 7
        %v6540 = vsub.s32 %v6537, %v6539
        %v6541 = vrot.slane %v6527, %v6540
        %v6542 = vcombine.low %v6486, %v6518
        %v6543 = vcombine.high %v6486, %v6518
        %v6544 = vcombine.low %v6493, %v6525
        %v6545 = vcombine.high %v6493, %v6525
        %v6546 = vcombine.low %v6502, %v6534
        %v6547 = vcombine.high %v6502, %v6534
        %v6548 = vcombine.low %v6509, %v6541
        %v6549 = vcombine.high %v6509, %v6541
        %v6550 = vcombine.low %v5751, %v5927
        %v6551 = vcombine.high %v5751, %v5927
        %v6553 = vunpack.c.l.s4 1983009808
        %v6554 = vunpack.c.0.s8 %v6553
        %v6555 = vlaneseq
        %v6556 = vshrl.u32 %v6555, 7
        %v6557 = vsub.s32 %v6554, %v6556
        %v6558 = vrot.slane %v6550, %v6557
        %v6560 = vunpack.c.l.s4 1983009808
        %v6561 = vunpack.c.0.s8 %v6560
        %v6562 = vlaneseq
        %v6563 = vshrl.u32 %v6562, 7
        %v6564 = vsub.s32 %v6561, %v6563
        %v6565 = vrot.slane %v6551, %v6564
        %v6566 = vcombine.low %v5839, %v6015
        %v6567 = vcombine.high %v5839, %v6015
        %v6569 = vunpack.c.l.s4 1983009808
        %v6570 = vunpack.c.0.s8 %v6569
        %v6571 = vlaneseq
        %v6572 = vshrl.u32 %v6571, 7
        %v6573 = vsub.s32 %v6570, %v6572
        %v6574 = vrot.slane %v6566, %v6573
        %v6576 = vunpack.c.l.s4 1983009808
        %v6577 = vunpack.c.0.s8 %v6576
        %v6578 = vlaneseq
        %v6579 = vshrl.u32 %v6578, 7
        %v6580 = vsub.s32 %v6577, %v6579
        %v6581 = vrot.slane %v6567, %v6580
        %v6582 = vcombine.low %v6103, %v6279
        %v6583 = vcombine.high %v6103, %v6279
        %v6585 = vunpack.c.l.s4 1983009808
        %v6586 = vunpack.c.0.s8 %v6585
        %v6587 = vlaneseq
        %v6588 = vshrl.u32 %v6587, 7
        %v6589 = vsub.s32 %v6586, %v6588
        %v6590 = vrot.slane %v6582, %v6589
        %v6592 = vunpack.c.l.s4 1983009808
        %v6593 = vunpack.c.0.s8 %v6592
        %v6594 = vlaneseq
        %v6595 = vshrl.u32 %v6594, 7
        %v6596 = vsub.s32 %v6593, %v6595
        %v6597 = vrot.slane %v6583, %v6596
        %v6598 = vcombine.low %v6191, %v6367
        %v6599 = vcombine.high %v6191, %v6367
        %v6601 = vunpack.c.l.s4 1983009808
        %v6602 = vunpack.c.0.s8 %v6601
        %v6603 = vlaneseq
        %v6604 = vshrl.u32 %v6603, 7
        %v6605 = vsub.s32 %v6602, %v6604
        %v6606 = vrot.slane %v6598, %v6605
        %v6608 = vunpack.c.l.s4 1983009808
        %v6609 = vunpack.c.0.s8 %v6608
        %v6610 = vlaneseq
        %v6611 = vshrl.u32 %v6610, 7
        %v6612 = vsub.s32 %v6609, %v6611
        %v6613 = vrot.slane %v6599, %v6612
        %v6614 = vcombine.low %v6558, %v6574
        %v6615 = vcombine.high %v6558, %v6574
        %v6617 = vunpack.c.l.s4 1934713408
        %v6618 = vunpack.c.0.s8 %v6617
        %v6619 = vlaneseq
        %v6620 = vshrl.u32 %v6619, 7
        %v6621 = vsub.s32 %v6618, %v6620
        %v6622 = vrot.slane %v6614, %v6621
        %v6624 = vunpack.c.l.s4 1934713408
        %v6625 = vunpack.c.0.s8 %v6624
        %v6626 = vlaneseq
        %v6627 = vshrl.u32 %v6626, 7
        %v6628 = vsub.s32 %v6625, %v6627
        %v6629 = vrot.slane %v6615, %v6628
        %v6630 = vcombine.low %v6565, %v6581
        %v6631 = vcombine.high %v6565, %v6581
        %v6633 = vunpack.c.l.s4 1934713408
        %v6634 = vunpack.c.0.s8 %v6633
        %v6635 = vlaneseq
        %v6636 = vshrl.u32 %v6635, 7
        %v6637 = vsub.s32 %v6634, %v6636
        %v6638 = vrot.slane %v6630, %v6637
        %v6640 = vunpack.c.l.s4 1934713408
        %v6641 = vunpack.c.0.s8 %v6640
        %v6642 = vlaneseq
        %v6643 = vshrl.u32 %v6642, 7
        %v6644 = vsub.s32 %v6641, %v6643
        %v6645 = vrot.slane %v6631, %v6644
        %v6646 = vcombine.low %v6590, %v6606
        %v6647 = vcombine.high %v6590, %v6606
        %v6649 = vunpack.c.l.s4 1934713408
        %v6650 = vunpack.c.0.s8 %v6649
        %v6651 = vlaneseq
        %v6652 = vshrl.u32 %v6651, 7
        %v6653 = vsub.s32 %v6650, %v6652
        %v6654 = vrot.slane %v6646, %v6653
        %v6656 = vunpack.c.l.s4 1934713408
        %v6657 = vunpack.c.0.s8 %v6656
        %v6658 = vlaneseq
        %v6659 = vshrl.u32 %v6658, 7
        %v6660 = vsub.s32 %v6657, %v6659
        %v6661 = vrot.slane %v6647, %v6660
        %v6662 = vcombine.low %v6597, %v6613
        %v6663 = vcombine.high %v6597, %v6613
        %v6665 = vunpack.c.l.s4 1934713408
        %v6666 = vunpack.c.0.s8 %v6665
        %v6667 = vlaneseq
        %v6668 = vshrl.u32 %v6667, 7
        %v6669 = vsub.s32 %v6666, %v6668
        %v6670 = vrot.slane %v6662, %v6669
        %v6672 = vunpack.c.l.s4 1934713408
        %v6673 = vunpack.c.0.s8 %v6672
        %v6674 = vlaneseq
        %v6675 = vshrl.u32 %v6674, 7
        %v6676 = vsub.s32 %v6673, %v6675
        %v6677 = vrot.slane %v6663, %v6676
        %v6678 = vcombine.low %v6622, %v6654
        %v6679 = vcombine.high %v6622, %v6654
        %v6680 = vcombine.low %v6629, %v6661
        %v6681 = vcombine.high %v6629, %v6661
        %v6682 = vcombine.low %v6638, %v6670
        %v6683 = vcombine.high %v6638, %v6670
        %v6684 = vcombine.low %v6645, %v6677
        %v6685 = vcombine.high %v6645, %v6677
        %v6686 = vcombine.low %v5792, %v5968
        %v6687 = vcombine.high %v5792, %v5968
        %v6689 = vunpack.c.l.s4 1983009808
        %v6690 = vunpack.c.0.s8 %v6689
        %v6691 = vlaneseq
        %v6692 = vshrl.u32 %v6691, 7
        %v6693 = vsub.s32 %v6690, %v6692
        %v6694 = vrot.slane %v6686, %v6693
        %v6696 = vunpack.c.l.s4 1983009808
        %v6697 = vunpack.c.0.s8 %v6696
        %v6698 = vlaneseq
        %v6699 = vshrl.u32 %v6698, 7
        %v6700 = vsub.s32 %v6697, %v6699
        %v6701 = vrot.slane %v6687, %v6700
        %v6702 = vcombine.low %v5880, %v6056
        %v6703 = vcombine.high %v5880, %v6056
        %v6705 = vunpack.c.l.s4 1983009808
        %v6706 = vunpack.c.0.s8 %v6705
        %v6707 = vlaneseq
        %v6708 = vshrl.u32 %v6707, 7
        %v6709 = vsub.s32 %v6706, %v6708
        %v6710 = vrot.slane %v6702, %v6709
        %v6712 = vunpack.c.l.s4 1983009808
        %v6713 = vunpack.c.0.s8 %v6712
        %v6714 = vlaneseq
        %v6715 = vshrl.u32 %v6714, 7
        %v6716 = vsub.s32 %v6713, %v6715
        %v6717 = vrot.slane %v6703, %v6716
        %v6718 = vcombine.low %v6144, %v6320
        %v6719 = vcombine.high %v6144, %v6320
        %v6721 = vunpack.c.l.s4 1983009808
        %v6722 = vunpack.c.0.s8 %v6721
        %v6723 = vlaneseq
        %v6724 = vshrl.u32 %v6723, 7
        %v6725 = vsub.s32 %v6722, %v6724
        %v6726 = vrot.slane %v6718, %v6725
        %v6728 = vunpack.c.l.s4 1983009808
        %v6729 = vunpack.c.0.s8 %v6728
        %v6730 = vlaneseq
        %v6731 = vshrl.u32 %v6730, 7
        %v6732 = vsub.s32 %v6729, %v6731
        %v6733 = vrot.slane %v6719, %v6732
        %v6734 = vcombine.low %v6232, %v6408
        %v6735 = vcombine.high %v6232, %v6408
        %v6737 = vunpack.c.l.s4 1983009808
        %v6738 = vunpack.c.0.s8 %v6737
        %v6739 = vlaneseq
        %v6740 = vshrl.u32 %v6739, 7
        %v6741 = vsub.s32 %v6738, %v6740
        %v6742 = vrot.slane %v6734, %v6741
        %v6744 = vunpack.c.l.s4 1983009808
        %v6745 = vunpack.c.0.s8 %v6744
        %v6746 = vlaneseq
        %v6747 = vshrl.u32 %v6746, 7
        %v6748 = vsub.s32 %v6745, %v6747
        %v6749 = vrot.slane %v6735, %v6748
        %v6750 = vcombine.low %v6694, %v6710
        %v6751 = vcombine.high %v6694, %v6710
        %v6753 = vunpack.c.l.s4 1934713408
        %v6754 = vunpack.c.0.s8 %v6753
        %v6755 = vlaneseq
        %v6756 = vshrl.u32 %v6755, 7
        %v6757 = vsub.s32 %v6754, %v6756
        %v6758 = vrot.slane %v6750, %v6757
        %v6760 = vunpack.c.l.s4 1934713408
        %v6761 = vunpack.c.0.s8 %v6760
        %v6762 = vlaneseq
        %v6763 = vshrl.u32 %v6762, 7
        %v6764 = vsub.s32 %v6761, %v6763
        %v6765 = vrot.slane %v6751, %v6764
        %v6766 = vcombine.low %v6701, %v6717
        %v6767 = vcombine.high %v6701, %v6717
        %v6769 = vunpack.c.l.s4 1934713408
        %v6770 = vunpack.c.0.s8 %v6769
        %v6771 = vlaneseq
        %v6772 = vshrl.u32 %v6771, 7
        %v6773 = vsub.s32 %v6770, %v6772
        %v6774 = vrot.slane %v6766, %v6773
        %v6776 = vunpack.c.l.s4 1934713408
        %v6777 = vunpack.c.0.s8 %v6776
        %v6778 = vlaneseq
        %v6779 = vshrl.u32 %v6778, 7
        %v6780 = vsub.s32 %v6777, %v6779
        %v6781 = vrot.slane %v6767, %v6780
        %v6782 = vcombine.low %v6726, %v6742
        %v6783 = vcombine.high %v6726, %v6742
        %v6785 = vunpack.c.l.s4 1934713408
        %v6786 = vunpack.c.0.s8 %v6785
        %v6787 = vlaneseq
        %v6788 = vshrl.u32 %v6787, 7
        %v6789 = vsub.s32 %v6786, %v6788
        %v6790 = vrot.slane %v6782, %v6789
        %v6792 = vunpack.c.l.s4 1934713408
        %v6793 = vunpack.c.0.s8 %v6792
        %v6794 = vlaneseq
        %v6795 = vshrl.u32 %v6794, 7
        %v6796 = vsub.s32 %v6793, %v6795
        %v6797 = vrot.slane %v6783, %v6796
        %v6798 = vcombine.low %v6733, %v6749
        %v6799 = vcombine.high %v6733, %v6749
        %v6801 = vunpack.c.l.s4 1934713408
        %v6802 = vunpack.c.0.s8 %v6801
        %v6803 = vlaneseq
        %v6804 = vshrl.u32 %v6803, 7
        %v6805 = vsub.s32 %v6802, %v6804
        %v6806 = vrot.slane %v6798, %v6805
        %v6808 = vunpack.c.l.s4 1934713408
        %v6809 = vunpack.c.0.s8 %v6808
        %v6810 = vlaneseq
        %v6811 = vshrl.u32 %v6810, 7
        %v6812 = vsub.s32 %v6809, %v6811
        %v6813 = vrot.slane %v6799, %v6812
        %v6814 = vcombine.low %v6758, %v6790
        %v6815 = vcombine.high %v6758, %v6790
        %v6816 = vcombine.low %v6765, %v6797
        %v6817 = vcombine.high %v6765, %v6797
        %v6818 = vcombine.low %v6774, %v6806
        %v6819 = vcombine.high %v6774, %v6806
        %v6820 = vcombine.low %v6781, %v6813
        %v6821 = vcombine.high %v6781, %v6813
        %v6822 = vcombine.low %v5795, %v5971
        %v6823 = vcombine.high %v5795, %v5971
        %v6825 = vunpack.c.l.s4 1983009808
        %v6826 = vunpack.c.0.s8 %v6825
        %v6827 = vlaneseq
        %v6828 = vshrl.u32 %v6827, 7
        %v6829 = vsub.s32 %v6826, %v6828
        %v6830 = vrot.slane %v6822, %v6829
        %v6832 = vunpack.c.l.s4 1983009808
        %v6833 = vunpack.c.0.s8 %v6832
        %v6834 = vlaneseq
        %v6835 = vshrl.u32 %v6834, 7
        %v6836 = vsub.s32 %v6833, %v6835
        %v6837 = vrot.slane %v6823, %v6836
        %v6838 = vcombine.low %v5883, %v6059
        %v6839 = vcombine.high %v5883, %v6059
        %v6841 = vunpack.c.l.s4 1983009808
        %v6842 = vunpack.c.0.s8 %v6841
        %v6843 = vlaneseq
        %v6844 = vshrl.u32 %v6843, 7
        %v6845 = vsub.s32 %v6842, %v6844
        %v6846 = vrot.slane %v6838, %v6845
        %v6848 = vunpack.c.l.s4 1983009808
        %v6849 = vunpack.c.0.s8 %v6848
        %v6850 = vlaneseq
        %v6851 = vshrl.u32 %v6850, 7
        %v6852 = vsub.s32 %v6849, %v6851
        %v6853 = vrot.slane %v6839, %v6852
        %v6854 = vcombine.low %v6147, %v6323
        %v6855 = vcombine.high %v6147, %v6323
        %v6857 = vunpack.c.l.s4 1983009808
        %v6858 = vunpack.c.0.s8 %v6857
        %v6859 = vlaneseq
        %v6860 = vshrl.u32 %v6859, 7
        %v6861 = vsub.s32 %v6858, %v6860
        %v6862 = vrot.slane %v6854, %v6861
        %v6864 = vunpack.c.l.s4 1983009808
        %v6865 = vunpack.c.0.s8 %v6864
        %v6866 = vlaneseq
        %v6867 = vshrl.u32 %v6866, 7
        %v6868 = vsub.s32 %v6865, %v6867
        %v6869 = vrot.slane %v6855, %v6868
        %v6870 = vcombine.low %v6235, %v6411
        %v6871 = vcombine.high %v6235, %v6411
        %v6873 = vunpack.c.l.s4 1983009808
        %v6874 = vunpack.c.0.s8 %v6873
        %v6875 = vlaneseq
        %v6876 = vshrl.u32 %v6875, 7
        %v6877 = vsub.s32 %v6874, %v6876
        %v6878 = vrot.slane %v6870, %v6877
        %v6880 = vunpack.c.l.s4 1983009808
        %v6881 = vunpack.c.0.s8 %v6880
        %v6882 = vlaneseq
        %v6883 = vshrl.u32 %v6882, 7
        %v6884 = vsub.s32 %v6881, %v6883
        %v6885 = vrot.slane %v6871, %v6884
        %v6886 = vcombine.low %v6830, %v6846
        %v6887 = vcombine.high %v6830, %v6846
        %v6889 = vunpack.c.l.s4 1934713408
        %v6890 = vunpack.c.0.s8 %v6889
        %v6891 = vlaneseq
        %v6892 = vshrl.u32 %v6891, 7
        %v6893 = vsub.s32 %v6890, %v6892
        %v6894 = vrot.slane %v6886, %v6893
        %v6896 = vunpack.c.l.s4 1934713408
        %v6897 = vunpack.c.0.s8 %v6896
        %v6898 = vlaneseq
        %v6899 = vshrl.u32 %v6898, 7
        %v6900 = vsub.s32 %v6897, %v6899
        %v6901 = vrot.slane %v6887, %v6900
        %v6902 = vcombine.low %v6837, %v6853
        %v6903 = vcombine.high %v6837, %v6853
        %v6905 = vunpack.c.l.s4 1934713408
        %v6906 = vunpack.c.0.s8 %v6905
        %v6907 = vlaneseq
        %v6908 = vshrl.u32 %v6907, 7
        %v6909 = vsub.s32 %v6906, %v6908
        %v6910 = vrot.slane %v6902, %v6909
        %v6912 = vunpack.c.l.s4 1934713408
        %v6913 = vunpack.c.0.s8 %v6912
        %v6914 = vlaneseq
        %v6915 = vshrl.u32 %v6914, 7
        %v6916 = vsub.s32 %v6913, %v6915
        %v6917 = vrot.slane %v6903, %v6916
        %v6918 = vcombine.low %v6862, %v6878
        %v6919 = vcombine.high %v6862, %v6878
        %v6921 = vunpack.c.l.s4 1934713408
        %v6922 = vunpack.c.0.s8 %v6921
        %v6923 = vlaneseq
        %v6924 = vshrl.u32 %v6923, 7
        %v6925 = vsub.s32 %v6922, %v6924
        %v6926 = vrot.slane %v6918, %v6925
        %v6928 = vunpack.c.l.s4 1934713408
        %v6929 = vunpack.c.0.s8 %v6928
        %v6930 = vlaneseq
        %v6931 = vshrl.u32 %v6930, 7
        %v6932 = vsub.s32 %v6929, %v6931
        %v6933 = vrot.slane %v6919, %v6932
        %v6934 = vcombine.low %v6869, %v6885
        %v6935 = vcombine.high %v6869, %v6885
        %v6937 = vunpack.c.l.s4 1934713408
        %v6938 = vunpack.c.0.s8 %v6937
        %v6939 = vlaneseq
        %v6940 = vshrl.u32 %v6939, 7
        %v6941 = vsub.s32 %v6938, %v6940
        %v6942 = vrot.slane %v6934, %v6941
        %v6944 = vunpack.c.l.s4 1934713408
        %v6945 = vunpack.c.0.s8 %v6944
        %v6946 = vlaneseq
        %v6947 = vshrl.u32 %v6946, 7
        %v6948 = vsub.s32 %v6945, %v6947
        %v6949 = vrot.slane %v6935, %v6948
        %v6950 = vcombine.low %v6894, %v6926
        %v6951 = vcombine.high %v6894, %v6926
        %v6952 = vcombine.low %v6901, %v6933
        %v6953 = vcombine.high %v6901, %v6933
        %v6954 = vcombine.low %v6910, %v6942
        %v6955 = vcombine.high %v6910, %v6942
        %v6956 = vcombine.low %v6917, %v6949
        %v6957 = vcombine.high %v6917, %v6949
        %v6958 = vcombine.low %v6542, %v6544
        %v6959 = vcombine.high %v6542, %v6544
        %v6961 = vunpack.c.l.s4 1983009808
        %v6962 = vunpack.c.0.s8 %v6961
        %v6963 = vlaneseq
        %v6964 = vshrl.u32 %v6963, 7
        %v6965 = vsub.s32 %v6962, %v6964
        %v6966 = vrot.slane %v6958, %v6965
        %v6968 = vunpack.c.l.s4 1983009808
        %v6969 = vunpack.c.0.s8 %v6968
        %v6970 = vlaneseq
        %v6971 = vshrl.u32 %v6970, 7
        %v6972 = vsub.s32 %v6969, %v6971
        %v6973 = vrot.slane %v6959, %v6972
        %v6974 = vcombine.low %v6543, %v6545
        %v6975 = vcombine.high %v6543, %v6545
        %v6977 = vunpack.c.l.s4 1983009808
        %v6978 = vunpack.c.0.s8 %v6977
        %v6979 = vlaneseq
        %v6980 = vshrl.u32 %v6979, 7
        %v6981 = vsub.s32 %v6978, %v6980
        %v6982 = vrot.slane %v6974, %v6981
        %v6984 = vunpack.c.l.s4 1983009808
        %v6985 = vunpack.c.0.s8 %v6984
        %v6986 = vlaneseq
        %v6987 = vshrl.u32 %v6986, 7
        %v6988 = vsub.s32 %v6985, %v6987
        %v6989 = vrot.slane %v6975, %v6988
        %v6990 = vcombine.low %v6546, %v6548
        %v6991 = vcombine.high %v6546, %v6548
        %v6993 = vunpack.c.l.s4 1983009808
        %v6994 = vunpack.c.0.s8 %v6993
        %v6995 = vlaneseq
        %v6996 = vshrl.u32 %v6995, 7
        %v6997 = vsub.s32 %v6994, %v6996
        %v6998 = vrot.slane %v6990, %v6997
        %v7000 = vunpack.c.l.s4 1983009808
        %v7001 = vunpack.c.0.s8 %v7000
        %v7002 = vlaneseq
        %v7003 = vshrl.u32 %v7002, 7
        %v7004 = vsub.s32 %v7001, %v7003
        %v7005 = vrot.slane %v6991, %v7004
        %v7006 = vcombine.low %v6547, %v6549
        %v7007 = vcombine.high %v6547, %v6549
        %v7009 = vunpack.c.l.s4 1983009808
        %v7010 = vunpack.c.0.s8 %v7009
        %v7011 = vlaneseq
        %v7012 = vshrl.u32 %v7011, 7
        %v7013 = vsub.s32 %v7010, %v7012
        %v7014 = vrot.slane %v7006, %v7013
        %v7016 = vunpack.c.l.s4 1983009808
        %v7017 = vunpack.c.0.s8 %v7016
        %v7018 = vlaneseq
        %v7019 = vshrl.u32 %v7018, 7
        %v7020 = vsub.s32 %v7017, %v7019
        %v7021 = vrot.slane %v7007, %v7020
        %v7022 = vcombine.low %v6966, %v6982
        %v7023 = vcombine.high %v6966, %v6982
        %v7025 = vunpack.c.l.s4 1934713408
        %v7026 = vunpack.c.0.s8 %v7025
        %v7027 = vlaneseq
        %v7028 = vshrl.u32 %v7027, 7
        %v7029 = vsub.s32 %v7026, %v7028
        %v7030 = vrot.slane %v7022, %v7029
        %v7032 = vunpack.c.l.s4 1934713408
        %v7033 = vunpack.c.0.s8 %v7032
        %v7034 = vlaneseq
        %v7035 = vshrl.u32 %v7034, 7
        %v7036 = vsub.s32 %v7033, %v7035
        %v7037 = vrot.slane %v7023, %v7036
        %v7038 = vcombine.low %v6973, %v6989
        %v7039 = vcombine.high %v6973, %v6989
        %v7041 = vunpack.c.l.s4 1934713408
        %v7042 = vunpack.c.0.s8 %v7041
        %v7043 = vlaneseq
        %v7044 = vshrl.u32 %v7043, 7
        %v7045 = vsub.s32 %v7042, %v7044
        %v7046 = vrot.slane %v7038, %v7045
        %v7048 = vunpack.c.l.s4 1934713408
        %v7049 = vunpack.c.0.s8 %v7048
        %v7050 = vlaneseq
        %v7051 = vshrl.u32 %v7050, 7
        %v7052 = vsub.s32 %v7049, %v7051
        %v7053 = vrot.slane %v7039, %v7052
        %v7054 = vcombine.low %v6998, %v7014
        %v7055 = vcombine.high %v6998, %v7014
        %v7057 = vunpack.c.l.s4 1934713408
        %v7058 = vunpack.c.0.s8 %v7057
        %v7059 = vlaneseq
        %v7060 = vshrl.u32 %v7059, 7
        %v7061 = vsub.s32 %v7058, %v7060
        %v7062 = vrot.slane %v7054, %v7061
        %v7064 = vunpack.c.l.s4 1934713408
        %v7065 = vunpack.c.0.s8 %v7064
        %v7066 = vlaneseq
        %v7067 = vshrl.u32 %v7066, 7
        %v7068 = vsub.s32 %v7065, %v7067
        %v7069 = vrot.slane %v7055, %v7068
        %v7070 = vcombine.low %v7005, %v7021
        %v7071 = vcombine.high %v7005, %v7021
        %v7073 = vunpack.c.l.s4 1934713408
        %v7074 = vunpack.c.0.s8 %v7073
        %v7075 = vlaneseq
        %v7076 = vshrl.u32 %v7075, 7
        %v7077 = vsub.s32 %v7074, %v7076
        %v7078 = vrot.slane %v7070, %v7077
        %v7080 = vunpack.c.l.s4 1934713408
        %v7081 = vunpack.c.0.s8 %v7080
        %v7082 = vlaneseq
        %v7083 = vshrl.u32 %v7082, 7
        %v7084 = vsub.s32 %v7081, %v7083
        %v7085 = vrot.slane %v7071, %v7084
        %v7086 = vcombine.low %v7030, %v7062
        %v7087 = vcombine.high %v7030, %v7062
        %v7088 = vcombine.low %v7037, %v7069
        %v7089 = vcombine.high %v7037, %v7069
        %v7090 = vcombine.low %v7046, %v7078
        %v7091 = vcombine.high %v7046, %v7078
        %v7092 = vcombine.low %v7053, %v7085
        %v7093 = vcombine.high %v7053, %v7085
        %v7094 = vcombine.low %v6678, %v6680
        %v7095 = vcombine.high %v6678, %v6680
        %v7097 = vunpack.c.l.s4 1983009808
        %v7098 = vunpack.c.0.s8 %v7097
        %v7099 = vlaneseq
        %v7100 = vshrl.u32 %v7099, 7
        %v7101 = vsub.s32 %v7098, %v7100
        %v7102 = vrot.slane %v7094, %v7101
        %v7104 = vunpack.c.l.s4 1983009808
        %v7105 = vunpack.c.0.s8 %v7104
        %v7106 = vlaneseq
        %v7107 = vshrl.u32 %v7106, 7
        %v7108 = vsub.s32 %v7105, %v7107
        %v7109 = vrot.slane %v7095, %v7108
        %v7110 = vcombine.low %v6679, %v6681
        %v7111 = vcombine.high %v6679, %v6681
        %v7113 = vunpack.c.l.s4 1983009808
        %v7114 = vunpack.c.0.s8 %v7113
        %v7115 = vlaneseq
        %v7116 = vshrl.u32 %v7115, 7
        %v7117 = vsub.s32 %v7114, %v7116
        %v7118 = vrot.slane %v7110, %v7117
        %v7120 = vunpack.c.l.s4 1983009808
        %v7121 = vunpack.c.0.s8 %v7120
        %v7122 = vlaneseq
        %v7123 = vshrl.u32 %v7122, 7
        %v7124 = vsub.s32 %v7121, %v7123
        %v7125 = vrot.slane %v7111, %v7124
        %v7126 = vcombine.low %v6682, %v6684
        %v7127 = vcombine.high %v6682, %v6684
        %v7129 = vunpack.c.l.s4 1983009808
        %v7130 = vunpack.c.0.s8 %v7129
        %v7131 = vlaneseq
        %v7132 = vshrl.u32 %v7131, 7
        %v7133 = vsub.s32 %v7130, %v7132
        %v7134 = vrot.slane %v7126, %v7133
        %v7136 = vunpack.c.l.s4 1983009808
        %v7137 = vunpack.c.0.s8 %v7136
        %v7138 = vlaneseq
        %v7139 = vshrl.u32 %v7138, 7
        %v7140 = vsub.s32 %v7137, %v7139
        %v7141 = vrot.slane %v7127, %v7140
        %v7142 = vcombine.low %v6683, %v6685
        %v7143 = vcombine.high %v6683, %v6685
        %v7145 = vunpack.c.l.s4 1983009808
        %v7146 = vunpack.c.0.s8 %v7145
        %v7147 = vlaneseq
        %v7148 = vshrl.u32 %v7147, 7
        %v7149 = vsub.s32 %v7146, %v7148
        %v7150 = vrot.slane %v7142, %v7149
        %v7152 = vunpack.c.l.s4 1983009808
        %v7153 = vunpack.c.0.s8 %v7152
        %v7154 = vlaneseq
        %v7155 = vshrl.u32 %v7154, 7
        %v7156 = vsub.s32 %v7153, %v7155
        %v7157 = vrot.slane %v7143, %v7156
        %v7158 = vcombine.low %v7102, %v7118
        %v7159 = vcombine.high %v7102, %v7118
        %v7161 = vunpack.c.l.s4 1934713408
        %v7162 = vunpack.c.0.s8 %v7161
        %v7163 = vlaneseq
        %v7164 = vshrl.u32 %v7163, 7
        %v7165 = vsub.s32 %v7162, %v7164
        %v7166 = vrot.slane %v7158, %v7165
        %v7168 = vunpack.c.l.s4 1934713408
        %v7169 = vunpack.c.0.s8 %v7168
        %v7170 = vlaneseq
        %v7171 = vshrl.u32 %v7170, 7
        %v7172 = vsub.s32 %v7169, %v7171
        %v7173 = vrot.slane %v7159, %v7172
        %v7174 = vcombine.low %v7109, %v7125
        %v7175 = vcombine.high %v7109, %v7125
        %v7177 = vunpack.c.l.s4 1934713408
        %v7178 = vunpack.c.0.s8 %v7177
        %v7179 = vlaneseq
        %v7180 = vshrl.u32 %v7179, 7
        %v7181 = vsub.s32 %v7178, %v7180
        %v7182 = vrot.slane %v7174, %v7181
        %v7184 = vunpack.c.l.s4 1934713408
        %v7185 = vunpack.c.0.s8 %v7184
        %v7186 = vlaneseq
        %v7187 = vshrl.u32 %v7186, 7
        %v7188 = vsub.s32 %v7185, %v7187
        %v7189 = vrot.slane %v7175, %v7188
        %v7190 = vcombine.low %v7134, %v7150
        %v7191 = vcombine.high %v7134, %v7150
        %v7193 = vunpack.c.l.s4 1934713408
        %v7194 = vunpack.c.0.s8 %v7193
        %v7195 = vlaneseq
        %v7196 = vshrl.u32 %v7195, 7
        %v7197 = vsub.s32 %v7194, %v7196
        %v7198 = vrot.slane %v7190, %v7197
        %v7200 = vunpack.c.l.s4 1934713408
        %v7201 = vunpack.c.0.s8 %v7200
        %v7202 = vlaneseq
        %v7203 = vshrl.u32 %v7202, 7
        %v7204 = vsub.s32 %v7201, %v7203
        %v7205 = vrot.slane %v7191, %v7204
        %v7206 = vcombine.low %v7141, %v7157
        %v7207 = vcombine.high %v7141, %v7157
        %v7209 = vunpack.c.l.s4 1934713408
        %v7210 = vunpack.c.0.s8 %v7209
        %v7211 = vlaneseq
        %v7212 = vshrl.u32 %v7211, 7
        %v7213 = vsub.s32 %v7210, %v7212
        %v7214 = vrot.slane %v7206, %v7213
        %v7216 = vunpack.c.l.s4 1934713408
        %v7217 = vunpack.c.0.s8 %v7216
        %v7218 = vlaneseq
        %v7219 = vshrl.u32 %v7218, 7
        %v7220 = vsub.s32 %v7217, %v7219
        %v7221 = vrot.slane %v7207, %v7220
        %v7222 = vcombine.low %v7166, %v7198
        %v7223 = vcombine.high %v7166, %v7198
        %v7224 = vcombine.low %v7173, %v7205
        %v7225 = vcombine.high %v7173, %v7205
        %v7226 = vcombine.low %v7182, %v7214
        %v7227 = vcombine.high %v7182, %v7214
        %v7228 = vcombine.low %v7189, %v7221
        %v7229 = vcombine.high %v7189, %v7221
        %v7230 = vcombine.low %v6814, %v6816
        %v7231 = vcombine.high %v6814, %v6816
        %v7233 = vunpack.c.l.s4 1983009808
        %v7234 = vunpack.c.0.s8 %v7233
        %v7235 = vlaneseq
        %v7236 = vshrl.u32 %v7235, 7
        %v7237 = vsub.s32 %v7234, %v7236
        %v7238 = vrot.slane %v7230, %v7237
        %v7240 = vunpack.c.l.s4 1983009808
        %v7241 = vunpack.c.0.s8 %v7240
        %v7242 = vlaneseq
        %v7243 = vshrl.u32 %v7242, 7
        %v7244 = vsub.s32 %v7241, %v7243
        %v7245 = vrot.slane %v7231, %v7244
        %v7246 = vcombine.low %v6815, %v6817
        %v7247 = vcombine.high %v6815, %v6817
        %v7249 = vunpack.c.l.s4 1983009808
        %v7250 = vunpack.c.0.s8 %v7249
        %v7251 = vlaneseq
        %v7252 = vshrl.u32 %v7251, 7
        %v7253 = vsub.s32 %v7250, %v7252
        %v7254 = vrot.slane %v7246, %v7253
        %v7256 = vunpack.c.l.s4 1983009808
        %v7257 = vunpack.c.0.s8 %v7256
        %v7258 = vlaneseq
        %v7259 = vshrl.u32 %v7258, 7
        %v7260 = vsub.s32 %v7257, %v7259
        %v7261 = vrot.slane %v7247, %v7260
        %v7262 = vcombine.low %v6818, %v6820
        %v7263 = vcombine.high %v6818, %v6820
        %v7265 = vunpack.c.l.s4 1983009808
        %v7266 = vunpack.c.0.s8 %v7265
        %v7267 = vlaneseq
        %v7268 = vshrl.u32 %v7267, 7
        %v7269 = vsub.s32 %v7266, %v7268
        %v7270 = vrot.slane %v7262, %v7269
        %v7272 = vunpack.c.l.s4 1983009808
        %v7273 = vunpack.c.0.s8 %v7272
        %v7274 = vlaneseq
        %v7275 = vshrl.u32 %v7274, 7
        %v7276 = vsub.s32 %v7273, %v7275
        %v7277 = vrot.slane %v7263, %v7276
        %v7278 = vcombine.low %v6819, %v6821
        %v7279 = vcombine.high %v6819, %v6821
        %v7281 = vunpack.c.l.s4 1983009808
        %v7282 = vunpack.c.0.s8 %v7281
        %v7283 = vlaneseq
        %v7284 = vshrl.u32 %v7283, 7
        %v7285 = vsub.s32 %v7282, %v7284
        %v7286 = vrot.slane %v7278, %v7285
        %v7288 = vunpack.c.l.s4 1983009808
        %v7289 = vunpack.c.0.s8 %v7288
        %v7290 = vlaneseq
        %v7291 = vshrl.u32 %v7290, 7
        %v7292 = vsub.s32 %v7289, %v7291
        %v7293 = vrot.slane %v7279, %v7292
        %v7294 = vcombine.low %v7238, %v7254
        %v7295 = vcombine.high %v7238, %v7254
        %v7297 = vunpack.c.l.s4 1934713408
        %v7298 = vunpack.c.0.s8 %v7297
        %v7299 = vlaneseq
        %v7300 = vshrl.u32 %v7299, 7
        %v7301 = vsub.s32 %v7298, %v7300
        %v7302 = vrot.slane %v7294, %v7301
        %v7304 = vunpack.c.l.s4 1934713408
        %v7305 = vunpack.c.0.s8 %v7304
        %v7306 = vlaneseq
        %v7307 = vshrl.u32 %v7306, 7
        %v7308 = vsub.s32 %v7305, %v7307
        %v7309 = vrot.slane %v7295, %v7308
        %v7310 = vcombine.low %v7245, %v7261
        %v7311 = vcombine.high %v7245, %v7261
        %v7313 = vunpack.c.l.s4 1934713408
        %v7314 = vunpack.c.0.s8 %v7313
        %v7315 = vlaneseq
        %v7316 = vshrl.u32 %v7315, 7
        %v7317 = vsub.s32 %v7314, %v7316
        %v7318 = vrot.slane %v7310, %v7317
        %v7320 = vunpack.c.l.s4 1934713408
        %v7321 = vunpack.c.0.s8 %v7320
        %v7322 = vlaneseq
        %v7323 = vshrl.u32 %v7322, 7
        %v7324 = vsub.s32 %v7321, %v7323
        %v7325 = vrot.slane %v7311, %v7324
        %v7326 = vcombine.low %v7270, %v7286
        %v7327 = vcombine.high %v7270, %v7286
        %v7329 = vunpack.c.l.s4 1934713408
        %v7330 = vunpack.c.0.s8 %v7329
        %v7331 = vlaneseq
        %v7332 = vshrl.u32 %v7331, 7
        %v7333 = vsub.s32 %v7330, %v7332
        %v7334 = vrot.slane %v7326, %v7333
        %v7336 = vunpack.c.l.s4 1934713408
        %v7337 = vunpack.c.0.s8 %v7336
        %v7338 = vlaneseq
        %v7339 = vshrl.u32 %v7338, 7
        %v7340 = vsub.s32 %v7337, %v7339
        %v7341 = vrot.slane %v7327, %v7340
        %v7342 = vcombine.low %v7277, %v7293
        %v7343 = vcombine.high %v7277, %v7293
        %v7345 = vunpack.c.l.s4 1934713408
        %v7346 = vunpack.c.0.s8 %v7345
        %v7347 = vlaneseq
        %v7348 = vshrl.u32 %v7347, 7
        %v7349 = vsub.s32 %v7346, %v7348
        %v7350 = vrot.slane %v7342, %v7349
        %v7352 = vunpack.c.l.s4 1934713408
        %v7353 = vunpack.c.0.s8 %v7352
        %v7354 = vlaneseq
        %v7355 = vshrl.u32 %v7354, 7
        %v7356 = vsub.s32 %v7353, %v7355
        %v7357 = vrot.slane %v7343, %v7356
        %v7358 = vcombine.low %v7302, %v7334
        %v7359 = vcombine.high %v7302, %v7334
        %v7360 = vcombine.low %v7309, %v7341
        %v7361 = vcombine.high %v7309, %v7341
        %v7362 = vcombine.low %v7318, %v7350
        %v7363 = vcombine.high %v7318, %v7350
        %v7364 = vcombine.low %v7325, %v7357
        %v7365 = vcombine.high %v7325, %v7357
        %v7366 = vcombine.low %v6950, %v6952
        %v7367 = vcombine.high %v6950, %v6952
        %v7369 = vunpack.c.l.s4 1983009808
        %v7370 = vunpack.c.0.s8 %v7369
        %v7371 = vlaneseq
        %v7372 = vshrl.u32 %v7371, 7
        %v7373 = vsub.s32 %v7370, %v7372
        %v7374 = vrot.slane %v7366, %v7373
        %v7376 = vunpack.c.l.s4 1983009808
        %v7377 = vunpack.c.0.s8 %v7376
        %v7378 = vlaneseq
        %v7379 = vshrl.u32 %v7378, 7
        %v7380 = vsub.s32 %v7377, %v7379
        %v7381 = vrot.slane %v7367, %v7380
        %v7382 = vcombine.low %v6951, %v6953
        %v7383 = vcombine.high %v6951, %v6953
        %v7385 = vunpack.c.l.s4 1983009808
        %v7386 = vunpack.c.0.s8 %v7385
        %v7387 = vlaneseq
        %v7388 = vshrl.u32 %v7387, 7
        %v7389 = vsub.s32 %v7386, %v7388
        %v7390 = vrot.slane %v7382, %v7389
        %v7392 = vunpack.c.l.s4 1983009808
        %v7393 = vunpack.c.0.s8 %v7392
        %v7394 = vlaneseq
        %v7395 = vshrl.u32 %v7394, 7
        %v7396 = vsub.s32 %v7393, %v7395
        %v7397 = vrot.slane %v7383, %v7396
        %v7398 = vcombine.low %v6954, %v6956
        %v7399 = vcombine.high %v6954, %v6956
        %v7401 = vunpack.c.l.s4 1983009808
        %v7402 = vunpack.c.0.s8 %v7401
        %v7403 = vlaneseq
        %v7404 = vshrl.u32 %v7403, 7
        %v7405 = vsub.s32 %v7402, %v7404
        %v7406 = vrot.slane %v7398, %v7405
        %v7408 = vunpack.c.l.s4 1983009808
        %v7409 = vunpack.c.0.s8 %v7408
        %v7410 = vlaneseq
        %v7411 = vshrl.u32 %v7410, 7
        %v7412 = vsub.s32 %v7409, %v7411
        %v7413 = vrot.slane %v7399, %v7412
        %v7414 = vcombine.low %v6955, %v6957
        %v7415 = vcombine.high %v6955, %v6957
        %v7417 = vunpack.c.l.s4 1983009808
        %v7418 = vunpack.c.0.s8 %v7417
        %v7419 = vlaneseq
        %v7420 = vshrl.u32 %v7419, 7
        %v7421 = vsub.s32 %v7418, %v7420
        %v7422 = vrot.slane %v7414, %v7421
        %v7424 = vunpack.c.l.s4 1983009808
        %v7425 = vunpack.c.0.s8 %v7424
        %v7426 = vlaneseq
        %v7427 = vshrl.u32 %v7426, 7
        %v7428 = vsub.s32 %v7425, %v7427
        %v7429 = vrot.slane %v7415, %v7428
        %v7430 = vcombine.low %v7374, %v7390
        %v7431 = vcombine.high %v7374, %v7390
        %v7433 = vunpack.c.l.s4 1934713408
        %v7434 = vunpack.c.0.s8 %v7433
        %v7435 = vlaneseq
        %v7436 = vshrl.u32 %v7435, 7
        %v7437 = vsub.s32 %v7434, %v7436
        %v7438 = vrot.slane %v7430, %v7437
        %v7440 = vunpack.c.l.s4 1934713408
        %v7441 = vunpack.c.0.s8 %v7440
        %v7442 = vlaneseq
        %v7443 = vshrl.u32 %v7442, 7
        %v7444 = vsub.s32 %v7441, %v7443
        %v7445 = vrot.slane %v7431, %v7444
        %v7446 = vcombine.low %v7381, %v7397
        %v7447 = vcombine.high %v7381, %v7397
        %v7449 = vunpack.c.l.s4 1934713408
        %v7450 = vunpack.c.0.s8 %v7449
        %v7451 = vlaneseq
        %v7452 = vshrl.u32 %v7451, 7
        %v7453 = vsub.s32 %v7450, %v7452
        %v7454 = vrot.slane %v7446, %v7453
        %v7456 = vunpack.c.l.s4 1934713408
        %v7457 = vunpack.c.0.s8 %v7456
        %v7458 = vlaneseq
        %v7459 = vshrl.u32 %v7458, 7
        %v7460 = vsub.s32 %v7457, %v7459
        %v7461 = vrot.slane %v7447, %v7460
        %v7462 = vcombine.low %v7406, %v7422
        %v7463 = vcombine.high %v7406, %v7422
        %v7465 = vunpack.c.l.s4 1934713408
        %v7466 = vunpack.c.0.s8 %v7465
        %v7467 = vlaneseq
        %v7468 = vshrl.u32 %v7467, 7
        %v7469 = vsub.s32 %v7466, %v7468
        %v7470 = vrot.slane %v7462, %v7469
        %v7472 = vunpack.c.l.s4 1934713408
        %v7473 = vunpack.c.0.s8 %v7472
        %v7474 = vlaneseq
        %v7475 = vshrl.u32 %v7474, 7
        %v7476 = vsub.s32 %v7473, %v7475
        %v7477 = vrot.slane %v7463, %v7476
        %v7478 = vcombine.low %v7413, %v7429
        %v7479 = vcombine.high %v7413, %v7429
        %v7481 = vunpack.c.l.s4 1934713408
        %v7482 = vunpack.c.0.s8 %v7481
        %v7483 = vlaneseq
        %v7484 = vshrl.u32 %v7483, 7
        %v7485 = vsub.s32 %v7482, %v7484
        %v7486 = vrot.slane %v7478, %v7485
        %v7488 = vunpack.c.l.s4 1934713408
        %v7489 = vunpack.c.0.s8 %v7488
        %v7490 = vlaneseq
        %v7491 = vshrl.u32 %v7490, 7
        %v7492 = vsub.s32 %v7489, %v7491
        %v7493 = vrot.slane %v7479, %v7492
        %v7494 = vcombine.low %v7438, %v7470
        %v7495 = vcombine.high %v7438, %v7470
        %v7496 = vcombine.low %v7445, %v7477
        %v7497 = vcombine.high %v7445, %v7477
        %v7498 = vcombine.low %v7454, %v7486
        %v7499 = vcombine.high %v7454, %v7486
        %v7500 = vcombine.low %v7461, %v7493
        %v7501 = vcombine.high %v7461, %v7493
        %7506 = vrot.lane.b32.xlu0 %v7087, 16
        %v7507 = vpop.permute.xlu0 %7506
        %7508 = vrot.lane.b32.xlu0 %v7223, 16
        %v7509 = vpop.permute.xlu0 %7508
        %7510 = vrot.lane.b32.xlu0 %v7359, 16
        %v7511 = vpop.permute.xlu0 %7510
        %7512 = vrot.lane.b32.xlu0 %v7495, 16
        %v7513 = vpop.permute.xlu0 %7512
        %7522 = vrot.lane.b32.xlu0 %v7088, 32
        %v7523 = vpop.permute.xlu0 %7522
        %7524 = vrot.lane.b32.xlu0 %v7224, 32
        %v7525 = vpop.permute.xlu0 %7524
        %7526 = vrot.lane.b32.xlu0 %v7360, 32
        %v7527 = vpop.permute.xlu0 %7526
        %7528 = vrot.lane.b32.xlu0 %v7496, 32
        %v7529 = vpop.permute.xlu0 %7528
        %7538 = vrot.lane.b32.xlu0 %v7089, 48
        %v7539 = vpop.permute.xlu0 %7538
        %7540 = vrot.lane.b32.xlu0 %v7225, 48
        %v7541 = vpop.permute.xlu0 %7540
        %7542 = vrot.lane.b32.xlu0 %v7361, 48
        %v7543 = vpop.permute.xlu0 %7542
        %7544 = vrot.lane.b32.xlu0 %v7497, 48
        %v7545 = vpop.permute.xlu0 %7544
        %7554 = vrot.lane.b32.xlu0 %v7090, 64
        %v7555 = vpop.permute.xlu0 %7554
        %7556 = vrot.lane.b32.xlu0 %v7226, 64
        %v7557 = vpop.permute.xlu0 %7556
        %7558 = vrot.lane.b32.xlu0 %v7362, 64
        %v7559 = vpop.permute.xlu0 %7558
        %7560 = vrot.lane.b32.xlu0 %v7498, 64
        %v7561 = vpop.permute.xlu0 %7560
        %7570 = vrot.lane.b32.xlu0 %v7091, 80
        %v7571 = vpop.permute.xlu0 %7570
        %7572 = vrot.lane.b32.xlu0 %v7227, 80
        %v7573 = vpop.permute.xlu0 %7572
        %7574 = vrot.lane.b32.xlu0 %v7363, 80
        %v7575 = vpop.permute.xlu0 %7574
        %7576 = vrot.lane.b32.xlu0 %v7499, 80
        %v7577 = vpop.permute.xlu0 %7576
        %7586 = vrot.lane.b32.xlu0 %v7092, 96
        %v7587 = vpop.permute.xlu0 %7586
        %7588 = vrot.lane.b32.xlu0 %v7228, 96
        %v7589 = vpop.permute.xlu0 %7588
        %7590 = vrot.lane.b32.xlu0 %v7364, 96
        %v7591 = vpop.permute.xlu0 %7590
        %7592 = vrot.lane.b32.xlu0 %v7500, 96
        %v7593 = vpop.permute.xlu0 %7592
        %7602 = vrot.lane.b32.xlu0 %v7093, 112
        %v7603 = vpop.permute.xlu0 %7602
        %7604 = vrot.lane.b32.xlu0 %v7229, 112
        %v7605 = vpop.permute.xlu0 %7604
        %7606 = vrot.lane.b32.xlu0 %v7365, 112
        %v7607 = vpop.permute.xlu0 %7606
        %7608 = vrot.lane.b32.xlu0 %v7501, 112
        %v7609 = vpop.permute.xlu0 %7608
        %v7614 = vsel %vm4589, %v7086, %v7507
        %v7615 = vsel %vm4589, %v7222, %v7509
        %v7616 = vsel %vm4589, %v7358, %v7511
        %v7617 = vsel %vm4589, %v7494, %v7513
        %vm7618 = vcmask 261120
        %v7619 = vsel %vm7618, %v7614, %v7523
        %v7620 = vsel %vm7618, %v7615, %v7525
        %v7621 = vsel %vm7618, %v7616, %v7527
        %v7622 = vsel %vm7618, %v7617, %v7529
        %vm7623 = vcmask 392192
        %v7624 = vsel %vm7623, %v7619, %v7539
        %v7625 = vsel %vm7623, %v7620, %v7541
        %v7626 = vsel %vm7623, %v7621, %v7543
        %v7627 = vsel %vm7623, %v7622, %v7545
        %vm7628 = vcmask 523264
        %v7629 = vsel %vm7628, %v7624, %v7555
        %v7630 = vsel %vm7628, %v7625, %v7557
        %v7631 = vsel %vm7628, %v7626, %v7559
        %v7632 = vsel %vm7628, %v7627, %v7561
        %vm7633 = vcmask 654336
        %v7634 = vsel %vm7633, %v7629, %v7571
        %v7635 = vsel %vm7633, %v7630, %v7573
        %v7636 = vsel %vm7633, %v7631, %v7575
        %v7637 = vsel %vm7633, %v7632, %v7577
        %vm7638 = vcmask 785408
        %v7639 = vsel %vm7638, %v7634, %v7587
        %v7640 = vsel %vm7638, %v7635, %v7589
        %v7641 = vsel %vm7638, %v7636, %v7591
        %v7642 = vsel %vm7638, %v7637, %v7593
        %vm7643 = vcmask 916480
        %v7644 = vsel %vm7643, %v7639, %v7603
        %v7645 = vsel %vm7643, %v7640, %v7605
        %v7646 = vsel %vm7643, %v7641, %v7607
        %v7647 = vsel %vm7643, %v7642, %v7609
        %v7648 = vpack.c.bf16 %v7645, %v7644
        %v7649 = vpack.c.bf16 %v7647, %v7646
        %v7650 = vld [vmem:[%s595] sm:$0xf]
        %v7651 = vld [vmem:[%s595 + $0x4] sm:$0xf]
        %v7652 = vld [vmem:[%s595 + $0x8] sm:$0xf]
        %v7653 = vld [vmem:[%s595 + $0xc] sm:$0xf]
        %v7654 = vld [vmem:[%s595 + $0x10] sm:$0xf]
        %v7655 = vld [vmem:[%s595 + $0x14] sm:$0xf]
        %v7656 = vld [vmem:[%s595 + $0x18] sm:$0xf]
        %v7657 = vld [vmem:[%s595 + $0x1c] sm:$0xf]
        %v7658 = vld [vmem:[%s595 + $0x20] sm:$0xf]
        %v7659 = vld [vmem:[%s595 + $0x24] sm:$0xf]
        %v7660 = vld [vmem:[%s595 + $0x28] sm:$0xf]
        %v7661 = vld [vmem:[%s595 + $0x2c] sm:$0xf]
        %v7662 = vld [vmem:[%s595 + $0x30] sm:$0xf]
        %v7663 = vld [vmem:[%s595 + $0x34] sm:$0xf]
        %v7664 = vld [vmem:[%s595 + $0x38] sm:$0xf]
        %v7665 = vld [vmem:[%s595 + $0x3c] sm:$0xf]
        %v7666 = vld [vmem:[%s695] sm:$0x1]
        %v7668 = vlaneseq
        %v7669 = vshrl.u32 %v7668, 7
        %v7670 = vsub.s32 0, %v7669
        %v7671 = vrot.slane %v7666, %v7670
        %v7689 = vunpack.c.l.b16 %v7650
        %v7690 = vunpack.c.l.b16 %v7651
        %v7691 = vunpack.c.l.b16 %v7652
        %v7692 = vunpack.c.l.b16 %v7653
        %v7693 = vunpack.c.l.b16 %v7654
        %v7694 = vunpack.c.l.b16 %v7655
        %v7695 = vunpack.c.l.b16 %v7656
        %v7696 = vunpack.c.l.b16 %v7657
        %v7697 = vunpack.c.l.b16 %v7658
        %v7698 = vunpack.c.l.b16 %v7659
        %v7699 = vunpack.c.l.b16 %v7660
        %v7700 = vunpack.c.l.b16 %v7661
        %v7701 = vunpack.c.l.b16 %v7662
        %v7702 = vunpack.c.l.b16 %v7663
        %v7703 = vunpack.c.l.b16 %v7664
        %v7704 = vunpack.c.l.b16 %v7665
        %v7705 = vpack.c.b16 %v7690, %v7689
        %v7706 = vpack.c.b16 %v7692, %v7691
        %v7707 = vpack.c.b16 %v7694, %v7693
        %v7708 = vpack.c.b16 %v7696, %v7695
        %v7709 = vpack.c.b16 %v7698, %v7697
        %v7710 = vpack.c.b16 %v7700, %v7699
        %v7711 = vpack.c.b16 %v7702, %v7701
        %v7712 = vpack.c.b16 %v7704, %v7703
        %7721 = vmatprep.subr.bf16.mxu0 0
        %7722 = vmatpush1.bf16.msra.mxu0 %v7712
        %7723 = vmatprep.subr.bf16.mxu0 0
        %7724 = vmatpush1.bf16.msra.mxu0 %v7711
        %7725 = vmatprep.subr.bf16.mxu0 0
        %7726 = vmatpush1.bf16.msra.mxu0 %v7710
        %7727 = vmatprep.subr.bf16.mxu0 0
        %7728 = vmatpush1.bf16.msra.mxu0 %v7709
        %7729 = vmatprep.subr.bf16.mxu0 0
        %7730 = vmatpush1.bf16.msra.mxu0 %v7708
        %7731 = vmatprep.subr.bf16.mxu0 0
        %7732 = vmatpush1.bf16.msra.mxu0 %v7707
        %7733 = vmatprep.subr.bf16.mxu0 0
        %7734 = vmatpush1.bf16.msra.mxu0 %v7706
        %7735 = vmatprep.subr.bf16.mxu0 0
        %7736 = vmatpush1.bf16.msra.mxu0 %v7705
        %7737 = vmatprep.subr.bf16.mxu0 0
        %7738 = vmatpush2.bf16.msra.mxu0 0
        %7739 = vmatprep.subr.bf16.mxu0 0
        %7740 = vmatpush2.bf16.msra.mxu0 0
        %7741 = vmatprep.subr.bf16.mxu0 0
        %7742 = vmatpush2.bf16.msra.mxu0 0
        %7743 = vmatprep.subr.bf16.mxu0 0
        %7744 = vmatpush2.bf16.msra.mxu0 0
        %7745 = vmatprep.subr.bf16.mxu0 0
        %7746 = vmatpush2.bf16.msra.mxu0 0
        %7747 = vmatprep.subr.bf16.mxu0 0
        %7748 = vmatpush2.bf16.msra.mxu0 0
        %7749 = vmatprep.subr.bf16.mxu0 0
        %7750 = vmatpush2.bf16.msra.mxu0 0
        %7751 = vmatprep.subr.bf16.mxu0 0
        %7752 = vmatpush2.bf16.msra.mxu0 0
        %7753 = vmatprep.mubr.bf16.mxu0 0
        %7754 = vmatmul.mubr.bf16.gmra.mxu0 %v7648
        %v7755 = vpop.f32.mrf.mxu0
        %v7756 = vadd.f32 %v7671, %v7755
        %v7757 = vpop.f32.mrf.mxu0
        %v7758 = vpop.f32.mrf.mxu0
        %v7759 = vadd.f32 %v7671, %v7758
        %v7760 = vpop.f32.mrf.mxu0
        %7761 = vmatprep.mubr.bf16.mxu0 0
        %7762 = vmatmul.mubr.bf16.gmra.mxu0 %v7649
        %v7763 = vpop.f32.mrf.mxu0
        %v7764 = vadd.f32 %v7671, %v7763
        %v7765 = vpop.f32.mrf.mxu0
        %v7766 = vpop.f32.mrf.mxu0
        %v7767 = vadd.f32 %v7671, %v7766
        %v7768 = vpop.f32.mrf.mxu0
        %7769 = vdwg.mxu0
        %v7770 = vadd.f32 %v728, %v7756
        %v7771 = vadd.f32 %v729, %v7759
        %v7772 = vadd.f32 %v730, %v7764
        %v7773 = vadd.f32 %v731, %v7767
        %v7774 = vadd.f32 %v7770, %v7771
        %v7775 = vadd.f32 %v7774, %v7772
        %v7776 = vadd.f32 %v7775, %v7773
        %v7777 = vrot.slane %v7776, 4
        %v7778 = vadd.f32 %v7776, %v7777
        %v7779 = vrot.slane %v7778, 2
        %v7780 = vadd.f32 %v7778, %v7779
        %v7781 = vrot.slane %v7780, 1
        %v7782 = vadd.f32 %v7780, %v7781
        %v7783 = vmul.f32 %v7782, 0.03125
        %v7784 = vsub.f32 %v7770, %v7783
        %v7785 = vsub.f32 %v7771, %v7783
        %v7786 = vsub.f32 %v7772, %v7783
        %v7787 = vsub.f32 %v7773, %v7783
        %v7788 = vmul.f32 %v7784, %v7784
        %v7789 = vmul.f32 %v7785, %v7785
        %v7790 = vmul.f32 %v7786, %v7786
        %v7791 = vmul.f32 %v7787, %v7787
        %v7792 = vadd.f32 %v7788, %v7789
        %v7793 = vadd.f32 %v7792, %v7790
        %v7794 = vadd.f32 %v7793, %v7791
        %v7795 = vrot.slane %v7794, 4
        %v7796 = vadd.f32 %v7794, %v7795
        %v7797 = vrot.slane %v7796, 2
        %v7798 = vadd.f32 %v7796, %v7797
        %v7799 = vrot.slane %v7798, 1
        %v7800 = vadd.f32 %v7798, %v7799
        %v7801 = vmul.f32 %v7800, 0.03125
        %v7802 = vadd.f32 %v7801, 1e-05
        %v7803 = vrsqrt.pop %v7802
        %v7804 = vmul.f32 %v7784, %v7803
        %v7805 = vmul.f32 %v7785, %v7803
        %v7806 = vmul.f32 %v7786, %v7803
        %v7807 = vmul.f32 %v7787, %v7803
        %v7808 = vld [vmem:[%s698] sm:$0x1]
        %v7810 = vlaneseq
        %v7811 = vshrl.u32 %v7810, 7
        %v7812 = vsub.s32 0, %v7811
        %v7813 = vrot.slane %v7808, %v7812
        %v7815 = vmul.f32 %v7804, %v7813
        %v7816 = vmul.f32 %v7805, %v7813
        %v7817 = vmul.f32 %v7806, %v7813
        %v7818 = vmul.f32 %v7807, %v7813
        %v7819 = vld [vmem:[%s701] sm:$0x1]
        %v7821 = vlaneseq
        %v7822 = vshrl.u32 %v7821, 7
        %v7823 = vsub.s32 0, %v7822
        %v7824 = vrot.slane %v7819, %v7823
        %v7826 = vadd.f32 %v7815, %v7824
        %v7827 = vadd.f32 %v7816, %v7824
        %v7828 = vadd.f32 %v7817, %v7824
        %v7829 = vadd.f32 %v7818, %v7824
        %v7830 = vpack.c.bf16 %v7827, %v7826
        %v7831 = vpack.c.bf16 %v7829, %v7828
        %v7832 = vld [vmem:[%s604] sm:$0xff]
        %v7833 = vld [vmem:[%s604 + $0x8] sm:$0xff]
        %v7834 = vld [vmem:[%s604 + $0x10] sm:$0xff]
        %v7835 = vld [vmem:[%s604 + $0x18] sm:$0xff]
        %v7836 = vld [vmem:[%s604 + $0x20] sm:$0xff]
        %v7837 = vld [vmem:[%s604 + $0x28] sm:$0xff]
        %v7838 = vld [vmem:[%s604 + $0x30] sm:$0xff]
        %v7839 = vld [vmem:[%s604 + $0x38] sm:$0xff]
        %v7840 = vld [vmem:[%s604 + $0x40] sm:$0xff]
        %v7841 = vld [vmem:[%s604 + $0x48] sm:$0xff]
        %v7842 = vld [vmem:[%s604 + $0x50] sm:$0xff]
        %v7843 = vld [vmem:[%s604 + $0x58] sm:$0xff]
        %v7844 = vld [vmem:[%s604 + $0x60] sm:$0xff]
        %v7845 = vld [vmem:[%s604 + $0x68] sm:$0xff]
        %v7846 = vld [vmem:[%s604 + $0x70] sm:$0xff]
        %v7847 = vld [vmem:[%s604 + $0x78] sm:$0xff]
        %v7848 = vld [vmem:[%s705] sm:$0x3]
        %v7850 = vlaneseq
        %v7851 = vshrl.u32 %v7850, 7
        %v7852 = vsub.s32 0, %v7851
        %v7853 = vrot.slane %v7848, %v7852
        %v7854 = vlaneseq
        %v7855 = vshrl.u32 %v7854, 7
        %v7856 = vsub.s32 1, %v7855
        %v7857 = vrot.slane %v7848, %v7856
        %v7876 = vunpack.c.l.b16 %v7832
        %v7877 = vunpack.c.h.b16 %v7832
        %v7878 = vunpack.c.l.b16 %v7833
        %v7879 = vunpack.c.h.b16 %v7833
        %v7880 = vunpack.c.l.b16 %v7834
        %v7881 = vunpack.c.h.b16 %v7834
        %v7882 = vunpack.c.l.b16 %v7835
        %v7883 = vunpack.c.h.b16 %v7835
        %v7884 = vunpack.c.l.b16 %v7836
        %v7885 = vunpack.c.h.b16 %v7836
        %v7886 = vunpack.c.l.b16 %v7837
        %v7887 = vunpack.c.h.b16 %v7837
        %v7888 = vunpack.c.l.b16 %v7838
        %v7889 = vunpack.c.h.b16 %v7838
        %v7890 = vunpack.c.l.b16 %v7839
        %v7891 = vunpack.c.h.b16 %v7839
        %v7892 = vunpack.c.l.b16 %v7840
        %v7893 = vunpack.c.h.b16 %v7840
        %v7894 = vunpack.c.l.b16 %v7841
        %v7895 = vunpack.c.h.b16 %v7841
        %v7896 = vunpack.c.l.b16 %v7842
        %v7897 = vunpack.c.h.b16 %v7842
        %v7898 = vunpack.c.l.b16 %v7843
        %v7899 = vunpack.c.h.b16 %v7843
        %v7900 = vunpack.c.l.b16 %v7844
        %v7901 = vunpack.c.h.b16 %v7844
        %v7902 = vunpack.c.l.b16 %v7845
        %v7903 = vunpack.c.h.b16 %v7845
        %v7904 = vunpack.c.l.b16 %v7846
        %v7905 = vunpack.c.h.b16 %v7846
        %v7906 = vunpack.c.l.b16 %v7847
        %v7907 = vunpack.c.h.b16 %v7847
        %v7908 = vpack.c.b16 %v7878, %v7876
        %v7909 = vpack.c.b16 %v7879, %v7877
        %v7910 = vpack.c.b16 %v7882, %v7880
        %v7911 = vpack.c.b16 %v7883, %v7881
        %v7912 = vpack.c.b16 %v7886, %v7884
        %v7913 = vpack.c.b16 %v7887, %v7885
        %v7914 = vpack.c.b16 %v7890, %v7888
        %v7915 = vpack.c.b16 %v7891, %v7889
        %v7916 = vpack.c.b16 %v7894, %v7892
        %v7917 = vpack.c.b16 %v7895, %v7893
        %v7918 = vpack.c.b16 %v7898, %v7896
        %v7919 = vpack.c.b16 %v7899, %v7897
        %v7920 = vpack.c.b16 %v7902, %v7900
        %v7921 = vpack.c.b16 %v7903, %v7901
        %v7922 = vpack.c.b16 %v7906, %v7904
        %v7923 = vpack.c.b16 %v7907, %v7905
        %7940 = vmatprep.subr.bf16.mxu0 %v7923
        %7941 = vmatpush1.bf16.msra.mxu0 %v7922
        %7942 = vmatprep.subr.bf16.mxu0 %v7921
        %7943 = vmatpush1.bf16.msra.mxu0 %v7920
        %7944 = vmatprep.subr.bf16.mxu0 %v7919
        %7945 = vmatpush1.bf16.msra.mxu0 %v7918
        %7946 = vmatprep.subr.bf16.mxu0 %v7917
        %7947 = vmatpush1.bf16.msra.mxu0 %v7916
        %7948 = vmatprep.subr.bf16.mxu0 %v7915
        %7949 = vmatpush1.bf16.msra.mxu0 %v7914
        %7950 = vmatprep.subr.bf16.mxu0 %v7913
        %7951 = vmatpush1.bf16.msra.mxu0 %v7912
        %7952 = vmatprep.subr.bf16.mxu0 %v7911
        %7953 = vmatpush1.bf16.msra.mxu0 %v7910
        %7954 = vmatprep.subr.bf16.mxu0 %v7909
        %7955 = vmatpush1.bf16.msra.mxu0 %v7908
        %7956 = vmatprep.subr.bf16.mxu0 0
        %7957 = vmatpush2.bf16.msra.mxu0 0
        %7958 = vmatprep.subr.bf16.mxu0 0
        %7959 = vmatpush2.bf16.msra.mxu0 0
        %7960 = vmatprep.subr.bf16.mxu0 0
        %7961 = vmatpush2.bf16.msra.mxu0 0
        %7962 = vmatprep.subr.bf16.mxu0 0
        %7963 = vmatpush2.bf16.msra.mxu0 0
        %7964 = vmatprep.subr.bf16.mxu0 0
        %7965 = vmatpush2.bf16.msra.mxu0 0
        %7966 = vmatprep.subr.bf16.mxu0 0
        %7967 = vmatpush2.bf16.msra.mxu0 0
        %7968 = vmatprep.subr.bf16.mxu0 0
        %7969 = vmatpush2.bf16.msra.mxu0 0
        %7970 = vmatprep.subr.bf16.mxu0 0
        %7971 = vmatpush2.bf16.msra.mxu0 0
        %7972 = vmatprep.mubr.bf16.mxu0 0
        %7973 = vmatmul.mubr.bf16.gmra.mxu0 %v7830
        %v7974 = vpop.f32.mrf.mxu0
        %v7975 = vadd.f32 %v7853, %v7974
        %v7976 = vpop.f32.mrf.mxu0
        %v7977 = vadd.f32 %v7857, %v7976
        %v7978 = vpop.f32.mrf.mxu0
        %v7979 = vadd.f32 %v7853, %v7978
        %v7980 = vpop.f32.mrf.mxu0
        %v7981 = vadd.f32 %v7857, %v7980
        %7982 = vmatprep.mubr.bf16.mxu0 0
        %7983 = vmatmul.mubr.bf16.gmra.mxu0 %v7831
        %v7984 = vpop.f32.mrf.mxu0
        %v7985 = vadd.f32 %v7853, %v7984
        %v7986 = vpop.f32.mrf.mxu0
        %v7987 = vadd.f32 %v7857, %v7986
        %v7988 = vpop.f32.mrf.mxu0
        %v7989 = vadd.f32 %v7853, %v7988
        %v7990 = vpop.f32.mrf.mxu0
        %v7991 = vadd.f32 %v7857, %v7990
        %7992 = vdwg.mxu0
        %v7993 = vmax.f32 %v7975, 0.0
        %v7994 = vmax.f32 %v7977, 0.0
        %v7995 = vmax.f32 %v7979, 0.0
        %v7996 = vmax.f32 %v7981, 0.0
        %v7997 = vmax.f32 %v7985, 0.0
        %v7998 = vmax.f32 %v7987, 0.0
        %v7999 = vmax.f32 %v7989, 0.0
        %v8000 = vmax.f32 %v7991, 0.0
        %v8001 = vpack.c.bf16 %v7995, %v7993
        %v8002 = vpack.c.bf16 %v7996, %v7994
        %v8003 = vpack.c.bf16 %v7999, %v7997
        %v8004 = vpack.c.bf16 %v8000, %v7998
        %v8005 = vld [vmem:[%s613] sm:$0xf]
        %v8006 = vld [vmem:[%s613 + $0x4] sm:$0xf]
        %v8007 = vld [vmem:[%s613 + $0x8] sm:$0xf]
        %v8008 = vld [vmem:[%s613 + $0xc] sm:$0xf]
        %v8009 = vld [vmem:[%s613 + $0x10] sm:$0xf]
        %v8010 = vld [vmem:[%s613 + $0x14] sm:$0xf]
        %v8011 = vld [vmem:[%s613 + $0x18] sm:$0xf]
        %v8012 = vld [vmem:[%s613 + $0x1c] sm:$0xf]
        %v8013 = vld [vmem:[%s613 + $0x20] sm:$0xf]
        %v8014 = vld [vmem:[%s613 + $0x24] sm:$0xf]
        %v8015 = vld [vmem:[%s613 + $0x28] sm:$0xf]
        %v8016 = vld [vmem:[%s613 + $0x2c] sm:$0xf]
        %v8017 = vld [vmem:[%s613 + $0x30] sm:$0xf]
        %v8018 = vld [vmem:[%s613 + $0x34] sm:$0xf]
        %v8019 = vld [vmem:[%s613 + $0x38] sm:$0xf]
        %v8020 = vld [vmem:[%s613 + $0x3c] sm:$0xf]
        %v8021 = vld [vmem:[%s613 + $0x40] sm:$0xf]
        %v8022 = vld [vmem:[%s613 + $0x44] sm:$0xf]
        %v8023 = vld [vmem:[%s613 + $0x48] sm:$0xf]
        %v8024 = vld [vmem:[%s613 + $0x4c] sm:$0xf]
        %v8025 = vld [vmem:[%s613 + $0x50] sm:$0xf]
        %v8026 = vld [vmem:[%s613 + $0x54] sm:$0xf]
        %v8027 = vld [vmem:[%s613 + $0x58] sm:$0xf]
        %v8028 = vld [vmem:[%s613 + $0x5c] sm:$0xf]
        %v8029 = vld [vmem:[%s613 + $0x60] sm:$0xf]
        %v8030 = vld [vmem:[%s613 + $0x64] sm:$0xf]
        %v8031 = vld [vmem:[%s613 + $0x68] sm:$0xf]
        %v8032 = vld [vmem:[%s613 + $0x6c] sm:$0xf]
        %v8033 = vld [vmem:[%s613 + $0x70] sm:$0xf]
        %v8034 = vld [vmem:[%s613 + $0x74] sm:$0xf]
        %v8035 = vld [vmem:[%s613 + $0x78] sm:$0xf]
        %v8036 = vld [vmem:[%s613 + $0x7c] sm:$0xf]
        %v8037 = vld [vmem:[%s708] sm:$0x1]
        %v8039 = vlaneseq
        %v8040 = vshrl.u32 %v8039, 7
        %v8041 = vsub.s32 0, %v8040
        %v8042 = vrot.slane %v8037, %v8041
        %v8076 = vunpack.c.l.b16 %v8005
        %v8077 = vunpack.c.l.b16 %v8006
        %v8078 = vunpack.c.l.b16 %v8007
        %v8079 = vunpack.c.l.b16 %v8008
        %v8080 = vunpack.c.l.b16 %v8009
        %v8081 = vunpack.c.l.b16 %v8010
        %v8082 = vunpack.c.l.b16 %v8011
        %v8083 = vunpack.c.l.b16 %v8012
        %v8084 = vunpack.c.l.b16 %v8013
        %v8085 = vunpack.c.l.b16 %v8014
        %v8086 = vunpack.c.l.b16 %v8015
        %v8087 = vunpack.c.l.b16 %v8016
        %v8088 = vunpack.c.l.b16 %v8017
        %v8089 = vunpack.c.l.b16 %v8018
        %v8090 = vunpack.c.l.b16 %v8019
        %v8091 = vunpack.c.l.b16 %v8020
        %v8092 = vunpack.c.l.b16 %v8021
        %v8093 = vunpack.c.l.b16 %v8022
        %v8094 = vunpack.c.l.b16 %v8023
        %v8095 = vunpack.c.l.b16 %v8024
        %v8096 = vunpack.c.l.b16 %v8025
        %v8097 = vunpack.c.l.b16 %v8026
        %v8098 = vunpack.c.l.b16 %v8027
        %v8099 = vunpack.c.l.b16 %v8028
        %v8100 = vunpack.c.l.b16 %v8029
        %v8101 = vunpack.c.l.b16 %v8030
        %v8102 = vunpack.c.l.b16 %v8031
        %v8103 = vunpack.c.l.b16 %v8032
        %v8104 = vunpack.c.l.b16 %v8033
        %v8105 = vunpack.c.l.b16 %v8034
        %v8106 = vunpack.c.l.b16 %v8035
        %v8107 = vunpack.c.l.b16 %v8036
        %v8108 = vpack.c.b16 %v8077, %v8076
        %v8109 = vpack.c.b16 %v8079, %v8078
        %v8110 = vpack.c.b16 %v8081, %v8080
        %v8111 = vpack.c.b16 %v8083, %v8082
        %v8112 = vpack.c.b16 %v8085, %v8084
        %v8113 = vpack.c.b16 %v8087, %v8086
        %v8114 = vpack.c.b16 %v8089, %v8088
        %v8115 = vpack.c.b16 %v8091, %v8090
        %v8116 = vpack.c.b16 %v8093, %v8092
        %v8117 = vpack.c.b16 %v8095, %v8094
        %v8118 = vpack.c.b16 %v8097, %v8096
        %v8119 = vpack.c.b16 %v8099, %v8098
        %v8120 = vpack.c.b16 %v8101, %v8100
        %v8121 = vpack.c.b16 %v8103, %v8102
        %v8122 = vpack.c.b16 %v8105, %v8104
        %v8123 = vpack.c.b16 %v8107, %v8106
        %8140 = vmatprep.subr.bf16.mxu0 0
        %8141 = vmatpush1.bf16.msra.mxu0 %v8115
        %8142 = vmatprep.subr.bf16.mxu0 0
        %8143 = vmatpush1.bf16.msra.mxu0 %v8114
        %8144 = vmatprep.subr.bf16.mxu0 0
        %8145 = vmatpush1.bf16.msra.mxu0 %v8113
        %8146 = vmatprep.subr.bf16.mxu0 0
        %8147 = vmatpush1.bf16.msra.mxu0 %v8112
        %8148 = vmatprep.subr.bf16.mxu0 0
        %8149 = vmatpush1.bf16.msra.mxu0 %v8111
        %8150 = vmatprep.subr.bf16.mxu0 0
        %8151 = vmatpush1.bf16.msra.mxu0 %v8110
        %8152 = vmatprep.subr.bf16.mxu0 0
        %8153 = vmatpush1.bf16.msra.mxu0 %v8109
        %8154 = vmatprep.subr.bf16.mxu0 0
        %8155 = vmatpush1.bf16.msra.mxu0 %v8108
        %8156 = vmatprep.subr.bf16.mxu0 0
        %8157 = vmatpush2.bf16.msra.mxu0 %v8123
        %8158 = vmatprep.subr.bf16.mxu0 0
        %8159 = vmatpush2.bf16.msra.mxu0 %v8122
        %8160 = vmatprep.subr.bf16.mxu0 0
        %8161 = vmatpush2.bf16.msra.mxu0 %v8121
        %8162 = vmatprep.subr.bf16.mxu0 0
        %8163 = vmatpush2.bf16.msra.mxu0 %v8120
        %8164 = vmatprep.subr.bf16.mxu0 0
        %8165 = vmatpush2.bf16.msra.mxu0 %v8119
        %8166 = vmatprep.subr.bf16.mxu0 0
        %8167 = vmatpush2.bf16.msra.mxu0 %v8118
        %8168 = vmatprep.subr.bf16.mxu0 0
        %8169 = vmatpush2.bf16.msra.mxu0 %v8117
        %8170 = vmatprep.subr.bf16.mxu0 0
        %8171 = vmatpush2.bf16.msra.mxu0 %v8116
        %8172 = vmatprep.mubr.bf16.mxu0 %v8002
        %8173 = vmatmul.mubr.bf16.gmra.mxu0 %v8001
        %v8174 = vpop.f32.mrf.mxu0
        %v8175 = vadd.f32 %v8042, %v8174
        %v8176 = vpop.f32.mrf.mxu0
        %v8177 = vpop.f32.mrf.mxu0
        %v8178 = vadd.f32 %v8042, %v8177
        %v8179 = vpop.f32.mrf.mxu0
        %8180 = vmatprep.mubr.bf16.mxu0 %v8004
        %8181 = vmatmul.mubr.bf16.gmra.mxu0 %v8003
        %v8182 = vpop.f32.mrf.mxu0
        %v8183 = vadd.f32 %v8042, %v8182
        %v8184 = vpop.f32.mrf.mxu0
        %v8185 = vpop.f32.mrf.mxu0
        %v8186 = vadd.f32 %v8042, %v8185
        %v8187 = vpop.f32.mrf.mxu0
        %8188 = vdwg.mxu0
        %v8189 = vadd.f32 %v7826, %v8175
        %v8190 = vadd.f32 %v7827, %v8178
        %v8191 = vadd.f32 %v7828, %v8183
        %v8192 = vadd.f32 %v7829, %v8186
        %v8193 = vadd.f32 %v8189, %v8190
        %v8194 = vadd.f32 %v8193, %v8191
        %v8195 = vadd.f32 %v8194, %v8192
        %v8196 = vrot.slane %v8195, 4
        %v8197 = vadd.f32 %v8195, %v8196
        %v8198 = vrot.slane %v8197, 2
        %v8199 = vadd.f32 %v8197, %v8198
        %v8200 = vrot.slane %v8199, 1
        %v8201 = vadd.f32 %v8199, %v8200
        %v8202 = vmul.f32 %v8201, 0.03125
        %v8203 = vsub.f32 %v8189, %v8202
        %v8204 = vsub.f32 %v8190, %v8202
        %v8205 = vsub.f32 %v8191, %v8202
        %v8206 = vsub.f32 %v8192, %v8202
        %v8207 = vmul.f32 %v8203, %v8203
        %v8208 = vmul.f32 %v8204, %v8204
        %v8209 = vmul.f32 %v8205, %v8205
        %v8210 = vmul.f32 %v8206, %v8206
        %v8211 = vadd.f32 %v8207, %v8208
        %v8212 = vadd.f32 %v8211, %v8209
        %v8213 = vadd.f32 %v8212, %v8210
        %v8214 = vrot.slane %v8213, 4
        %v8215 = vadd.f32 %v8213, %v8214
        %v8216 = vrot.slane %v8215, 2
        %v8217 = vadd.f32 %v8215, %v8216
        %v8218 = vrot.slane %v8217, 1
        %v8219 = vadd.f32 %v8217, %v8218
        %v8220 = vmul.f32 %v8219, 0.03125
        %v8221 = vadd.f32 %v8220, 1e-05
        %v8222 = vrsqrt.pop %v8221
        %v8223 = vmul.f32 %v8203, %v8222
        %v8224 = vmul.f32 %v8204, %v8222
        %v8225 = vmul.f32 %v8205, %v8222
        %v8226 = vmul.f32 %v8206, %v8222
        %v8227 = vld [vmem:[%s711] sm:$0x1]
        %v8229 = vlaneseq
        %v8230 = vshrl.u32 %v8229, 7
        %v8231 = vsub.s32 0, %v8230
        %v8232 = vrot.slane %v8227, %v8231
        %v8234 = vmul.f32 %v8223, %v8232
        %v8235 = vmul.f32 %v8224, %v8232
        %v8236 = vmul.f32 %v8225, %v8232
        %v8237 = vmul.f32 %v8226, %v8232
        %v8238 = vld [vmem:[%s714] sm:$0x1]
        %v8240 = vlaneseq
        %v8241 = vshrl.u32 %v8240, 7
        %v8242 = vsub.s32 0, %v8241
        %v8243 = vrot.slane %v8238, %v8242
        %v8245 = vadd.f32 %v8234, %v8243
        %v8246 = vadd.f32 %v8235, %v8243
        %v8247 = vadd.f32 %v8236, %v8243
        %v8248 = vadd.f32 %v8237, %v8243
        %8249 = vst [vmem:[#allocation2] sm:$0xff] %v8245
        %8250 = vst [vmem:[#allocation2 + $0x8] sm:$0xff] %v8246
        %8251 = vst [vmem:[#allocation2 + $0x10] sm:$0xff] %v8247
        %8252 = vst [vmem:[#allocation2 + $0x18] sm:$0xff] %v8248
        %p8253 = scmp.eq.s32.totalorder %s35, 1
        // Predicated region
        $region101: #{graph_attention_network.1} parent=71 // pred_check
          %p8254 = pneg %p8253
        $region102: #{graph_attention_network.1} parent=71 // pred_check_branch
          %8256 = sbr.rel (%p8254) target = $region104
        $region103: #{graph_attention_network.1} parent=71 // pred_region
          %8257 = vst [vmem:[#allocation14] sm:$0xff] %v8245
          %8258 = vst [vmem:[#allocation14 + $0x8] sm:$0xff] %v8246
          %8259 = vst [vmem:[#allocation14 + $0x10] sm:$0xff] %v8247
          %8260 = vst [vmem:[#allocation14 + $0x18] sm:$0xff] %v8248
        $region104: #{graph_attention_network.1} parent=71 // pred_fallthru
          _
        // Predicated region
        $region105: #{graph_attention_network.1} parent=71 // pred_check
          %p8261 = pneg %p381
        $region106: #{graph_attention_network.1} parent=71 // pred_check_branch
          %8263 = sbr.rel (%p8261) target = $region108
        $region107: #{graph_attention_network.1} parent=71 // pred_region
          %s8265 = ssub.s32 512, 512
          %8266 = vsyncadd [#allocation5], %s8265
          %s8267 = sshll.u32 [#allocation14], 4
          %s8268 = int_to_ptr.vmem [resolvable:$true] %s8267
          %8273 = dma.vmem_to_hbm [thread:$0]  %s8268, 512, %s13, [#allocation5], 128, 128, 8
        $region108: #{graph_attention_network.1} parent=71 // pred_fallthru
          _
        // Predicated region
        $region109: #{graph_attention_network.1} parent=71 // pred_check
          %p8274 = pneg %p381
        $region110: #{graph_attention_network.1} parent=71 // pred_check_branch
          %8276 = sbr.rel (%p8274) target = $region112
        $region111: #{graph_attention_network.1} parent=71 // pred_region
          %8277 = dma.done [#allocation5], 512
        $region112: #{graph_attention_network.1} parent=71 // pred_fallthru
          _
      $region72: #{graph_attention_network.1} parent=5 // pred_fallthru
        _
      %p8278 = scmp.le.s32.totalorder 2, %s30
      // Predicated region
      $region113: #{graph_attention_network.1} parent=5 // pred_check
        %p8279 = pneg %p8278
      $region114: #{graph_attention_network.1} parent=5 // pred_check_branch
        %8281 = sbr.rel (%p8279) target = $region116
      $region115: #{graph_attention_network.1} parent=5 // pred_region
        %s8282 = ssub.s32 %s30, 2
      $region116: #{graph_attention_network.1} parent=5 // pred_fallthru
        _
    $region6: #{graph_attention_network.1} parent=1 // loop_footer
      %s34 = sadd.s32 1, %s30
    $region7: #{graph_attention_network.1} parent=1 // loop_footer_branch
      %29 = sbr.rel target = $region3
    $region8: #{graph_attention_network.1} parent=1 // loop_exit
      _
    %8283 = vsyncpa [#allocation4], 1
    %s8284 = scalar_lea.sflag [#allocation4], 1
    %8285 = vsyncpa %s8284, 1
    %8286 = vsyncpa [#allocation7], 1
    %s8287 = scalar_lea.sflag [#allocation7], 1
    %8288 = vsyncpa %s8287, 1
    %8289 = vsyncpa [#allocation10], 1
    %s8290 = scalar_lea.sflag [#allocation10], 1
    %8291 = vsyncpa %s8290, 1
    %8292 = vsyncpa [#allocation13], 1
    %s8293 = scalar_lea.sflag [#allocation13], 1
    %8294 = vsyncpa %s8293, 1
    %8295 = vsyncpa [#allocation5], 1
    %s8296 = scalar_lea.sflag [#allocation5], 1
    %8297 = vsyncpa %s8296, 1

</llo_original>
